<compile_context>
chip_gen: v6e
topology: v6e:2x2x1
jax: 0.10.0
libtpu: 0.0.40
codegen_flags: <defaults>
</compile_context>

<pallas_src>
import functools

import jax
import jax.numpy as jnp
from jax.experimental import pallas as pl
from jax.experimental.pallas import tpu as pltpu

_VMEM = pl.BlockSpec(memory_space=pltpu.MemorySpace.VMEM)


# ----------------------------------------------------------------------------
# Pallas kernels
# ----------------------------------------------------------------------------
def _bert_concat_kernel(x_ref, w_ref, b_ref, o_ref):
    """(M, 399) @ (399, 35) + bias  ==  [x[:,0:13], bert_mlp(x[:,13:397]), x[:,397:399]]."""
    x = x_ref[...].astype(jnp.bfloat16)
    o_ref[...] = jnp.dot(x, w_ref[...], preferred_element_type=jnp.float32) + b_ref[...]


def _conv_bn_relu_kernel(xe_ref, xo_ref, w0_ref, w1_ref, w2_ref, b_ref, o_ref,
                         *, batch, ho):
    """Fused Conv(3x3,s2,p1)+BN+ReLU as 3 banded matmuls over H-parity row slabs.

    xe_ref/xo_ref: (B, He/Ho_rows, Wp*Cin) f32 -- even / odd padded input rows.
    w*_ref:        (Wp*Cin, Wo*Cout) bf16     -- banded weights for kh = 0,1,2.
    b_ref:         (1, Wo*Cout) f32           -- BN-folded bias, tiled over Wo.
    o_ref:         (B, Ho, Wo*Cout) f32       -- row-flattened NHWC output.
    """
    w0, w1, w2 = w0_ref[...], w1_ref[...], w2_ref[...]
    b = b_ref[...]
    for i in range(batch):                      # static unroll (batch is tiny)
        xe = xe_ref[i]                          # (He, Wp*Cin) f32
        xo = xo_ref[i]
        acc = jnp.dot(xe[0:ho].astype(jnp.bfloat16), w0,
                      preferred_element_type=jnp.float32)
        acc = acc + jnp.dot(xo[0:ho].astype(jnp.bfloat16), w1,
                            preferred_element_type=jnp.float32)
        acc = acc + jnp.dot(xe[1:ho + 1].astype(jnp.bfloat16), w2,
                            preferred_element_type=jnp.float32)
        o_ref[i] = jnp.maximum(acc + b, 0.0)


def _head_softmax_kernel(x_ref, *refs):
    """Fused last_mlp..last_mlp5 (+ReLUs) + softmax.  refs = (w0,b0,...,w5,b5,out)."""
    o_ref = refs[-1]
    layers = (len(refs) - 1) // 2
    h = x_ref[...]
    for i in range(layers):
        w = refs[2 * i][...]
        b = refs[2 * i + 1][...]
        h = jnp.dot(h.astype(jnp.bfloat16), w,
                    preferred_element_type=jnp.float32) + b
        if i < layers - 1:
            h = jnp.maximum(h, 0.0)
    m = jnp.max(h, axis=-1, keepdims=True)
    e = jnp.exp(h - m)
    o_ref[...] = e / jnp.sum(e, axis=-1, keepdims=True)


# ----------------------------------------------------------------------------
# pallas_call wrappers
# ----------------------------------------------------------------------------
def pallas_bert_concat(x, w, b):
    m, f = x.shape
    n = w.shape[1]
    if m % 16 == 0:          # shard rows over a 2-wide parallel grid (both TCs on v7x)
        gm, bm = 2, m // 2
    else:
        gm, bm = 1, m
    return pl.pallas_call(
        _bert_concat_kernel,
        out_shape=jax.ShapeDtypeStruct((m, n), jnp.float32),
        grid=(gm,),
        in_specs=[pl.BlockSpec((bm, f), lambda i: (i, 0)),
                  pl.BlockSpec((f, n), lambda i: (0, 0)),
                  pl.BlockSpec((1, n), lambda i: (0, 0))],
        out_specs=pl.BlockSpec((bm, n), lambda i: (i, 0)),
        compiler_params=pltpu.CompilerParams(dimension_semantics=("parallel",)),
    )(x, w, b)


def pallas_conv(xe, xo, w0, w1, w2, b, *, ho):
    batch = xe.shape[0]
    woc = w0.shape[1]
    return pl.pallas_call(
        functools.partial(_conv_bn_relu_kernel, batch=batch, ho=ho),
        out_shape=jax.ShapeDtypeStruct((batch, ho, woc), jnp.float32),
        in_specs=[_VMEM] * 6,
        out_specs=_VMEM,
    )(xe, xo, w0, w1, w2, b)


def pallas_head(x, head):
    args = [x]
    for wgt, b in head:
        args.extend((wgt, b))
    n = head[-1][0].shape[1]
    return pl.pallas_call(
        _head_softmax_kernel,
        out_shape=jax.ShapeDtypeStruct((x.shape[0], n), jnp.float32),
        in_specs=[_VMEM] * len(args),
        out_specs=_VMEM,
    )(*args)


# ----------------------------------------------------------------------------
# Deterministic parameter init (shapes from RerankModel.__init__)
# ----------------------------------------------------------------------------
def init_params(key):
    keys = iter(jax.random.split(key, 32))

    def linear(din, dout):
        s = 1.0 / jnp.sqrt(jnp.float32(din))
        w = jax.random.uniform(next(keys), (din, dout), jnp.float32, -s, s)
        b = jax.random.uniform(next(keys), (dout,), jnp.float32, -s, s)
        return (w, b)

    def conv(cin, cout, k=3):
        s = 1.0 / jnp.sqrt(jnp.float32(cin * k * k))
        return dict(
            w=jax.random.uniform(next(keys), (k, k, cin, cout), jnp.float32, -s, s),
            b=jax.random.uniform(next(keys), (cout,), jnp.float32, -s, s),
            gamma=jnp.ones((cout,), jnp.float32),
            beta=jnp.zeros((cout,), jnp.float32),
            mean=jnp.zeros((cout,), jnp.float32),
            var=jnp.ones((cout,), jnp.float32),
        )

    return dict(
        mlp=linear(384, 100), mlp1=linear(100, 50), mlp2=linear(50, 20),
        conv1=conv(35, 32), conv2=conv(32, 64), conv3=conv(64, 128), conv4=conv(128, 128),
        last_mlp=linear(896, 640), last_mlp1=linear(640, 384), last_mlp2=linear(384, 120),
        last_mlp3=linear(120, 50), last_mlp4=linear(50, 20), last_mlp5=linear(20, 2),
    )


# ----------------------------------------------------------------------------
# One-time parameter folding (algebraic collapses / banding / permutations)
# ----------------------------------------------------------------------------
def fold_params(params, x_shape, eps=1e-5):
    b_, h0, w0_, f = x_shape
    fd = {}

    # bert MLP chain collapse (no nonlinearities between mlp/mlp1/mlp2) + concat fold.
    w0, b0 = params["mlp"]
    w1, b1 = params["mlp1"]
    w2, b2 = params["mlp2"]
    wb = w0 @ w1 @ w2                          # (384, 20)
    bb = (b0 @ w1 + b1) @ w2 + b2              # (20,)
    wcat = jnp.zeros((f, 35), jnp.float32)
    wcat = wcat.at[0:13, 0:13].set(jnp.eye(13, dtype=jnp.float32))
    wcat = wcat.at[13:f - 2, 13:33].set(wb)
    wcat = wcat.at[f - 2:f, 33:35].set(jnp.eye(2, dtype=jnp.float32))
    bcat = jnp.zeros((35,), jnp.float32).at[13:33].set(bb)
    fd["bert_w"] = wcat.astype(jnp.bfloat16)
    fd["bert_b"] = bcat.reshape(1, 35)

    # Conv layers: fold BN (inference mode), band the 3x3/stride-2 W-taps.
    h, w = h0, w0_
    convs = []
    for name in ("conv1", "conv2", "conv3", "conv4"):
        p = params[name]
        _, _, cin, cout = p["w"].shape
        scale = p["gamma"] / jnp.sqrt(p["var"] + eps)
        w_eff = p["w"] * scale                               # (3,3,cin,cout)
        b_eff = (p["b"] - p["mean"]) * scale + p["beta"]     # (cout,)
        wp = w + 2
        ho, wo = (h - 1) // 2 + 1, (w - 1) // 2 + 1
        taps = []
        for kh in range(3):
            big = jnp.zeros((wp, cin, wo, cout), jnp.float32)
            for j in range(wo):
                big = big.at[2 * j:2 * j + 3, :, j, :].set(w_eff[kh])
            taps.append(big.reshape(wp * cin, wo * cout).astype(jnp.bfloat16))
        convs.append(dict(w0=taps[0], w1=taps[1], w2=taps[2],
                          b=jnp.tile(b_eff, (wo,)).reshape(1, wo * cout)))
        h, w = ho, wo
    fd["convs"] = convs

    # Head: permute last_mlp rows so it consumes the NHWC row-flattened conv4
    # output directly (equivalent to torch's NCHW .view(B,-1) before Linear).
    c4 = params["conv4"]["w"].shape[3]
    h4, w4 = h, w
    assert h4 * w4 * c4 == params["last_mlp"][0].shape[0], "spatial dims must yield 896 feats"
    idx = jnp.arange(h4 * w4 * c4)
    hh, rem = idx // (w4 * c4), idx % (w4 * c4)
    ww, cc = rem // c4, rem % c4
    perm = cc * (h4 * w4) + hh * w4 + ww
    wlm, blm = params["last_mlp"]
    head = [(wlm[perm, :].astype(jnp.bfloat16), blm.reshape(1, -1))]
    for name in ("last_mlp1", "last_mlp2", "last_mlp3", "last_mlp4", "last_mlp5"):
        wi, bi = params[name]
        head.append((wi.astype(jnp.bfloat16), bi.reshape(1, -1)))
    fd["head"] = head
    return fd


# ----------------------------------------------------------------------------
# Forward pass (mirrors RerankModel.forward)
# ----------------------------------------------------------------------------
def rerank_forward(folded, x1):
    b, h, w, f = x1.shape                                    # x1: (B, H, W, 399)

    # Fused bert-MLP + channel concat: one 399->35 matmul over B*H*W rows.
    concat = pallas_bert_concat(x1.reshape(b * h * w, f),
                                folded["bert_w"], folded["bert_b"])   # (B*H*W, 35)

    # Conv stack kept in row-flattened NHWC layout (B, H, W*C).
    feat = concat.reshape(b, h, w * 35)
    for layer in folded["convs"]:
        wp = w + 2
        ho, wo = (h - 1) // 2 + 1, (w - 1) // 2 + 1
        cin = layer["w0"].shape[0] // wp
        rows = jnp.pad(feat, ((0, 0), (1, 1), (cin, cin)))   # H pad (rows) + W pad (lanes)
        xe, xo = rows[:, 0::2, :], rows[:, 1::2, :]          # H-parity split
        feat = pallas_conv(xe, xo, layer["w0"], layer["w1"], layer["w2"],
                           layer["b"], ho=ho)                # (B, Ho, Wo*Cout)
        h, w = ho, wo

    # NHWC row-flatten; the NCHW .view(B,-1) ordering is folded into the head weight.
    flat = feat.reshape(b, -1)                               # (B, 896)
    return pallas_head(flat, folded["head"])                 # (B, 2), softmax rows


if __name__ == "__main__":
    key = jax.random.PRNGKey(0)
    pkey, xkey = jax.random.split(key)
    params = init_params(pkey)

    # Spatial dims chosen so the conv stack yields 128*7*1 = 896 features,
    # matching last_mlp's in_features (torch constraint): (2, 100, 10, 399).
    x1 = jax.random.normal(xkey, (2, 100, 10, 399), dtype=jnp.float32)

    folded = fold_params(params, x1.shape)
    out = jax.jit(rerank_forward)(folded, x1)
    out = jax.block_until_ready(out)

    assert out.shape == (2, 2)
    assert jnp.allclose(jnp.sum(out, axis=1), 1.0, atol=1e-5)   # softmax rows sum to 1
    print("KERNEL_OK")
</pallas_src>

<mosaic_0001>
module attributes {stable_mosaic.version = 11 : i64} {
  func.func @_bert_concat_kernel(%arg0: i32, %arg1: memref<1000x399xf32, #tpu.memory_space<vmem>>, %arg2: memref<399x35xbf16, #tpu.memory_space<vmem>>, %arg3: memref<1x35xf32, #tpu.memory_space<vmem>>, %arg4: memref<1000x35xf32, #tpu.memory_space<vmem>>) attributes {dimension_semantics = [#tpu.dimension_semantics<parallel>], iteration_bounds = array<i64: 2>, scalar_prefetch = 0 : i64, scratch_operands = 0 : i64, tpu.core_type = #tpu.core_type<tc>, window_params = [{transform_indices = @transform_0, window_bounds = array<i64: 1000, 399>}, {pipeline_mode = #tpu.pipeline_mode<synchronous>, transform_indices = @transform_1, window_bounds = array<i64: 399, 35>}, {pipeline_mode = #tpu.pipeline_mode<synchronous>, transform_indices = @transform_2, window_bounds = array<i64: 1, 35>}, {transform_indices = @transform_3, window_bounds = array<i64: 1000, 35>}]} {
    %c0 = arith.constant 0 : index
    %c0_0 = arith.constant 0 : index
    %0 = vector.load %arg1[%c0, %c0_0] : memref<1000x399xf32, #tpu.memory_space<vmem>>, vector<1000x399xf32>
    %1 = arith.truncf %0 : vector<1000x399xf32> to vector<1000x399xbf16>
    %c0_1 = arith.constant 0 : index
    %c0_2 = arith.constant 0 : index
    %2 = vector.load %arg2[%c0_1, %c0_2] : memref<399x35xbf16, #tpu.memory_space<vmem>>, vector<399x35xbf16>
    %cst = arith.constant dense<0.000000e+00> : vector<1000x35xf32>
    %3 = tpu.matmul %1, %2, %cst {dimension_numbers = #tpu.dot_dimension_numbers<[1], [0], [0], [1], [0, 0, 1, 1], [], []>} : vector<1000x399xbf16>, vector<399x35xbf16>, vector<1000x35xf32> -> vector<1000x35xf32>
    %c0_3 = arith.constant 0 : index
    %c0_4 = arith.constant 0 : index
    %4 = vector.load %arg3[%c0_3, %c0_4] : memref<1x35xf32, #tpu.memory_space<vmem>>, vector<1x35xf32>
    %5 = vector.broadcast %4 : vector<1x35xf32> to vector<1000x35xf32>
    %6 = arith.addf %3, %5 : vector<1000x35xf32>
    %c0_5 = arith.constant 0 : index
    %c0_6 = arith.constant 0 : index
    %7 = vector.load %arg4[%c0_5, %c0_6] : memref<1000x35xf32, #tpu.memory_space<vmem>>, vector<1000x35xf32>
    tpu.vector_store %arg4[%c0_5, %c0_6], %6 {strides = array<i32>} : memref<1000x35xf32, #tpu.memory_space<vmem>>, vector<1000x35xf32>,
    return
  }
  func.func @transform_0(%arg0: i32) -> (i32, i32) {
    %c0_i32 = arith.constant 0 : i32
    %c0_i32_0 = arith.constant 0 : i32
    return %arg0, %c0_i32 : i32, i32
  }
  func.func @transform_1(%arg0: i32) -> (i32, i32) {
    %c0_i32 = arith.constant 0 : i32
    %c0_i32_0 = arith.constant 0 : i32
    %c0_i32_1 = arith.constant 0 : i32
    return %c0_i32, %c0_i32_0 : i32, i32
  }
  func.func @transform_2(%arg0: i32) -> (i32, i32) {
    %c0_i32 = arith.constant 0 : i32
    %c0_i32_0 = arith.constant 0 : i32
    %c0_i32_1 = arith.constant 0 : i32
    return %c0_i32, %c0_i32_0 : i32, i32
  }
  func.func @transform_3(%arg0: i32) -> (i32, i32) {
    %c0_i32 = arith.constant 0 : i32
    %c0_i32_0 = arith.constant 0 : i32
    return %arg0, %c0_i32 : i32, i32
  }
}

module attributes {stable_mosaic.version = 11 : i64} {
  func.func @_conv_bn_relu_kernel(%arg0: memref<2x51x420xf32, #tpu.memory_space<vmem>>, %arg1: memref<2x51x420xf32, #tpu.memory_space<vmem>>, %arg2: memref<420x160xbf16, #tpu.memory_space<vmem>>, %arg3: memref<420x160xbf16, #tpu.memory_space<vmem>>, %arg4: memref<420x160xbf16, #tpu.memory_space<vmem>>, %arg5: memref<1x160xf32, #tpu.memory_space<vmem>>, %arg6: memref<2x50x160xf32, #tpu.memory_space<vmem>>) attributes {dimension_semantics = [], scalar_prefetch = 0 : i64, scratch_operands = 0 : i64, tpu.core_type = #tpu.core_type<tc>} {
    %c0 = arith.constant 0 : index
    %c0_0 = arith.constant 0 : index
    %0 = vector.load %arg2[%c0, %c0_0] : memref<420x160xbf16, #tpu.memory_space<vmem>>, vector<420x160xbf16>
    %c0_1 = arith.constant 0 : index
    %c0_2 = arith.constant 0 : index
    %1 = vector.load %arg3[%c0_1, %c0_2] : memref<420x160xbf16, #tpu.memory_space<vmem>>, vector<420x160xbf16>
    %c0_3 = arith.constant 0 : index
    %c0_4 = arith.constant 0 : index
    %2 = vector.load %arg4[%c0_3, %c0_4] : memref<420x160xbf16, #tpu.memory_space<vmem>>, vector<420x160xbf16>
    %c0_5 = arith.constant 0 : index
    %c0_6 = arith.constant 0 : index
    %3 = vector.load %arg5[%c0_5, %c0_6] : memref<1x160xf32, #tpu.memory_space<vmem>>, vector<1x160xf32>
    %c0_7 = arith.constant 0 : index
    %c0_8 = arith.constant 0 : index
    %c0_9 = arith.constant 0 : index
    %4 = vector.load %arg0[%c0_7, %c0_8, %c0_9] : memref<2x51x420xf32, #tpu.memory_space<vmem>>, vector<1x51x420xf32>
    %5 = vector.shape_cast %4 : vector<1x51x420xf32> to vector<51x420xf32>
    %c0_10 = arith.constant 0 : index
    %c0_11 = arith.constant 0 : index
    %c0_12 = arith.constant 0 : index
    %6 = vector.load %arg1[%c0_10, %c0_11, %c0_12] : memref<2x51x420xf32, #tpu.memory_space<vmem>>, vector<1x51x420xf32>
    %7 = vector.shape_cast %6 : vector<1x51x420xf32> to vector<51x420xf32>
    %8 = vector.extract_strided_slice %5 {offsets = [0, 0], sizes = [50, 420], strides = [1, 1]} : vector<51x420xf32> to vector<50x420xf32>
    %9 = arith.truncf %8 : vector<50x420xf32> to vector<50x420xbf16>
    %cst = arith.constant dense<0.000000e+00> : vector<50x160xf32>
    %10 = tpu.matmul %9, %0, %cst {dimension_numbers = #tpu.dot_dimension_numbers<[1], [0], [0], [1], [0, 0, 1, 1], [], []>} : vector<50x420xbf16>, vector<420x160xbf16>, vector<50x160xf32> -> vector<50x160xf32>
    %11 = vector.extract_strided_slice %7 {offsets = [0, 0], sizes = [50, 420], strides = [1, 1]} : vector<51x420xf32> to vector<50x420xf32>
    %12 = arith.truncf %11 : vector<50x420xf32> to vector<50x420xbf16>
    %cst_13 = arith.constant dense<0.000000e+00> : vector<50x160xf32>
    %13 = tpu.matmul %12, %1, %cst_13 {dimension_numbers = #tpu.dot_dimension_numbers<[1], [0], [0], [1], [0, 0, 1, 1], [], []>} : vector<50x420xbf16>, vector<420x160xbf16>, vector<50x160xf32> -> vector<50x160xf32>
    %14 = arith.addf %10, %13 : vector<50x160xf32>
    %15 = vector.extract_strided_slice %5 {offsets = [1, 0], sizes = [50, 420], strides = [1, 1]} : vector<51x420xf32> to vector<50x420xf32>
    %16 = arith.truncf %15 : vector<50x420xf32> to vector<50x420xbf16>
    %cst_14 = arith.constant dense<0.000000e+00> : vector<50x160xf32>
    %17 = tpu.matmul %16, %2, %cst_14 {dimension_numbers = #tpu.dot_dimension_numbers<[1], [0], [0], [1], [0, 0, 1, 1], [], []>} : vector<50x420xbf16>, vector<420x160xbf16>, vector<50x160xf32> -> vector<50x160xf32>
    %18 = arith.addf %14, %17 : vector<50x160xf32>
    %19 = vector.broadcast %3 : vector<1x160xf32> to vector<50x160xf32>
    %20 = arith.addf %18, %19 : vector<50x160xf32>
    %cst_15 = arith.constant 0.000000e+00 : f32
    %21 = vector.broadcast %cst_15 : f32 to vector<50x160xf32>
    %22 = arith.maximumf %20, %21 : vector<50x160xf32>
    %c0_16 = arith.constant 0 : index
    %c0_17 = arith.constant 0 : index
    %c0_18 = arith.constant 0 : index
    %23 = vector.load %arg6[%c0_16, %c0_17, %c0_18] : memref<2x50x160xf32, #tpu.memory_space<vmem>>, vector<1x50x160xf32>
    %24 = vector.shape_cast %23 : vector<1x50x160xf32> to vector<50x160xf32>
    %25 = vector.shape_cast %22 : vector<50x160xf32> to vector<1x50x160xf32>
    tpu.vector_store %arg6[%c0_16, %c0_17, %c0_18], %25 {strides = array<i32>} : memref<2x50x160xf32, #tpu.memory_space<vmem>>, vector<1x50x160xf32>,
    %c1 = arith.constant 1 : index
    %c0_19 = arith.constant 0 : index
    %c0_20 = arith.constant 0 : index
    %26 = vector.load %arg0[%c1, %c0_19, %c0_20] : memref<2x51x420xf32, #tpu.memory_space<vmem>>, vector<1x51x420xf32>
    %27 = vector.shape_cast %26 : vector<1x51x420xf32> to vector<51x420xf32>
    %c1_21 = arith.constant 1 : index
    %c0_22 = arith.constant 0 : index
    %c0_23 = arith.constant 0 : index
    %28 = vector.load %arg1[%c1_21, %c0_22, %c0_23] : memref<2x51x420xf32, #tpu.memory_space<vmem>>, vector<1x51x420xf32>
    %29 = vector.shape_cast %28 : vector<1x51x420xf32> to vector<51x420xf32>
    %30 = vector.extract_strided_slice %27 {offsets = [0, 0], sizes = [50, 420], strides = [1, 1]} : vector<51x420xf32> to vector<50x420xf32>
    %31 = arith.truncf %30 : vector<50x420xf32> to vector<50x420xbf16>
    %cst_24 = arith.constant dense<0.000000e+00> : vector<50x160xf32>
    %32 = tpu.matmul %31, %0, %cst_24 {dimension_numbers = #tpu.dot_dimension_numbers<[1], [0], [0], [1], [0, 0, 1, 1], [], []>} : vector<50x420xbf16>, vector<420x160xbf16>, vector<50x160xf32> -> vector<50x160xf32>
    %33 = vector.extract_strided_slice %29 {offsets = [0, 0], sizes = [50, 420], strides = [1, 1]} : vector<51x420xf32> to vector<50x420xf32>
    %34 = arith.truncf %33 : vector<50x420xf32> to vector<50x420xbf16>
    %cst_25 = arith.constant dense<0.000000e+00> : vector<50x160xf32>
    %35 = tpu.matmul %34, %1, %cst_25 {dimension_numbers = #tpu.dot_dimension_numbers<[1], [0], [0], [1], [0, 0, 1, 1], [], []>} : vector<50x420xbf16>, vector<420x160xbf16>, vector<50x160xf32> -> vector<50x160xf32>
    %36 = arith.addf %32, %35 : vector<50x160xf32>
    %37 = vector.extract_strided_slice %27 {offsets = [1, 0], sizes = [50, 420], strides = [1, 1]} : vector<51x420xf32> to vector<50x420xf32>
    %38 = arith.truncf %37 : vector<50x420xf32> to vector<50x420xbf16>
    %cst_26 = arith.constant dense<0.000000e+00> : vector<50x160xf32>
    %39 = tpu.matmul %38, %2, %cst_26 {dimension_numbers = #tpu.dot_dimension_numbers<[1], [0], [0], [1], [0, 0, 1, 1], [], []>} : vector<50x420xbf16>, vector<420x160xbf16>, vector<50x160xf32> -> vector<50x160xf32>
    %40 = arith.addf %36, %39 : vector<50x160xf32>
    %41 = vector.broadcast %3 : vector<1x160xf32> to vector<50x160xf32>
    %42 = arith.addf %40, %41 : vector<50x160xf32>
    %cst_27 = arith.constant 0.000000e+00 : f32
    %43 = vector.broadcast %cst_27 : f32 to vector<50x160xf32>
    %44 = arith.maximumf %42, %43 : vector<50x160xf32>
    %c1_28 = arith.constant 1 : index
    %c0_29 = arith.constant 0 : index
    %c0_30 = arith.constant 0 : index
    %45 = vector.load %arg6[%c1_28, %c0_29, %c0_30] : memref<2x50x160xf32, #tpu.memory_space<vmem>>, vector<1x50x160xf32>
    %46 = vector.shape_cast %45 : vector<1x50x160xf32> to vector<50x160xf32>
    %47 = vector.shape_cast %44 : vector<50x160xf32> to vector<1x50x160xf32>
    tpu.vector_store %arg6[%c1_28, %c0_29, %c0_30], %47 {strides = array<i32>} : memref<2x50x160xf32, #tpu.memory_space<vmem>>, vector<1x50x160xf32>,
    return
  }
}

module attributes {stable_mosaic.version = 11 : i64} {
  func.func @_conv_bn_relu_kernel(%arg0: memref<2x26x224xf32, #tpu.memory_space<vmem>>, %arg1: memref<2x26x224xf32, #tpu.memory_space<vmem>>, %arg2: memref<224x192xbf16, #tpu.memory_space<vmem>>, %arg3: memref<224x192xbf16, #tpu.memory_space<vmem>>, %arg4: memref<224x192xbf16, #tpu.memory_space<vmem>>, %arg5: memref<1x192xf32, #tpu.memory_space<vmem>>, %arg6: memref<2x25x192xf32, #tpu.memory_space<vmem>>) attributes {dimension_semantics = [], scalar_prefetch = 0 : i64, scratch_operands = 0 : i64, tpu.core_type = #tpu.core_type<tc>} {
    %c0 = arith.constant 0 : index
    %c0_0 = arith.constant 0 : index
    %0 = vector.load %arg2[%c0, %c0_0] : memref<224x192xbf16, #tpu.memory_space<vmem>>, vector<224x192xbf16>
    %c0_1 = arith.constant 0 : index
    %c0_2 = arith.constant 0 : index
    %1 = vector.load %arg3[%c0_1, %c0_2] : memref<224x192xbf16, #tpu.memory_space<vmem>>, vector<224x192xbf16>
    %c0_3 = arith.constant 0 : index
    %c0_4 = arith.constant 0 : index
    %2 = vector.load %arg4[%c0_3, %c0_4] : memref<224x192xbf16, #tpu.memory_space<vmem>>, vector<224x192xbf16>
    %c0_5 = arith.constant 0 : index
    %c0_6 = arith.constant 0 : index
    %3 = vector.load %arg5[%c0_5, %c0_6] : memref<1x192xf32, #tpu.memory_space<vmem>>, vector<1x192xf32>
    %c0_7 = arith.constant 0 : index
    %c0_8 = arith.constant 0 : index
    %c0_9 = arith.constant 0 : index
    %4 = vector.load %arg0[%c0_7, %c0_8, %c0_9] : memref<2x26x224xf32, #tpu.memory_space<vmem>>, vector<1x26x224xf32>
    %5 = vector.shape_cast %4 : vector<1x26x224xf32> to vector<26x224xf32>
    %c0_10 = arith.constant 0 : index
    %c0_11 = arith.constant 0 : index
    %c0_12 = arith.constant 0 : index
    %6 = vector.load %arg1[%c0_10, %c0_11, %c0_12] : memref<2x26x224xf32, #tpu.memory_space<vmem>>, vector<1x26x224xf32>
    %7 = vector.shape_cast %6 : vector<1x26x224xf32> to vector<26x224xf32>
    %8 = vector.extract_strided_slice %5 {offsets = [0, 0], sizes = [25, 224], strides = [1, 1]} : vector<26x224xf32> to vector<25x224xf32>
    %9 = arith.truncf %8 : vector<25x224xf32> to vector<25x224xbf16>
    %cst = arith.constant dense<0.000000e+00> : vector<25x192xf32>
    %10 = tpu.matmul %9, %0, %cst {dimension_numbers = #tpu.dot_dimension_numbers<[1], [0], [0], [1], [0, 0, 1, 1], [], []>} : vector<25x224xbf16>, vector<224x192xbf16>, vector<25x192xf32> -> vector<25x192xf32>
    %11 = vector.extract_strided_slice %7 {offsets = [0, 0], sizes = [25, 224], strides = [1, 1]} : vector<26x224xf32> to vector<25x224xf32>
    %12 = arith.truncf %11 : vector<25x224xf32> to vector<25x224xbf16>
    %cst_13 = arith.constant dense<0.000000e+00> : vector<25x192xf32>
    %13 = tpu.matmul %12, %1, %cst_13 {dimension_numbers = #tpu.dot_dimension_numbers<[1], [0], [0], [1], [0, 0, 1, 1], [], []>} : vector<25x224xbf16>, vector<224x192xbf16>, vector<25x192xf32> -> vector<25x192xf32>
    %14 = arith.addf %10, %13 : vector<25x192xf32>
    %15 = vector.extract_strided_slice %5 {offsets = [1, 0], sizes = [25, 224], strides = [1, 1]} : vector<26x224xf32> to vector<25x224xf32>
    %16 = arith.truncf %15 : vector<25x224xf32> to vector<25x224xbf16>
    %cst_14 = arith.constant dense<0.000000e+00> : vector<25x192xf32>
    %17 = tpu.matmul %16, %2, %cst_14 {dimension_numbers = #tpu.dot_dimension_numbers<[1], [0], [0], [1], [0, 0, 1, 1], [], []>} : vector<25x224xbf16>, vector<224x192xbf16>, vector<25x192xf32> -> vector<25x192xf32>
    %18 = arith.addf %14, %17 : vector<25x192xf32>
    %19 = vector.broadcast %3 : vector<1x192xf32> to vector<25x192xf32>
    %20 = arith.addf %18, %19 : vector<25x192xf32>
    %cst_15 = arith.constant 0.000000e+00 : f32
    %21 = vector.broadcast %cst_15 : f32 to vector<25x192xf32>
    %22 = arith.maximumf %20, %21 : vector<25x192xf32>
    %c0_16 = arith.constant 0 : index
    %c0_17 = arith.constant 0 : index
    %c0_18 = arith.constant 0 : index
    %23 = vector.load %arg6[%c0_16, %c0_17, %c0_18] : memref<2x25x192xf32, #tpu.memory_space<vmem>>, vector<1x25x192xf32>
    %24 = vector.shape_cast %23 : vector<1x25x192xf32> to vector<25x192xf32>
    %25 = vector.shape_cast %22 : vector<25x192xf32> to vector<1x25x192xf32>
    tpu.vector_store %arg6[%c0_16, %c0_17, %c0_18], %25 {strides = array<i32>} : memref<2x25x192xf32, #tpu.memory_space<vmem>>, vector<1x25x192xf32>,
    %c1 = arith.constant 1 : index
    %c0_19 = arith.constant 0 : index
    %c0_20 = arith.constant 0 : index
    %26 = vector.load %arg0[%c1, %c0_19, %c0_20] : memref<2x26x224xf32, #tpu.memory_space<vmem>>, vector<1x26x224xf32>
    %27 = vector.shape_cast %26 : vector<1x26x224xf32> to vector<26x224xf32>
    %c1_21 = arith.constant 1 : index
    %c0_22 = arith.constant 0 : index
    %c0_23 = arith.constant 0 : index
    %28 = vector.load %arg1[%c1_21, %c0_22, %c0_23] : memref<2x26x224xf32, #tpu.memory_space<vmem>>, vector<1x26x224xf32>
    %29 = vector.shape_cast %28 : vector<1x26x224xf32> to vector<26x224xf32>
    %30 = vector.extract_strided_slice %27 {offsets = [0, 0], sizes = [25, 224], strides = [1, 1]} : vector<26x224xf32> to vector<25x224xf32>
    %31 = arith.truncf %30 : vector<25x224xf32> to vector<25x224xbf16>
    %cst_24 = arith.constant dense<0.000000e+00> : vector<25x192xf32>
    %32 = tpu.matmul %31, %0, %cst_24 {dimension_numbers = #tpu.dot_dimension_numbers<[1], [0], [0], [1], [0, 0, 1, 1], [], []>} : vector<25x224xbf16>, vector<224x192xbf16>, vector<25x192xf32> -> vector<25x192xf32>
    %33 = vector.extract_strided_slice %29 {offsets = [0, 0], sizes = [25, 224], strides = [1, 1]} : vector<26x224xf32> to vector<25x224xf32>
    %34 = arith.truncf %33 : vector<25x224xf32> to vector<25x224xbf16>
    %cst_25 = arith.constant dense<0.000000e+00> : vector<25x192xf32>
    %35 = tpu.matmul %34, %1, %cst_25 {dimension_numbers = #tpu.dot_dimension_numbers<[1], [0], [0], [1], [0, 0, 1, 1], [], []>} : vector<25x224xbf16>, vector<224x192xbf16>, vector<25x192xf32> -> vector<25x192xf32>
    %36 = arith.addf %32, %35 : vector<25x192xf32>
    %37 = vector.extract_strided_slice %27 {offsets = [1, 0], sizes = [25, 224], strides = [1, 1]} : vector<26x224xf32> to vector<25x224xf32>
    %38 = arith.truncf %37 : vector<25x224xf32> to vector<25x224xbf16>
    %cst_26 = arith.constant dense<0.000000e+00> : vector<25x192xf32>
    %39 = tpu.matmul %38, %2, %cst_26 {dimension_numbers = #tpu.dot_dimension_numbers<[1], [0], [0], [1], [0, 0, 1, 1], [], []>} : vector<25x224xbf16>, vector<224x192xbf16>, vector<25x192xf32> -> vector<25x192xf32>
    %40 = arith.addf %36, %39 : vector<25x192xf32>
    %41 = vector.broadcast %3 : vector<1x192xf32> to vector<25x192xf32>
    %42 = arith.addf %40, %41 : vector<25x192xf32>
    %cst_27 = arith.constant 0.000000e+00 : f32
    %43 = vector.broadcast %cst_27 : f32 to vector<25x192xf32>
    %44 = arith.maximumf %42, %43 : vector<25x192xf32>
    %c1_28 = arith.constant 1 : index
    %c0_29 = arith.constant 0 : index
    %c0_30 = arith.constant 0 : index
    %45 = vector.load %arg6[%c1_28, %c0_29, %c0_30] : memref<2x25x192xf32, #tpu.memory_space<vmem>>, vector<1x25x192xf32>
    %46 = vector.shape_cast %45 : vector<1x25x192xf32> to vector<25x192xf32>
    %47 = vector.shape_cast %44 : vector<25x192xf32> to vector<1x25x192xf32>
    tpu.vector_store %arg6[%c1_28, %c0_29, %c0_30], %47 {strides = array<i32>} : memref<2x25x192xf32, #tpu.memory_space<vmem>>, vector<1x25x192xf32>,
    return
  }
}

module attributes {stable_mosaic.version = 11 : i64} {
  func.func @_conv_bn_relu_kernel(%arg0: memref<2x14x320xf32, #tpu.memory_space<vmem>>, %arg1: memref<2x13x320xf32, #tpu.memory_space<vmem>>, %arg2: memref<320x256xbf16, #tpu.memory_space<vmem>>, %arg3: memref<320x256xbf16, #tpu.memory_space<vmem>>, %arg4: memref<320x256xbf16, #tpu.memory_space<vmem>>, %arg5: memref<1x256xf32, #tpu.memory_space<vmem>>, %arg6: memref<2x13x256xf32, #tpu.memory_space<vmem>>) attributes {dimension_semantics = [], scalar_prefetch = 0 : i64, scratch_operands = 0 : i64, tpu.core_type = #tpu.core_type<tc>} {
    %c0 = arith.constant 0 : index
    %c0_0 = arith.constant 0 : index
    %0 = vector.load %arg2[%c0, %c0_0] : memref<320x256xbf16, #tpu.memory_space<vmem>>, vector<320x256xbf16>
    %c0_1 = arith.constant 0 : index
    %c0_2 = arith.constant 0 : index
    %1 = vector.load %arg3[%c0_1, %c0_2] : memref<320x256xbf16, #tpu.memory_space<vmem>>, vector<320x256xbf16>
    %c0_3 = arith.constant 0 : index
    %c0_4 = arith.constant 0 : index
    %2 = vector.load %arg4[%c0_3, %c0_4] : memref<320x256xbf16, #tpu.memory_space<vmem>>, vector<320x256xbf16>
    %c0_5 = arith.constant 0 : index
    %c0_6 = arith.constant 0 : index
    %3 = vector.load %arg5[%c0_5, %c0_6] : memref<1x256xf32, #tpu.memory_space<vmem>>, vector<1x256xf32>
    %c0_7 = arith.constant 0 : index
    %c0_8 = arith.constant 0 : index
    %c0_9 = arith.constant 0 : index
    %4 = vector.load %arg0[%c0_7, %c0_8, %c0_9] : memref<2x14x320xf32, #tpu.memory_space<vmem>>, vector<1x14x320xf32>
    %5 = vector.shape_cast %4 : vector<1x14x320xf32> to vector<14x320xf32>
    %c0_10 = arith.constant 0 : index
    %c0_11 = arith.constant 0 : index
    %c0_12 = arith.constant 0 : index
    %6 = vector.load %arg1[%c0_10, %c0_11, %c0_12] : memref<2x13x320xf32, #tpu.memory_space<vmem>>, vector<1x13x320xf32>
    %7 = vector.shape_cast %6 : vector<1x13x320xf32> to vector<13x320xf32>
    %8 = vector.extract_strided_slice %5 {offsets = [0, 0], sizes = [13, 320], strides = [1, 1]} : vector<14x320xf32> to vector<13x320xf32>
    %9 = arith.truncf %8 : vector<13x320xf32> to vector<13x320xbf16>
    %cst = arith.constant dense<0.000000e+00> : vector<13x256xf32>
    %10 = tpu.matmul %9, %0, %cst {dimension_numbers = #tpu.dot_dimension_numbers<[1], [0], [0], [1], [0, 0, 1, 1], [], []>} : vector<13x320xbf16>, vector<320x256xbf16>, vector<13x256xf32> -> vector<13x256xf32>
    %11 = arith.truncf %7 : vector<13x320xf32> to vector<13x320xbf16>
    %cst_13 = arith.constant dense<0.000000e+00> : vector<13x256xf32>
    %12 = tpu.matmul %11, %1, %cst_13 {dimension_numbers = #tpu.dot_dimension_numbers<[1], [0], [0], [1], [0, 0, 1, 1], [], []>} : vector<13x320xbf16>, vector<320x256xbf16>, vector<13x256xf32> -> vector<13x256xf32>
    %13 = arith.addf %10, %12 : vector<13x256xf32>
    %14 = vector.extract_strided_slice %5 {offsets = [1, 0], sizes = [13, 320], strides = [1, 1]} : vector<14x320xf32> to vector<13x320xf32>
    %15 = arith.truncf %14 : vector<13x320xf32> to vector<13x320xbf16>
    %cst_14 = arith.constant dense<0.000000e+00> : vector<13x256xf32>
    %16 = tpu.matmul %15, %2, %cst_14 {dimension_numbers = #tpu.dot_dimension_numbers<[1], [0], [0], [1], [0, 0, 1, 1], [], []>} : vector<13x320xbf16>, vector<320x256xbf16>, vector<13x256xf32> -> vector<13x256xf32>
    %17 = arith.addf %13, %16 : vector<13x256xf32>
    %18 = vector.broadcast %3 : vector<1x256xf32> to vector<13x256xf32>
    %19 = arith.addf %17, %18 : vector<13x256xf32>
    %cst_15 = arith.constant 0.000000e+00 : f32
    %20 = vector.broadcast %cst_15 : f32 to vector<13x256xf32>
    %21 = arith.maximumf %19, %20 : vector<13x256xf32>
    %c0_16 = arith.constant 0 : index
    %c0_17 = arith.constant 0 : index
    %c0_18 = arith.constant 0 : index
    %22 = vector.load %arg6[%c0_16, %c0_17, %c0_18] : memref<2x13x256xf32, #tpu.memory_space<vmem>>, vector<1x13x256xf32>
    %23 = vector.shape_cast %22 : vector<1x13x256xf32> to vector<13x256xf32>
    %24 = vector.shape_cast %21 : vector<13x256xf32> to vector<1x13x256xf32>
    tpu.vector_store %arg6[%c0_16, %c0_17, %c0_18], %24 {strides = array<i32>} : memref<2x13x256xf32, #tpu.memory_space<vmem>>, vector<1x13x256xf32>,
    %c1 = arith.constant 1 : index
    %c0_19 = arith.constant 0 : index
    %c0_20 = arith.constant 0 : index
    %25 = vector.load %arg0[%c1, %c0_19, %c0_20] : memref<2x14x320xf32, #tpu.memory_space<vmem>>, vector<1x14x320xf32>
    %26 = vector.shape_cast %25 : vector<1x14x320xf32> to vector<14x320xf32>
    %c1_21 = arith.constant 1 : index
    %c0_22 = arith.constant 0 : index
    %c0_23 = arith.constant 0 : index
    %27 = vector.load %arg1[%c1_21, %c0_22, %c0_23] : memref<2x13x320xf32, #tpu.memory_space<vmem>>, vector<1x13x320xf32>
    %28 = vector.shape_cast %27 : vector<1x13x320xf32> to vector<13x320xf32>
    %29 = vector.extract_strided_slice %26 {offsets = [0, 0], sizes = [13, 320], strides = [1, 1]} : vector<14x320xf32> to vector<13x320xf32>
    %30 = arith.truncf %29 : vector<13x320xf32> to vector<13x320xbf16>
    %cst_24 = arith.constant dense<0.000000e+00> : vector<13x256xf32>
    %31 = tpu.matmul %30, %0, %cst_24 {dimension_numbers = #tpu.dot_dimension_numbers<[1], [0], [0], [1], [0, 0, 1, 1], [], []>} : vector<13x320xbf16>, vector<320x256xbf16>, vector<13x256xf32> -> vector<13x256xf32>
    %32 = arith.truncf %28 : vector<13x320xf32> to vector<13x320xbf16>
    %cst_25 = arith.constant dense<0.000000e+00> : vector<13x256xf32>
    %33 = tpu.matmul %32, %1, %cst_25 {dimension_numbers = #tpu.dot_dimension_numbers<[1], [0], [0], [1], [0, 0, 1, 1], [], []>} : vector<13x320xbf16>, vector<320x256xbf16>, vector<13x256xf32> -> vector<13x256xf32>
    %34 = arith.addf %31, %33 : vector<13x256xf32>
    %35 = vector.extract_strided_slice %26 {offsets = [1, 0], sizes = [13, 320], strides = [1, 1]} : vector<14x320xf32> to vector<13x320xf32>
    %36 = arith.truncf %35 : vector<13x320xf32> to vector<13x320xbf16>
    %cst_26 = arith.constant dense<0.000000e+00> : vector<13x256xf32>
    %37 = tpu.matmul %36, %2, %cst_26 {dimension_numbers = #tpu.dot_dimension_numbers<[1], [0], [0], [1], [0, 0, 1, 1], [], []>} : vector<13x320xbf16>, vector<320x256xbf16>, vector<13x256xf32> -> vector<13x256xf32>
    %38 = arith.addf %34, %37 : vector<13x256xf32>
    %39 = vector.broadcast %3 : vector<1x256xf32> to vector<13x256xf32>
    %40 = arith.addf %38, %39 : vector<13x256xf32>
    %cst_27 = arith.constant 0.000000e+00 : f32
    %41 = vector.broadcast %cst_27 : f32 to vector<13x256xf32>
    %42 = arith.maximumf %40, %41 : vector<13x256xf32>
    %c1_28 = arith.constant 1 : index
    %c0_29 = arith.constant 0 : index
    %c0_30 = arith.constant 0 : index
    %43 = vector.load %arg6[%c1_28, %c0_29, %c0_30] : memref<2x13x256xf32, #tpu.memory_space<vmem>>, vector<1x13x256xf32>
    %44 = vector.shape_cast %43 : vector<1x13x256xf32> to vector<13x256xf32>
    %45 = vector.shape_cast %42 : vector<13x256xf32> to vector<1x13x256xf32>
    tpu.vector_store %arg6[%c1_28, %c0_29, %c0_30], %45 {strides = array<i32>} : memref<2x13x256xf32, #tpu.memory_space<vmem>>, vector<1x13x256xf32>,
    return
  }
}

module attributes {stable_mosaic.version = 11 : i64} {
  func.func @_conv_bn_relu_kernel(%arg0: memref<2x8x512xf32, #tpu.memory_space<vmem>>, %arg1: memref<2x7x512xf32, #tpu.memory_space<vmem>>, %arg2: memref<512x128xbf16, #tpu.memory_space<vmem>>, %arg3: memref<512x128xbf16, #tpu.memory_space<vmem>>, %arg4: memref<512x128xbf16, #tpu.memory_space<vmem>>, %arg5: memref<1x128xf32, #tpu.memory_space<vmem>>, %arg6: memref<2x7x128xf32, #tpu.memory_space<vmem>>) attributes {dimension_semantics = [], scalar_prefetch = 0 : i64, scratch_operands = 0 : i64, tpu.core_type = #tpu.core_type<tc>} {
    %c0 = arith.constant 0 : index
    %c0_0 = arith.constant 0 : index
    %0 = vector.load %arg2[%c0, %c0_0] : memref<512x128xbf16, #tpu.memory_space<vmem>>, vector<512x128xbf16>
    %c0_1 = arith.constant 0 : index
    %c0_2 = arith.constant 0 : index
    %1 = vector.load %arg3[%c0_1, %c0_2] : memref<512x128xbf16, #tpu.memory_space<vmem>>, vector<512x128xbf16>
    %c0_3 = arith.constant 0 : index
    %c0_4 = arith.constant 0 : index
    %2 = vector.load %arg4[%c0_3, %c0_4] : memref<512x128xbf16, #tpu.memory_space<vmem>>, vector<512x128xbf16>
    %c0_5 = arith.constant 0 : index
    %c0_6 = arith.constant 0 : index
    %3 = vector.load %arg5[%c0_5, %c0_6] : memref<1x128xf32, #tpu.memory_space<vmem>>, vector<1x128xf32>
    %c0_7 = arith.constant 0 : index
    %c0_8 = arith.constant 0 : index
    %c0_9 = arith.constant 0 : index
    %4 = vector.load %arg0[%c0_7, %c0_8, %c0_9] : memref<2x8x512xf32, #tpu.memory_space<vmem>>, vector<1x8x512xf32>
    %5 = vector.shape_cast %4 : vector<1x8x512xf32> to vector<8x512xf32>
    %c0_10 = arith.constant 0 : index
    %c0_11 = arith.constant 0 : index
    %c0_12 = arith.constant 0 : index
    %6 = vector.load %arg1[%c0_10, %c0_11, %c0_12] : memref<2x7x512xf32, #tpu.memory_space<vmem>>, vector<1x7x512xf32>
    %7 = vector.shape_cast %6 : vector<1x7x512xf32> to vector<7x512xf32>
    %8 = vector.extract_strided_slice %5 {offsets = [0, 0], sizes = [7, 512], strides = [1, 1]} : vector<8x512xf32> to vector<7x512xf32>
    %9 = arith.truncf %8 : vector<7x512xf32> to vector<7x512xbf16>
    %cst = arith.constant dense<0.000000e+00> : vector<7x128xf32>
    %10 = tpu.matmul %9, %0, %cst {dimension_numbers = #tpu.dot_dimension_numbers<[1], [0], [0], [1], [0, 0, 1, 1], [], []>} : vector<7x512xbf16>, vector<512x128xbf16>, vector<7x128xf32> -> vector<7x128xf32>
    %11 = arith.truncf %7 : vector<7x512xf32> to vector<7x512xbf16>
    %cst_13 = arith.constant dense<0.000000e+00> : vector<7x128xf32>
    %12 = tpu.matmul %11, %1, %cst_13 {dimension_numbers = #tpu.dot_dimension_numbers<[1], [0], [0], [1], [0, 0, 1, 1], [], []>} : vector<7x512xbf16>, vector<512x128xbf16>, vector<7x128xf32> -> vector<7x128xf32>
    %13 = arith.addf %10, %12 : vector<7x128xf32>
    %14 = vector.extract_strided_slice %5 {offsets = [1, 0], sizes = [7, 512], strides = [1, 1]} : vector<8x512xf32> to vector<7x512xf32>
    %15 = arith.truncf %14 : vector<7x512xf32> to vector<7x512xbf16>
    %cst_14 = arith.constant dense<0.000000e+00> : vector<7x128xf32>
    %16 = tpu.matmul %15, %2, %cst_14 {dimension_numbers = #tpu.dot_dimension_numbers<[1], [0], [0], [1], [0, 0, 1, 1], [], []>} : vector<7x512xbf16>, vector<512x128xbf16>, vector<7x128xf32> -> vector<7x128xf32>
    %17 = arith.addf %13, %16 : vector<7x128xf32>
    %18 = vector.broadcast %3 : vector<1x128xf32> to vector<7x128xf32>
    %19 = arith.addf %17, %18 : vector<7x128xf32>
    %cst_15 = arith.constant 0.000000e+00 : f32
    %20 = vector.broadcast %cst_15 : f32 to vector<7x128xf32>
    %21 = arith.maximumf %19, %20 : vector<7x128xf32>
    %c0_16 = arith.constant 0 : index
    %c0_17 = arith.constant 0 : index
    %c0_18 = arith.constant 0 : index
    %22 = vector.load %arg6[%c0_16, %c0_17, %c0_18] : memref<2x7x128xf32, #tpu.memory_space<vmem>>, vector<1x7x128xf32>
    %23 = vector.shape_cast %22 : vector<1x7x128xf32> to vector<7x128xf32>
    %24 = vector.shape_cast %21 : vector<7x128xf32> to vector<1x7x128xf32>
    tpu.vector_store %arg6[%c0_16, %c0_17, %c0_18], %24 {strides = array<i32>} : memref<2x7x128xf32, #tpu.memory_space<vmem>>, vector<1x7x128xf32>,
    %c1 = arith.constant 1 : index
    %c0_19 = arith.constant 0 : index
    %c0_20 = arith.constant 0 : index
    %25 = vector.load %arg0[%c1, %c0_19, %c0_20] : memref<2x8x512xf32, #tpu.memory_space<vmem>>, vector<1x8x512xf32>
    %26 = vector.shape_cast %25 : vector<1x8x512xf32> to vector<8x512xf32>
    %c1_21 = arith.constant 1 : index
    %c0_22 = arith.constant 0 : index
    %c0_23 = arith.constant 0 : index
    %27 = vector.load %arg1[%c1_21, %c0_22, %c0_23] : memref<2x7x512xf32, #tpu.memory_space<vmem>>, vector<1x7x512xf32>
    %28 = vector.shape_cast %27 : vector<1x7x512xf32> to vector<7x512xf32>
    %29 = vector.extract_strided_slice %26 {offsets = [0, 0], sizes = [7, 512], strides = [1, 1]} : vector<8x512xf32> to vector<7x512xf32>
    %30 = arith.truncf %29 : vector<7x512xf32> to vector<7x512xbf16>
    %cst_24 = arith.constant dense<0.000000e+00> : vector<7x128xf32>
    %31 = tpu.matmul %30, %0, %cst_24 {dimension_numbers = #tpu.dot_dimension_numbers<[1], [0], [0], [1], [0, 0, 1, 1], [], []>} : vector<7x512xbf16>, vector<512x128xbf16>, vector<7x128xf32> -> vector<7x128xf32>
    %32 = arith.truncf %28 : vector<7x512xf32> to vector<7x512xbf16>
    %cst_25 = arith.constant dense<0.000000e+00> : vector<7x128xf32>
    %33 = tpu.matmul %32, %1, %cst_25 {dimension_numbers = #tpu.dot_dimension_numbers<[1], [0], [0], [1], [0, 0, 1, 1], [], []>} : vector<7x512xbf16>, vector<512x128xbf16>, vector<7x128xf32> -> vector<7x128xf32>
    %34 = arith.addf %31, %33 : vector<7x128xf32>
    %35 = vector.extract_strided_slice %26 {offsets = [1, 0], sizes = [7, 512], strides = [1, 1]} : vector<8x512xf32> to vector<7x512xf32>
    %36 = arith.truncf %35 : vector<7x512xf32> to vector<7x512xbf16>
    %cst_26 = arith.constant dense<0.000000e+00> : vector<7x128xf32>
    %37 = tpu.matmul %36, %2, %cst_26 {dimension_numbers = #tpu.dot_dimension_numbers<[1], [0], [0], [1], [0, 0, 1, 1], [], []>} : vector<7x512xbf16>, vector<512x128xbf16>, vector<7x128xf32> -> vector<7x128xf32>
    %38 = arith.addf %34, %37 : vector<7x128xf32>
    %39 = vector.broadcast %3 : vector<1x128xf32> to vector<7x128xf32>
    %40 = arith.addf %38, %39 : vector<7x128xf32>
    %cst_27 = arith.constant 0.000000e+00 : f32
    %41 = vector.broadcast %cst_27 : f32 to vector<7x128xf32>
    %42 = arith.maximumf %40, %41 : vector<7x128xf32>
    %c1_28 = arith.constant 1 : index
    %c0_29 = arith.constant 0 : index
    %c0_30 = arith.constant 0 : index
    %43 = vector.load %arg6[%c1_28, %c0_29, %c0_30] : memref<2x7x128xf32, #tpu.memory_space<vmem>>, vector<1x7x128xf32>
    %44 = vector.shape_cast %43 : vector<1x7x128xf32> to vector<7x128xf32>
    %45 = vector.shape_cast %42 : vector<7x128xf32> to vector<1x7x128xf32>
    tpu.vector_store %arg6[%c1_28, %c0_29, %c0_30], %45 {strides = array<i32>} : memref<2x7x128xf32, #tpu.memory_space<vmem>>, vector<1x7x128xf32>,
    return
  }
}

module attributes {stable_mosaic.version = 11 : i64} {
  func.func @_head_softmax_kernel(%arg0: memref<2x896xf32, #tpu.memory_space<vmem>>, %arg1: memref<896x640xbf16, #tpu.memory_space<vmem>>, %arg2: memref<1x640xf32, #tpu.memory_space<vmem>>, %arg3: memref<640x384xbf16, #tpu.memory_space<vmem>>, %arg4: memref<1x384xf32, #tpu.memory_space<vmem>>, %arg5: memref<384x120xbf16, #tpu.memory_space<vmem>>, %arg6: memref<1x120xf32, #tpu.memory_space<vmem>>, %arg7: memref<120x50xbf16, #tpu.memory_space<vmem>>, %arg8: memref<1x50xf32, #tpu.memory_space<vmem>>, %arg9: memref<50x20xbf16, #tpu.memory_space<vmem>>, %arg10: memref<1x20xf32, #tpu.memory_space<vmem>>, %arg11: memref<20x2xbf16, #tpu.memory_space<vmem>>, %arg12: memref<1x2xf32, #tpu.memory_space<vmem>>, %arg13: memref<2x2xf32, #tpu.memory_space<vmem>>) attributes {dimension_semantics = [], scalar_prefetch = 0 : i64, scratch_operands = 0 : i64, tpu.core_type = #tpu.core_type<tc>} {
    %c0 = arith.constant 0 : index
    %c0_0 = arith.constant 0 : index
    %0 = vector.load %arg0[%c0, %c0_0] : memref<2x896xf32, #tpu.memory_space<vmem>>, vector<2x896xf32>
    %c0_1 = arith.constant 0 : index
    %c0_2 = arith.constant 0 : index
    %1 = vector.load %arg1[%c0_1, %c0_2] : memref<896x640xbf16, #tpu.memory_space<vmem>>, vector<896x640xbf16>
    %c0_3 = arith.constant 0 : index
    %c0_4 = arith.constant 0 : index
    %2 = vector.load %arg2[%c0_3, %c0_4] : memref<1x640xf32, #tpu.memory_space<vmem>>, vector<1x640xf32>
    %3 = arith.truncf %0 : vector<2x896xf32> to vector<2x896xbf16>
    %cst = arith.constant dense<0.000000e+00> : vector<2x640xf32>
    %4 = tpu.matmul %3, %1, %cst {dimension_numbers = #tpu.dot_dimension_numbers<[1], [0], [0], [1], [0, 0, 1, 1], [], []>} : vector<2x896xbf16>, vector<896x640xbf16>, vector<2x640xf32> -> vector<2x640xf32>
    %5 = vector.broadcast %2 : vector<1x640xf32> to vector<2x640xf32>
    %6 = arith.addf %4, %5 : vector<2x640xf32>
    %cst_5 = arith.constant 0.000000e+00 : f32
    %7 = vector.broadcast %cst_5 : f32 to vector<2x640xf32>
    %8 = arith.maximumf %6, %7 : vector<2x640xf32>
    %c0_6 = arith.constant 0 : index
    %c0_7 = arith.constant 0 : index
    %9 = vector.load %arg3[%c0_6, %c0_7] : memref<640x384xbf16, #tpu.memory_space<vmem>>, vector<640x384xbf16>
    %c0_8 = arith.constant 0 : index
    %c0_9 = arith.constant 0 : index
    %10 = vector.load %arg4[%c0_8, %c0_9] : memref<1x384xf32, #tpu.memory_space<vmem>>, vector<1x384xf32>
    %11 = arith.truncf %8 : vector<2x640xf32> to vector<2x640xbf16>
    %cst_10 = arith.constant dense<0.000000e+00> : vector<2x384xf32>
    %12 = tpu.matmul %11, %9, %cst_10 {dimension_numbers = #tpu.dot_dimension_numbers<[1], [0], [0], [1], [0, 0, 1, 1], [], []>} : vector<2x640xbf16>, vector<640x384xbf16>, vector<2x384xf32> -> vector<2x384xf32>
    %13 = vector.broadcast %10 : vector<1x384xf32> to vector<2x384xf32>
    %14 = arith.addf %12, %13 : vector<2x384xf32>
    %cst_11 = arith.constant 0.000000e+00 : f32
    %15 = vector.broadcast %cst_11 : f32 to vector<2x384xf32>
    %16 = arith.maximumf %14, %15 : vector<2x384xf32>
    %c0_12 = arith.constant 0 : index
    %c0_13 = arith.constant 0 : index
    %17 = vector.load %arg5[%c0_12, %c0_13] : memref<384x120xbf16, #tpu.memory_space<vmem>>, vector<384x120xbf16>
    %c0_14 = arith.constant 0 : index
    %c0_15 = arith.constant 0 : index
    %18 = vector.load %arg6[%c0_14, %c0_15] : memref<1x120xf32, #tpu.memory_space<vmem>>, vector<1x120xf32>
    %19 = arith.truncf %16 : vector<2x384xf32> to vector<2x384xbf16>
    %cst_16 = arith.constant dense<0.000000e+00> : vector<2x120xf32>
    %20 = tpu.matmul %19, %17, %cst_16 {dimension_numbers = #tpu.dot_dimension_numbers<[1], [0], [0], [1], [0, 0, 1, 1], [], []>} : vector<2x384xbf16>, vector<384x120xbf16>, vector<2x120xf32> -> vector<2x120xf32>
    %21 = vector.broadcast %18 : vector<1x120xf32> to vector<2x120xf32>
    %22 = arith.addf %20, %21 : vector<2x120xf32>
    %cst_17 = arith.constant 0.000000e+00 : f32
    %23 = vector.broadcast %cst_17 : f32 to vector<2x120xf32>
    %24 = arith.maximumf %22, %23 : vector<2x120xf32>
    %c0_18 = arith.constant 0 : index
    %c0_19 = arith.constant 0 : index
    %25 = vector.load %arg7[%c0_18, %c0_19] : memref<120x50xbf16, #tpu.memory_space<vmem>>, vector<120x50xbf16>
    %c0_20 = arith.constant 0 : index
    %c0_21 = arith.constant 0 : index
    %26 = vector.load %arg8[%c0_20, %c0_21] : memref<1x50xf32, #tpu.memory_space<vmem>>, vector<1x50xf32>
    %27 = arith.truncf %24 : vector<2x120xf32> to vector<2x120xbf16>
    %cst_22 = arith.constant dense<0.000000e+00> : vector<2x50xf32>
    %28 = tpu.matmul %27, %25, %cst_22 {dimension_numbers = #tpu.dot_dimension_numbers<[1], [0], [0], [1], [0, 0, 1, 1], [], []>} : vector<2x120xbf16>, vector<120x50xbf16>, vector<2x50xf32> -> vector<2x50xf32>
    %29 = vector.broadcast %26 : vector<1x50xf32> to vector<2x50xf32>
    %30 = arith.addf %28, %29 : vector<2x50xf32>
    %cst_23 = arith.constant 0.000000e+00 : f32
    %31 = vector.broadcast %cst_23 : f32 to vector<2x50xf32>
    %32 = arith.maximumf %30, %31 : vector<2x50xf32>
    %c0_24 = arith.constant 0 : index
    %c0_25 = arith.constant 0 : index
    %33 = vector.load %arg9[%c0_24, %c0_25] : memref<50x20xbf16, #tpu.memory_space<vmem>>, vector<50x20xbf16>
    %c0_26 = arith.constant 0 : index
    %c0_27 = arith.constant 0 : index
    %34 = vector.load %arg10[%c0_26, %c0_27] : memref<1x20xf32, #tpu.memory_space<vmem>>, vector<1x20xf32>
    %35 = arith.truncf %32 : vector<2x50xf32> to vector<2x50xbf16>
    %cst_28 = arith.constant dense<0.000000e+00> : vector<2x20xf32>
    %36 = tpu.matmul %35, %33, %cst_28 {dimension_numbers = #tpu.dot_dimension_numbers<[1], [0], [0], [1], [0, 0, 1, 1], [], []>} : vector<2x50xbf16>, vector<50x20xbf16>, vector<2x20xf32> -> vector<2x20xf32>
    %37 = vector.broadcast %34 : vector<1x20xf32> to vector<2x20xf32>
    %38 = arith.addf %36, %37 : vector<2x20xf32>
    %cst_29 = arith.constant 0.000000e+00 : f32
    %39 = vector.broadcast %cst_29 : f32 to vector<2x20xf32>
    %40 = arith.maximumf %38, %39 : vector<2x20xf32>
    %c0_30 = arith.constant 0 : index
    %c0_31 = arith.constant 0 : index
    %41 = vector.load %arg11[%c0_30, %c0_31] : memref<20x2xbf16, #tpu.memory_space<vmem>>, vector<20x2xbf16>
    %c0_32 = arith.constant 0 : index
    %c0_33 = arith.constant 0 : index
    %42 = vector.load %arg12[%c0_32, %c0_33] : memref<1x2xf32, #tpu.memory_space<vmem>>, vector<1x2xf32>
    %43 = arith.truncf %40 : vector<2x20xf32> to vector<2x20xbf16>
    %cst_34 = arith.constant dense<0.000000e+00> : vector<2x2xf32>
    %44 = tpu.matmul %43, %41, %cst_34 {dimension_numbers = #tpu.dot_dimension_numbers<[1], [0], [0], [1], [0, 0, 1, 1], [], []>} : vector<2x20xbf16>, vector<20x2xbf16>, vector<2x2xf32> -> vector<2x2xf32>
    %45 = vector.broadcast %42 : vector<1x2xf32> to vector<2x2xf32>
    %46 = arith.addf %44, %45 : vector<2x2xf32>
    %cst_35 = arith.constant dense<0xFF800000> : vector<2xf32>
    %47 = vector.multi_reduction <maximumf>, %46, %cst_35 [1] : vector<2x2xf32> to vector<2xf32>
    %48 = vector.shape_cast %47 : vector<2xf32> to vector<2x1xf32>
    %49 = vector.broadcast %48 : vector<2x1xf32> to vector<2x2xf32>
    %50 = arith.subf %46, %49 : vector<2x2xf32>
    %51 = math.exp %50 : vector<2x2xf32>
    %cst_36 = arith.constant dense<0.000000e+00> : vector<2xf32>
    %52 = vector.multi_reduction <add>, %51, %cst_36 [1] : vector<2x2xf32> to vector<2xf32>
    %53 = vector.shape_cast %52 : vector<2xf32> to vector<2x1xf32>
    %54 = vector.broadcast %53 : vector<2x1xf32> to vector<2x2xf32>
    %55 = arith.divf %51, %54 : vector<2x2xf32>
    %c0_37 = arith.constant 0 : index
    %c0_38 = arith.constant 0 : index
    %56 = vector.load %arg13[%c0_37, %c0_38] : memref<2x2xf32, #tpu.memory_space<vmem>>, vector<2x2xf32>
    tpu.vector_store %arg13[%c0_37, %c0_38], %55 {strides = array<i32>} : memref<2x2xf32, #tpu.memory_space<vmem>>, vector<2x2xf32>,
    return
  }
}

</mosaic_0001>

<llo_original>
// kernel: rerank_forward.6
$region0: #{rerank_forward.6}
  #allocation0 [shape = 'u32[]', space=smem, size = 0x4, offset = 0x4, fixed_abs, tag = 'smem constant byte address 0x4 - core index']
  #allocation1 [shape = 'u32[144,128]{1,0:T(1,128)}', space=vmem, size = 0x12000, scoped, tag = 'internal scratch']
  %s0 = inlined_call_operand.vmem [shape: f32[2000,399], index: 0, kind: input, shape index: {}]
  %s1 = inlined_call_operand.vmem [shape: bf16[399,35], index: 1, kind: input, shape index: {}]
  %s2 = inlined_call_operand.vmem [shape: f32[1,35], index: 2, kind: input, shape index: {}]
  %s3 = inlined_call_operand.vmem [shape: f32[2000,35], index: 3, kind: output, shape index: {}]
  %s4 = sld [smem:[#allocation0]]
  $region45: #{rerank_forward.6} parent=0
    _
  %s6 = ssub.s32 1, %s4
  %s7 = scalar_select 0, %s6, %s4
  loop: start=0, step=1, limit=4
  $region2: #{rerank_forward.6} parent=0 // loop_pre_header
    _
  $region3: #{rerank_forward.6} parent=0 // loop_header
    %s9 = sphi 0, %s13
    %p10 = scmp.ge.s32.totalorder %s9, 4
    %s19 = sphi 0, %s21
    %s22 = sphi 0, %s19
    %s23 = sphi 0, %s22
    %s39 = sphi 0, %s23
    %s43 = sphi 0, %s43
    %s45 = sphi 0, %s43
    %s46 = sphi 0, %s45
    %s60 = sphi 0, %s46
    %s64 = sphi 0, %s64
    %s66 = sphi 0, %s64
    %s67 = sphi 0, %s66
    %s81 = sphi 0, %s67
    %s87 = sphi 0, %s89
    %s90 = sphi 0, %s87
    %s91 = sphi 0, %s90
    %s107 = sphi 0, %s91
  $region4: #{rerank_forward.6} parent=0 // loop_header_branch
    %12 = sbr.rel (%p10) target = $region8
  $region5: #{rerank_forward.6} parent=0 // loop_body
    %s14 = ssub.s32 %s9, 1
    %s15 = ssub.s32 %s9, 2
    %s16 = sadd.s32 %s9, 1
    %s17 = ssub.s32 %s9, %s16
    %p18 = scmp.eq.s32.totalorder %s17, 0
    %s20 = sadd.s32 %s19, 1
    %s21 = scalar_select %p18, %s19, %s20
    %p24 = pneg %p18
    %p25 = scmp.eq.s32.totalorder %s9, 1
    %p26 = por %p24, %p25
    %p27 = scmp.ne.s32.totalorder %s19, %s22
    %p28 = scmp.eq.s32.totalorder %s9, 0
    %p29 = por %p27, %p28
    %p30 = scmp.ne.s32.totalorder %s19, %s22
    %p31 = scmp.eq.s32.totalorder %s14, 1
    %p32 = por %p30, %p31
    %p33 = scmp.ne.s32.totalorder %s22, %s23
    %p34 = scmp.eq.s32.totalorder %s14, 0
    %p35 = por %p33, %p34
    %p36 = scmp.ne.s32.totalorder %s22, %s23
    %p37 = scmp.eq.s32.totalorder %s15, 1
    %p38 = por %p36, %p37
    %p40 = scmp.ne.s32.totalorder %s23, %s39
    %p41 = scmp.eq.s32.totalorder %s15, 0
    %p42 = por %p40, %p41
    %s44 = sadd.s32 %s43, 1
    %p47 = scmp.eq.s32.totalorder %s9, 1
    %p48 = scmp.ne.s32.totalorder %s43, %s45
    %p49 = scmp.eq.s32.totalorder %s9, 0
    %p50 = por %p48, %p49
    %p51 = scmp.ne.s32.totalorder %s43, %s45
    %p52 = scmp.eq.s32.totalorder %s14, 1
    %p53 = por %p51, %p52
    %p54 = scmp.ne.s32.totalorder %s45, %s46
    %p55 = scmp.eq.s32.totalorder %s14, 0
    %p56 = por %p54, %p55
    %p57 = scmp.ne.s32.totalorder %s45, %s46
    %p58 = scmp.eq.s32.totalorder %s15, 1
    %p59 = por %p57, %p58
    %p61 = scmp.ne.s32.totalorder %s46, %s60
    %p62 = scmp.eq.s32.totalorder %s15, 0
    %p63 = por %p61, %p62
    %s65 = sadd.s32 %s64, 1
    %p68 = scmp.eq.s32.totalorder %s9, 1
    %p69 = scmp.ne.s32.totalorder %s64, %s66
    %p70 = scmp.eq.s32.totalorder %s9, 0
    %p71 = por %p69, %p70
    %p72 = scmp.ne.s32.totalorder %s64, %s66
    %p73 = scmp.eq.s32.totalorder %s14, 1
    %p74 = por %p72, %p73
    %p75 = scmp.ne.s32.totalorder %s66, %s67
    %p76 = scmp.eq.s32.totalorder %s14, 0
    %p77 = por %p75, %p76
    %p78 = scmp.ne.s32.totalorder %s66, %s67
    %p79 = scmp.eq.s32.totalorder %s15, 1
    %p80 = por %p78, %p79
    %p82 = scmp.ne.s32.totalorder %s67, %s81
    %p83 = scmp.eq.s32.totalorder %s15, 0
    %p84 = por %p82, %p83
    %s85 = ssub.s32 %s9, %s16
    %p86 = scmp.eq.s32.totalorder %s85, 0
    %s88 = sadd.s32 %s87, 1
    %s89 = scalar_select %p86, %s87, %s88
    %p92 = pneg %p86
    %p93 = scmp.eq.s32.totalorder %s9, 1
    %p94 = por %p92, %p93
    %p95 = scmp.ne.s32.totalorder %s87, %s90
    %p96 = scmp.eq.s32.totalorder %s9, 0
    %p97 = por %p95, %p96
    %p98 = scmp.ne.s32.totalorder %s87, %s90
    %p99 = scmp.eq.s32.totalorder %s14, 1
    %p100 = por %p98, %p99
    %p101 = scmp.ne.s32.totalorder %s90, %s91
    %p102 = scmp.eq.s32.totalorder %s14, 0
    %p103 = por %p101, %p102
    %p104 = scmp.ne.s32.totalorder %s90, %s91
    %p105 = scmp.eq.s32.totalorder %s15, 1
    %p106 = por %p104, %p105
    %p108 = scmp.ne.s32.totalorder %s91, %s107
    %p109 = scmp.eq.s32.totalorder %s15, 0
    %p110 = por %p108, %p109
    %p111 = scmp.le.s32.totalorder 1, %s9
    %p112 = scmp.lt.s32.totalorder %s9, 3
    %p113 = pnand %p111, %p112
    %p114 = pneg %p113
    // Predicated region
    $region9: #{rerank_forward.6} parent=5 // pred_check
      _
    $region10: #{rerank_forward.6} parent=5 // pred_check_branch
      %116 = sbr.rel (%p113) target = $region12
    $region11: #{rerank_forward.6} parent=5 // pred_region
      %s117 = ssub.s32 %s9, 1
      // Predicated region
      $region13: #{rerank_forward.6} parent=11 // pred_check
        %p118 = pneg %p56
      $region14: #{rerank_forward.6} parent=11 // pred_check_branch
        %120 = sbr.rel (%p118) target = $region16
      $region15: #{rerank_forward.6} parent=11 // pred_region
        _
      $region16: #{rerank_forward.6} parent=11 // pred_fallthru
        _
      // Predicated region
      $region17: #{rerank_forward.6} parent=11 // pred_check
        %p121 = pneg %p77
      $region18: #{rerank_forward.6} parent=11 // pred_check_branch
        %123 = sbr.rel (%p121) target = $region20
      $region19: #{rerank_forward.6} parent=11 // pred_region
        _
      $region20: #{rerank_forward.6} parent=11 // pred_fallthru
        _
    $region12: #{rerank_forward.6} parent=5 // pred_fallthru
      _
    %p124 = scmp.lt.s32.totalorder %s9, 2
    // Predicated region
    $region21: #{rerank_forward.6} parent=5 // pred_check
      %p125 = pneg %p124
    $region22: #{rerank_forward.6} parent=5 // pred_check_branch
      %127 = sbr.rel (%p125) target = $region24
    $region23: #{rerank_forward.6} parent=5 // pred_region
      // Predicated region
      $region25: #{rerank_forward.6} parent=23 // pred_check
        %p128 = pneg %p29
      $region26: #{rerank_forward.6} parent=23 // pred_check_branch
        %130 = sbr.rel (%p128) target = $region28
      $region27: #{rerank_forward.6} parent=23 // pred_region
        %s131 = smul.u32 125, %s9
        %p132 = scmp.lt.s32.totalorder %s131, 249
        %s133 = scalar_select %p132, %s131, 249
        %s134 = smul.addr %s133, 4
        %s135 = smul.addr %s134, 8
        %s136 = scalar_lea.vmem %s0, %s135
        %s137 = smul.u32 125, %s9
      $region28: #{rerank_forward.6} parent=23 // pred_fallthru
        _
    $region24: #{rerank_forward.6} parent=5 // pred_fallthru
      _
    %p138 = scmp.le.s32.totalorder 1, %s9
    %p139 = scmp.lt.s32.totalorder %s9, 3
    %p140 = pnand %p138, %p139
    %p141 = pneg %p140
    // Predicated region
    $region29: #{rerank_forward.6} parent=5 // pred_check
      _
    $region30: #{rerank_forward.6} parent=5 // pred_check_branch
      %143 = sbr.rel (%p140) target = $region32
    $region31: #{rerank_forward.6} parent=5 // pred_region
      %s144 = ssub.s32 %s9, 1
      %s145 = smul.u32 125, %s14
      %p146 = scmp.lt.s32.totalorder %s145, 249
      %s147 = scalar_select %p146, %s145, 249
      %s148 = smul.addr %s147, 4
      %s149 = smul.addr %s148, 8
      %s150 = scalar_lea.vmem %s0, %s149
      %p151 = pneg %p35
      %p152 = pneg %p32
      %p153 = pneg %p56
      %p154 = pneg %p53
      %p155 = pneg %p77
      %p156 = pneg %p74
      %p157 = pneg %p103
      %p158 = pneg %p100
      %s159 = smul.u32 125, %s14
      %p160 = scmp.lt.s32.totalorder %s159, 249
      %s161 = scalar_select %p160, %s159, 249
      %s162 = smul.addr %s161, 8
      %s163 = scalar_lea.vmem %s3, %s162
      %s164 = smul.u32 125, %s14
      %p165 = scmp.lt.s32.totalorder %s164, 249
      %s166 = scalar_select %p165, %s164, 249
      %s167 = smul.addr %s166, 4
      %s168 = smul.addr %s167, 8
      %s169 = scalar_lea.vmem %s0, %s168
      %s170 = smul.u32 125, %s14
      %s171 = smul.u32 125, %s14
      %p172 = scmp.lt.s32.totalorder %s171, 249
      %s173 = scalar_select %p172, %s171, 249
      %s174 = smul.addr %s173, 8
      %s175 = scalar_lea.vmem %s3, %s174
      %s176 = smul.u32 125, %s14
      %v178 = vld [vmem:[%s169] sm:$0xff]
      %v179 = vld [vmem:[%s169 + $0x8] sm:$0xff]
      %v180 = vld [vmem:[%s169 + $0x10] sm:$0xff]
      %v181 = vld [vmem:[%s169 + $0x18] sm:$0xff]
      %v182 = vld [vmem:[%s169 + $0x20] sm:$0xff]
      %v183 = vld [vmem:[%s169 + $0x28] sm:$0xff]
      %v184 = vld [vmem:[%s169 + $0x30] sm:$0xff]
      %v185 = vld [vmem:[%s169 + $0x38] sm:$0xff]
      %v186 = vld [vmem:[%s169 + $0x40] sm:$0xff]
      %v187 = vld [vmem:[%s169 + $0x48] sm:$0xff]
      %v188 = vld [vmem:[%s169 + $0x50] sm:$0xff]
      %v189 = vld [vmem:[%s169 + $0x58] sm:$0xff]
      %v190 = vld [vmem:[%s169 + $0x60] sm:$0xff]
      %v191 = vld [vmem:[%s169 + $0x68] sm:$0xff]
      %v192 = vld [vmem:[%s169 + $0x70] sm:$0xff]
      %v193 = vld [vmem:[%s169 + $0x78] sm:$0xff]
      %v194 = vld [vmem:[%s169 + $0x80] sm:$0xff]
      %v195 = vld [vmem:[%s169 + $0x88] sm:$0xff]
      %v196 = vld [vmem:[%s169 + $0x90] sm:$0xff]
      %v197 = vld [vmem:[%s169 + $0x98] sm:$0xff]
      %v198 = vld [vmem:[%s169 + $0xa0] sm:$0xff]
      %v199 = vld [vmem:[%s169 + $0xa8] sm:$0xff]
      %v200 = vld [vmem:[%s169 + $0xb0] sm:$0xff]
      %v201 = vld [vmem:[%s169 + $0xb8] sm:$0xff]
      %v202 = vld [vmem:[%s169 + $0xc0] sm:$0xff]
      %v203 = vld [vmem:[%s169 + $0xc8] sm:$0xff]
      %v204 = vld [vmem:[%s169 + $0xd0] sm:$0xff]
      %v205 = vld [vmem:[%s169 + $0xd8] sm:$0xff]
      %v206 = vld [vmem:[%s169 + $0xe0] sm:$0xff]
      %v207 = vld [vmem:[%s169 + $0xe8] sm:$0xff]
      %v208 = vld [vmem:[%s169 + $0xf0] sm:$0xff]
      %v209 = vld [vmem:[%s169 + $0xf8] sm:$0xff]
      %v210 = vld [vmem:[%s169 + $0x100] sm:$0xff]
      %v211 = vld [vmem:[%s169 + $0x108] sm:$0xff]
      %v212 = vld [vmem:[%s169 + $0x110] sm:$0xff]
      %v213 = vld [vmem:[%s169 + $0x118] sm:$0xff]
      %v214 = vld [vmem:[%s169 + $0x120] sm:$0xff]
      %v215 = vld [vmem:[%s169 + $0x128] sm:$0xff]
      %v216 = vld [vmem:[%s169 + $0x130] sm:$0xff]
      %v217 = vld [vmem:[%s169 + $0x138] sm:$0xff]
      %v218 = vld [vmem:[%s169 + $0x140] sm:$0xff]
      %v219 = vld [vmem:[%s169 + $0x148] sm:$0xff]
      %v220 = vld [vmem:[%s169 + $0x150] sm:$0xff]
      %v221 = vld [vmem:[%s169 + $0x158] sm:$0xff]
      %v222 = vld [vmem:[%s169 + $0x160] sm:$0xff]
      %v223 = vld [vmem:[%s169 + $0x168] sm:$0xff]
      %v224 = vld [vmem:[%s169 + $0x170] sm:$0xff]
      %v225 = vld [vmem:[%s169 + $0x178] sm:$0xff]
      %v226 = vld [vmem:[%s169 + $0x180] sm:$0xff]
      %v227 = vld [vmem:[%s169 + $0x188] sm:$0xff]
      %v228 = vld [vmem:[%s169 + $0x190] sm:$0xff]
      %v229 = vld [vmem:[%s169 + $0x198] sm:$0xff]
      %v230 = vld [vmem:[%s169 + $0x1a0] sm:$0xff]
      %v231 = vld [vmem:[%s169 + $0x1a8] sm:$0xff]
      %v232 = vld [vmem:[%s169 + $0x1b0] sm:$0xff]
      %v233 = vld [vmem:[%s169 + $0x1b8] sm:$0xff]
      %v234 = vld [vmem:[%s169 + $0x1c0] sm:$0xff]
      %v235 = vld [vmem:[%s169 + $0x1c8] sm:$0xff]
      %v236 = vld [vmem:[%s169 + $0x1d0] sm:$0xff]
      %v237 = vld [vmem:[%s169 + $0x1d8] sm:$0xff]
      %v238 = vld [vmem:[%s169 + $0x1e0] sm:$0xff]
      %v239 = vld [vmem:[%s169 + $0x1e8] sm:$0xff]
      %v240 = vld [vmem:[%s169 + $0x1f0] sm:$0xff]
      %v241 = vld [vmem:[%s169 + $0x1f8] sm:$0xff]
      %v242 = vld [vmem:[%s169 + $0x200] sm:$0xff]
      %v243 = vld [vmem:[%s169 + $0x208] sm:$0xff]
      %v244 = vld [vmem:[%s169 + $0x210] sm:$0xff]
      %v245 = vld [vmem:[%s169 + $0x218] sm:$0xff]
      %v246 = vld [vmem:[%s169 + $0x220] sm:$0xff]
      %v247 = vld [vmem:[%s169 + $0x228] sm:$0xff]
      %v248 = vld [vmem:[%s169 + $0x230] sm:$0xff]
      %v249 = vld [vmem:[%s169 + $0x238] sm:$0xff]
      %v250 = vld [vmem:[%s169 + $0x240] sm:$0xff]
      %v251 = vld [vmem:[%s169 + $0x248] sm:$0xff]
      %v252 = vld [vmem:[%s169 + $0x250] sm:$0xff]
      %v253 = vld [vmem:[%s169 + $0x258] sm:$0xff]
      %v254 = vld [vmem:[%s169 + $0x260] sm:$0xff]
      %v255 = vld [vmem:[%s169 + $0x268] sm:$0xff]
      %v256 = vld [vmem:[%s169 + $0x270] sm:$0xff]
      %v257 = vld [vmem:[%s169 + $0x278] sm:$0xff]
      %v258 = vld [vmem:[%s169 + $0x280] sm:$0xff]
      %v259 = vld [vmem:[%s169 + $0x288] sm:$0xff]
      %v260 = vld [vmem:[%s169 + $0x290] sm:$0xff]
      %v261 = vld [vmem:[%s169 + $0x298] sm:$0xff]
      %v262 = vld [vmem:[%s169 + $0x2a0] sm:$0xff]
      %v263 = vld [vmem:[%s169 + $0x2a8] sm:$0xff]
      %v264 = vld [vmem:[%s169 + $0x2b0] sm:$0xff]
      %v265 = vld [vmem:[%s169 + $0x2b8] sm:$0xff]
      %v266 = vld [vmem:[%s169 + $0x2c0] sm:$0xff]
      %v267 = vld [vmem:[%s169 + $0x2c8] sm:$0xff]
      %v268 = vld [vmem:[%s169 + $0x2d0] sm:$0xff]
      %v269 = vld [vmem:[%s169 + $0x2d8] sm:$0xff]
      %v270 = vld [vmem:[%s169 + $0x2e0] sm:$0xff]
      %v271 = vld [vmem:[%s169 + $0x2e8] sm:$0xff]
      %v272 = vld [vmem:[%s169 + $0x2f0] sm:$0xff]
      %v273 = vld [vmem:[%s169 + $0x2f8] sm:$0xff]
      %v274 = vld [vmem:[%s169 + $0x300] sm:$0xff]
      %v275 = vld [vmem:[%s169 + $0x308] sm:$0xff]
      %v276 = vld [vmem:[%s169 + $0x310] sm:$0xff]
      %v277 = vld [vmem:[%s169 + $0x318] sm:$0xff]
      %v278 = vld [vmem:[%s169 + $0x320] sm:$0xff]
      %v279 = vld [vmem:[%s169 + $0x328] sm:$0xff]
      %v280 = vld [vmem:[%s169 + $0x330] sm:$0xff]
      %v281 = vld [vmem:[%s169 + $0x338] sm:$0xff]
      %v282 = vld [vmem:[%s169 + $0x340] sm:$0xff]
      %v283 = vld [vmem:[%s169 + $0x348] sm:$0xff]
      %v284 = vld [vmem:[%s169 + $0x350] sm:$0xff]
      %v285 = vld [vmem:[%s169 + $0x358] sm:$0xff]
      %v286 = vld [vmem:[%s169 + $0x360] sm:$0xff]
      %v287 = vld [vmem:[%s169 + $0x368] sm:$0xff]
      %v288 = vld [vmem:[%s169 + $0x370] sm:$0xff]
      %v289 = vld [vmem:[%s169 + $0x378] sm:$0xff]
      %v290 = vld [vmem:[%s169 + $0x380] sm:$0xff]
      %v291 = vld [vmem:[%s169 + $0x388] sm:$0xff]
      %v292 = vld [vmem:[%s169 + $0x390] sm:$0xff]
      %v293 = vld [vmem:[%s169 + $0x398] sm:$0xff]
      %v294 = vld [vmem:[%s169 + $0x3a0] sm:$0xff]
      %v295 = vld [vmem:[%s169 + $0x3a8] sm:$0xff]
      %v296 = vld [vmem:[%s169 + $0x3b0] sm:$0xff]
      %v297 = vld [vmem:[%s169 + $0x3b8] sm:$0xff]
      %v298 = vld [vmem:[%s169 + $0x3c0] sm:$0xff]
      %v299 = vld [vmem:[%s169 + $0x3c8] sm:$0xff]
      %v300 = vld [vmem:[%s169 + $0x3d0] sm:$0xff]
      %v301 = vld [vmem:[%s169 + $0x3d8] sm:$0xff]
      %v302 = vld [vmem:[%s169 + $0x3e0] sm:$0xff]
      %v303 = vld [vmem:[%s169 + $0x3e8] sm:$0xff]
      %v304 = vld [vmem:[%s169 + $0x3f0] sm:$0xff]
      %v305 = vld [vmem:[%s169 + $0x3f8] sm:$0xff]
      %v306 = vld [vmem:[%s169 + $0x400] sm:$0xff]
      %v307 = vld [vmem:[%s169 + $0x408] sm:$0xff]
      %v308 = vld [vmem:[%s169 + $0x410] sm:$0xff]
      %v309 = vld [vmem:[%s169 + $0x418] sm:$0xff]
      %v310 = vld [vmem:[%s169 + $0x420] sm:$0xff]
      %v311 = vld [vmem:[%s169 + $0x428] sm:$0xff]
      %v312 = vld [vmem:[%s169 + $0x430] sm:$0xff]
      %v313 = vld [vmem:[%s169 + $0x438] sm:$0xff]
      %v314 = vld [vmem:[%s169 + $0x440] sm:$0xff]
      %v315 = vld [vmem:[%s169 + $0x448] sm:$0xff]
      %v316 = vld [vmem:[%s169 + $0x450] sm:$0xff]
      %v317 = vld [vmem:[%s169 + $0x458] sm:$0xff]
      %v318 = vld [vmem:[%s169 + $0x460] sm:$0xff]
      %v319 = vld [vmem:[%s169 + $0x468] sm:$0xff]
      %v320 = vld [vmem:[%s169 + $0x470] sm:$0xff]
      %v321 = vld [vmem:[%s169 + $0x478] sm:$0xff]
      %v322 = vld [vmem:[%s169 + $0x480] sm:$0xff]
      %v323 = vld [vmem:[%s169 + $0x488] sm:$0xff]
      %v324 = vld [vmem:[%s169 + $0x490] sm:$0xff]
      %v325 = vld [vmem:[%s169 + $0x498] sm:$0xff]
      %v326 = vld [vmem:[%s169 + $0x4a0] sm:$0xff]
      %v327 = vld [vmem:[%s169 + $0x4a8] sm:$0xff]
      %v328 = vld [vmem:[%s169 + $0x4b0] sm:$0xff]
      %v329 = vld [vmem:[%s169 + $0x4b8] sm:$0xff]
      %v330 = vld [vmem:[%s169 + $0x4c0] sm:$0xff]
      %v331 = vld [vmem:[%s169 + $0x4c8] sm:$0xff]
      %v332 = vld [vmem:[%s169 + $0x4d0] sm:$0xff]
      %v333 = vld [vmem:[%s169 + $0x4d8] sm:$0xff]
      %v334 = vld [vmem:[%s169 + $0x4e0] sm:$0xff]
      %v335 = vld [vmem:[%s169 + $0x4e8] sm:$0xff]
      %v336 = vld [vmem:[%s169 + $0x4f0] sm:$0xff]
      %v337 = vld [vmem:[%s169 + $0x4f8] sm:$0xff]
      %v338 = vld [vmem:[%s169 + $0x500] sm:$0xff]
      %v339 = vld [vmem:[%s169 + $0x508] sm:$0xff]
      %v340 = vld [vmem:[%s169 + $0x510] sm:$0xff]
      %v341 = vld [vmem:[%s169 + $0x518] sm:$0xff]
      %v342 = vld [vmem:[%s169 + $0x520] sm:$0xff]
      %v343 = vld [vmem:[%s169 + $0x528] sm:$0xff]
      %v344 = vld [vmem:[%s169 + $0x530] sm:$0xff]
      %v345 = vld [vmem:[%s169 + $0x538] sm:$0xff]
      %v346 = vld [vmem:[%s169 + $0x540] sm:$0xff]
      %v347 = vld [vmem:[%s169 + $0x548] sm:$0xff]
      %v348 = vld [vmem:[%s169 + $0x550] sm:$0xff]
      %v349 = vld [vmem:[%s169 + $0x558] sm:$0xff]
      %v350 = vld [vmem:[%s169 + $0x560] sm:$0xff]
      %v351 = vld [vmem:[%s169 + $0x568] sm:$0xff]
      %v352 = vld [vmem:[%s169 + $0x570] sm:$0xff]
      %v353 = vld [vmem:[%s169 + $0x578] sm:$0xff]
      %v354 = vld [vmem:[%s169 + $0x580] sm:$0xff]
      %v355 = vld [vmem:[%s169 + $0x588] sm:$0xff]
      %v356 = vld [vmem:[%s169 + $0x590] sm:$0xff]
      %v357 = vld [vmem:[%s169 + $0x598] sm:$0xff]
      %v358 = vld [vmem:[%s169 + $0x5a0] sm:$0xff]
      %v359 = vld [vmem:[%s169 + $0x5a8] sm:$0xff]
      %v360 = vld [vmem:[%s169 + $0x5b0] sm:$0xff]
      %v361 = vld [vmem:[%s169 + $0x5b8] sm:$0xff]
      %v362 = vld [vmem:[%s169 + $0x5c0] sm:$0xff]
      %v363 = vld [vmem:[%s169 + $0x5c8] sm:$0xff]
      %v364 = vld [vmem:[%s169 + $0x5d0] sm:$0xff]
      %v365 = vld [vmem:[%s169 + $0x5d8] sm:$0xff]
      %v366 = vld [vmem:[%s169 + $0x5e0] sm:$0xff]
      %v367 = vld [vmem:[%s169 + $0x5e8] sm:$0xff]
      %v368 = vld [vmem:[%s169 + $0x5f0] sm:$0xff]
      %v369 = vld [vmem:[%s169 + $0x5f8] sm:$0xff]
      %v370 = vld [vmem:[%s169 + $0x600] sm:$0xff]
      %v371 = vld [vmem:[%s169 + $0x608] sm:$0xff]
      %v372 = vld [vmem:[%s169 + $0x610] sm:$0xff]
      %v373 = vld [vmem:[%s169 + $0x618] sm:$0xff]
      %v374 = vld [vmem:[%s169 + $0x620] sm:$0xff]
      %v375 = vld [vmem:[%s169 + $0x628] sm:$0xff]
      %v376 = vld [vmem:[%s169 + $0x630] sm:$0xff]
      %v377 = vld [vmem:[%s169 + $0x638] sm:$0xff]
      %v378 = vld [vmem:[%s169 + $0x640] sm:$0xff]
      %v379 = vld [vmem:[%s169 + $0x648] sm:$0xff]
      %v380 = vld [vmem:[%s169 + $0x650] sm:$0xff]
      %v381 = vld [vmem:[%s169 + $0x658] sm:$0xff]
      %v382 = vld [vmem:[%s169 + $0x660] sm:$0xff]
      %v383 = vld [vmem:[%s169 + $0x668] sm:$0xff]
      %v384 = vld [vmem:[%s169 + $0x670] sm:$0xff]
      %v385 = vld [vmem:[%s169 + $0x678] sm:$0xff]
      %v386 = vld [vmem:[%s169 + $0x680] sm:$0xff]
      %v387 = vld [vmem:[%s169 + $0x688] sm:$0xff]
      %v388 = vld [vmem:[%s169 + $0x690] sm:$0xff]
      %v389 = vld [vmem:[%s169 + $0x698] sm:$0xff]
      %v390 = vld [vmem:[%s169 + $0x6a0] sm:$0xff]
      %v391 = vld [vmem:[%s169 + $0x6a8] sm:$0xff]
      %v392 = vld [vmem:[%s169 + $0x6b0] sm:$0xff]
      %v393 = vld [vmem:[%s169 + $0x6b8] sm:$0xff]
      %v394 = vld [vmem:[%s169 + $0x6c0] sm:$0xff]
      %v395 = vld [vmem:[%s169 + $0x6c8] sm:$0xff]
      %v396 = vld [vmem:[%s169 + $0x6d0] sm:$0xff]
      %v397 = vld [vmem:[%s169 + $0x6d8] sm:$0xff]
      %v398 = vld [vmem:[%s169 + $0x6e0] sm:$0xff]
      %v399 = vld [vmem:[%s169 + $0x6e8] sm:$0xff]
      %v400 = vld [vmem:[%s169 + $0x6f0] sm:$0xff]
      %v401 = vld [vmem:[%s169 + $0x6f8] sm:$0xff]
      %v402 = vld [vmem:[%s169 + $0x700] sm:$0xff]
      %v403 = vld [vmem:[%s169 + $0x708] sm:$0xff]
      %v404 = vld [vmem:[%s169 + $0x710] sm:$0xff]
      %v405 = vld [vmem:[%s169 + $0x718] sm:$0xff]
      %v406 = vld [vmem:[%s169 + $0x720] sm:$0xff]
      %v407 = vld [vmem:[%s169 + $0x728] sm:$0xff]
      %v408 = vld [vmem:[%s169 + $0x730] sm:$0xff]
      %v409 = vld [vmem:[%s169 + $0x738] sm:$0xff]
      %v410 = vld [vmem:[%s169 + $0x740] sm:$0xff]
      %v411 = vld [vmem:[%s169 + $0x748] sm:$0xff]
      %v412 = vld [vmem:[%s169 + $0x750] sm:$0xff]
      %v413 = vld [vmem:[%s169 + $0x758] sm:$0xff]
      %v414 = vld [vmem:[%s169 + $0x760] sm:$0xff]
      %v415 = vld [vmem:[%s169 + $0x768] sm:$0xff]
      %v416 = vld [vmem:[%s169 + $0x770] sm:$0xff]
      %v417 = vld [vmem:[%s169 + $0x778] sm:$0xff]
      %v418 = vld [vmem:[%s169 + $0x780] sm:$0xff]
      %v419 = vld [vmem:[%s169 + $0x788] sm:$0xff]
      %v420 = vld [vmem:[%s169 + $0x790] sm:$0xff]
      %v421 = vld [vmem:[%s169 + $0x798] sm:$0xff]
      %v422 = vld [vmem:[%s169 + $0x7a0] sm:$0xff]
      %v423 = vld [vmem:[%s169 + $0x7a8] sm:$0xff]
      %v424 = vld [vmem:[%s169 + $0x7b0] sm:$0xff]
      %v425 = vld [vmem:[%s169 + $0x7b8] sm:$0xff]
      %v426 = vld [vmem:[%s169 + $0x7c0] sm:$0xff]
      %v427 = vld [vmem:[%s169 + $0x7c8] sm:$0xff]
      %v428 = vld [vmem:[%s169 + $0x7d0] sm:$0xff]
      %v429 = vld [vmem:[%s169 + $0x7d8] sm:$0xff]
      %v430 = vld [vmem:[%s169 + $0x7e0] sm:$0xff]
      %v431 = vld [vmem:[%s169 + $0x7e8] sm:$0xff]
      %v432 = vld [vmem:[%s169 + $0x7f0] sm:$0xff]
      %v433 = vld [vmem:[%s169 + $0x7f8] sm:$0xff]
      %v434 = vld [vmem:[%s169 + $0x800] sm:$0xff]
      %v435 = vld [vmem:[%s169 + $0x808] sm:$0xff]
      %v436 = vld [vmem:[%s169 + $0x810] sm:$0xff]
      %v437 = vld [vmem:[%s169 + $0x818] sm:$0xff]
      %v438 = vld [vmem:[%s169 + $0x820] sm:$0xff]
      %v439 = vld [vmem:[%s169 + $0x828] sm:$0xff]
      %v440 = vld [vmem:[%s169 + $0x830] sm:$0xff]
      %v441 = vld [vmem:[%s169 + $0x838] sm:$0xff]
      %v442 = vld [vmem:[%s169 + $0x840] sm:$0xff]
      %v443 = vld [vmem:[%s169 + $0x848] sm:$0xff]
      %v444 = vld [vmem:[%s169 + $0x850] sm:$0xff]
      %v445 = vld [vmem:[%s169 + $0x858] sm:$0xff]
      %v446 = vld [vmem:[%s169 + $0x860] sm:$0xff]
      %v447 = vld [vmem:[%s169 + $0x868] sm:$0xff]
      %v448 = vld [vmem:[%s169 + $0x870] sm:$0xff]
      %v449 = vld [vmem:[%s169 + $0x878] sm:$0xff]
      %v450 = vld [vmem:[%s169 + $0x880] sm:$0xff]
      %v451 = vld [vmem:[%s169 + $0x888] sm:$0xff]
      %v452 = vld [vmem:[%s169 + $0x890] sm:$0xff]
      %v453 = vld [vmem:[%s169 + $0x898] sm:$0xff]
      %v454 = vld [vmem:[%s169 + $0x8a0] sm:$0xff]
      %v455 = vld [vmem:[%s169 + $0x8a8] sm:$0xff]
      %v456 = vld [vmem:[%s169 + $0x8b0] sm:$0xff]
      %v457 = vld [vmem:[%s169 + $0x8b8] sm:$0xff]
      %v458 = vld [vmem:[%s169 + $0x8c0] sm:$0xff]
      %v459 = vld [vmem:[%s169 + $0x8c8] sm:$0xff]
      %v460 = vld [vmem:[%s169 + $0x8d0] sm:$0xff]
      %v461 = vld [vmem:[%s169 + $0x8d8] sm:$0xff]
      %v462 = vld [vmem:[%s169 + $0x8e0] sm:$0xff]
      %v463 = vld [vmem:[%s169 + $0x8e8] sm:$0xff]
      %v464 = vld [vmem:[%s169 + $0x8f0] sm:$0xff]
      %v465 = vld [vmem:[%s169 + $0x8f8] sm:$0xff]
      %v466 = vld [vmem:[%s169 + $0x900] sm:$0xff]
      %v467 = vld [vmem:[%s169 + $0x908] sm:$0xff]
      %v468 = vld [vmem:[%s169 + $0x910] sm:$0xff]
      %v469 = vld [vmem:[%s169 + $0x918] sm:$0xff]
      %v470 = vld [vmem:[%s169 + $0x920] sm:$0xff]
      %v471 = vld [vmem:[%s169 + $0x928] sm:$0xff]
      %v472 = vld [vmem:[%s169 + $0x930] sm:$0xff]
      %v473 = vld [vmem:[%s169 + $0x938] sm:$0xff]
      %v474 = vld [vmem:[%s169 + $0x940] sm:$0xff]
      %v475 = vld [vmem:[%s169 + $0x948] sm:$0xff]
      %v476 = vld [vmem:[%s169 + $0x950] sm:$0xff]
      %v477 = vld [vmem:[%s169 + $0x958] sm:$0xff]
      %v478 = vld [vmem:[%s169 + $0x960] sm:$0xff]
      %v479 = vld [vmem:[%s169 + $0x968] sm:$0xff]
      %v480 = vld [vmem:[%s169 + $0x970] sm:$0xff]
      %v481 = vld [vmem:[%s169 + $0x978] sm:$0xff]
      %v482 = vld [vmem:[%s169 + $0x980] sm:$0xff]
      %v483 = vld [vmem:[%s169 + $0x988] sm:$0xff]
      %v484 = vld [vmem:[%s169 + $0x990] sm:$0xff]
      %v485 = vld [vmem:[%s169 + $0x998] sm:$0xff]
      %v486 = vld [vmem:[%s169 + $0x9a0] sm:$0xff]
      %v487 = vld [vmem:[%s169 + $0x9a8] sm:$0xff]
      %v488 = vld [vmem:[%s169 + $0x9b0] sm:$0xff]
      %v489 = vld [vmem:[%s169 + $0x9b8] sm:$0xff]
      %v490 = vld [vmem:[%s169 + $0x9c0] sm:$0xff]
      %v491 = vld [vmem:[%s169 + $0x9c8] sm:$0xff]
      %v492 = vld [vmem:[%s169 + $0x9d0] sm:$0xff]
      %v493 = vld [vmem:[%s169 + $0x9d8] sm:$0xff]
      %v494 = vld [vmem:[%s169 + $0x9e0] sm:$0xff]
      %v495 = vld [vmem:[%s169 + $0x9e8] sm:$0xff]
      %v496 = vld [vmem:[%s169 + $0x9f0] sm:$0xff]
      %v497 = vld [vmem:[%s169 + $0x9f8] sm:$0xff]
      %v498 = vld [vmem:[%s169 + $0xa00] sm:$0xff]
      %v499 = vld [vmem:[%s169 + $0xa08] sm:$0xff]
      %v500 = vld [vmem:[%s169 + $0xa10] sm:$0xff]
      %v501 = vld [vmem:[%s169 + $0xa18] sm:$0xff]
      %v502 = vld [vmem:[%s169 + $0xa20] sm:$0xff]
      %v503 = vld [vmem:[%s169 + $0xa28] sm:$0xff]
      %v504 = vld [vmem:[%s169 + $0xa30] sm:$0xff]
      %v505 = vld [vmem:[%s169 + $0xa38] sm:$0xff]
      %v506 = vld [vmem:[%s169 + $0xa40] sm:$0xff]
      %v507 = vld [vmem:[%s169 + $0xa48] sm:$0xff]
      %v508 = vld [vmem:[%s169 + $0xa50] sm:$0xff]
      %v509 = vld [vmem:[%s169 + $0xa58] sm:$0xff]
      %v510 = vld [vmem:[%s169 + $0xa60] sm:$0xff]
      %v511 = vld [vmem:[%s169 + $0xa68] sm:$0xff]
      %v512 = vld [vmem:[%s169 + $0xa70] sm:$0xff]
      %v513 = vld [vmem:[%s169 + $0xa78] sm:$0xff]
      %v514 = vld [vmem:[%s169 + $0xa80] sm:$0xff]
      %v515 = vld [vmem:[%s169 + $0xa88] sm:$0xff]
      %v516 = vld [vmem:[%s169 + $0xa90] sm:$0xff]
      %v517 = vld [vmem:[%s169 + $0xa98] sm:$0xff]
      %v518 = vld [vmem:[%s169 + $0xaa0] sm:$0xff]
      %v519 = vld [vmem:[%s169 + $0xaa8] sm:$0xff]
      %v520 = vld [vmem:[%s169 + $0xab0] sm:$0xff]
      %v521 = vld [vmem:[%s169 + $0xab8] sm:$0xff]
      %v522 = vld [vmem:[%s169 + $0xac0] sm:$0xff]
      %v523 = vld [vmem:[%s169 + $0xac8] sm:$0xff]
      %v524 = vld [vmem:[%s169 + $0xad0] sm:$0xff]
      %v525 = vld [vmem:[%s169 + $0xad8] sm:$0xff]
      %v526 = vld [vmem:[%s169 + $0xae0] sm:$0xff]
      %v527 = vld [vmem:[%s169 + $0xae8] sm:$0xff]
      %v528 = vld [vmem:[%s169 + $0xaf0] sm:$0xff]
      %v529 = vld [vmem:[%s169 + $0xaf8] sm:$0xff]
      %v530 = vld [vmem:[%s169 + $0xb00] sm:$0xff]
      %v531 = vld [vmem:[%s169 + $0xb08] sm:$0xff]
      %v532 = vld [vmem:[%s169 + $0xb10] sm:$0xff]
      %v533 = vld [vmem:[%s169 + $0xb18] sm:$0xff]
      %v534 = vld [vmem:[%s169 + $0xb20] sm:$0xff]
      %v535 = vld [vmem:[%s169 + $0xb28] sm:$0xff]
      %v536 = vld [vmem:[%s169 + $0xb30] sm:$0xff]
      %v537 = vld [vmem:[%s169 + $0xb38] sm:$0xff]
      %v538 = vld [vmem:[%s169 + $0xb40] sm:$0xff]
      %v539 = vld [vmem:[%s169 + $0xb48] sm:$0xff]
      %v540 = vld [vmem:[%s169 + $0xb50] sm:$0xff]
      %v541 = vld [vmem:[%s169 + $0xb58] sm:$0xff]
      %v542 = vld [vmem:[%s169 + $0xb60] sm:$0xff]
      %v543 = vld [vmem:[%s169 + $0xb68] sm:$0xff]
      %v544 = vld [vmem:[%s169 + $0xb70] sm:$0xff]
      %v545 = vld [vmem:[%s169 + $0xb78] sm:$0xff]
      %v546 = vld [vmem:[%s169 + $0xb80] sm:$0xff]
      %v547 = vld [vmem:[%s169 + $0xb88] sm:$0xff]
      %v548 = vld [vmem:[%s169 + $0xb90] sm:$0xff]
      %v549 = vld [vmem:[%s169 + $0xb98] sm:$0xff]
      %v550 = vld [vmem:[%s169 + $0xba0] sm:$0xff]
      %v551 = vld [vmem:[%s169 + $0xba8] sm:$0xff]
      %v552 = vld [vmem:[%s169 + $0xbb0] sm:$0xff]
      %v553 = vld [vmem:[%s169 + $0xbb8] sm:$0xff]
      %v554 = vld [vmem:[%s169 + $0xbc0] sm:$0xff]
      %v555 = vld [vmem:[%s169 + $0xbc8] sm:$0xff]
      %v556 = vld [vmem:[%s169 + $0xbd0] sm:$0xff]
      %v557 = vld [vmem:[%s169 + $0xbd8] sm:$0xff]
      %v558 = vld [vmem:[%s169 + $0xbe0] sm:$0xff]
      %v559 = vld [vmem:[%s169 + $0xbe8] sm:$0xff]
      %v560 = vld [vmem:[%s169 + $0xbf0] sm:$0xff]
      %v561 = vld [vmem:[%s169 + $0xbf8] sm:$0xff]
      %v562 = vld [vmem:[%s169 + $0xc00] sm:$0xff]
      %v563 = vld [vmem:[%s169 + $0xc08] sm:$0xff]
      %v564 = vld [vmem:[%s169 + $0xc10] sm:$0xff]
      %v565 = vld [vmem:[%s169 + $0xc18] sm:$0xff]
      %v566 = vld [vmem:[%s169 + $0xc20] sm:$0xff]
      %v567 = vld [vmem:[%s169 + $0xc28] sm:$0xff]
      %v568 = vld [vmem:[%s169 + $0xc30] sm:$0xff]
      %v569 = vld [vmem:[%s169 + $0xc38] sm:$0xff]
      %v570 = vld [vmem:[%s169 + $0xc40] sm:$0xff]
      %v571 = vld [vmem:[%s169 + $0xc48] sm:$0xff]
      %v572 = vld [vmem:[%s169 + $0xc50] sm:$0xff]
      %v573 = vld [vmem:[%s169 + $0xc58] sm:$0xff]
      %v574 = vld [vmem:[%s169 + $0xc60] sm:$0xff]
      %v575 = vld [vmem:[%s169 + $0xc68] sm:$0xff]
      %v576 = vld [vmem:[%s169 + $0xc70] sm:$0xff]
      %v577 = vld [vmem:[%s169 + $0xc78] sm:$0xff]
      %v578 = vld [vmem:[%s169 + $0xc80] sm:$0xff]
      %v579 = vld [vmem:[%s169 + $0xc88] sm:$0xff]
      %v580 = vld [vmem:[%s169 + $0xc90] sm:$0xff]
      %v581 = vld [vmem:[%s169 + $0xc98] sm:$0xff]
      %v582 = vld [vmem:[%s169 + $0xca0] sm:$0xff]
      %v583 = vld [vmem:[%s169 + $0xca8] sm:$0xff]
      %v584 = vld [vmem:[%s169 + $0xcb0] sm:$0xff]
      %v585 = vld [vmem:[%s169 + $0xcb8] sm:$0xff]
      %v586 = vld [vmem:[%s169 + $0xcc0] sm:$0xff]
      %v587 = vld [vmem:[%s169 + $0xcc8] sm:$0xff]
      %v588 = vld [vmem:[%s169 + $0xcd0] sm:$0xff]
      %v589 = vld [vmem:[%s169 + $0xcd8] sm:$0xff]
      %v590 = vld [vmem:[%s169 + $0xce0] sm:$0xff]
      %v591 = vld [vmem:[%s169 + $0xce8] sm:$0xff]
      %v592 = vld [vmem:[%s169 + $0xcf0] sm:$0xff]
      %v593 = vld [vmem:[%s169 + $0xcf8] sm:$0xff]
      %v594 = vld [vmem:[%s169 + $0xd00] sm:$0xff]
      %v595 = vld [vmem:[%s169 + $0xd08] sm:$0xff]
      %v596 = vld [vmem:[%s169 + $0xd10] sm:$0xff]
      %v597 = vld [vmem:[%s169 + $0xd18] sm:$0xff]
      %v598 = vld [vmem:[%s169 + $0xd20] sm:$0xff]
      %v599 = vld [vmem:[%s169 + $0xd28] sm:$0xff]
      %v600 = vld [vmem:[%s169 + $0xd30] sm:$0xff]
      %v601 = vld [vmem:[%s169 + $0xd38] sm:$0xff]
      %v602 = vld [vmem:[%s169 + $0xd40] sm:$0xff]
      %v603 = vld [vmem:[%s169 + $0xd48] sm:$0xff]
      %v604 = vld [vmem:[%s169 + $0xd50] sm:$0xff]
      %v605 = vld [vmem:[%s169 + $0xd58] sm:$0xff]
      %v606 = vld [vmem:[%s169 + $0xd60] sm:$0xff]
      %v607 = vld [vmem:[%s169 + $0xd68] sm:$0xff]
      %v608 = vld [vmem:[%s169 + $0xd70] sm:$0xff]
      %v609 = vld [vmem:[%s169 + $0xd78] sm:$0xff]
      %v610 = vld [vmem:[%s169 + $0xd80] sm:$0xff]
      %v611 = vld [vmem:[%s169 + $0xd88] sm:$0xff]
      %v612 = vld [vmem:[%s169 + $0xd90] sm:$0xff]
      %v613 = vld [vmem:[%s169 + $0xd98] sm:$0xff]
      %v614 = vld [vmem:[%s169 + $0xda0] sm:$0xff]
      %v615 = vld [vmem:[%s169 + $0xda8] sm:$0xff]
      %v616 = vld [vmem:[%s169 + $0xdb0] sm:$0xff]
      %v617 = vld [vmem:[%s169 + $0xdb8] sm:$0xff]
      %v618 = vld [vmem:[%s169 + $0xdc0] sm:$0xff]
      %v619 = vld [vmem:[%s169 + $0xdc8] sm:$0xff]
      %v620 = vld [vmem:[%s169 + $0xdd0] sm:$0xff]
      %v621 = vld [vmem:[%s169 + $0xdd8] sm:$0xff]
      %v622 = vld [vmem:[%s169 + $0xde0] sm:$0xff]
      %v623 = vld [vmem:[%s169 + $0xde8] sm:$0xff]
      %v624 = vld [vmem:[%s169 + $0xdf0] sm:$0xff]
      %v625 = vld [vmem:[%s169 + $0xdf8] sm:$0xff]
      %v626 = vld [vmem:[%s169 + $0xe00] sm:$0xff]
      %v627 = vld [vmem:[%s169 + $0xe08] sm:$0xff]
      %v628 = vld [vmem:[%s169 + $0xe10] sm:$0xff]
      %v629 = vld [vmem:[%s169 + $0xe18] sm:$0xff]
      %v630 = vld [vmem:[%s169 + $0xe20] sm:$0xff]
      %v631 = vld [vmem:[%s169 + $0xe28] sm:$0xff]
      %v632 = vld [vmem:[%s169 + $0xe30] sm:$0xff]
      %v633 = vld [vmem:[%s169 + $0xe38] sm:$0xff]
      %v634 = vld [vmem:[%s169 + $0xe40] sm:$0xff]
      %v635 = vld [vmem:[%s169 + $0xe48] sm:$0xff]
      %v636 = vld [vmem:[%s169 + $0xe50] sm:$0xff]
      %v637 = vld [vmem:[%s169 + $0xe58] sm:$0xff]
      %v638 = vld [vmem:[%s169 + $0xe60] sm:$0xff]
      %v639 = vld [vmem:[%s169 + $0xe68] sm:$0xff]
      %v640 = vld [vmem:[%s169 + $0xe70] sm:$0xff]
      %v641 = vld [vmem:[%s169 + $0xe78] sm:$0xff]
      %v642 = vld [vmem:[%s169 + $0xe80] sm:$0xff]
      %v643 = vld [vmem:[%s169 + $0xe88] sm:$0xff]
      %v644 = vld [vmem:[%s169 + $0xe90] sm:$0xff]
      %v645 = vld [vmem:[%s169 + $0xe98] sm:$0xff]
      %v646 = vld [vmem:[%s169 + $0xea0] sm:$0xff]
      %v647 = vld [vmem:[%s169 + $0xea8] sm:$0xff]
      %v648 = vld [vmem:[%s169 + $0xeb0] sm:$0xff]
      %v649 = vld [vmem:[%s169 + $0xeb8] sm:$0xff]
      %v650 = vld [vmem:[%s169 + $0xec0] sm:$0xff]
      %v651 = vld [vmem:[%s169 + $0xec8] sm:$0xff]
      %v652 = vld [vmem:[%s169 + $0xed0] sm:$0xff]
      %v653 = vld [vmem:[%s169 + $0xed8] sm:$0xff]
      %v654 = vld [vmem:[%s169 + $0xee0] sm:$0xff]
      %v655 = vld [vmem:[%s169 + $0xee8] sm:$0xff]
      %v656 = vld [vmem:[%s169 + $0xef0] sm:$0xff]
      %v657 = vld [vmem:[%s169 + $0xef8] sm:$0xff]
      %v658 = vld [vmem:[%s169 + $0xf00] sm:$0xff]
      %v659 = vld [vmem:[%s169 + $0xf08] sm:$0xff]
      %v660 = vld [vmem:[%s169 + $0xf10] sm:$0xff]
      %v661 = vld [vmem:[%s169 + $0xf18] sm:$0xff]
      %v662 = vld [vmem:[%s169 + $0xf20] sm:$0xff]
      %v663 = vld [vmem:[%s169 + $0xf28] sm:$0xff]
      %v664 = vld [vmem:[%s169 + $0xf30] sm:$0xff]
      %v665 = vld [vmem:[%s169 + $0xf38] sm:$0xff]
      %v666 = vld [vmem:[%s169 + $0xf40] sm:$0xff]
      %v667 = vld [vmem:[%s169 + $0xf48] sm:$0xff]
      %v668 = vld [vmem:[%s169 + $0xf50] sm:$0xff]
      %v669 = vld [vmem:[%s169 + $0xf58] sm:$0xff]
      %v670 = vld [vmem:[%s169 + $0xf60] sm:$0xff]
      %v671 = vld [vmem:[%s169 + $0xf68] sm:$0xff]
      %v672 = vld [vmem:[%s169 + $0xf70] sm:$0xff]
      %v673 = vld [vmem:[%s169 + $0xf78] sm:$0xff]
      %v674 = vld [vmem:[%s169 + $0xf80] sm:$0xff]
      %v675 = vld [vmem:[%s169 + $0xf88] sm:$0xff]
      %v676 = vld [vmem:[%s169 + $0xf90] sm:$0xff]
      %v677 = vld [vmem:[%s169 + $0xf98] sm:$0xff]
      %v678 = vpack.c.bf16 %v182, %v178
      %v679 = vpack.c.bf16 %v183, %v179
      %v680 = vpack.c.bf16 %v184, %v180
      %v681 = vpack.c.bf16 %v185, %v181
      %v682 = vpack.c.bf16 %v190, %v186
      %v683 = vpack.c.bf16 %v191, %v187
      %v684 = vpack.c.bf16 %v192, %v188
      %v685 = vpack.c.bf16 %v193, %v189
      %v686 = vpack.c.bf16 %v198, %v194
      %v687 = vpack.c.bf16 %v199, %v195
      %v688 = vpack.c.bf16 %v200, %v196
      %v689 = vpack.c.bf16 %v201, %v197
      %v690 = vpack.c.bf16 %v206, %v202
      %v691 = vpack.c.bf16 %v207, %v203
      %v692 = vpack.c.bf16 %v208, %v204
      %v693 = vpack.c.bf16 %v209, %v205
      %v694 = vpack.c.bf16 %v214, %v210
      %v695 = vpack.c.bf16 %v215, %v211
      %v696 = vpack.c.bf16 %v216, %v212
      %v697 = vpack.c.bf16 %v217, %v213
      %v698 = vpack.c.bf16 %v222, %v218
      %v699 = vpack.c.bf16 %v223, %v219
      %v700 = vpack.c.bf16 %v224, %v220
      %v701 = vpack.c.bf16 %v225, %v221
      %v702 = vpack.c.bf16 %v230, %v226
      %v703 = vpack.c.bf16 %v231, %v227
      %v704 = vpack.c.bf16 %v232, %v228
      %v705 = vpack.c.bf16 %v233, %v229
      %v706 = vpack.c.bf16 %v238, %v234
      %v707 = vpack.c.bf16 %v239, %v235
      %v708 = vpack.c.bf16 %v240, %v236
      %v709 = vpack.c.bf16 %v241, %v237
      %v710 = vpack.c.bf16 %v246, %v242
      %v711 = vpack.c.bf16 %v247, %v243
      %v712 = vpack.c.bf16 %v248, %v244
      %v713 = vpack.c.bf16 %v249, %v245
      %v714 = vpack.c.bf16 %v254, %v250
      %v715 = vpack.c.bf16 %v255, %v251
      %v716 = vpack.c.bf16 %v256, %v252
      %v717 = vpack.c.bf16 %v257, %v253
      %v718 = vpack.c.bf16 %v262, %v258
      %v719 = vpack.c.bf16 %v263, %v259
      %v720 = vpack.c.bf16 %v264, %v260
      %v721 = vpack.c.bf16 %v265, %v261
      %v722 = vpack.c.bf16 %v270, %v266
      %v723 = vpack.c.bf16 %v271, %v267
      %v724 = vpack.c.bf16 %v272, %v268
      %v725 = vpack.c.bf16 %v273, %v269
      %v726 = vpack.c.bf16 %v278, %v274
      %v727 = vpack.c.bf16 %v279, %v275
      %v728 = vpack.c.bf16 %v280, %v276
      %v729 = vpack.c.bf16 %v281, %v277
      %v730 = vpack.c.bf16 %v286, %v282
      %v731 = vpack.c.bf16 %v287, %v283
      %v732 = vpack.c.bf16 %v288, %v284
      %v733 = vpack.c.bf16 %v289, %v285
      %v734 = vpack.c.bf16 %v294, %v290
      %v735 = vpack.c.bf16 %v295, %v291
      %v736 = vpack.c.bf16 %v296, %v292
      %v737 = vpack.c.bf16 %v297, %v293
      %v738 = vpack.c.bf16 %v302, %v298
      %v739 = vpack.c.bf16 %v303, %v299
      %v740 = vpack.c.bf16 %v304, %v300
      %v741 = vpack.c.bf16 %v305, %v301
      %v742 = vpack.c.bf16 %v310, %v306
      %v743 = vpack.c.bf16 %v311, %v307
      %v744 = vpack.c.bf16 %v312, %v308
      %v745 = vpack.c.bf16 %v313, %v309
      %v746 = vpack.c.bf16 %v318, %v314
      %v747 = vpack.c.bf16 %v319, %v315
      %v748 = vpack.c.bf16 %v320, %v316
      %v749 = vpack.c.bf16 %v321, %v317
      %v750 = vpack.c.bf16 %v326, %v322
      %v751 = vpack.c.bf16 %v327, %v323
      %v752 = vpack.c.bf16 %v328, %v324
      %v753 = vpack.c.bf16 %v329, %v325
      %v754 = vpack.c.bf16 %v334, %v330
      %v755 = vpack.c.bf16 %v335, %v331
      %v756 = vpack.c.bf16 %v336, %v332
      %v757 = vpack.c.bf16 %v337, %v333
      %v758 = vpack.c.bf16 %v342, %v338
      %v759 = vpack.c.bf16 %v343, %v339
      %v760 = vpack.c.bf16 %v344, %v340
      %v761 = vpack.c.bf16 %v345, %v341
      %v762 = vpack.c.bf16 %v350, %v346
      %v763 = vpack.c.bf16 %v351, %v347
      %v764 = vpack.c.bf16 %v352, %v348
      %v765 = vpack.c.bf16 %v353, %v349
      %v766 = vpack.c.bf16 %v358, %v354
      %v767 = vpack.c.bf16 %v359, %v355
      %v768 = vpack.c.bf16 %v360, %v356
      %v769 = vpack.c.bf16 %v361, %v357
      %v770 = vpack.c.bf16 %v366, %v362
      %v771 = vpack.c.bf16 %v367, %v363
      %v772 = vpack.c.bf16 %v368, %v364
      %v773 = vpack.c.bf16 %v369, %v365
      %v774 = vpack.c.bf16 %v374, %v370
      %v775 = vpack.c.bf16 %v375, %v371
      %v776 = vpack.c.bf16 %v376, %v372
      %v777 = vpack.c.bf16 %v377, %v373
      %v778 = vpack.c.bf16 %v382, %v378
      %v779 = vpack.c.bf16 %v383, %v379
      %v780 = vpack.c.bf16 %v384, %v380
      %v781 = vpack.c.bf16 %v385, %v381
      %v782 = vpack.c.bf16 %v390, %v386
      %v783 = vpack.c.bf16 %v391, %v387
      %v784 = vpack.c.bf16 %v392, %v388
      %v785 = vpack.c.bf16 %v393, %v389
      %v786 = vpack.c.bf16 %v398, %v394
      %v787 = vpack.c.bf16 %v399, %v395
      %v788 = vpack.c.bf16 %v400, %v396
      %v789 = vpack.c.bf16 %v401, %v397
      %v790 = vpack.c.bf16 %v406, %v402
      %v791 = vpack.c.bf16 %v407, %v403
      %v792 = vpack.c.bf16 %v408, %v404
      %v793 = vpack.c.bf16 %v409, %v405
      %v794 = vpack.c.bf16 %v414, %v410
      %v795 = vpack.c.bf16 %v415, %v411
      %v796 = vpack.c.bf16 %v416, %v412
      %v797 = vpack.c.bf16 %v417, %v413
      %v798 = vpack.c.bf16 %v422, %v418
      %v799 = vpack.c.bf16 %v423, %v419
      %v800 = vpack.c.bf16 %v424, %v420
      %v801 = vpack.c.bf16 %v425, %v421
      %v802 = vpack.c.bf16 %v430, %v426
      %v803 = vpack.c.bf16 %v431, %v427
      %v804 = vpack.c.bf16 %v432, %v428
      %v805 = vpack.c.bf16 %v433, %v429
      %v806 = vpack.c.bf16 %v438, %v434
      %v807 = vpack.c.bf16 %v439, %v435
      %v808 = vpack.c.bf16 %v440, %v436
      %v809 = vpack.c.bf16 %v441, %v437
      %v810 = vpack.c.bf16 %v446, %v442
      %v811 = vpack.c.bf16 %v447, %v443
      %v812 = vpack.c.bf16 %v448, %v444
      %v813 = vpack.c.bf16 %v449, %v445
      %v814 = vpack.c.bf16 %v454, %v450
      %v815 = vpack.c.bf16 %v455, %v451
      %v816 = vpack.c.bf16 %v456, %v452
      %v817 = vpack.c.bf16 %v457, %v453
      %v818 = vpack.c.bf16 %v462, %v458
      %v819 = vpack.c.bf16 %v463, %v459
      %v820 = vpack.c.bf16 %v464, %v460
      %v821 = vpack.c.bf16 %v465, %v461
      %v822 = vpack.c.bf16 %v470, %v466
      %v823 = vpack.c.bf16 %v471, %v467
      %v824 = vpack.c.bf16 %v472, %v468
      %v825 = vpack.c.bf16 %v473, %v469
      %v826 = vpack.c.bf16 %v478, %v474
      %v827 = vpack.c.bf16 %v479, %v475
      %v828 = vpack.c.bf16 %v480, %v476
      %v829 = vpack.c.bf16 %v481, %v477
      %v830 = vpack.c.bf16 %v486, %v482
      %v831 = vpack.c.bf16 %v487, %v483
      %v832 = vpack.c.bf16 %v488, %v484
      %v833 = vpack.c.bf16 %v489, %v485
      %v834 = vpack.c.bf16 %v494, %v490
      %v835 = vpack.c.bf16 %v495, %v491
      %v836 = vpack.c.bf16 %v496, %v492
      %v837 = vpack.c.bf16 %v497, %v493
      %v838 = vpack.c.bf16 %v502, %v498
      %v839 = vpack.c.bf16 %v503, %v499
      %v840 = vpack.c.bf16 %v504, %v500
      %v841 = vpack.c.bf16 %v505, %v501
      %v842 = vpack.c.bf16 %v510, %v506
      %v843 = vpack.c.bf16 %v511, %v507
      %v844 = vpack.c.bf16 %v512, %v508
      %v845 = vpack.c.bf16 %v513, %v509
      %v846 = vpack.c.bf16 %v518, %v514
      %v847 = vpack.c.bf16 %v519, %v515
      %v848 = vpack.c.bf16 %v520, %v516
      %v849 = vpack.c.bf16 %v521, %v517
      %v850 = vpack.c.bf16 %v526, %v522
      %v851 = vpack.c.bf16 %v527, %v523
      %v852 = vpack.c.bf16 %v528, %v524
      %v853 = vpack.c.bf16 %v529, %v525
      %v854 = vpack.c.bf16 %v534, %v530
      %v855 = vpack.c.bf16 %v535, %v531
      %v856 = vpack.c.bf16 %v536, %v532
      %v857 = vpack.c.bf16 %v537, %v533
      %v858 = vpack.c.bf16 %v542, %v538
      %v859 = vpack.c.bf16 %v543, %v539
      %v860 = vpack.c.bf16 %v544, %v540
      %v861 = vpack.c.bf16 %v545, %v541
      %v862 = vpack.c.bf16 %v550, %v546
      %v863 = vpack.c.bf16 %v551, %v547
      %v864 = vpack.c.bf16 %v552, %v548
      %v865 = vpack.c.bf16 %v553, %v549
      %v866 = vpack.c.bf16 %v558, %v554
      %v867 = vpack.c.bf16 %v559, %v555
      %v868 = vpack.c.bf16 %v560, %v556
      %v869 = vpack.c.bf16 %v561, %v557
      %v870 = vpack.c.bf16 %v566, %v562
      %v871 = vpack.c.bf16 %v567, %v563
      %v872 = vpack.c.bf16 %v568, %v564
      %v873 = vpack.c.bf16 %v569, %v565
      %v874 = vpack.c.bf16 %v574, %v570
      %v875 = vpack.c.bf16 %v575, %v571
      %v876 = vpack.c.bf16 %v576, %v572
      %v877 = vpack.c.bf16 %v577, %v573
      %v878 = vpack.c.bf16 %v582, %v578
      %v879 = vpack.c.bf16 %v583, %v579
      %v880 = vpack.c.bf16 %v584, %v580
      %v881 = vpack.c.bf16 %v585, %v581
      %v882 = vpack.c.bf16 %v590, %v586
      %v883 = vpack.c.bf16 %v591, %v587
      %v884 = vpack.c.bf16 %v592, %v588
      %v885 = vpack.c.bf16 %v593, %v589
      %v886 = vpack.c.bf16 %v598, %v594
      %v887 = vpack.c.bf16 %v599, %v595
      %v888 = vpack.c.bf16 %v600, %v596
      %v889 = vpack.c.bf16 %v601, %v597
      %v890 = vpack.c.bf16 %v606, %v602
      %v891 = vpack.c.bf16 %v607, %v603
      %v892 = vpack.c.bf16 %v608, %v604
      %v893 = vpack.c.bf16 %v609, %v605
      %v894 = vpack.c.bf16 %v614, %v610
      %v895 = vpack.c.bf16 %v615, %v611
      %v896 = vpack.c.bf16 %v616, %v612
      %v897 = vpack.c.bf16 %v617, %v613
      %v898 = vpack.c.bf16 %v622, %v618
      %v899 = vpack.c.bf16 %v623, %v619
      %v900 = vpack.c.bf16 %v624, %v620
      %v901 = vpack.c.bf16 %v625, %v621
      %v902 = vpack.c.bf16 %v630, %v626
      %v903 = vpack.c.bf16 %v631, %v627
      %v904 = vpack.c.bf16 %v632, %v628
      %v905 = vpack.c.bf16 %v633, %v629
      %v906 = vpack.c.bf16 %v638, %v634
      %v907 = vpack.c.bf16 %v639, %v635
      %v908 = vpack.c.bf16 %v640, %v636
      %v909 = vpack.c.bf16 %v641, %v637
      %v910 = vpack.c.bf16 %v646, %v642
      %v911 = vpack.c.bf16 %v647, %v643
      %v912 = vpack.c.bf16 %v648, %v644
      %v913 = vpack.c.bf16 %v649, %v645
      %v914 = vpack.c.bf16 %v654, %v650
      %v915 = vpack.c.bf16 %v655, %v651
      %v916 = vpack.c.bf16 %v656, %v652
      %v917 = vpack.c.bf16 %v657, %v653
      %v918 = vpack.c.bf16 %v662, %v658
      %v919 = vpack.c.bf16 %v663, %v659
      %v920 = vpack.c.bf16 %v664, %v660
      %v921 = vpack.c.bf16 %v665, %v661
      %v922 = vpack.c.bf16 %v670, %v666
      %v923 = vpack.c.bf16 %v671, %v667
      %v924 = vpack.c.bf16 %v672, %v668
      %v925 = vpack.c.bf16 %v673, %v669
      %v926 = vpack.c.bf16 %v674, %v674
      %v927 = vpack.c.bf16 %v675, %v675
      %v928 = vpack.c.bf16 %v676, %v676
      %v929 = vpack.c.bf16 %v677, %v677
      %v930 = vld [vmem:[%s1] sm:$0xf]
      %v931 = vld [vmem:[%s1 + $0x4] sm:$0xf]
      %v932 = vld [vmem:[%s1 + $0x8] sm:$0xf]
      %v933 = vld [vmem:[%s1 + $0xc] sm:$0xf]
      %v934 = vld [vmem:[%s1 + $0x10] sm:$0xf]
      %v935 = vld [vmem:[%s1 + $0x14] sm:$0xf]
      %v936 = vld [vmem:[%s1 + $0x18] sm:$0xf]
      %v937 = vld [vmem:[%s1 + $0x1c] sm:$0xf]
      %v938 = vld [vmem:[%s1 + $0x20] sm:$0xf]
      %v939 = vld [vmem:[%s1 + $0x24] sm:$0xf]
      %v940 = vld [vmem:[%s1 + $0x28] sm:$0xf]
      %v941 = vld [vmem:[%s1 + $0x2c] sm:$0xf]
      %v942 = vld [vmem:[%s1 + $0x30] sm:$0xf]
      %v943 = vld [vmem:[%s1 + $0x34] sm:$0xf]
      %v944 = vld [vmem:[%s1 + $0x38] sm:$0xf]
      %v945 = vld [vmem:[%s1 + $0x3c] sm:$0xf]
      %v946 = vld [vmem:[%s1 + $0x40] sm:$0xf]
      %v947 = vld [vmem:[%s1 + $0x44] sm:$0xf]
      %v948 = vld [vmem:[%s1 + $0x48] sm:$0xf]
      %v949 = vld [vmem:[%s1 + $0x4c] sm:$0xf]
      %v950 = vld [vmem:[%s1 + $0x50] sm:$0xf]
      %v951 = vld [vmem:[%s1 + $0x54] sm:$0xf]
      %v952 = vld [vmem:[%s1 + $0x58] sm:$0xf]
      %v953 = vld [vmem:[%s1 + $0x5c] sm:$0xf]
      %v954 = vld [vmem:[%s1 + $0x60] sm:$0xf]
      %v955 = vld [vmem:[%s1 + $0x64] sm:$0xf]
      %v956 = vld [vmem:[%s1 + $0x68] sm:$0xf]
      %v957 = vld [vmem:[%s1 + $0x6c] sm:$0xf]
      %v958 = vld [vmem:[%s1 + $0x70] sm:$0xf]
      %v959 = vld [vmem:[%s1 + $0x74] sm:$0xf]
      %v960 = vld [vmem:[%s1 + $0x78] sm:$0xf]
      %v961 = vld [vmem:[%s1 + $0x7c] sm:$0xf]
      %v962 = vld [vmem:[%s1 + $0x80] sm:$0xf]
      %v963 = vld [vmem:[%s1 + $0x84] sm:$0xf]
      %v964 = vld [vmem:[%s1 + $0x88] sm:$0xf]
      %v965 = vld [vmem:[%s1 + $0x8c] sm:$0xf]
      %v966 = vld [vmem:[%s1 + $0x90] sm:$0xf]
      %v967 = vld [vmem:[%s1 + $0x94] sm:$0xf]
      %v968 = vld [vmem:[%s1 + $0x98] sm:$0xf]
      %v969 = vld [vmem:[%s1 + $0x9c] sm:$0xf]
      %v970 = vld [vmem:[%s1 + $0xa0] sm:$0xf]
      %v971 = vld [vmem:[%s1 + $0xa4] sm:$0xf]
      %v972 = vld [vmem:[%s1 + $0xa8] sm:$0xf]
      %v973 = vld [vmem:[%s1 + $0xac] sm:$0xf]
      %v974 = vld [vmem:[%s1 + $0xb0] sm:$0xf]
      %v975 = vld [vmem:[%s1 + $0xb4] sm:$0xf]
      %v976 = vld [vmem:[%s1 + $0xb8] sm:$0xf]
      %v977 = vld [vmem:[%s1 + $0xbc] sm:$0xf]
      %v978 = vld [vmem:[%s1 + $0xc0] sm:$0xf]
      %v979 = vld [vmem:[%s1 + $0xc4] sm:$0xf]
      %v980 = vld [vmem:[%s2] sm:$0x1]
      %v982 = vlaneseq
      %v983 = vshrl.u32 %v982, 7
      %v984 = vsub.s32 0, %v983
      %v985 = vrot.slane %v980, %v984
      %v1037 = vunpack.c.l.b16 %v930
      %v1038 = vunpack.c.l.b16 %v931
      %v1039 = vunpack.c.l.b16 %v932
      %v1040 = vunpack.c.l.b16 %v933
      %v1041 = vunpack.c.l.b16 %v934
      %v1042 = vunpack.c.l.b16 %v935
      %v1043 = vunpack.c.l.b16 %v936
      %v1044 = vunpack.c.l.b16 %v937
      %v1045 = vunpack.c.l.b16 %v938
      %v1046 = vunpack.c.l.b16 %v939
      %v1047 = vunpack.c.l.b16 %v940
      %v1048 = vunpack.c.l.b16 %v941
      %v1049 = vunpack.c.l.b16 %v942
      %v1050 = vunpack.c.l.b16 %v943
      %v1051 = vunpack.c.l.b16 %v944
      %v1052 = vunpack.c.l.b16 %v945
      %v1053 = vunpack.c.l.b16 %v946
      %v1054 = vunpack.c.l.b16 %v947
      %v1055 = vunpack.c.l.b16 %v948
      %v1056 = vunpack.c.l.b16 %v949
      %v1057 = vunpack.c.l.b16 %v950
      %v1058 = vunpack.c.l.b16 %v951
      %v1059 = vunpack.c.l.b16 %v952
      %v1060 = vunpack.c.l.b16 %v953
      %v1061 = vunpack.c.l.b16 %v954
      %v1062 = vunpack.c.l.b16 %v955
      %v1063 = vunpack.c.l.b16 %v956
      %v1064 = vunpack.c.l.b16 %v957
      %v1065 = vunpack.c.l.b16 %v958
      %v1066 = vunpack.c.l.b16 %v959
      %v1067 = vunpack.c.l.b16 %v960
      %v1068 = vunpack.c.l.b16 %v961
      %v1069 = vunpack.c.l.b16 %v962
      %v1070 = vunpack.c.l.b16 %v963
      %v1071 = vunpack.c.l.b16 %v964
      %v1072 = vunpack.c.l.b16 %v965
      %v1073 = vunpack.c.l.b16 %v966
      %v1074 = vunpack.c.l.b16 %v967
      %v1075 = vunpack.c.l.b16 %v968
      %v1076 = vunpack.c.l.b16 %v969
      %v1077 = vunpack.c.l.b16 %v970
      %v1078 = vunpack.c.l.b16 %v971
      %v1079 = vunpack.c.l.b16 %v972
      %v1080 = vunpack.c.l.b16 %v973
      %v1081 = vunpack.c.l.b16 %v974
      %v1082 = vunpack.c.l.b16 %v975
      %v1083 = vunpack.c.l.b16 %v976
      %v1084 = vunpack.c.l.b16 %v977
      %v1085 = vunpack.c.l.b16 %v978
      %v1086 = vunpack.c.l.b16 %v979
      %v1087 = vpack.c.b16 %v1038, %v1037
      %v1088 = vpack.c.b16 %v1040, %v1039
      %v1089 = vpack.c.b16 %v1042, %v1041
      %v1090 = vpack.c.b16 %v1044, %v1043
      %v1091 = vpack.c.b16 %v1046, %v1045
      %v1092 = vpack.c.b16 %v1048, %v1047
      %v1093 = vpack.c.b16 %v1050, %v1049
      %v1094 = vpack.c.b16 %v1052, %v1051
      %v1095 = vpack.c.b16 %v1054, %v1053
      %v1096 = vpack.c.b16 %v1056, %v1055
      %v1097 = vpack.c.b16 %v1058, %v1057
      %v1098 = vpack.c.b16 %v1060, %v1059
      %v1099 = vpack.c.b16 %v1062, %v1061
      %v1100 = vpack.c.b16 %v1064, %v1063
      %v1101 = vpack.c.b16 %v1066, %v1065
      %v1102 = vpack.c.b16 %v1068, %v1067
      %v1103 = vpack.c.b16 %v1070, %v1069
      %v1104 = vpack.c.b16 %v1072, %v1071
      %v1105 = vpack.c.b16 %v1074, %v1073
      %v1106 = vpack.c.b16 %v1076, %v1075
      %v1107 = vpack.c.b16 %v1078, %v1077
      %v1108 = vpack.c.b16 %v1080, %v1079
      %v1109 = vpack.c.b16 %v1082, %v1081
      %v1110 = vpack.c.b16 %v1084, %v1083
      %v1111 = vpack.c.b16 %v1086, %v1085
      %vm1136 = vcmask 121856
      %v1138 = vsel %vm1136, %v681, 0
      %v1141 = vsel %vm1136, %v685, 0
      %v1144 = vsel %vm1136, %v689, 0
      %v1147 = vsel %vm1136, %v693, 0
      %v1150 = vsel %vm1136, %v697, 0
      %v1153 = vsel %vm1136, %v701, 0
      %v1156 = vsel %vm1136, %v705, 0
      %v1159 = vsel %vm1136, %v709, 0
      %v1162 = vsel %vm1136, %v713, 0
      %v1165 = vsel %vm1136, %v717, 0
      %v1168 = vsel %vm1136, %v721, 0
      %v1171 = vsel %vm1136, %v725, 0
      %v1174 = vsel %vm1136, %v729, 0
      %v1177 = vsel %vm1136, %v733, 0
      %v1180 = vsel %vm1136, %v737, 0
      %v1183 = vsel %vm1136, %v741, 0
      %v1186 = vsel %vm1136, %v745, 0
      %v1189 = vsel %vm1136, %v749, 0
      %v1192 = vsel %vm1136, %v753, 0
      %v1195 = vsel %vm1136, %v757, 0
      %v1198 = vsel %vm1136, %v761, 0
      %v1201 = vsel %vm1136, %v765, 0
      %v1204 = vsel %vm1136, %v769, 0
      %v1207 = vsel %vm1136, %v773, 0
      %v1210 = vsel %vm1136, %v777, 0
      %v1213 = vsel %vm1136, %v781, 0
      %v1216 = vsel %vm1136, %v785, 0
      %v1219 = vsel %vm1136, %v789, 0
      %v1222 = vsel %vm1136, %v793, 0
      %v1225 = vsel %vm1136, %v797, 0
      %v1228 = vsel %vm1136, %v801, 0
      %v1231 = vsel %vm1136, %v805, 0
      %v1234 = vsel %vm1136, %v809, 0
      %v1237 = vsel %vm1136, %v813, 0
      %v1240 = vsel %vm1136, %v817, 0
      %v1243 = vsel %vm1136, %v821, 0
      %v1246 = vsel %vm1136, %v825, 0
      %v1249 = vsel %vm1136, %v829, 0
      %v1252 = vsel %vm1136, %v833, 0
      %v1255 = vsel %vm1136, %v837, 0
      %v1258 = vsel %vm1136, %v841, 0
      %v1261 = vsel %vm1136, %v845, 0
      %v1264 = vsel %vm1136, %v849, 0
      %v1267 = vsel %vm1136, %v853, 0
      %v1270 = vsel %vm1136, %v857, 0
      %v1273 = vsel %vm1136, %v861, 0
      %v1276 = vsel %vm1136, %v865, 0
      %v1279 = vsel %vm1136, %v869, 0
      %v1282 = vsel %vm1136, %v873, 0
      %v1285 = vsel %vm1136, %v877, 0
      %v1288 = vsel %vm1136, %v881, 0
      %v1291 = vsel %vm1136, %v885, 0
      %v1294 = vsel %vm1136, %v889, 0
      %v1297 = vsel %vm1136, %v893, 0
      %v1300 = vsel %vm1136, %v897, 0
      %v1303 = vsel %vm1136, %v901, 0
      %v1306 = vsel %vm1136, %v905, 0
      %v1309 = vsel %vm1136, %v909, 0
      %v1312 = vsel %vm1136, %v913, 0
      %v1315 = vsel %vm1136, %v917, 0
      %v1318 = vsel %vm1136, %v921, 0
      %v1321 = vsel %vm1136, %v925, 0
      %v1324 = vsel %vm1136, %v929, 0
      %vm1326 = vcmask 1046528
      %vm1327 = vcmask 1047552
      %v1328 = vsel %vm1326, 4294967295, 65535
      %v1329 = vsel %vm1327, %v1328, 0
      %v1331 = vand.u32 %v1111, %v1329
      %1333 = vmatprep.subr.bf16.mxu0 0
      %1334 = vmatpush1.bf16.msra.mxu0 %v1094
      %1335 = vmatprep.subr.bf16.mxu0 0
      %1336 = vmatpush1.bf16.msra.mxu0 %v1093
      %1337 = vmatprep.subr.bf16.mxu0 0
      %1338 = vmatpush1.bf16.msra.mxu0 %v1092
      %1339 = vmatprep.subr.bf16.mxu0 0
      %1340 = vmatpush1.bf16.msra.mxu0 %v1091
      %1341 = vmatprep.subr.bf16.mxu0 0
      %1342 = vmatpush1.bf16.msra.mxu0 %v1090
      %1343 = vmatprep.subr.bf16.mxu0 0
      %1344 = vmatpush1.bf16.msra.mxu0 %v1089
      %1345 = vmatprep.subr.bf16.mxu0 0
      %1346 = vmatpush1.bf16.msra.mxu0 %v1088
      %1347 = vmatprep.subr.bf16.mxu0 0
      %1348 = vmatpush1.bf16.msra.mxu0 %v1087
      %1349 = vmatprep.subr.bf16.mxu0 0
      %1350 = vmatpush2.bf16.msra.mxu0 %v1102
      %1351 = vmatprep.subr.bf16.mxu0 0
      %1352 = vmatpush2.bf16.msra.mxu0 %v1101
      %1353 = vmatprep.subr.bf16.mxu0 0
      %1354 = vmatpush2.bf16.msra.mxu0 %v1100
      %1355 = vmatprep.subr.bf16.mxu0 0
      %1356 = vmatpush2.bf16.msra.mxu0 %v1099
      %1357 = vmatprep.subr.bf16.mxu0 0
      %1358 = vmatpush2.bf16.msra.mxu0 %v1098
      %1359 = vmatprep.subr.bf16.mxu0 0
      %1360 = vmatpush2.bf16.msra.mxu0 %v1097
      %1361 = vmatprep.subr.bf16.mxu0 0
      %1362 = vmatpush2.bf16.msra.mxu0 %v1096
      %1363 = vmatprep.subr.bf16.mxu0 0
      %1364 = vmatpush2.bf16.msra.mxu0 %v1095
      %1365 = vmatprep.mubr.bf16.mxu0 %v679
      %1366 = vmatmul.mubr.bf16.gmra.mxu0 %v678
      %v1367 = vpop.f32.mrf.mxu0
      %v1368 = vadd.f32 %v985, %v1367
      %v1369 = vpop.f32.mrf.mxu0
      %v1370 = vpop.f32.mrf.mxu0
      %v1371 = vadd.f32 %v985, %v1370
      %v1372 = vpop.f32.mrf.mxu0
      %1373 = vmatprep.mubr.bf16.mxu0 %v683
      %1374 = vmatmul.mubr.bf16.gmra.mxu0 %v682
      %v1375 = vpop.f32.mrf.mxu0
      %v1376 = vadd.f32 %v985, %v1375
      %v1377 = vpop.f32.mrf.mxu0
      %v1378 = vpop.f32.mrf.mxu0
      %v1379 = vadd.f32 %v985, %v1378
      %v1380 = vpop.f32.mrf.mxu0
      %1381 = vmatprep.mubr.bf16.mxu0 %v687
      %1382 = vmatmul.mubr.bf16.gmra.mxu0 %v686
      %v1383 = vpop.f32.mrf.mxu0
      %v1384 = vadd.f32 %v985, %v1383
      %v1385 = vpop.f32.mrf.mxu0
      %v1386 = vpop.f32.mrf.mxu0
      %v1387 = vadd.f32 %v985, %v1386
      %v1388 = vpop.f32.mrf.mxu0
      %1389 = vmatprep.mubr.bf16.mxu0 %v691
      %1390 = vmatmul.mubr.bf16.gmra.mxu0 %v690
      %v1391 = vpop.f32.mrf.mxu0
      %v1392 = vadd.f32 %v985, %v1391
      %v1393 = vpop.f32.mrf.mxu0
      %v1394 = vpop.f32.mrf.mxu0
      %v1395 = vadd.f32 %v985, %v1394
      %v1396 = vpop.f32.mrf.mxu0
      %1397 = vmatprep.mubr.bf16.mxu0 %v695
      %1398 = vmatmul.mubr.bf16.gmra.mxu0 %v694
      %v1399 = vpop.f32.mrf.mxu0
      %v1400 = vadd.f32 %v985, %v1399
      %v1401 = vpop.f32.mrf.mxu0
      %v1402 = vpop.f32.mrf.mxu0
      %v1403 = vadd.f32 %v985, %v1402
      %v1404 = vpop.f32.mrf.mxu0
      %1405 = vmatprep.mubr.bf16.mxu0 %v699
      %1406 = vmatmul.mubr.bf16.gmra.mxu0 %v698
      %v1407 = vpop.f32.mrf.mxu0
      %v1408 = vadd.f32 %v985, %v1407
      %v1409 = vpop.f32.mrf.mxu0
      %v1410 = vpop.f32.mrf.mxu0
      %v1411 = vadd.f32 %v985, %v1410
      %v1412 = vpop.f32.mrf.mxu0
      %1413 = vmatprep.mubr.bf16.mxu0 %v703
      %1414 = vmatmul.mubr.bf16.gmra.mxu0 %v702
      %v1415 = vpop.f32.mrf.mxu0
      %v1416 = vadd.f32 %v985, %v1415
      %v1417 = vpop.f32.mrf.mxu0
      %v1418 = vpop.f32.mrf.mxu0
      %v1419 = vadd.f32 %v985, %v1418
      %v1420 = vpop.f32.mrf.mxu0
      %1421 = vmatprep.mubr.bf16.mxu0 %v707
      %1422 = vmatmul.mubr.bf16.gmra.mxu0 %v706
      %v1423 = vpop.f32.mrf.mxu0
      %v1424 = vadd.f32 %v985, %v1423
      %v1425 = vpop.f32.mrf.mxu0
      %v1426 = vpop.f32.mrf.mxu0
      %v1427 = vadd.f32 %v985, %v1426
      %v1428 = vpop.f32.mrf.mxu0
      %1429 = vmatprep.mubr.bf16.mxu0 %v711
      %1430 = vmatmul.mubr.bf16.gmra.mxu0 %v710
      %v1431 = vpop.f32.mrf.mxu0
      %v1432 = vadd.f32 %v985, %v1431
      %v1433 = vpop.f32.mrf.mxu0
      %v1434 = vpop.f32.mrf.mxu0
      %v1435 = vadd.f32 %v985, %v1434
      %v1436 = vpop.f32.mrf.mxu0
      %1437 = vmatprep.mubr.bf16.mxu0 %v715
      %1438 = vmatmul.mubr.bf16.gmra.mxu0 %v714
      %v1439 = vpop.f32.mrf.mxu0
      %v1440 = vadd.f32 %v985, %v1439
      %v1441 = vpop.f32.mrf.mxu0
      %v1442 = vpop.f32.mrf.mxu0
      %v1443 = vadd.f32 %v985, %v1442
      %v1444 = vpop.f32.mrf.mxu0
      %1445 = vmatprep.mubr.bf16.mxu0 %v719
      %1446 = vmatmul.mubr.bf16.gmra.mxu0 %v718
      %v1447 = vpop.f32.mrf.mxu0
      %v1448 = vadd.f32 %v985, %v1447
      %v1449 = vpop.f32.mrf.mxu0
      %v1450 = vpop.f32.mrf.mxu0
      %v1451 = vadd.f32 %v985, %v1450
      %v1452 = vpop.f32.mrf.mxu0
      %1453 = vmatprep.mubr.bf16.mxu0 %v723
      %1454 = vmatmul.mubr.bf16.gmra.mxu0 %v722
      %v1455 = vpop.f32.mrf.mxu0
      %v1456 = vadd.f32 %v985, %v1455
      %v1457 = vpop.f32.mrf.mxu0
      %v1458 = vpop.f32.mrf.mxu0
      %v1459 = vadd.f32 %v985, %v1458
      %v1460 = vpop.f32.mrf.mxu0
      %1461 = vmatprep.mubr.bf16.mxu0 %v727
      %1462 = vmatmul.mubr.bf16.gmra.mxu0 %v726
      %v1463 = vpop.f32.mrf.mxu0
      %v1464 = vadd.f32 %v985, %v1463
      %v1465 = vpop.f32.mrf.mxu0
      %v1466 = vpop.f32.mrf.mxu0
      %v1467 = vadd.f32 %v985, %v1466
      %v1468 = vpop.f32.mrf.mxu0
      %1469 = vmatprep.mubr.bf16.mxu0 %v731
      %1470 = vmatmul.mubr.bf16.gmra.mxu0 %v730
      %v1471 = vpop.f32.mrf.mxu0
      %v1472 = vadd.f32 %v985, %v1471
      %v1473 = vpop.f32.mrf.mxu0
      %v1474 = vpop.f32.mrf.mxu0
      %v1475 = vadd.f32 %v985, %v1474
      %v1476 = vpop.f32.mrf.mxu0
      %1477 = vmatprep.mubr.bf16.mxu0 %v735
      %1478 = vmatmul.mubr.bf16.gmra.mxu0 %v734
      %v1479 = vpop.f32.mrf.mxu0
      %v1480 = vadd.f32 %v985, %v1479
      %v1481 = vpop.f32.mrf.mxu0
      %v1482 = vpop.f32.mrf.mxu0
      %v1483 = vadd.f32 %v985, %v1482
      %v1484 = vpop.f32.mrf.mxu0
      %1485 = vmatprep.mubr.bf16.mxu0 %v739
      %1486 = vmatmul.mubr.bf16.gmra.mxu0 %v738
      %v1487 = vpop.f32.mrf.mxu0
      %v1488 = vadd.f32 %v985, %v1487
      %v1489 = vpop.f32.mrf.mxu0
      %v1490 = vpop.f32.mrf.mxu0
      %v1491 = vadd.f32 %v985, %v1490
      %v1492 = vpop.f32.mrf.mxu0
      %1493 = vmatprep.mubr.bf16.mxu0 %v743
      %1494 = vmatmul.mubr.bf16.gmra.mxu0 %v742
      %v1495 = vpop.f32.mrf.mxu0
      %v1496 = vadd.f32 %v985, %v1495
      %v1497 = vpop.f32.mrf.mxu0
      %v1498 = vpop.f32.mrf.mxu0
      %v1499 = vadd.f32 %v985, %v1498
      %v1500 = vpop.f32.mrf.mxu0
      %1501 = vmatprep.mubr.bf16.mxu0 %v747
      %1502 = vmatmul.mubr.bf16.gmra.mxu0 %v746
      %v1503 = vpop.f32.mrf.mxu0
      %v1504 = vadd.f32 %v985, %v1503
      %v1505 = vpop.f32.mrf.mxu0
      %v1506 = vpop.f32.mrf.mxu0
      %v1507 = vadd.f32 %v985, %v1506
      %v1508 = vpop.f32.mrf.mxu0
      %1509 = vmatprep.mubr.bf16.mxu0 %v751
      %1510 = vmatmul.mubr.bf16.gmra.mxu0 %v750
      %v1511 = vpop.f32.mrf.mxu0
      %v1512 = vadd.f32 %v985, %v1511
      %v1513 = vpop.f32.mrf.mxu0
      %v1514 = vpop.f32.mrf.mxu0
      %v1515 = vadd.f32 %v985, %v1514
      %v1516 = vpop.f32.mrf.mxu0
      %1517 = vmatprep.mubr.bf16.mxu0 %v755
      %1518 = vmatmul.mubr.bf16.gmra.mxu0 %v754
      %v1519 = vpop.f32.mrf.mxu0
      %v1520 = vadd.f32 %v985, %v1519
      %v1521 = vpop.f32.mrf.mxu0
      %v1522 = vpop.f32.mrf.mxu0
      %v1523 = vadd.f32 %v985, %v1522
      %v1524 = vpop.f32.mrf.mxu0
      %1525 = vmatprep.mubr.bf16.mxu0 %v759
      %1526 = vmatmul.mubr.bf16.gmra.mxu0 %v758
      %v1527 = vpop.f32.mrf.mxu0
      %v1528 = vadd.f32 %v985, %v1527
      %v1529 = vpop.f32.mrf.mxu0
      %v1530 = vpop.f32.mrf.mxu0
      %v1531 = vadd.f32 %v985, %v1530
      %v1532 = vpop.f32.mrf.mxu0
      %1533 = vmatprep.mubr.bf16.mxu0 %v763
      %1534 = vmatmul.mubr.bf16.gmra.mxu0 %v762
      %v1535 = vpop.f32.mrf.mxu0
      %v1536 = vadd.f32 %v985, %v1535
      %v1537 = vpop.f32.mrf.mxu0
      %v1538 = vpop.f32.mrf.mxu0
      %v1539 = vadd.f32 %v985, %v1538
      %v1540 = vpop.f32.mrf.mxu0
      %1541 = vmatprep.mubr.bf16.mxu0 %v767
      %1542 = vmatmul.mubr.bf16.gmra.mxu0 %v766
      %v1543 = vpop.f32.mrf.mxu0
      %v1544 = vadd.f32 %v985, %v1543
      %v1545 = vpop.f32.mrf.mxu0
      %v1546 = vpop.f32.mrf.mxu0
      %v1547 = vadd.f32 %v985, %v1546
      %v1548 = vpop.f32.mrf.mxu0
      %1549 = vmatprep.mubr.bf16.mxu0 %v771
      %1550 = vmatmul.mubr.bf16.gmra.mxu0 %v770
      %v1551 = vpop.f32.mrf.mxu0
      %v1552 = vadd.f32 %v985, %v1551
      %v1553 = vpop.f32.mrf.mxu0
      %v1554 = vpop.f32.mrf.mxu0
      %v1555 = vadd.f32 %v985, %v1554
      %v1556 = vpop.f32.mrf.mxu0
      %1557 = vmatprep.mubr.bf16.mxu0 %v775
      %1558 = vmatmul.mubr.bf16.gmra.mxu0 %v774
      %v1559 = vpop.f32.mrf.mxu0
      %v1560 = vadd.f32 %v985, %v1559
      %v1561 = vpop.f32.mrf.mxu0
      %v1562 = vpop.f32.mrf.mxu0
      %v1563 = vadd.f32 %v985, %v1562
      %v1564 = vpop.f32.mrf.mxu0
      %1565 = vmatprep.mubr.bf16.mxu0 %v779
      %1566 = vmatmul.mubr.bf16.gmra.mxu0 %v778
      %v1567 = vpop.f32.mrf.mxu0
      %v1568 = vadd.f32 %v985, %v1567
      %v1569 = vpop.f32.mrf.mxu0
      %v1570 = vpop.f32.mrf.mxu0
      %v1571 = vadd.f32 %v985, %v1570
      %v1572 = vpop.f32.mrf.mxu0
      %1573 = vmatprep.mubr.bf16.mxu0 %v783
      %1574 = vmatmul.mubr.bf16.gmra.mxu0 %v782
      %v1575 = vpop.f32.mrf.mxu0
      %v1576 = vadd.f32 %v985, %v1575
      %v1577 = vpop.f32.mrf.mxu0
      %v1578 = vpop.f32.mrf.mxu0
      %v1579 = vadd.f32 %v985, %v1578
      %v1580 = vpop.f32.mrf.mxu0
      %1581 = vmatprep.mubr.bf16.mxu0 %v787
      %1582 = vmatmul.mubr.bf16.gmra.mxu0 %v786
      %v1583 = vpop.f32.mrf.mxu0
      %v1584 = vadd.f32 %v985, %v1583
      %v1585 = vpop.f32.mrf.mxu0
      %v1586 = vpop.f32.mrf.mxu0
      %v1587 = vadd.f32 %v985, %v1586
      %v1588 = vpop.f32.mrf.mxu0
      %1589 = vmatprep.mubr.bf16.mxu0 %v791
      %1590 = vmatmul.mubr.bf16.gmra.mxu0 %v790
      %v1591 = vpop.f32.mrf.mxu0
      %v1592 = vadd.f32 %v985, %v1591
      %v1593 = vpop.f32.mrf.mxu0
      %v1594 = vpop.f32.mrf.mxu0
      %v1595 = vadd.f32 %v985, %v1594
      %v1596 = vpop.f32.mrf.mxu0
      %1597 = vmatprep.mubr.bf16.mxu0 %v795
      %1598 = vmatmul.mubr.bf16.gmra.mxu0 %v794
      %v1599 = vpop.f32.mrf.mxu0
      %v1600 = vadd.f32 %v985, %v1599
      %v1601 = vpop.f32.mrf.mxu0
      %v1602 = vpop.f32.mrf.mxu0
      %v1603 = vadd.f32 %v985, %v1602
      %v1604 = vpop.f32.mrf.mxu0
      %1605 = vmatprep.mubr.bf16.mxu0 %v799
      %1606 = vmatmul.mubr.bf16.gmra.mxu0 %v798
      %v1607 = vpop.f32.mrf.mxu0
      %v1608 = vadd.f32 %v985, %v1607
      %v1609 = vpop.f32.mrf.mxu0
      %v1610 = vpop.f32.mrf.mxu0
      %v1611 = vadd.f32 %v985, %v1610
      %v1612 = vpop.f32.mrf.mxu0
      %1613 = vmatprep.mubr.bf16.mxu0 %v803
      %1614 = vmatmul.mubr.bf16.gmra.mxu0 %v802
      %v1615 = vpop.f32.mrf.mxu0
      %v1616 = vadd.f32 %v985, %v1615
      %v1617 = vpop.f32.mrf.mxu0
      %v1618 = vpop.f32.mrf.mxu0
      %v1619 = vadd.f32 %v985, %v1618
      %v1620 = vpop.f32.mrf.mxu0
      %1621 = vmatprep.mubr.bf16.mxu0 %v807
      %1622 = vmatmul.mubr.bf16.gmra.mxu0 %v806
      %v1623 = vpop.f32.mrf.mxu0
      %v1624 = vadd.f32 %v985, %v1623
      %v1625 = vpop.f32.mrf.mxu0
      %v1626 = vpop.f32.mrf.mxu0
      %v1627 = vadd.f32 %v985, %v1626
      %v1628 = vpop.f32.mrf.mxu0
      %1629 = vmatprep.mubr.bf16.mxu0 %v811
      %1630 = vmatmul.mubr.bf16.gmra.mxu0 %v810
      %v1631 = vpop.f32.mrf.mxu0
      %v1632 = vadd.f32 %v985, %v1631
      %v1633 = vpop.f32.mrf.mxu0
      %v1634 = vpop.f32.mrf.mxu0
      %v1635 = vadd.f32 %v985, %v1634
      %v1636 = vpop.f32.mrf.mxu0
      %1637 = vmatprep.mubr.bf16.mxu0 %v815
      %1638 = vmatmul.mubr.bf16.gmra.mxu0 %v814
      %v1639 = vpop.f32.mrf.mxu0
      %v1640 = vadd.f32 %v985, %v1639
      %v1641 = vpop.f32.mrf.mxu0
      %v1642 = vpop.f32.mrf.mxu0
      %v1643 = vadd.f32 %v985, %v1642
      %v1644 = vpop.f32.mrf.mxu0
      %1645 = vmatprep.mubr.bf16.mxu0 %v819
      %1646 = vmatmul.mubr.bf16.gmra.mxu0 %v818
      %v1647 = vpop.f32.mrf.mxu0
      %v1648 = vadd.f32 %v985, %v1647
      %v1649 = vpop.f32.mrf.mxu0
      %v1650 = vpop.f32.mrf.mxu0
      %v1651 = vadd.f32 %v985, %v1650
      %v1652 = vpop.f32.mrf.mxu0
      %1653 = vmatprep.mubr.bf16.mxu0 %v823
      %1654 = vmatmul.mubr.bf16.gmra.mxu0 %v822
      %v1655 = vpop.f32.mrf.mxu0
      %v1656 = vadd.f32 %v985, %v1655
      %v1657 = vpop.f32.mrf.mxu0
      %v1658 = vpop.f32.mrf.mxu0
      %v1659 = vadd.f32 %v985, %v1658
      %v1660 = vpop.f32.mrf.mxu0
      %1661 = vmatprep.mubr.bf16.mxu0 %v827
      %1662 = vmatmul.mubr.bf16.gmra.mxu0 %v826
      %v1663 = vpop.f32.mrf.mxu0
      %v1664 = vadd.f32 %v985, %v1663
      %v1665 = vpop.f32.mrf.mxu0
      %v1666 = vpop.f32.mrf.mxu0
      %v1667 = vadd.f32 %v985, %v1666
      %v1668 = vpop.f32.mrf.mxu0
      %1669 = vmatprep.mubr.bf16.mxu0 %v831
      %1670 = vmatmul.mubr.bf16.gmra.mxu0 %v830
      %v1671 = vpop.f32.mrf.mxu0
      %v1672 = vadd.f32 %v985, %v1671
      %v1673 = vpop.f32.mrf.mxu0
      %v1674 = vpop.f32.mrf.mxu0
      %v1675 = vadd.f32 %v985, %v1674
      %v1676 = vpop.f32.mrf.mxu0
      %1677 = vmatprep.mubr.bf16.mxu0 %v835
      %1678 = vmatmul.mubr.bf16.gmra.mxu0 %v834
      %v1679 = vpop.f32.mrf.mxu0
      %v1680 = vadd.f32 %v985, %v1679
      %v1681 = vpop.f32.mrf.mxu0
      %v1682 = vpop.f32.mrf.mxu0
      %v1683 = vadd.f32 %v985, %v1682
      %v1684 = vpop.f32.mrf.mxu0
      %1685 = vmatprep.mubr.bf16.mxu0 %v839
      %1686 = vmatmul.mubr.bf16.gmra.mxu0 %v838
      %v1687 = vpop.f32.mrf.mxu0
      %v1688 = vadd.f32 %v985, %v1687
      %v1689 = vpop.f32.mrf.mxu0
      %v1690 = vpop.f32.mrf.mxu0
      %v1691 = vadd.f32 %v985, %v1690
      %v1692 = vpop.f32.mrf.mxu0
      %1693 = vmatprep.mubr.bf16.mxu0 %v843
      %1694 = vmatmul.mubr.bf16.gmra.mxu0 %v842
      %v1695 = vpop.f32.mrf.mxu0
      %v1696 = vadd.f32 %v985, %v1695
      %v1697 = vpop.f32.mrf.mxu0
      %v1698 = vpop.f32.mrf.mxu0
      %v1699 = vadd.f32 %v985, %v1698
      %v1700 = vpop.f32.mrf.mxu0
      %1701 = vmatprep.mubr.bf16.mxu0 %v847
      %1702 = vmatmul.mubr.bf16.gmra.mxu0 %v846
      %v1703 = vpop.f32.mrf.mxu0
      %v1704 = vadd.f32 %v985, %v1703
      %v1705 = vpop.f32.mrf.mxu0
      %v1706 = vpop.f32.mrf.mxu0
      %v1707 = vadd.f32 %v985, %v1706
      %v1708 = vpop.f32.mrf.mxu0
      %1709 = vmatprep.mubr.bf16.mxu0 %v851
      %1710 = vmatmul.mubr.bf16.gmra.mxu0 %v850
      %v1711 = vpop.f32.mrf.mxu0
      %v1712 = vadd.f32 %v985, %v1711
      %v1713 = vpop.f32.mrf.mxu0
      %v1714 = vpop.f32.mrf.mxu0
      %v1715 = vadd.f32 %v985, %v1714
      %v1716 = vpop.f32.mrf.mxu0
      %1717 = vmatprep.mubr.bf16.mxu0 %v855
      %1718 = vmatmul.mubr.bf16.gmra.mxu0 %v854
      %v1719 = vpop.f32.mrf.mxu0
      %v1720 = vadd.f32 %v985, %v1719
      %v1721 = vpop.f32.mrf.mxu0
      %v1722 = vpop.f32.mrf.mxu0
      %v1723 = vadd.f32 %v985, %v1722
      %v1724 = vpop.f32.mrf.mxu0
      %1725 = vmatprep.mubr.bf16.mxu0 %v859
      %1726 = vmatmul.mubr.bf16.gmra.mxu0 %v858
      %v1727 = vpop.f32.mrf.mxu0
      %v1728 = vadd.f32 %v985, %v1727
      %v1729 = vpop.f32.mrf.mxu0
      %v1730 = vpop.f32.mrf.mxu0
      %v1731 = vadd.f32 %v985, %v1730
      %v1732 = vpop.f32.mrf.mxu0
      %1733 = vmatprep.mubr.bf16.mxu0 %v863
      %1734 = vmatmul.mubr.bf16.gmra.mxu0 %v862
      %v1735 = vpop.f32.mrf.mxu0
      %v1736 = vadd.f32 %v985, %v1735
      %v1737 = vpop.f32.mrf.mxu0
      %v1738 = vpop.f32.mrf.mxu0
      %v1739 = vadd.f32 %v985, %v1738
      %v1740 = vpop.f32.mrf.mxu0
      %1741 = vmatprep.mubr.bf16.mxu0 %v867
      %1742 = vmatmul.mubr.bf16.gmra.mxu0 %v866
      %v1743 = vpop.f32.mrf.mxu0
      %v1744 = vadd.f32 %v985, %v1743
      %v1745 = vpop.f32.mrf.mxu0
      %v1746 = vpop.f32.mrf.mxu0
      %v1747 = vadd.f32 %v985, %v1746
      %v1748 = vpop.f32.mrf.mxu0
      %1749 = vmatprep.mubr.bf16.mxu0 %v871
      %1750 = vmatmul.mubr.bf16.gmra.mxu0 %v870
      %v1751 = vpop.f32.mrf.mxu0
      %v1752 = vadd.f32 %v985, %v1751
      %v1753 = vpop.f32.mrf.mxu0
      %v1754 = vpop.f32.mrf.mxu0
      %v1755 = vadd.f32 %v985, %v1754
      %v1756 = vpop.f32.mrf.mxu0
      %1757 = vmatprep.mubr.bf16.mxu0 %v875
      %1758 = vmatmul.mubr.bf16.gmra.mxu0 %v874
      %v1759 = vpop.f32.mrf.mxu0
      %v1760 = vadd.f32 %v985, %v1759
      %v1761 = vpop.f32.mrf.mxu0
      %v1762 = vpop.f32.mrf.mxu0
      %v1763 = vadd.f32 %v985, %v1762
      %v1764 = vpop.f32.mrf.mxu0
      %1765 = vmatprep.mubr.bf16.mxu0 %v879
      %1766 = vmatmul.mubr.bf16.gmra.mxu0 %v878
      %v1767 = vpop.f32.mrf.mxu0
      %v1768 = vadd.f32 %v985, %v1767
      %v1769 = vpop.f32.mrf.mxu0
      %v1770 = vpop.f32.mrf.mxu0
      %v1771 = vadd.f32 %v985, %v1770
      %v1772 = vpop.f32.mrf.mxu0
      %1773 = vmatprep.mubr.bf16.mxu0 %v883
      %1774 = vmatmul.mubr.bf16.gmra.mxu0 %v882
      %v1775 = vpop.f32.mrf.mxu0
      %v1776 = vadd.f32 %v985, %v1775
      %v1777 = vpop.f32.mrf.mxu0
      %v1778 = vpop.f32.mrf.mxu0
      %v1779 = vadd.f32 %v985, %v1778
      %v1780 = vpop.f32.mrf.mxu0
      %1781 = vmatprep.mubr.bf16.mxu0 %v887
      %1782 = vmatmul.mubr.bf16.gmra.mxu0 %v886
      %v1783 = vpop.f32.mrf.mxu0
      %v1784 = vadd.f32 %v985, %v1783
      %v1785 = vpop.f32.mrf.mxu0
      %v1786 = vpop.f32.mrf.mxu0
      %v1787 = vadd.f32 %v985, %v1786
      %v1788 = vpop.f32.mrf.mxu0
      %1789 = vmatprep.mubr.bf16.mxu0 %v891
      %1790 = vmatmul.mubr.bf16.gmra.mxu0 %v890
      %v1791 = vpop.f32.mrf.mxu0
      %v1792 = vadd.f32 %v985, %v1791
      %v1793 = vpop.f32.mrf.mxu0
      %v1794 = vpop.f32.mrf.mxu0
      %v1795 = vadd.f32 %v985, %v1794
      %v1796 = vpop.f32.mrf.mxu0
      %1797 = vmatprep.mubr.bf16.mxu0 %v895
      %1798 = vmatmul.mubr.bf16.gmra.mxu0 %v894
      %v1799 = vpop.f32.mrf.mxu0
      %v1800 = vadd.f32 %v985, %v1799
      %v1801 = vpop.f32.mrf.mxu0
      %v1802 = vpop.f32.mrf.mxu0
      %v1803 = vadd.f32 %v985, %v1802
      %v1804 = vpop.f32.mrf.mxu0
      %1805 = vmatprep.mubr.bf16.mxu0 %v899
      %1806 = vmatmul.mubr.bf16.gmra.mxu0 %v898
      %v1807 = vpop.f32.mrf.mxu0
      %v1808 = vadd.f32 %v985, %v1807
      %v1809 = vpop.f32.mrf.mxu0
      %v1810 = vpop.f32.mrf.mxu0
      %v1811 = vadd.f32 %v985, %v1810
      %v1812 = vpop.f32.mrf.mxu0
      %1813 = vmatprep.mubr.bf16.mxu0 %v903
      %1814 = vmatmul.mubr.bf16.gmra.mxu0 %v902
      %v1815 = vpop.f32.mrf.mxu0
      %v1816 = vadd.f32 %v985, %v1815
      %v1817 = vpop.f32.mrf.mxu0
      %v1818 = vpop.f32.mrf.mxu0
      %v1819 = vadd.f32 %v985, %v1818
      %v1820 = vpop.f32.mrf.mxu0
      %1821 = vmatprep.mubr.bf16.mxu0 %v907
      %1822 = vmatmul.mubr.bf16.gmra.mxu0 %v906
      %v1823 = vpop.f32.mrf.mxu0
      %v1824 = vadd.f32 %v985, %v1823
      %v1825 = vpop.f32.mrf.mxu0
      %v1826 = vpop.f32.mrf.mxu0
      %v1827 = vadd.f32 %v985, %v1826
      %v1828 = vpop.f32.mrf.mxu0
      %1829 = vmatprep.mubr.bf16.mxu0 %v911
      %1830 = vmatmul.mubr.bf16.gmra.mxu0 %v910
      %v1831 = vpop.f32.mrf.mxu0
      %v1832 = vadd.f32 %v985, %v1831
      %v1833 = vpop.f32.mrf.mxu0
      %v1834 = vpop.f32.mrf.mxu0
      %v1835 = vadd.f32 %v985, %v1834
      %v1836 = vpop.f32.mrf.mxu0
      %1837 = vmatprep.mubr.bf16.mxu0 %v915
      %1838 = vmatmul.mubr.bf16.gmra.mxu0 %v914
      %v1839 = vpop.f32.mrf.mxu0
      %v1840 = vadd.f32 %v985, %v1839
      %v1841 = vpop.f32.mrf.mxu0
      %v1842 = vpop.f32.mrf.mxu0
      %v1843 = vadd.f32 %v985, %v1842
      %v1844 = vpop.f32.mrf.mxu0
      %1845 = vmatprep.mubr.bf16.mxu0 %v919
      %1846 = vmatmul.mubr.bf16.gmra.mxu0 %v918
      %v1847 = vpop.f32.mrf.mxu0
      %v1848 = vadd.f32 %v985, %v1847
      %v1849 = vpop.f32.mrf.mxu0
      %v1850 = vpop.f32.mrf.mxu0
      %v1851 = vadd.f32 %v985, %v1850
      %v1852 = vpop.f32.mrf.mxu0
      %1853 = vmatprep.mubr.bf16.mxu0 %v923
      %1854 = vmatmul.mubr.bf16.gmra.mxu0 %v922
      %v1855 = vpop.f32.mrf.mxu0
      %v1856 = vadd.f32 %v985, %v1855
      %v1857 = vpop.f32.mrf.mxu0
      %v1858 = vpop.f32.mrf.mxu0
      %v1859 = vadd.f32 %v985, %v1858
      %v1860 = vpop.f32.mrf.mxu0
      %1861 = vmatprep.mubr.bf16.mxu0 %v927
      %1862 = vmatmul.mubr.bf16.gmra.mxu0 %v926
      %v1863 = vpop.f32.mrf.mxu0
      %v1864 = vadd.f32 %v985, %v1863
      %v1865 = vpop.f32.mrf.mxu0
      %v1866 = vpop.f32.mrf.mxu0
      %v1867 = vpop.f32.mrf.mxu0
      %1868 = vdwg.mxu0
      %1869 = vmatprep.subr.bf16.mxu0 0
      %1870 = vmatpush1.bf16.msra.mxu0 %v1110
      %1871 = vmatprep.subr.bf16.mxu0 0
      %1872 = vmatpush1.bf16.msra.mxu0 %v1109
      %1873 = vmatprep.subr.bf16.mxu0 0
      %1874 = vmatpush1.bf16.msra.mxu0 %v1108
      %1875 = vmatprep.subr.bf16.mxu0 0
      %1876 = vmatpush1.bf16.msra.mxu0 %v1107
      %1877 = vmatprep.subr.bf16.mxu0 0
      %1878 = vmatpush1.bf16.msra.mxu0 %v1106
      %1879 = vmatprep.subr.bf16.mxu0 0
      %1880 = vmatpush1.bf16.msra.mxu0 %v1105
      %1881 = vmatprep.subr.bf16.mxu0 0
      %1882 = vmatpush1.bf16.msra.mxu0 %v1104
      %1883 = vmatprep.subr.bf16.mxu0 0
      %1884 = vmatpush1.bf16.msra.mxu0 %v1103
      %1885 = vmatprep.subr.bf16.mxu0 0
      %1886 = vmatpush2.bf16.msra.mxu0 0
      %1887 = vmatprep.subr.bf16.mxu0 0
      %1888 = vmatpush2.bf16.msra.mxu0 0
      %1889 = vmatprep.subr.bf16.mxu0 0
      %1890 = vmatpush2.bf16.msra.mxu0 0
      %1891 = vmatprep.subr.bf16.mxu0 0
      %1892 = vmatpush2.bf16.msra.mxu0 0
      %1893 = vmatprep.subr.bf16.mxu0 0
      %1894 = vmatpush2.bf16.msra.mxu0 0
      %1895 = vmatprep.subr.bf16.mxu0 0
      %1896 = vmatpush2.bf16.msra.mxu0 0
      %1897 = vmatprep.subr.bf16.mxu0 0
      %1898 = vmatpush2.bf16.msra.mxu0 0
      %1899 = vmatprep.subr.bf16.mxu0 0
      %1900 = vmatpush2.bf16.msra.mxu0 %v1331
      %1901 = vmatprep.mubr.bf16.mxu0 %v1138
      %1902 = vmatmul.mubr.bf16.gmra.mxu0 %v680
      %v1903 = vpop.f32.mrf.mxu0
      %v1904 = vadd.f32 %v1368, %v1903
      %v1905 = vpop.f32.mrf.mxu0
      %v1906 = vpop.f32.mrf.mxu0
      %v1907 = vadd.f32 %v1371, %v1906
      %v1908 = vpop.f32.mrf.mxu0
      %1909 = vmatprep.mubr.bf16.mxu0 %v1141
      %1910 = vmatmul.mubr.bf16.gmra.mxu0 %v684
      %v1911 = vpop.f32.mrf.mxu0
      %v1912 = vadd.f32 %v1376, %v1911
      %v1913 = vpop.f32.mrf.mxu0
      %v1914 = vpop.f32.mrf.mxu0
      %v1915 = vadd.f32 %v1379, %v1914
      %v1916 = vpop.f32.mrf.mxu0
      %1917 = vmatprep.mubr.bf16.mxu0 %v1144
      %1918 = vmatmul.mubr.bf16.gmra.mxu0 %v688
      %v1919 = vpop.f32.mrf.mxu0
      %v1920 = vadd.f32 %v1384, %v1919
      %v1921 = vpop.f32.mrf.mxu0
      %v1922 = vpop.f32.mrf.mxu0
      %v1923 = vadd.f32 %v1387, %v1922
      %v1924 = vpop.f32.mrf.mxu0
      %1925 = vmatprep.mubr.bf16.mxu0 %v1147
      %1926 = vmatmul.mubr.bf16.gmra.mxu0 %v692
      %v1927 = vpop.f32.mrf.mxu0
      %v1928 = vadd.f32 %v1392, %v1927
      %v1929 = vpop.f32.mrf.mxu0
      %v1930 = vpop.f32.mrf.mxu0
      %v1931 = vadd.f32 %v1395, %v1930
      %v1932 = vpop.f32.mrf.mxu0
      %1933 = vmatprep.mubr.bf16.mxu0 %v1150
      %1934 = vmatmul.mubr.bf16.gmra.mxu0 %v696
      %v1935 = vpop.f32.mrf.mxu0
      %v1936 = vadd.f32 %v1400, %v1935
      %v1937 = vpop.f32.mrf.mxu0
      %v1938 = vpop.f32.mrf.mxu0
      %v1939 = vadd.f32 %v1403, %v1938
      %v1940 = vpop.f32.mrf.mxu0
      %1941 = vmatprep.mubr.bf16.mxu0 %v1153
      %1942 = vmatmul.mubr.bf16.gmra.mxu0 %v700
      %v1943 = vpop.f32.mrf.mxu0
      %v1944 = vadd.f32 %v1408, %v1943
      %v1945 = vpop.f32.mrf.mxu0
      %v1946 = vpop.f32.mrf.mxu0
      %v1947 = vadd.f32 %v1411, %v1946
      %v1948 = vpop.f32.mrf.mxu0
      %1949 = vmatprep.mubr.bf16.mxu0 %v1156
      %1950 = vmatmul.mubr.bf16.gmra.mxu0 %v704
      %v1951 = vpop.f32.mrf.mxu0
      %v1952 = vadd.f32 %v1416, %v1951
      %v1953 = vpop.f32.mrf.mxu0
      %v1954 = vpop.f32.mrf.mxu0
      %v1955 = vadd.f32 %v1419, %v1954
      %v1956 = vpop.f32.mrf.mxu0
      %1957 = vmatprep.mubr.bf16.mxu0 %v1159
      %1958 = vmatmul.mubr.bf16.gmra.mxu0 %v708
      %v1959 = vpop.f32.mrf.mxu0
      %v1960 = vadd.f32 %v1424, %v1959
      %v1961 = vpop.f32.mrf.mxu0
      %v1962 = vpop.f32.mrf.mxu0
      %v1963 = vadd.f32 %v1427, %v1962
      %v1964 = vpop.f32.mrf.mxu0
      %1965 = vmatprep.mubr.bf16.mxu0 %v1162
      %1966 = vmatmul.mubr.bf16.gmra.mxu0 %v712
      %v1967 = vpop.f32.mrf.mxu0
      %v1968 = vadd.f32 %v1432, %v1967
      %v1969 = vpop.f32.mrf.mxu0
      %v1970 = vpop.f32.mrf.mxu0
      %v1971 = vadd.f32 %v1435, %v1970
      %v1972 = vpop.f32.mrf.mxu0
      %1973 = vmatprep.mubr.bf16.mxu0 %v1165
      %1974 = vmatmul.mubr.bf16.gmra.mxu0 %v716
      %v1975 = vpop.f32.mrf.mxu0
      %v1976 = vadd.f32 %v1440, %v1975
      %v1977 = vpop.f32.mrf.mxu0
      %v1978 = vpop.f32.mrf.mxu0
      %v1979 = vadd.f32 %v1443, %v1978
      %v1980 = vpop.f32.mrf.mxu0
      %1981 = vmatprep.mubr.bf16.mxu0 %v1168
      %1982 = vmatmul.mubr.bf16.gmra.mxu0 %v720
      %v1983 = vpop.f32.mrf.mxu0
      %v1984 = vadd.f32 %v1448, %v1983
      %v1985 = vpop.f32.mrf.mxu0
      %v1986 = vpop.f32.mrf.mxu0
      %v1987 = vadd.f32 %v1451, %v1986
      %v1988 = vpop.f32.mrf.mxu0
      %1989 = vmatprep.mubr.bf16.mxu0 %v1171
      %1990 = vmatmul.mubr.bf16.gmra.mxu0 %v724
      %v1991 = vpop.f32.mrf.mxu0
      %v1992 = vadd.f32 %v1456, %v1991
      %v1993 = vpop.f32.mrf.mxu0
      %v1994 = vpop.f32.mrf.mxu0
      %v1995 = vadd.f32 %v1459, %v1994
      %v1996 = vpop.f32.mrf.mxu0
      %1997 = vmatprep.mubr.bf16.mxu0 %v1174
      %1998 = vmatmul.mubr.bf16.gmra.mxu0 %v728
      %v1999 = vpop.f32.mrf.mxu0
      %v2000 = vadd.f32 %v1464, %v1999
      %v2001 = vpop.f32.mrf.mxu0
      %v2002 = vpop.f32.mrf.mxu0
      %v2003 = vadd.f32 %v1467, %v2002
      %v2004 = vpop.f32.mrf.mxu0
      %2005 = vmatprep.mubr.bf16.mxu0 %v1177
      %2006 = vmatmul.mubr.bf16.gmra.mxu0 %v732
      %v2007 = vpop.f32.mrf.mxu0
      %v2008 = vadd.f32 %v1472, %v2007
      %v2009 = vpop.f32.mrf.mxu0
      %v2010 = vpop.f32.mrf.mxu0
      %v2011 = vadd.f32 %v1475, %v2010
      %v2012 = vpop.f32.mrf.mxu0
      %2013 = vmatprep.mubr.bf16.mxu0 %v1180
      %2014 = vmatmul.mubr.bf16.gmra.mxu0 %v736
      %v2015 = vpop.f32.mrf.mxu0
      %v2016 = vadd.f32 %v1480, %v2015
      %v2017 = vpop.f32.mrf.mxu0
      %v2018 = vpop.f32.mrf.mxu0
      %v2019 = vadd.f32 %v1483, %v2018
      %v2020 = vpop.f32.mrf.mxu0
      %2021 = vmatprep.mubr.bf16.mxu0 %v1183
      %2022 = vmatmul.mubr.bf16.gmra.mxu0 %v740
      %v2023 = vpop.f32.mrf.mxu0
      %v2024 = vadd.f32 %v1488, %v2023
      %v2025 = vpop.f32.mrf.mxu0
      %v2026 = vpop.f32.mrf.mxu0
      %v2027 = vadd.f32 %v1491, %v2026
      %v2028 = vpop.f32.mrf.mxu0
      %2029 = vmatprep.mubr.bf16.mxu0 %v1186
      %2030 = vmatmul.mubr.bf16.gmra.mxu0 %v744
      %v2031 = vpop.f32.mrf.mxu0
      %v2032 = vadd.f32 %v1496, %v2031
      %v2033 = vpop.f32.mrf.mxu0
      %v2034 = vpop.f32.mrf.mxu0
      %v2035 = vadd.f32 %v1499, %v2034
      %v2036 = vpop.f32.mrf.mxu0
      %2037 = vmatprep.mubr.bf16.mxu0 %v1189
      %2038 = vmatmul.mubr.bf16.gmra.mxu0 %v748
      %v2039 = vpop.f32.mrf.mxu0
      %v2040 = vadd.f32 %v1504, %v2039
      %v2041 = vpop.f32.mrf.mxu0
      %v2042 = vpop.f32.mrf.mxu0
      %v2043 = vadd.f32 %v1507, %v2042
      %v2044 = vpop.f32.mrf.mxu0
      %2045 = vmatprep.mubr.bf16.mxu0 %v1192
      %2046 = vmatmul.mubr.bf16.gmra.mxu0 %v752
      %v2047 = vpop.f32.mrf.mxu0
      %v2048 = vadd.f32 %v1512, %v2047
      %v2049 = vpop.f32.mrf.mxu0
      %v2050 = vpop.f32.mrf.mxu0
      %v2051 = vadd.f32 %v1515, %v2050
      %v2052 = vpop.f32.mrf.mxu0
      %2053 = vmatprep.mubr.bf16.mxu0 %v1195
      %2054 = vmatmul.mubr.bf16.gmra.mxu0 %v756
      %v2055 = vpop.f32.mrf.mxu0
      %v2056 = vadd.f32 %v1520, %v2055
      %v2057 = vpop.f32.mrf.mxu0
      %v2058 = vpop.f32.mrf.mxu0
      %v2059 = vadd.f32 %v1523, %v2058
      %v2060 = vpop.f32.mrf.mxu0
      %2061 = vmatprep.mubr.bf16.mxu0 %v1198
      %2062 = vmatmul.mubr.bf16.gmra.mxu0 %v760
      %v2063 = vpop.f32.mrf.mxu0
      %v2064 = vadd.f32 %v1528, %v2063
      %v2065 = vpop.f32.mrf.mxu0
      %v2066 = vpop.f32.mrf.mxu0
      %v2067 = vadd.f32 %v1531, %v2066
      %v2068 = vpop.f32.mrf.mxu0
      %2069 = vmatprep.mubr.bf16.mxu0 %v1201
      %2070 = vmatmul.mubr.bf16.gmra.mxu0 %v764
      %v2071 = vpop.f32.mrf.mxu0
      %v2072 = vadd.f32 %v1536, %v2071
      %v2073 = vpop.f32.mrf.mxu0
      %v2074 = vpop.f32.mrf.mxu0
      %v2075 = vadd.f32 %v1539, %v2074
      %v2076 = vpop.f32.mrf.mxu0
      %2077 = vmatprep.mubr.bf16.mxu0 %v1204
      %2078 = vmatmul.mubr.bf16.gmra.mxu0 %v768
      %v2079 = vpop.f32.mrf.mxu0
      %v2080 = vadd.f32 %v1544, %v2079
      %v2081 = vpop.f32.mrf.mxu0
      %v2082 = vpop.f32.mrf.mxu0
      %v2083 = vadd.f32 %v1547, %v2082
      %v2084 = vpop.f32.mrf.mxu0
      %2085 = vmatprep.mubr.bf16.mxu0 %v1207
      %2086 = vmatmul.mubr.bf16.gmra.mxu0 %v772
      %v2087 = vpop.f32.mrf.mxu0
      %v2088 = vadd.f32 %v1552, %v2087
      %v2089 = vpop.f32.mrf.mxu0
      %v2090 = vpop.f32.mrf.mxu0
      %v2091 = vadd.f32 %v1555, %v2090
      %v2092 = vpop.f32.mrf.mxu0
      %2093 = vmatprep.mubr.bf16.mxu0 %v1210
      %2094 = vmatmul.mubr.bf16.gmra.mxu0 %v776
      %v2095 = vpop.f32.mrf.mxu0
      %v2096 = vadd.f32 %v1560, %v2095
      %v2097 = vpop.f32.mrf.mxu0
      %v2098 = vpop.f32.mrf.mxu0
      %v2099 = vadd.f32 %v1563, %v2098
      %v2100 = vpop.f32.mrf.mxu0
      %2101 = vmatprep.mubr.bf16.mxu0 %v1213
      %2102 = vmatmul.mubr.bf16.gmra.mxu0 %v780
      %v2103 = vpop.f32.mrf.mxu0
      %v2104 = vadd.f32 %v1568, %v2103
      %v2105 = vpop.f32.mrf.mxu0
      %v2106 = vpop.f32.mrf.mxu0
      %v2107 = vadd.f32 %v1571, %v2106
      %v2108 = vpop.f32.mrf.mxu0
      %2109 = vmatprep.mubr.bf16.mxu0 %v1216
      %2110 = vmatmul.mubr.bf16.gmra.mxu0 %v784
      %v2111 = vpop.f32.mrf.mxu0
      %v2112 = vadd.f32 %v1576, %v2111
      %v2113 = vpop.f32.mrf.mxu0
      %v2114 = vpop.f32.mrf.mxu0
      %v2115 = vadd.f32 %v1579, %v2114
      %v2116 = vpop.f32.mrf.mxu0
      %2117 = vmatprep.mubr.bf16.mxu0 %v1219
      %2118 = vmatmul.mubr.bf16.gmra.mxu0 %v788
      %v2119 = vpop.f32.mrf.mxu0
      %v2120 = vadd.f32 %v1584, %v2119
      %v2121 = vpop.f32.mrf.mxu0
      %v2122 = vpop.f32.mrf.mxu0
      %v2123 = vadd.f32 %v1587, %v2122
      %v2124 = vpop.f32.mrf.mxu0
      %2125 = vmatprep.mubr.bf16.mxu0 %v1222
      %2126 = vmatmul.mubr.bf16.gmra.mxu0 %v792
      %v2127 = vpop.f32.mrf.mxu0
      %v2128 = vadd.f32 %v1592, %v2127
      %v2129 = vpop.f32.mrf.mxu0
      %v2130 = vpop.f32.mrf.mxu0
      %v2131 = vadd.f32 %v1595, %v2130
      %v2132 = vpop.f32.mrf.mxu0
      %2133 = vmatprep.mubr.bf16.mxu0 %v1225
      %2134 = vmatmul.mubr.bf16.gmra.mxu0 %v796
      %v2135 = vpop.f32.mrf.mxu0
      %v2136 = vadd.f32 %v1600, %v2135
      %v2137 = vpop.f32.mrf.mxu0
      %v2138 = vpop.f32.mrf.mxu0
      %v2139 = vadd.f32 %v1603, %v2138
      %v2140 = vpop.f32.mrf.mxu0
      %2141 = vmatprep.mubr.bf16.mxu0 %v1228
      %2142 = vmatmul.mubr.bf16.gmra.mxu0 %v800
      %v2143 = vpop.f32.mrf.mxu0
      %v2144 = vadd.f32 %v1608, %v2143
      %v2145 = vpop.f32.mrf.mxu0
      %v2146 = vpop.f32.mrf.mxu0
      %v2147 = vadd.f32 %v1611, %v2146
      %v2148 = vpop.f32.mrf.mxu0
      %2149 = vmatprep.mubr.bf16.mxu0 %v1231
      %2150 = vmatmul.mubr.bf16.gmra.mxu0 %v804
      %v2151 = vpop.f32.mrf.mxu0
      %v2152 = vadd.f32 %v1616, %v2151
      %v2153 = vpop.f32.mrf.mxu0
      %v2154 = vpop.f32.mrf.mxu0
      %v2155 = vadd.f32 %v1619, %v2154
      %v2156 = vpop.f32.mrf.mxu0
      %2157 = vmatprep.mubr.bf16.mxu0 %v1234
      %2158 = vmatmul.mubr.bf16.gmra.mxu0 %v808
      %v2159 = vpop.f32.mrf.mxu0
      %v2160 = vadd.f32 %v1624, %v2159
      %v2161 = vpop.f32.mrf.mxu0
      %v2162 = vpop.f32.mrf.mxu0
      %v2163 = vadd.f32 %v1627, %v2162
      %v2164 = vpop.f32.mrf.mxu0
      %2165 = vmatprep.mubr.bf16.mxu0 %v1237
      %2166 = vmatmul.mubr.bf16.gmra.mxu0 %v812
      %v2167 = vpop.f32.mrf.mxu0
      %v2168 = vadd.f32 %v1632, %v2167
      %v2169 = vpop.f32.mrf.mxu0
      %v2170 = vpop.f32.mrf.mxu0
      %v2171 = vadd.f32 %v1635, %v2170
      %v2172 = vpop.f32.mrf.mxu0
      %2173 = vmatprep.mubr.bf16.mxu0 %v1240
      %2174 = vmatmul.mubr.bf16.gmra.mxu0 %v816
      %v2175 = vpop.f32.mrf.mxu0
      %v2176 = vadd.f32 %v1640, %v2175
      %v2177 = vpop.f32.mrf.mxu0
      %v2178 = vpop.f32.mrf.mxu0
      %v2179 = vadd.f32 %v1643, %v2178
      %v2180 = vpop.f32.mrf.mxu0
      %2181 = vmatprep.mubr.bf16.mxu0 %v1243
      %2182 = vmatmul.mubr.bf16.gmra.mxu0 %v820
      %v2183 = vpop.f32.mrf.mxu0
      %v2184 = vadd.f32 %v1648, %v2183
      %v2185 = vpop.f32.mrf.mxu0
      %v2186 = vpop.f32.mrf.mxu0
      %v2187 = vadd.f32 %v1651, %v2186
      %v2188 = vpop.f32.mrf.mxu0
      %2189 = vmatprep.mubr.bf16.mxu0 %v1246
      %2190 = vmatmul.mubr.bf16.gmra.mxu0 %v824
      %v2191 = vpop.f32.mrf.mxu0
      %v2192 = vadd.f32 %v1656, %v2191
      %v2193 = vpop.f32.mrf.mxu0
      %v2194 = vpop.f32.mrf.mxu0
      %v2195 = vadd.f32 %v1659, %v2194
      %v2196 = vpop.f32.mrf.mxu0
      %2197 = vmatprep.mubr.bf16.mxu0 %v1249
      %2198 = vmatmul.mubr.bf16.gmra.mxu0 %v828
      %v2199 = vpop.f32.mrf.mxu0
      %v2200 = vadd.f32 %v1664, %v2199
      %v2201 = vpop.f32.mrf.mxu0
      %v2202 = vpop.f32.mrf.mxu0
      %v2203 = vadd.f32 %v1667, %v2202
      %v2204 = vpop.f32.mrf.mxu0
      %2205 = vmatprep.mubr.bf16.mxu0 %v1252
      %2206 = vmatmul.mubr.bf16.gmra.mxu0 %v832
      %v2207 = vpop.f32.mrf.mxu0
      %v2208 = vadd.f32 %v1672, %v2207
      %v2209 = vpop.f32.mrf.mxu0
      %v2210 = vpop.f32.mrf.mxu0
      %v2211 = vadd.f32 %v1675, %v2210
      %v2212 = vpop.f32.mrf.mxu0
      %2213 = vmatprep.mubr.bf16.mxu0 %v1255
      %2214 = vmatmul.mubr.bf16.gmra.mxu0 %v836
      %v2215 = vpop.f32.mrf.mxu0
      %v2216 = vadd.f32 %v1680, %v2215
      %v2217 = vpop.f32.mrf.mxu0
      %v2218 = vpop.f32.mrf.mxu0
      %v2219 = vadd.f32 %v1683, %v2218
      %v2220 = vpop.f32.mrf.mxu0
      %2221 = vmatprep.mubr.bf16.mxu0 %v1258
      %2222 = vmatmul.mubr.bf16.gmra.mxu0 %v840
      %v2223 = vpop.f32.mrf.mxu0
      %v2224 = vadd.f32 %v1688, %v2223
      %v2225 = vpop.f32.mrf.mxu0
      %v2226 = vpop.f32.mrf.mxu0
      %v2227 = vadd.f32 %v1691, %v2226
      %v2228 = vpop.f32.mrf.mxu0
      %2229 = vmatprep.mubr.bf16.mxu0 %v1261
      %2230 = vmatmul.mubr.bf16.gmra.mxu0 %v844
      %v2231 = vpop.f32.mrf.mxu0
      %v2232 = vadd.f32 %v1696, %v2231
      %v2233 = vpop.f32.mrf.mxu0
      %v2234 = vpop.f32.mrf.mxu0
      %v2235 = vadd.f32 %v1699, %v2234
      %v2236 = vpop.f32.mrf.mxu0
      %2237 = vmatprep.mubr.bf16.mxu0 %v1264
      %2238 = vmatmul.mubr.bf16.gmra.mxu0 %v848
      %v2239 = vpop.f32.mrf.mxu0
      %v2240 = vadd.f32 %v1704, %v2239
      %v2241 = vpop.f32.mrf.mxu0
      %v2242 = vpop.f32.mrf.mxu0
      %v2243 = vadd.f32 %v1707, %v2242
      %v2244 = vpop.f32.mrf.mxu0
      %2245 = vmatprep.mubr.bf16.mxu0 %v1267
      %2246 = vmatmul.mubr.bf16.gmra.mxu0 %v852
      %v2247 = vpop.f32.mrf.mxu0
      %v2248 = vadd.f32 %v1712, %v2247
      %v2249 = vpop.f32.mrf.mxu0
      %v2250 = vpop.f32.mrf.mxu0
      %v2251 = vadd.f32 %v1715, %v2250
      %v2252 = vpop.f32.mrf.mxu0
      %2253 = vmatprep.mubr.bf16.mxu0 %v1270
      %2254 = vmatmul.mubr.bf16.gmra.mxu0 %v856
      %v2255 = vpop.f32.mrf.mxu0
      %v2256 = vadd.f32 %v1720, %v2255
      %v2257 = vpop.f32.mrf.mxu0
      %v2258 = vpop.f32.mrf.mxu0
      %v2259 = vadd.f32 %v1723, %v2258
      %v2260 = vpop.f32.mrf.mxu0
      %2261 = vmatprep.mubr.bf16.mxu0 %v1273
      %2262 = vmatmul.mubr.bf16.gmra.mxu0 %v860
      %v2263 = vpop.f32.mrf.mxu0
      %v2264 = vadd.f32 %v1728, %v2263
      %v2265 = vpop.f32.mrf.mxu0
      %v2266 = vpop.f32.mrf.mxu0
      %v2267 = vadd.f32 %v1731, %v2266
      %v2268 = vpop.f32.mrf.mxu0
      %2269 = vmatprep.mubr.bf16.mxu0 %v1276
      %2270 = vmatmul.mubr.bf16.gmra.mxu0 %v864
      %v2271 = vpop.f32.mrf.mxu0
      %v2272 = vadd.f32 %v1736, %v2271
      %v2273 = vpop.f32.mrf.mxu0
      %v2274 = vpop.f32.mrf.mxu0
      %v2275 = vadd.f32 %v1739, %v2274
      %v2276 = vpop.f32.mrf.mxu0
      %2277 = vmatprep.mubr.bf16.mxu0 %v1279
      %2278 = vmatmul.mubr.bf16.gmra.mxu0 %v868
      %v2279 = vpop.f32.mrf.mxu0
      %v2280 = vadd.f32 %v1744, %v2279
      %v2281 = vpop.f32.mrf.mxu0
      %v2282 = vpop.f32.mrf.mxu0
      %v2283 = vadd.f32 %v1747, %v2282
      %v2284 = vpop.f32.mrf.mxu0
      %2285 = vmatprep.mubr.bf16.mxu0 %v1282
      %2286 = vmatmul.mubr.bf16.gmra.mxu0 %v872
      %v2287 = vpop.f32.mrf.mxu0
      %v2288 = vadd.f32 %v1752, %v2287
      %v2289 = vpop.f32.mrf.mxu0
      %v2290 = vpop.f32.mrf.mxu0
      %v2291 = vadd.f32 %v1755, %v2290
      %v2292 = vpop.f32.mrf.mxu0
      %2293 = vmatprep.mubr.bf16.mxu0 %v1285
      %2294 = vmatmul.mubr.bf16.gmra.mxu0 %v876
      %v2295 = vpop.f32.mrf.mxu0
      %v2296 = vadd.f32 %v1760, %v2295
      %v2297 = vpop.f32.mrf.mxu0
      %v2298 = vpop.f32.mrf.mxu0
      %v2299 = vadd.f32 %v1763, %v2298
      %v2300 = vpop.f32.mrf.mxu0
      %2301 = vmatprep.mubr.bf16.mxu0 %v1288
      %2302 = vmatmul.mubr.bf16.gmra.mxu0 %v880
      %v2303 = vpop.f32.mrf.mxu0
      %v2304 = vadd.f32 %v1768, %v2303
      %v2305 = vpop.f32.mrf.mxu0
      %v2306 = vpop.f32.mrf.mxu0
      %v2307 = vadd.f32 %v1771, %v2306
      %v2308 = vpop.f32.mrf.mxu0
      %2309 = vmatprep.mubr.bf16.mxu0 %v1291
      %2310 = vmatmul.mubr.bf16.gmra.mxu0 %v884
      %v2311 = vpop.f32.mrf.mxu0
      %v2312 = vadd.f32 %v1776, %v2311
      %v2313 = vpop.f32.mrf.mxu0
      %v2314 = vpop.f32.mrf.mxu0
      %v2315 = vadd.f32 %v1779, %v2314
      %v2316 = vpop.f32.mrf.mxu0
      %2317 = vmatprep.mubr.bf16.mxu0 %v1294
      %2318 = vmatmul.mubr.bf16.gmra.mxu0 %v888
      %v2319 = vpop.f32.mrf.mxu0
      %v2320 = vadd.f32 %v1784, %v2319
      %v2321 = vpop.f32.mrf.mxu0
      %v2322 = vpop.f32.mrf.mxu0
      %v2323 = vadd.f32 %v1787, %v2322
      %v2324 = vpop.f32.mrf.mxu0
      %2325 = vmatprep.mubr.bf16.mxu0 %v1297
      %2326 = vmatmul.mubr.bf16.gmra.mxu0 %v892
      %v2327 = vpop.f32.mrf.mxu0
      %v2328 = vadd.f32 %v1792, %v2327
      %v2329 = vpop.f32.mrf.mxu0
      %v2330 = vpop.f32.mrf.mxu0
      %v2331 = vadd.f32 %v1795, %v2330
      %v2332 = vpop.f32.mrf.mxu0
      %2333 = vmatprep.mubr.bf16.mxu0 %v1300
      %2334 = vmatmul.mubr.bf16.gmra.mxu0 %v896
      %v2335 = vpop.f32.mrf.mxu0
      %v2336 = vadd.f32 %v1800, %v2335
      %v2337 = vpop.f32.mrf.mxu0
      %v2338 = vpop.f32.mrf.mxu0
      %v2339 = vadd.f32 %v1803, %v2338
      %v2340 = vpop.f32.mrf.mxu0
      %2341 = vmatprep.mubr.bf16.mxu0 %v1303
      %2342 = vmatmul.mubr.bf16.gmra.mxu0 %v900
      %v2343 = vpop.f32.mrf.mxu0
      %v2344 = vadd.f32 %v1808, %v2343
      %v2345 = vpop.f32.mrf.mxu0
      %v2346 = vpop.f32.mrf.mxu0
      %v2347 = vadd.f32 %v1811, %v2346
      %v2348 = vpop.f32.mrf.mxu0
      %2349 = vmatprep.mubr.bf16.mxu0 %v1306
      %2350 = vmatmul.mubr.bf16.gmra.mxu0 %v904
      %v2351 = vpop.f32.mrf.mxu0
      %v2352 = vadd.f32 %v1816, %v2351
      %v2353 = vpop.f32.mrf.mxu0
      %v2354 = vpop.f32.mrf.mxu0
      %v2355 = vadd.f32 %v1819, %v2354
      %v2356 = vpop.f32.mrf.mxu0
      %2357 = vmatprep.mubr.bf16.mxu0 %v1309
      %2358 = vmatmul.mubr.bf16.gmra.mxu0 %v908
      %v2359 = vpop.f32.mrf.mxu0
      %v2360 = vadd.f32 %v1824, %v2359
      %v2361 = vpop.f32.mrf.mxu0
      %v2362 = vpop.f32.mrf.mxu0
      %v2363 = vadd.f32 %v1827, %v2362
      %v2364 = vpop.f32.mrf.mxu0
      %2365 = vmatprep.mubr.bf16.mxu0 %v1312
      %2366 = vmatmul.mubr.bf16.gmra.mxu0 %v912
      %v2367 = vpop.f32.mrf.mxu0
      %v2368 = vadd.f32 %v1832, %v2367
      %v2369 = vpop.f32.mrf.mxu0
      %v2370 = vpop.f32.mrf.mxu0
      %v2371 = vadd.f32 %v1835, %v2370
      %v2372 = vpop.f32.mrf.mxu0
      %2373 = vmatprep.mubr.bf16.mxu0 %v1315
      %2374 = vmatmul.mubr.bf16.gmra.mxu0 %v916
      %v2375 = vpop.f32.mrf.mxu0
      %v2376 = vadd.f32 %v1840, %v2375
      %v2377 = vpop.f32.mrf.mxu0
      %v2378 = vpop.f32.mrf.mxu0
      %v2379 = vadd.f32 %v1843, %v2378
      %v2380 = vpop.f32.mrf.mxu0
      %2381 = vmatprep.mubr.bf16.mxu0 %v1318
      %2382 = vmatmul.mubr.bf16.gmra.mxu0 %v920
      %v2383 = vpop.f32.mrf.mxu0
      %v2384 = vadd.f32 %v1848, %v2383
      %v2385 = vpop.f32.mrf.mxu0
      %v2386 = vpop.f32.mrf.mxu0
      %v2387 = vadd.f32 %v1851, %v2386
      %v2388 = vpop.f32.mrf.mxu0
      %2389 = vmatprep.mubr.bf16.mxu0 %v1321
      %2390 = vmatmul.mubr.bf16.gmra.mxu0 %v924
      %v2391 = vpop.f32.mrf.mxu0
      %v2392 = vadd.f32 %v1856, %v2391
      %v2393 = vpop.f32.mrf.mxu0
      %v2394 = vpop.f32.mrf.mxu0
      %v2395 = vadd.f32 %v1859, %v2394
      %v2396 = vpop.f32.mrf.mxu0
      %2397 = vmatprep.mubr.bf16.mxu0 %v1324
      %2398 = vmatmul.mubr.bf16.gmra.mxu0 %v928
      %v2399 = vpop.f32.mrf.mxu0
      %v2400 = vadd.f32 %v1864, %v2399
      %v2401 = vpop.f32.mrf.mxu0
      %v2402 = vpop.f32.mrf.mxu0
      %v2403 = vpop.f32.mrf.mxu0
      %2404 = vdwg.mxu0
      %vm2405 = vcmask 285696
      %2406 = vst.msk [vmem:[%s175] sm:$0xff] %vm2405, %v1904
      %2407 = vst.msk [vmem:[%s175 + $0x8] sm:$0xff] %vm2405, %v1907
      %2408 = vst.msk [vmem:[%s175 + $0x10] sm:$0xff] %vm2405, %v1912
      %2409 = vst.msk [vmem:[%s175 + $0x18] sm:$0xff] %vm2405, %v1915
      %2410 = vst.msk [vmem:[%s175 + $0x20] sm:$0xff] %vm2405, %v1920
      %2411 = vst.msk [vmem:[%s175 + $0x28] sm:$0xff] %vm2405, %v1923
      %2412 = vst.msk [vmem:[%s175 + $0x30] sm:$0xff] %vm2405, %v1928
      %2413 = vst.msk [vmem:[%s175 + $0x38] sm:$0xff] %vm2405, %v1931
      %2414 = vst.msk [vmem:[%s175 + $0x40] sm:$0xff] %vm2405, %v1936
      %2415 = vst.msk [vmem:[%s175 + $0x48] sm:$0xff] %vm2405, %v1939
      %2416 = vst.msk [vmem:[%s175 + $0x50] sm:$0xff] %vm2405, %v1944
      %2417 = vst.msk [vmem:[%s175 + $0x58] sm:$0xff] %vm2405, %v1947
      %2418 = vst.msk [vmem:[%s175 + $0x60] sm:$0xff] %vm2405, %v1952
      %2419 = vst.msk [vmem:[%s175 + $0x68] sm:$0xff] %vm2405, %v1955
      %2420 = vst.msk [vmem:[%s175 + $0x70] sm:$0xff] %vm2405, %v1960
      %2421 = vst.msk [vmem:[%s175 + $0x78] sm:$0xff] %vm2405, %v1963
      %2422 = vst.msk [vmem:[%s175 + $0x80] sm:$0xff] %vm2405, %v1968
      %2423 = vst.msk [vmem:[%s175 + $0x88] sm:$0xff] %vm2405, %v1971
      %2424 = vst.msk [vmem:[%s175 + $0x90] sm:$0xff] %vm2405, %v1976
      %2425 = vst.msk [vmem:[%s175 + $0x98] sm:$0xff] %vm2405, %v1979
      %2426 = vst.msk [vmem:[%s175 + $0xa0] sm:$0xff] %vm2405, %v1984
      %2427 = vst.msk [vmem:[%s175 + $0xa8] sm:$0xff] %vm2405, %v1987
      %2428 = vst.msk [vmem:[%s175 + $0xb0] sm:$0xff] %vm2405, %v1992
      %2429 = vst.msk [vmem:[%s175 + $0xb8] sm:$0xff] %vm2405, %v1995
      %2430 = vst.msk [vmem:[%s175 + $0xc0] sm:$0xff] %vm2405, %v2000
      %2431 = vst.msk [vmem:[%s175 + $0xc8] sm:$0xff] %vm2405, %v2003
      %2432 = vst.msk [vmem:[%s175 + $0xd0] sm:$0xff] %vm2405, %v2008
      %2433 = vst.msk [vmem:[%s175 + $0xd8] sm:$0xff] %vm2405, %v2011
      %2434 = vst.msk [vmem:[%s175 + $0xe0] sm:$0xff] %vm2405, %v2016
      %2435 = vst.msk [vmem:[%s175 + $0xe8] sm:$0xff] %vm2405, %v2019
      %2436 = vst.msk [vmem:[%s175 + $0xf0] sm:$0xff] %vm2405, %v2024
      %2437 = vst.msk [vmem:[%s175 + $0xf8] sm:$0xff] %vm2405, %v2027
      %2438 = vst.msk [vmem:[%s175 + $0x100] sm:$0xff] %vm2405, %v2032
      %2439 = vst.msk [vmem:[%s175 + $0x108] sm:$0xff] %vm2405, %v2035
      %2440 = vst.msk [vmem:[%s175 + $0x110] sm:$0xff] %vm2405, %v2040
      %2441 = vst.msk [vmem:[%s175 + $0x118] sm:$0xff] %vm2405, %v2043
      %2442 = vst.msk [vmem:[%s175 + $0x120] sm:$0xff] %vm2405, %v2048
      %2443 = vst.msk [vmem:[%s175 + $0x128] sm:$0xff] %vm2405, %v2051
      %2444 = vst.msk [vmem:[%s175 + $0x130] sm:$0xff] %vm2405, %v2056
      %2445 = vst.msk [vmem:[%s175 + $0x138] sm:$0xff] %vm2405, %v2059
      %2446 = vst.msk [vmem:[%s175 + $0x140] sm:$0xff] %vm2405, %v2064
      %2447 = vst.msk [vmem:[%s175 + $0x148] sm:$0xff] %vm2405, %v2067
      %2448 = vst.msk [vmem:[%s175 + $0x150] sm:$0xff] %vm2405, %v2072
      %2449 = vst.msk [vmem:[%s175 + $0x158] sm:$0xff] %vm2405, %v2075
      %2450 = vst.msk [vmem:[%s175 + $0x160] sm:$0xff] %vm2405, %v2080
      %2451 = vst.msk [vmem:[%s175 + $0x168] sm:$0xff] %vm2405, %v2083
      %2452 = vst.msk [vmem:[%s175 + $0x170] sm:$0xff] %vm2405, %v2088
      %2453 = vst.msk [vmem:[%s175 + $0x178] sm:$0xff] %vm2405, %v2091
      %2454 = vst.msk [vmem:[%s175 + $0x180] sm:$0xff] %vm2405, %v2096
      %2455 = vst.msk [vmem:[%s175 + $0x188] sm:$0xff] %vm2405, %v2099
      %2456 = vst.msk [vmem:[%s175 + $0x190] sm:$0xff] %vm2405, %v2104
      %2457 = vst.msk [vmem:[%s175 + $0x198] sm:$0xff] %vm2405, %v2107
      %2458 = vst.msk [vmem:[%s175 + $0x1a0] sm:$0xff] %vm2405, %v2112
      %2459 = vst.msk [vmem:[%s175 + $0x1a8] sm:$0xff] %vm2405, %v2115
      %2460 = vst.msk [vmem:[%s175 + $0x1b0] sm:$0xff] %vm2405, %v2120
      %2461 = vst.msk [vmem:[%s175 + $0x1b8] sm:$0xff] %vm2405, %v2123
      %2462 = vst.msk [vmem:[%s175 + $0x1c0] sm:$0xff] %vm2405, %v2128
      %2463 = vst.msk [vmem:[%s175 + $0x1c8] sm:$0xff] %vm2405, %v2131
      %2464 = vst.msk [vmem:[%s175 + $0x1d0] sm:$0xff] %vm2405, %v2136
      %2465 = vst.msk [vmem:[%s175 + $0x1d8] sm:$0xff] %vm2405, %v2139
      %2466 = vst.msk [vmem:[%s175 + $0x1e0] sm:$0xff] %vm2405, %v2144
      %2467 = vst.msk [vmem:[%s175 + $0x1e8] sm:$0xff] %vm2405, %v2147
      %2468 = vst.msk [vmem:[%s175 + $0x1f0] sm:$0xff] %vm2405, %v2152
      %2469 = vst.msk [vmem:[%s175 + $0x1f8] sm:$0xff] %vm2405, %v2155
      %2470 = vst.msk [vmem:[%s175 + $0x200] sm:$0xff] %vm2405, %v2160
      %2471 = vst.msk [vmem:[%s175 + $0x208] sm:$0xff] %vm2405, %v2163
      %2472 = vst.msk [vmem:[%s175 + $0x210] sm:$0xff] %vm2405, %v2168
      %2473 = vst.msk [vmem:[%s175 + $0x218] sm:$0xff] %vm2405, %v2171
      %2474 = vst.msk [vmem:[%s175 + $0x220] sm:$0xff] %vm2405, %v2176
      %2475 = vst.msk [vmem:[%s175 + $0x228] sm:$0xff] %vm2405, %v2179
      %2476 = vst.msk [vmem:[%s175 + $0x230] sm:$0xff] %vm2405, %v2184
      %2477 = vst.msk [vmem:[%s175 + $0x238] sm:$0xff] %vm2405, %v2187
      %2478 = vst.msk [vmem:[%s175 + $0x240] sm:$0xff] %vm2405, %v2192
      %2479 = vst.msk [vmem:[%s175 + $0x248] sm:$0xff] %vm2405, %v2195
      %2480 = vst.msk [vmem:[%s175 + $0x250] sm:$0xff] %vm2405, %v2200
      %2481 = vst.msk [vmem:[%s175 + $0x258] sm:$0xff] %vm2405, %v2203
      %2482 = vst.msk [vmem:[%s175 + $0x260] sm:$0xff] %vm2405, %v2208
      %2483 = vst.msk [vmem:[%s175 + $0x268] sm:$0xff] %vm2405, %v2211
      %2484 = vst.msk [vmem:[%s175 + $0x270] sm:$0xff] %vm2405, %v2216
      %2485 = vst.msk [vmem:[%s175 + $0x278] sm:$0xff] %vm2405, %v2219
      %2486 = vst.msk [vmem:[%s175 + $0x280] sm:$0xff] %vm2405, %v2224
      %2487 = vst.msk [vmem:[%s175 + $0x288] sm:$0xff] %vm2405, %v2227
      %2488 = vst.msk [vmem:[%s175 + $0x290] sm:$0xff] %vm2405, %v2232
      %2489 = vst.msk [vmem:[%s175 + $0x298] sm:$0xff] %vm2405, %v2235
      %2490 = vst.msk [vmem:[%s175 + $0x2a0] sm:$0xff] %vm2405, %v2240
      %2491 = vst.msk [vmem:[%s175 + $0x2a8] sm:$0xff] %vm2405, %v2243
      %2492 = vst.msk [vmem:[%s175 + $0x2b0] sm:$0xff] %vm2405, %v2248
      %2493 = vst.msk [vmem:[%s175 + $0x2b8] sm:$0xff] %vm2405, %v2251
      %2494 = vst.msk [vmem:[%s175 + $0x2c0] sm:$0xff] %vm2405, %v2256
      %2495 = vst.msk [vmem:[%s175 + $0x2c8] sm:$0xff] %vm2405, %v2259
      %2496 = vst.msk [vmem:[%s175 + $0x2d0] sm:$0xff] %vm2405, %v2264
      %2497 = vst.msk [vmem:[%s175 + $0x2d8] sm:$0xff] %vm2405, %v2267
      %2498 = vst.msk [vmem:[%s175 + $0x2e0] sm:$0xff] %vm2405, %v2272
      %2499 = vst.msk [vmem:[%s175 + $0x2e8] sm:$0xff] %vm2405, %v2275
      %2500 = vst.msk [vmem:[%s175 + $0x2f0] sm:$0xff] %vm2405, %v2280
      %2501 = vst.msk [vmem:[%s175 + $0x2f8] sm:$0xff] %vm2405, %v2283
      %2502 = vst.msk [vmem:[%s175 + $0x300] sm:$0xff] %vm2405, %v2288
      %2503 = vst.msk [vmem:[%s175 + $0x308] sm:$0xff] %vm2405, %v2291
      %2504 = vst.msk [vmem:[%s175 + $0x310] sm:$0xff] %vm2405, %v2296
      %2505 = vst.msk [vmem:[%s175 + $0x318] sm:$0xff] %vm2405, %v2299
      %2506 = vst.msk [vmem:[%s175 + $0x320] sm:$0xff] %vm2405, %v2304
      %2507 = vst.msk [vmem:[%s175 + $0x328] sm:$0xff] %vm2405, %v2307
      %2508 = vst.msk [vmem:[%s175 + $0x330] sm:$0xff] %vm2405, %v2312
      %2509 = vst.msk [vmem:[%s175 + $0x338] sm:$0xff] %vm2405, %v2315
      %2510 = vst.msk [vmem:[%s175 + $0x340] sm:$0xff] %vm2405, %v2320
      %2511 = vst.msk [vmem:[%s175 + $0x348] sm:$0xff] %vm2405, %v2323
      %2512 = vst.msk [vmem:[%s175 + $0x350] sm:$0xff] %vm2405, %v2328
      %2513 = vst.msk [vmem:[%s175 + $0x358] sm:$0xff] %vm2405, %v2331
      %2514 = vst.msk [vmem:[%s175 + $0x360] sm:$0xff] %vm2405, %v2336
      %2515 = vst.msk [vmem:[%s175 + $0x368] sm:$0xff] %vm2405, %v2339
      %2516 = vst.msk [vmem:[%s175 + $0x370] sm:$0xff] %vm2405, %v2344
      %2517 = vst.msk [vmem:[%s175 + $0x378] sm:$0xff] %vm2405, %v2347
      %2518 = vst.msk [vmem:[%s175 + $0x380] sm:$0xff] %vm2405, %v2352
      %2519 = vst.msk [vmem:[%s175 + $0x388] sm:$0xff] %vm2405, %v2355
      %2520 = vst.msk [vmem:[%s175 + $0x390] sm:$0xff] %vm2405, %v2360
      %2521 = vst.msk [vmem:[%s175 + $0x398] sm:$0xff] %vm2405, %v2363
      %2522 = vst.msk [vmem:[%s175 + $0x3a0] sm:$0xff] %vm2405, %v2368
      %2523 = vst.msk [vmem:[%s175 + $0x3a8] sm:$0xff] %vm2405, %v2371
      %2524 = vst.msk [vmem:[%s175 + $0x3b0] sm:$0xff] %vm2405, %v2376
      %2525 = vst.msk [vmem:[%s175 + $0x3b8] sm:$0xff] %vm2405, %v2379
      %2526 = vst.msk [vmem:[%s175 + $0x3c0] sm:$0xff] %vm2405, %v2384
      %2527 = vst.msk [vmem:[%s175 + $0x3c8] sm:$0xff] %vm2405, %v2387
      %2528 = vst.msk [vmem:[%s175 + $0x3d0] sm:$0xff] %vm2405, %v2392
      %2529 = vst.msk [vmem:[%s175 + $0x3d8] sm:$0xff] %vm2405, %v2395
      %2530 = vst.msk [vmem:[%s175 + $0x3e0] sm:$0xff] %vm2405, %v2400
      %s2531 = smul.u32 125, %s14
      %p2532 = scmp.lt.s32.totalorder %s2531, 249
      %s2533 = scalar_select %p2532, %s2531, 249
      %s2534 = smul.addr %s2533, 8
      %s2535 = scalar_lea.vmem %s3, %s2534
      // Predicated region
      $region33: #{rerank_forward.6} parent=31 // pred_check
        %p2536 = pneg %p100
      $region34: #{rerank_forward.6} parent=31 // pred_check_branch
        %2538 = sbr.rel (%p2536) target = $region36
      $region35: #{rerank_forward.6} parent=31 // pred_region
        %s2539 = smul.u32 125, %s14
      $region36: #{rerank_forward.6} parent=31 // pred_fallthru
        _
    $region32: #{rerank_forward.6} parent=5 // pred_fallthru
      _
    %p2540 = scmp.le.s32.totalorder 2, %s9
    // Predicated region
    $region37: #{rerank_forward.6} parent=5 // pred_check
      %p2541 = pneg %p2540
    $region38: #{rerank_forward.6} parent=5 // pred_check_branch
      %2543 = sbr.rel (%p2541) target = $region40
    $region39: #{rerank_forward.6} parent=5 // pred_region
      %s2544 = ssub.s32 %s9, 2
      // Predicated region
      $region41: #{rerank_forward.6} parent=39 // pred_check
        %p2545 = pneg %p106
      $region42: #{rerank_forward.6} parent=39 // pred_check_branch
        %2547 = sbr.rel (%p2545) target = $region44
      $region43: #{rerank_forward.6} parent=39 // pred_region
        %s2548 = smul.u32 125, %s15
        %p2549 = scmp.lt.s32.totalorder %s2548, 249
        %s2550 = scalar_select %p2549, %s2548, 249
        %s2551 = smul.addr %s2550, 8
        %s2552 = scalar_lea.vmem %s3, %s2551
      $region44: #{rerank_forward.6} parent=39 // pred_fallthru
        _
    $region40: #{rerank_forward.6} parent=5 // pred_fallthru
      _
  $region6: #{rerank_forward.6} parent=0 // loop_footer
    %s13 = sadd.s32 1, %s9
  $region7: #{rerank_forward.6} parent=0 // loop_footer_branch
    %8 = sbr.rel target = $region3
  $region8: #{rerank_forward.6} parent=0 // loop_exit
    _

// kernel: rerank_forward.8
$region0: #{rerank_forward.8}
  #allocation0 [shape = 'u32[]', space=smem, size = 0x4, offset = 0x4, fixed_abs, tag = 'smem constant byte address 0x4 - core index']
  #allocation1 [shape = 'u32[144,128]{1,0:T(1,128)}', space=vmem, size = 0x12000, scoped, tag = 'internal scratch']
  %s0 = inlined_call_operand.vmem [shape: f32[2,26,224], index: 0, kind: input, shape index: {}]
  %s1 = inlined_call_operand.vmem [shape: f32[2,26,224], index: 1, kind: input, shape index: {}]
  %s2 = inlined_call_operand.vmem [shape: bf16[224,192], index: 2, kind: input, shape index: {}]
  %s3 = inlined_call_operand.vmem [shape: bf16[224,192], index: 3, kind: input, shape index: {}]
  %s4 = inlined_call_operand.vmem [shape: bf16[224,192], index: 4, kind: input, shape index: {}]
  %s5 = inlined_call_operand.vmem [shape: f32[1,192], index: 5, kind: input, shape index: {}]
  %s6 = inlined_call_operand.vmem [shape: f32[2,25,192], index: 6, kind: output, shape index: {}]
  %s7 = sld [smem:[#allocation0]]
  $region34: #{rerank_forward.8} parent=0
    _
  %s9 = ssub.s32 1, %s7
  %s10 = scalar_select 0, %s9, %s7
  // Predicated region
  $region2: #{rerank_forward.8} parent=0 // pred_check
    _
  $region3: #{rerank_forward.8} parent=0 // pred_check_branch
    %12 = sbr.rel (0) target = $region5
  $region4: #{rerank_forward.8} parent=0 // pred_region
    _
  $region5: #{rerank_forward.8} parent=0 // pred_fallthru
    _
  // Predicated region
  $region6: #{rerank_forward.8} parent=0 // pred_check
    _
  $region7: #{rerank_forward.8} parent=0 // pred_check_branch
    %14 = sbr.rel (0) target = $region9
  $region8: #{rerank_forward.8} parent=0 // pred_region
    _
  $region9: #{rerank_forward.8} parent=0 // pred_fallthru
    _
  // Predicated region
  $region10: #{rerank_forward.8} parent=0 // pred_check
    _
  $region11: #{rerank_forward.8} parent=0 // pred_check_branch
    %16 = sbr.rel (0) target = $region13
  $region12: #{rerank_forward.8} parent=0 // pred_region
    _
  $region13: #{rerank_forward.8} parent=0 // pred_fallthru
    _
  // Predicated region
  $region14: #{rerank_forward.8} parent=0 // pred_check
    _
  $region15: #{rerank_forward.8} parent=0 // pred_check_branch
    %18 = sbr.rel (0) target = $region17
  $region16: #{rerank_forward.8} parent=0 // pred_region
    _
  $region17: #{rerank_forward.8} parent=0 // pred_fallthru
    _
  // Predicated region
  $region18: #{rerank_forward.8} parent=0 // pred_check
    _
  $region19: #{rerank_forward.8} parent=0 // pred_check_branch
    %20 = sbr.rel (0) target = $region21
  $region20: #{rerank_forward.8} parent=0 // pred_region
    _
  $region21: #{rerank_forward.8} parent=0 // pred_fallthru
    _
  // Predicated region
  $region22: #{rerank_forward.8} parent=0 // pred_check
    _
  $region23: #{rerank_forward.8} parent=0 // pred_check_branch
    %22 = sbr.rel (0) target = $region25
  $region24: #{rerank_forward.8} parent=0 // pred_region
    _
  $region25: #{rerank_forward.8} parent=0 // pred_fallthru
    _
  %v24 = vld [vmem:[%s2] sm:$0xff]
  %v25 = vld [vmem:[%s2 + $0x8] sm:$0xff]
  %v26 = vld [vmem:[%s2 + $0x10] sm:$0xff]
  %v27 = vld [vmem:[%s2 + $0x18] sm:$0xff]
  %v28 = vld [vmem:[%s2 + $0x20] sm:$0xff]
  %v29 = vld [vmem:[%s2 + $0x28] sm:$0xff]
  %v30 = vld [vmem:[%s2 + $0x30] sm:$0xff]
  %v31 = vld [vmem:[%s2 + $0x38] sm:$0xff]
  %v32 = vld [vmem:[%s2 + $0x40] sm:$0xff]
  %v33 = vld [vmem:[%s2 + $0x48] sm:$0xff]
  %v34 = vld [vmem:[%s2 + $0x50] sm:$0xff]
  %v35 = vld [vmem:[%s2 + $0x58] sm:$0xff]
  %v36 = vld [vmem:[%s2 + $0x60] sm:$0xff]
  %v37 = vld [vmem:[%s2 + $0x68] sm:$0xff]
  %v38 = vld [vmem:[%s2 + $0x70] sm:$0xff]
  %v39 = vld [vmem:[%s2 + $0x78] sm:$0xff]
  %v40 = vld [vmem:[%s2 + $0x80] sm:$0xff]
  %v41 = vld [vmem:[%s2 + $0x88] sm:$0xff]
  %v42 = vld [vmem:[%s2 + $0x90] sm:$0xff]
  %v43 = vld [vmem:[%s2 + $0x98] sm:$0xff]
  %v44 = vld [vmem:[%s2 + $0xa0] sm:$0xff]
  %v45 = vld [vmem:[%s2 + $0xa8] sm:$0xff]
  %v46 = vld [vmem:[%s2 + $0xb0] sm:$0xff]
  %v47 = vld [vmem:[%s2 + $0xb8] sm:$0xff]
  %v48 = vld [vmem:[%s2 + $0xc0] sm:$0xff]
  %v49 = vld [vmem:[%s2 + $0xc8] sm:$0xff]
  %v50 = vld [vmem:[%s2 + $0xd0] sm:$0xff]
  %v51 = vld [vmem:[%s2 + $0xd8] sm:$0xff]
  %v52 = vld [vmem:[%s3] sm:$0xff]
  %v53 = vld [vmem:[%s3 + $0x8] sm:$0xff]
  %v54 = vld [vmem:[%s3 + $0x10] sm:$0xff]
  %v55 = vld [vmem:[%s3 + $0x18] sm:$0xff]
  %v56 = vld [vmem:[%s3 + $0x20] sm:$0xff]
  %v57 = vld [vmem:[%s3 + $0x28] sm:$0xff]
  %v58 = vld [vmem:[%s3 + $0x30] sm:$0xff]
  %v59 = vld [vmem:[%s3 + $0x38] sm:$0xff]
  %v60 = vld [vmem:[%s3 + $0x40] sm:$0xff]
  %v61 = vld [vmem:[%s3 + $0x48] sm:$0xff]
  %v62 = vld [vmem:[%s3 + $0x50] sm:$0xff]
  %v63 = vld [vmem:[%s3 + $0x58] sm:$0xff]
  %v64 = vld [vmem:[%s3 + $0x60] sm:$0xff]
  %v65 = vld [vmem:[%s3 + $0x68] sm:$0xff]
  %v66 = vld [vmem:[%s3 + $0x70] sm:$0xff]
  %v67 = vld [vmem:[%s3 + $0x78] sm:$0xff]
  %v68 = vld [vmem:[%s3 + $0x80] sm:$0xff]
  %v69 = vld [vmem:[%s3 + $0x88] sm:$0xff]
  %v70 = vld [vmem:[%s3 + $0x90] sm:$0xff]
  %v71 = vld [vmem:[%s3 + $0x98] sm:$0xff]
  %v72 = vld [vmem:[%s3 + $0xa0] sm:$0xff]
  %v73 = vld [vmem:[%s3 + $0xa8] sm:$0xff]
  %v74 = vld [vmem:[%s3 + $0xb0] sm:$0xff]
  %v75 = vld [vmem:[%s3 + $0xb8] sm:$0xff]
  %v76 = vld [vmem:[%s3 + $0xc0] sm:$0xff]
  %v77 = vld [vmem:[%s3 + $0xc8] sm:$0xff]
  %v78 = vld [vmem:[%s3 + $0xd0] sm:$0xff]
  %v79 = vld [vmem:[%s3 + $0xd8] sm:$0xff]
  %v80 = vld [vmem:[%s4] sm:$0xff]
  %v81 = vld [vmem:[%s4 + $0x8] sm:$0xff]
  %v82 = vld [vmem:[%s4 + $0x10] sm:$0xff]
  %v83 = vld [vmem:[%s4 + $0x18] sm:$0xff]
  %v84 = vld [vmem:[%s4 + $0x20] sm:$0xff]
  %v85 = vld [vmem:[%s4 + $0x28] sm:$0xff]
  %v86 = vld [vmem:[%s4 + $0x30] sm:$0xff]
  %v87 = vld [vmem:[%s4 + $0x38] sm:$0xff]
  %v88 = vld [vmem:[%s4 + $0x40] sm:$0xff]
  %v89 = vld [vmem:[%s4 + $0x48] sm:$0xff]
  %v90 = vld [vmem:[%s4 + $0x50] sm:$0xff]
  %v91 = vld [vmem:[%s4 + $0x58] sm:$0xff]
  %v92 = vld [vmem:[%s4 + $0x60] sm:$0xff]
  %v93 = vld [vmem:[%s4 + $0x68] sm:$0xff]
  %v94 = vld [vmem:[%s4 + $0x70] sm:$0xff]
  %v95 = vld [vmem:[%s4 + $0x78] sm:$0xff]
  %v96 = vld [vmem:[%s4 + $0x80] sm:$0xff]
  %v97 = vld [vmem:[%s4 + $0x88] sm:$0xff]
  %v98 = vld [vmem:[%s4 + $0x90] sm:$0xff]
  %v99 = vld [vmem:[%s4 + $0x98] sm:$0xff]
  %v100 = vld [vmem:[%s4 + $0xa0] sm:$0xff]
  %v101 = vld [vmem:[%s4 + $0xa8] sm:$0xff]
  %v102 = vld [vmem:[%s4 + $0xb0] sm:$0xff]
  %v103 = vld [vmem:[%s4 + $0xb8] sm:$0xff]
  %v104 = vld [vmem:[%s4 + $0xc0] sm:$0xff]
  %v105 = vld [vmem:[%s4 + $0xc8] sm:$0xff]
  %v106 = vld [vmem:[%s4 + $0xd0] sm:$0xff]
  %v107 = vld [vmem:[%s4 + $0xd8] sm:$0xff]
  %v108 = vld [vmem:[%s5] sm:$0x3]
  %v109 = vld [vmem:[%s0] sm:$0xff]
  %v110 = vld [vmem:[%s0 + $0x8] sm:$0xff]
  %v111 = vld [vmem:[%s0 + $0x10] sm:$0xff]
  %v112 = vld [vmem:[%s0 + $0x18] sm:$0xff]
  %v113 = vld [vmem:[%s0 + $0x20] sm:$0xff]
  %v114 = vld [vmem:[%s0 + $0x28] sm:$0xff]
  %v115 = vld [vmem:[%s0 + $0x30] sm:$0x3]
  %v116 = vld [vmem:[%s0 + $0x38] sm:$0x3]
  %v117 = vld [vmem:[%s1] sm:$0xff]
  %v118 = vld [vmem:[%s1 + $0x8] sm:$0xff]
  %v119 = vld [vmem:[%s1 + $0x10] sm:$0xff]
  %v120 = vld [vmem:[%s1 + $0x18] sm:$0xff]
  %v121 = vld [vmem:[%s1 + $0x20] sm:$0xff]
  %v122 = vld [vmem:[%s1 + $0x28] sm:$0xff]
  %v123 = vld [vmem:[%s1 + $0x30] sm:$0x3]
  %v124 = vld [vmem:[%s1 + $0x38] sm:$0x3]
  %v125 = vpack.c.bf16 %v111, %v109
  %v126 = vpack.c.bf16 %v112, %v110
  %v127 = vpack.c.bf16 %v115, %v113
  %v128 = vpack.c.bf16 %v116, %v114
  %v129 = vpack.c.bf16 %v119, %v117
  %v130 = vpack.c.bf16 %v120, %v118
  %v131 = vpack.c.bf16 %v123, %v121
  %v132 = vpack.c.bf16 %v124, %v122
  %v161 = vunpack.c.l.b16 %v52
  %v162 = vunpack.c.h.b16 %v52
  %v163 = vunpack.c.l.b16 %v53
  %v164 = vunpack.c.h.b16 %v53
  %v165 = vunpack.c.l.b16 %v54
  %v166 = vunpack.c.h.b16 %v54
  %v167 = vunpack.c.l.b16 %v55
  %v168 = vunpack.c.h.b16 %v55
  %v169 = vunpack.c.l.b16 %v56
  %v170 = vunpack.c.h.b16 %v56
  %v171 = vunpack.c.l.b16 %v57
  %v172 = vunpack.c.h.b16 %v57
  %v173 = vunpack.c.l.b16 %v58
  %v174 = vunpack.c.h.b16 %v58
  %v175 = vunpack.c.l.b16 %v59
  %v176 = vunpack.c.h.b16 %v59
  %v177 = vunpack.c.l.b16 %v60
  %v178 = vunpack.c.h.b16 %v60
  %v179 = vunpack.c.l.b16 %v61
  %v180 = vunpack.c.h.b16 %v61
  %v181 = vunpack.c.l.b16 %v62
  %v182 = vunpack.c.h.b16 %v62
  %v183 = vunpack.c.l.b16 %v63
  %v184 = vunpack.c.h.b16 %v63
  %v185 = vunpack.c.l.b16 %v64
  %v186 = vunpack.c.h.b16 %v64
  %v187 = vunpack.c.l.b16 %v65
  %v188 = vunpack.c.h.b16 %v65
  %v189 = vunpack.c.l.b16 %v66
  %v190 = vunpack.c.h.b16 %v66
  %v191 = vunpack.c.l.b16 %v67
  %v192 = vunpack.c.h.b16 %v67
  %v193 = vunpack.c.l.b16 %v68
  %v194 = vunpack.c.h.b16 %v68
  %v195 = vunpack.c.l.b16 %v69
  %v196 = vunpack.c.h.b16 %v69
  %v197 = vunpack.c.l.b16 %v70
  %v198 = vunpack.c.h.b16 %v70
  %v199 = vunpack.c.l.b16 %v71
  %v200 = vunpack.c.h.b16 %v71
  %v201 = vunpack.c.l.b16 %v72
  %v202 = vunpack.c.h.b16 %v72
  %v203 = vunpack.c.l.b16 %v73
  %v204 = vunpack.c.h.b16 %v73
  %v205 = vunpack.c.l.b16 %v74
  %v206 = vunpack.c.h.b16 %v74
  %v207 = vunpack.c.l.b16 %v75
  %v208 = vunpack.c.h.b16 %v75
  %v209 = vunpack.c.l.b16 %v76
  %v210 = vunpack.c.h.b16 %v76
  %v211 = vunpack.c.l.b16 %v77
  %v212 = vunpack.c.h.b16 %v77
  %v213 = vunpack.c.l.b16 %v78
  %v214 = vunpack.c.h.b16 %v78
  %v215 = vunpack.c.l.b16 %v79
  %v216 = vunpack.c.h.b16 %v79
  %v217 = vpack.c.b16 %v163, %v161
  %v218 = vpack.c.b16 %v164, %v162
  %v219 = vpack.c.b16 %v167, %v165
  %v220 = vpack.c.b16 %v168, %v166
  %v221 = vpack.c.b16 %v171, %v169
  %v222 = vpack.c.b16 %v172, %v170
  %v223 = vpack.c.b16 %v175, %v173
  %v224 = vpack.c.b16 %v176, %v174
  %v225 = vpack.c.b16 %v179, %v177
  %v226 = vpack.c.b16 %v180, %v178
  %v227 = vpack.c.b16 %v183, %v181
  %v228 = vpack.c.b16 %v184, %v182
  %v229 = vpack.c.b16 %v187, %v185
  %v230 = vpack.c.b16 %v188, %v186
  %v231 = vpack.c.b16 %v191, %v189
  %v232 = vpack.c.b16 %v192, %v190
  %v233 = vpack.c.b16 %v195, %v193
  %v234 = vpack.c.b16 %v196, %v194
  %v235 = vpack.c.b16 %v199, %v197
  %v236 = vpack.c.b16 %v200, %v198
  %v237 = vpack.c.b16 %v203, %v201
  %v238 = vpack.c.b16 %v204, %v202
  %v239 = vpack.c.b16 %v207, %v205
  %v240 = vpack.c.b16 %v208, %v206
  %v241 = vpack.c.b16 %v211, %v209
  %v242 = vpack.c.b16 %v212, %v210
  %v243 = vpack.c.b16 %v215, %v213
  %v244 = vpack.c.b16 %v216, %v214
  %vm273 = vcmask 785408
  %v275 = vsel %vm273, %v130, 0
  %v278 = vsel %vm273, %v132, 0
  %280 = vmatprep.subr.bf16.mxu0 %v232
  %281 = vmatpush1.bf16.msra.mxu0 %v231
  %282 = vmatprep.subr.bf16.mxu0 %v230
  %283 = vmatpush1.bf16.msra.mxu0 %v229
  %284 = vmatprep.subr.bf16.mxu0 %v228
  %285 = vmatpush1.bf16.msra.mxu0 %v227
  %286 = vmatprep.subr.bf16.mxu0 %v226
  %287 = vmatpush1.bf16.msra.mxu0 %v225
  %288 = vmatprep.subr.bf16.mxu0 %v224
  %289 = vmatpush1.bf16.msra.mxu0 %v223
  %290 = vmatprep.subr.bf16.mxu0 %v222
  %291 = vmatpush1.bf16.msra.mxu0 %v221
  %292 = vmatprep.subr.bf16.mxu0 %v220
  %293 = vmatpush1.bf16.msra.mxu0 %v219
  %294 = vmatprep.subr.bf16.mxu0 %v218
  %295 = vmatpush1.bf16.msra.mxu0 %v217
  %296 = vmatprep.subr.bf16.mxu0 0
  %297 = vmatpush2.bf16.msra.mxu0 0
  %298 = vmatprep.subr.bf16.mxu0 0
  %299 = vmatpush2.bf16.msra.mxu0 0
  %300 = vmatprep.subr.bf16.mxu0 %v244
  %301 = vmatpush2.bf16.msra.mxu0 %v243
  %302 = vmatprep.subr.bf16.mxu0 %v242
  %303 = vmatpush2.bf16.msra.mxu0 %v241
  %304 = vmatprep.subr.bf16.mxu0 %v240
  %305 = vmatpush2.bf16.msra.mxu0 %v239
  %306 = vmatprep.subr.bf16.mxu0 %v238
  %307 = vmatpush2.bf16.msra.mxu0 %v237
  %308 = vmatprep.subr.bf16.mxu0 %v236
  %309 = vmatpush2.bf16.msra.mxu0 %v235
  %310 = vmatprep.subr.bf16.mxu0 %v234
  %311 = vmatpush2.bf16.msra.mxu0 %v233
  %312 = vmatprep.mubr.bf16.mxu0 %v275
  %313 = vmatmul.mubr.bf16.gmra.mxu0 %v129
  %v314 = vpop.f32.mrf.mxu0
  %v315 = vadd.f32 0.0, %v314
  %v316 = vpop.f32.mrf.mxu0
  %v317 = vadd.f32 0.0, %v316
  %v318 = vpop.f32.mrf.mxu0
  %v319 = vadd.f32 0.0, %v318
  %v320 = vpop.f32.mrf.mxu0
  %v321 = vadd.f32 0.0, %v320
  %322 = vmatprep.mubr.bf16.mxu0 %v278
  %323 = vmatmul.mubr.bf16.gmra.mxu0 %v131
  %v324 = vpop.f32.mrf.mxu0
  %v325 = vadd.f32 0.0, %v324
  %v326 = vpop.f32.mrf.mxu0
  %v327 = vadd.f32 0.0, %v326
  %v328 = vpop.f32.mrf.mxu0
  %v329 = vadd.f32 0.0, %v328
  %v330 = vpop.f32.mrf.mxu0
  %v331 = vadd.f32 0.0, %v330
  %332 = vdwg.mxu0
  %v361 = vunpack.c.l.b16 %v24
  %v362 = vunpack.c.h.b16 %v24
  %v363 = vunpack.c.l.b16 %v25
  %v364 = vunpack.c.h.b16 %v25
  %v365 = vunpack.c.l.b16 %v26
  %v366 = vunpack.c.h.b16 %v26
  %v367 = vunpack.c.l.b16 %v27
  %v368 = vunpack.c.h.b16 %v27
  %v369 = vunpack.c.l.b16 %v28
  %v370 = vunpack.c.h.b16 %v28
  %v371 = vunpack.c.l.b16 %v29
  %v372 = vunpack.c.h.b16 %v29
  %v373 = vunpack.c.l.b16 %v30
  %v374 = vunpack.c.h.b16 %v30
  %v375 = vunpack.c.l.b16 %v31
  %v376 = vunpack.c.h.b16 %v31
  %v377 = vunpack.c.l.b16 %v32
  %v378 = vunpack.c.h.b16 %v32
  %v379 = vunpack.c.l.b16 %v33
  %v380 = vunpack.c.h.b16 %v33
  %v381 = vunpack.c.l.b16 %v34
  %v382 = vunpack.c.h.b16 %v34
  %v383 = vunpack.c.l.b16 %v35
  %v384 = vunpack.c.h.b16 %v35
  %v385 = vunpack.c.l.b16 %v36
  %v386 = vunpack.c.h.b16 %v36
  %v387 = vunpack.c.l.b16 %v37
  %v388 = vunpack.c.h.b16 %v37
  %v389 = vunpack.c.l.b16 %v38
  %v390 = vunpack.c.h.b16 %v38
  %v391 = vunpack.c.l.b16 %v39
  %v392 = vunpack.c.h.b16 %v39
  %v393 = vunpack.c.l.b16 %v40
  %v394 = vunpack.c.h.b16 %v40
  %v395 = vunpack.c.l.b16 %v41
  %v396 = vunpack.c.h.b16 %v41
  %v397 = vunpack.c.l.b16 %v42
  %v398 = vunpack.c.h.b16 %v42
  %v399 = vunpack.c.l.b16 %v43
  %v400 = vunpack.c.h.b16 %v43
  %v401 = vunpack.c.l.b16 %v44
  %v402 = vunpack.c.h.b16 %v44
  %v403 = vunpack.c.l.b16 %v45
  %v404 = vunpack.c.h.b16 %v45
  %v405 = vunpack.c.l.b16 %v46
  %v406 = vunpack.c.h.b16 %v46
  %v407 = vunpack.c.l.b16 %v47
  %v408 = vunpack.c.h.b16 %v47
  %v409 = vunpack.c.l.b16 %v48
  %v410 = vunpack.c.h.b16 %v48
  %v411 = vunpack.c.l.b16 %v49
  %v412 = vunpack.c.h.b16 %v49
  %v413 = vunpack.c.l.b16 %v50
  %v414 = vunpack.c.h.b16 %v50
  %v415 = vunpack.c.l.b16 %v51
  %v416 = vunpack.c.h.b16 %v51
  %v417 = vpack.c.b16 %v363, %v361
  %v418 = vpack.c.b16 %v364, %v362
  %v419 = vpack.c.b16 %v367, %v365
  %v420 = vpack.c.b16 %v368, %v366
  %v421 = vpack.c.b16 %v371, %v369
  %v422 = vpack.c.b16 %v372, %v370
  %v423 = vpack.c.b16 %v375, %v373
  %v424 = vpack.c.b16 %v376, %v374
  %v425 = vpack.c.b16 %v379, %v377
  %v426 = vpack.c.b16 %v380, %v378
  %v427 = vpack.c.b16 %v383, %v381
  %v428 = vpack.c.b16 %v384, %v382
  %v429 = vpack.c.b16 %v387, %v385
  %v430 = vpack.c.b16 %v388, %v386
  %v431 = vpack.c.b16 %v391, %v389
  %v432 = vpack.c.b16 %v392, %v390
  %v433 = vpack.c.b16 %v395, %v393
  %v434 = vpack.c.b16 %v396, %v394
  %v435 = vpack.c.b16 %v399, %v397
  %v436 = vpack.c.b16 %v400, %v398
  %v437 = vpack.c.b16 %v403, %v401
  %v438 = vpack.c.b16 %v404, %v402
  %v439 = vpack.c.b16 %v407, %v405
  %v440 = vpack.c.b16 %v408, %v406
  %v441 = vpack.c.b16 %v411, %v409
  %v442 = vpack.c.b16 %v412, %v410
  %v443 = vpack.c.b16 %v415, %v413
  %v444 = vpack.c.b16 %v416, %v414
  %v474 = vsel %vm273, %v126, 0
  %v477 = vsel %vm273, %v128, 0
  %479 = vmatprep.subr.bf16.mxu0 %v432
  %480 = vmatpush1.bf16.msra.mxu0 %v431
  %481 = vmatprep.subr.bf16.mxu0 %v430
  %482 = vmatpush1.bf16.msra.mxu0 %v429
  %483 = vmatprep.subr.bf16.mxu0 %v428
  %484 = vmatpush1.bf16.msra.mxu0 %v427
  %485 = vmatprep.subr.bf16.mxu0 %v426
  %486 = vmatpush1.bf16.msra.mxu0 %v425
  %487 = vmatprep.subr.bf16.mxu0 %v424
  %488 = vmatpush1.bf16.msra.mxu0 %v423
  %489 = vmatprep.subr.bf16.mxu0 %v422
  %490 = vmatpush1.bf16.msra.mxu0 %v421
  %491 = vmatprep.subr.bf16.mxu0 %v420
  %492 = vmatpush1.bf16.msra.mxu0 %v419
  %493 = vmatprep.subr.bf16.mxu0 %v418
  %494 = vmatpush1.bf16.msra.mxu0 %v417
  %495 = vmatprep.subr.bf16.mxu0 0
  %496 = vmatpush2.bf16.msra.mxu0 0
  %497 = vmatprep.subr.bf16.mxu0 0
  %498 = vmatpush2.bf16.msra.mxu0 0
  %499 = vmatprep.subr.bf16.mxu0 %v444
  %500 = vmatpush2.bf16.msra.mxu0 %v443
  %501 = vmatprep.subr.bf16.mxu0 %v442
  %502 = vmatpush2.bf16.msra.mxu0 %v441
  %503 = vmatprep.subr.bf16.mxu0 %v440
  %504 = vmatpush2.bf16.msra.mxu0 %v439
  %505 = vmatprep.subr.bf16.mxu0 %v438
  %506 = vmatpush2.bf16.msra.mxu0 %v437
  %507 = vmatprep.subr.bf16.mxu0 %v436
  %508 = vmatpush2.bf16.msra.mxu0 %v435
  %509 = vmatprep.subr.bf16.mxu0 %v434
  %510 = vmatpush2.bf16.msra.mxu0 %v433
  %511 = vmatprep.mubr.bf16.mxu0 %v474
  %512 = vmatmul.mubr.bf16.gmra.mxu0 %v125
  %v513 = vpop.f32.mrf.mxu0
  %v514 = vadd.f32 %v315, %v513
  %v515 = vpop.f32.mrf.mxu0
  %v516 = vadd.f32 %v317, %v515
  %v517 = vpop.f32.mrf.mxu0
  %v518 = vadd.f32 %v319, %v517
  %v519 = vpop.f32.mrf.mxu0
  %v520 = vadd.f32 %v321, %v519
  %521 = vmatprep.mubr.bf16.mxu0 %v477
  %522 = vmatmul.mubr.bf16.gmra.mxu0 %v127
  %v523 = vpop.f32.mrf.mxu0
  %v524 = vadd.f32 %v325, %v523
  %v525 = vpop.f32.mrf.mxu0
  %v526 = vadd.f32 %v327, %v525
  %v527 = vpop.f32.mrf.mxu0
  %v528 = vadd.f32 %v329, %v527
  %v529 = vpop.f32.mrf.mxu0
  %v530 = vadd.f32 %v331, %v529
  %531 = vdwg.mxu0
  %vm532 = vsmask.f32 7424
  %v534 = vshrl.u32 %v125, 16
  %v536 = vshll.u32 %v125, 16
  %v538 = vrot.slane %v536, 1
  %v539 = vor.u32 %v534, %v538
  %v541 = vshll.u32 %v127, 16
  %v543 = vrot.slane %v541, 1
  %v544 = vsel %vm532, %v539, %v543
  %v545 = vshrl.u32 %v126, 16
  %v547 = vshll.u32 %v126, 16
  %v549 = vrot.slane %v547, 1
  %v550 = vor.u32 %v545, %v549
  %v551 = vshll.u32 %v128, 16
  %v553 = vrot.slane %v551, 1
  %v554 = vsel %vm532, %v550, %v553
  %v555 = vshrl.u32 %v127, 16
  %v557 = vor.u32 %v555, %v543
  %v558 = vshrl.u32 %v128, 16
  %v560 = vor.u32 %v558, %v553
  %v591 = vunpack.c.l.b16 %v80
  %v592 = vunpack.c.h.b16 %v80
  %v593 = vunpack.c.l.b16 %v81
  %v594 = vunpack.c.h.b16 %v81
  %v595 = vunpack.c.l.b16 %v82
  %v596 = vunpack.c.h.b16 %v82
  %v597 = vunpack.c.l.b16 %v83
  %v598 = vunpack.c.h.b16 %v83
  %v599 = vunpack.c.l.b16 %v84
  %v600 = vunpack.c.h.b16 %v84
  %v601 = vunpack.c.l.b16 %v85
  %v602 = vunpack.c.h.b16 %v85
  %v603 = vunpack.c.l.b16 %v86
  %v604 = vunpack.c.h.b16 %v86
  %v605 = vunpack.c.l.b16 %v87
  %v606 = vunpack.c.h.b16 %v87
  %v607 = vunpack.c.l.b16 %v88
  %v608 = vunpack.c.h.b16 %v88
  %v609 = vunpack.c.l.b16 %v89
  %v610 = vunpack.c.h.b16 %v89
  %v611 = vunpack.c.l.b16 %v90
  %v612 = vunpack.c.h.b16 %v90
  %v613 = vunpack.c.l.b16 %v91
  %v614 = vunpack.c.h.b16 %v91
  %v615 = vunpack.c.l.b16 %v92
  %v616 = vunpack.c.h.b16 %v92
  %v617 = vunpack.c.l.b16 %v93
  %v618 = vunpack.c.h.b16 %v93
  %v619 = vunpack.c.l.b16 %v94
  %v620 = vunpack.c.h.b16 %v94
  %v621 = vunpack.c.l.b16 %v95
  %v622 = vunpack.c.h.b16 %v95
  %v623 = vunpack.c.l.b16 %v96
  %v624 = vunpack.c.h.b16 %v96
  %v625 = vunpack.c.l.b16 %v97
  %v626 = vunpack.c.h.b16 %v97
  %v627 = vunpack.c.l.b16 %v98
  %v628 = vunpack.c.h.b16 %v98
  %v629 = vunpack.c.l.b16 %v99
  %v630 = vunpack.c.h.b16 %v99
  %v631 = vunpack.c.l.b16 %v100
  %v632 = vunpack.c.h.b16 %v100
  %v633 = vunpack.c.l.b16 %v101
  %v634 = vunpack.c.h.b16 %v101
  %v635 = vunpack.c.l.b16 %v102
  %v636 = vunpack.c.h.b16 %v102
  %v637 = vunpack.c.l.b16 %v103
  %v638 = vunpack.c.h.b16 %v103
  %v639 = vunpack.c.l.b16 %v104
  %v640 = vunpack.c.h.b16 %v104
  %v641 = vunpack.c.l.b16 %v105
  %v642 = vunpack.c.h.b16 %v105
  %v643 = vunpack.c.l.b16 %v106
  %v644 = vunpack.c.h.b16 %v106
  %v645 = vunpack.c.l.b16 %v107
  %v646 = vunpack.c.h.b16 %v107
  %v647 = vpack.c.b16 %v593, %v591
  %v648 = vpack.c.b16 %v594, %v592
  %v649 = vpack.c.b16 %v597, %v595
  %v650 = vpack.c.b16 %v598, %v596
  %v651 = vpack.c.b16 %v601, %v599
  %v652 = vpack.c.b16 %v602, %v600
  %v653 = vpack.c.b16 %v605, %v603
  %v654 = vpack.c.b16 %v606, %v604
  %v655 = vpack.c.b16 %v609, %v607
  %v656 = vpack.c.b16 %v610, %v608
  %v657 = vpack.c.b16 %v613, %v611
  %v658 = vpack.c.b16 %v614, %v612
  %v659 = vpack.c.b16 %v617, %v615
  %v660 = vpack.c.b16 %v618, %v616
  %v661 = vpack.c.b16 %v621, %v619
  %v662 = vpack.c.b16 %v622, %v620
  %v663 = vpack.c.b16 %v625, %v623
  %v664 = vpack.c.b16 %v626, %v624
  %v665 = vpack.c.b16 %v629, %v627
  %v666 = vpack.c.b16 %v630, %v628
  %v667 = vpack.c.b16 %v633, %v631
  %v668 = vpack.c.b16 %v634, %v632
  %v669 = vpack.c.b16 %v637, %v635
  %v670 = vpack.c.b16 %v638, %v636
  %v671 = vpack.c.b16 %v641, %v639
  %v672 = vpack.c.b16 %v642, %v640
  %v673 = vpack.c.b16 %v645, %v643
  %v674 = vpack.c.b16 %v646, %v644
  %v704 = vsel %vm273, %v554, 0
  %v707 = vsel %vm273, %v560, 0
  %709 = vmatprep.subr.bf16.mxu0 %v662
  %710 = vmatpush1.bf16.msra.mxu0 %v661
  %711 = vmatprep.subr.bf16.mxu0 %v660
  %712 = vmatpush1.bf16.msra.mxu0 %v659
  %713 = vmatprep.subr.bf16.mxu0 %v658
  %714 = vmatpush1.bf16.msra.mxu0 %v657
  %715 = vmatprep.subr.bf16.mxu0 %v656
  %716 = vmatpush1.bf16.msra.mxu0 %v655
  %717 = vmatprep.subr.bf16.mxu0 %v654
  %718 = vmatpush1.bf16.msra.mxu0 %v653
  %719 = vmatprep.subr.bf16.mxu0 %v652
  %720 = vmatpush1.bf16.msra.mxu0 %v651
  %721 = vmatprep.subr.bf16.mxu0 %v650
  %722 = vmatpush1.bf16.msra.mxu0 %v649
  %723 = vmatprep.subr.bf16.mxu0 %v648
  %724 = vmatpush1.bf16.msra.mxu0 %v647
  %725 = vmatprep.subr.bf16.mxu0 0
  %726 = vmatpush2.bf16.msra.mxu0 0
  %727 = vmatprep.subr.bf16.mxu0 0
  %728 = vmatpush2.bf16.msra.mxu0 0
  %729 = vmatprep.subr.bf16.mxu0 %v674
  %730 = vmatpush2.bf16.msra.mxu0 %v673
  %731 = vmatprep.subr.bf16.mxu0 %v672
  %732 = vmatpush2.bf16.msra.mxu0 %v671
  %733 = vmatprep.subr.bf16.mxu0 %v670
  %734 = vmatpush2.bf16.msra.mxu0 %v669
  %735 = vmatprep.subr.bf16.mxu0 %v668
  %736 = vmatpush2.bf16.msra.mxu0 %v667
  %737 = vmatprep.subr.bf16.mxu0 %v666
  %738 = vmatpush2.bf16.msra.mxu0 %v665
  %739 = vmatprep.subr.bf16.mxu0 %v664
  %740 = vmatpush2.bf16.msra.mxu0 %v663
  %741 = vmatprep.mubr.bf16.mxu0 %v704
  %742 = vmatmul.mubr.bf16.gmra.mxu0 %v544
  %v743 = vpop.f32.mrf.mxu0
  %v744 = vadd.f32 0.0, %v743
  %v745 = vpop.f32.mrf.mxu0
  %v746 = vadd.f32 0.0, %v745
  %v747 = vpop.f32.mrf.mxu0
  %v748 = vadd.f32 0.0, %v747
  %v749 = vpop.f32.mrf.mxu0
  %v750 = vadd.f32 0.0, %v749
  %751 = vmatprep.mubr.bf16.mxu0 %v707
  %752 = vmatmul.mubr.bf16.gmra.mxu0 %v557
  %v753 = vpop.f32.mrf.mxu0
  %v754 = vadd.f32 0.0, %v753
  %v755 = vpop.f32.mrf.mxu0
  %v756 = vadd.f32 0.0, %v755
  %v757 = vpop.f32.mrf.mxu0
  %v758 = vadd.f32 0.0, %v757
  %v759 = vpop.f32.mrf.mxu0
  %v760 = vadd.f32 0.0, %v759
  %761 = vdwg.mxu0
  %v762 = vadd.f32 %v514, %v744
  %v763 = vadd.f32 %v516, %v746
  %v764 = vadd.f32 %v518, %v748
  %v765 = vadd.f32 %v520, %v750
  %v766 = vadd.f32 %v524, %v754
  %v767 = vadd.f32 %v526, %v756
  %v768 = vadd.f32 %v528, %v758
  %v769 = vadd.f32 %v530, %v760
  %v771 = vlaneseq
  %v772 = vshrl.u32 %v771, 7
  %v773 = vsub.s32 0, %v772
  %v774 = vrot.slane %v108, %v773
  %v775 = vlaneseq
  %v776 = vshrl.u32 %v775, 7
  %v777 = vsub.s32 1, %v776
  %v778 = vrot.slane %v108, %v777
  %v781 = vadd.f32 %v762, %v774
  %v782 = vadd.f32 %v763, %v778
  %v783 = vadd.f32 %v764, %v774
  %v784 = vadd.f32 %v765, %v778
  %v785 = vadd.f32 %v766, %v774
  %v786 = vadd.f32 %v767, %v778
  %v787 = vadd.f32 %v768, %v774
  %v788 = vadd.f32 %v769, %v778
  %v789 = vmax.f32 %v781, 0.0
  %v790 = vmax.f32 %v782, 0.0
  %v791 = vmax.f32 %v783, 0.0
  %v792 = vmax.f32 %v784, 0.0
  %v793 = vmax.f32 %v785, 0.0
  %v794 = vmax.f32 %v786, 0.0
  %v795 = vmax.f32 %v787, 0.0
  %v796 = vmax.f32 %v788, 0.0
  %797 = vst [vmem:[%s6] sm:$0xff] %v789
  %vm798 = vcmask 523264
  %799 = vst.msk [vmem:[%s6 + $0x8] sm:$0xff] %vm798, %v790
  %800 = vst [vmem:[%s6 + $0x10] sm:$0xff] %v791
  %801 = vst.msk [vmem:[%s6 + $0x18] sm:$0xff] %vm798, %v792
  %802 = vst [vmem:[%s6 + $0x20] sm:$0xff] %v793
  %803 = vst.msk [vmem:[%s6 + $0x28] sm:$0xff] %vm798, %v794
  %804 = vst [vmem:[%s6 + $0x30] sm:$0x1] %v795
  %vm805 = vcmask 516096
  %806 = vst.msk [vmem:[%s6 + $0x38] sm:$0x1] %vm805, %v796
  %s807 = scalar_lea.vmem %s0, 64
  %v808 = vld [vmem:[%s807] sm:$0xff]
  %v809 = vld [vmem:[%s807 + $0x8] sm:$0xff]
  %v810 = vld [vmem:[%s807 + $0x10] sm:$0xff]
  %v811 = vld [vmem:[%s807 + $0x18] sm:$0xff]
  %v812 = vld [vmem:[%s807 + $0x20] sm:$0xff]
  %v813 = vld [vmem:[%s807 + $0x28] sm:$0xff]
  %v814 = vld [vmem:[%s807 + $0x30] sm:$0x3]
  %v815 = vld [vmem:[%s807 + $0x38] sm:$0x3]
  %s816 = scalar_lea.vmem %s1, 64
  %v817 = vld [vmem:[%s816] sm:$0xff]
  %v818 = vld [vmem:[%s816 + $0x8] sm:$0xff]
  %v819 = vld [vmem:[%s816 + $0x10] sm:$0xff]
  %v820 = vld [vmem:[%s816 + $0x18] sm:$0xff]
  %v821 = vld [vmem:[%s816 + $0x20] sm:$0xff]
  %v822 = vld [vmem:[%s816 + $0x28] sm:$0xff]
  %v823 = vld [vmem:[%s816 + $0x30] sm:$0x3]
  %v824 = vld [vmem:[%s816 + $0x38] sm:$0x3]
  %v825 = vpack.c.bf16 %v810, %v808
  %v826 = vpack.c.bf16 %v811, %v809
  %v827 = vpack.c.bf16 %v814, %v812
  %v828 = vpack.c.bf16 %v815, %v813
  %v829 = vpack.c.bf16 %v819, %v817
  %v830 = vpack.c.bf16 %v820, %v818
  %v831 = vpack.c.bf16 %v823, %v821
  %v832 = vpack.c.bf16 %v824, %v822
  %v834 = vsel %vm273, %v830, 0
  %v837 = vsel %vm273, %v832, 0
  %839 = vmatprep.subr.bf16.mxu0 %v232
  %840 = vmatpush1.bf16.msra.mxu0 %v231
  %841 = vmatprep.subr.bf16.mxu0 %v230
  %842 = vmatpush1.bf16.msra.mxu0 %v229
  %843 = vmatprep.subr.bf16.mxu0 %v228
  %844 = vmatpush1.bf16.msra.mxu0 %v227
  %845 = vmatprep.subr.bf16.mxu0 %v226
  %846 = vmatpush1.bf16.msra.mxu0 %v225
  %847 = vmatprep.subr.bf16.mxu0 %v224
  %848 = vmatpush1.bf16.msra.mxu0 %v223
  %849 = vmatprep.subr.bf16.mxu0 %v222
  %850 = vmatpush1.bf16.msra.mxu0 %v221
  %851 = vmatprep.subr.bf16.mxu0 %v220
  %852 = vmatpush1.bf16.msra.mxu0 %v219
  %853 = vmatprep.subr.bf16.mxu0 %v218
  %854 = vmatpush1.bf16.msra.mxu0 %v217
  %855 = vmatprep.subr.bf16.mxu0 0
  %856 = vmatpush2.bf16.msra.mxu0 0
  %857 = vmatprep.subr.bf16.mxu0 0
  %858 = vmatpush2.bf16.msra.mxu0 0
  %859 = vmatprep.subr.bf16.mxu0 %v244
  %860 = vmatpush2.bf16.msra.mxu0 %v243
  %861 = vmatprep.subr.bf16.mxu0 %v242
  %862 = vmatpush2.bf16.msra.mxu0 %v241
  %863 = vmatprep.subr.bf16.mxu0 %v240
  %864 = vmatpush2.bf16.msra.mxu0 %v239
  %865 = vmatprep.subr.bf16.mxu0 %v238
  %866 = vmatpush2.bf16.msra.mxu0 %v237
  %867 = vmatprep.subr.bf16.mxu0 %v236
  %868 = vmatpush2.bf16.msra.mxu0 %v235
  %869 = vmatprep.subr.bf16.mxu0 %v234
  %870 = vmatpush2.bf16.msra.mxu0 %v233
  %871 = vmatprep.mubr.bf16.mxu0 %v834
  %872 = vmatmul.mubr.bf16.gmra.mxu0 %v829
  %v873 = vpop.f32.mrf.mxu0
  %v874 = vadd.f32 0.0, %v873
  %v875 = vpop.f32.mrf.mxu0
  %v876 = vadd.f32 0.0, %v875
  %v877 = vpop.f32.mrf.mxu0
  %v878 = vadd.f32 0.0, %v877
  %v879 = vpop.f32.mrf.mxu0
  %v880 = vadd.f32 0.0, %v879
  %881 = vmatprep.mubr.bf16.mxu0 %v837
  %882 = vmatmul.mubr.bf16.gmra.mxu0 %v831
  %v883 = vpop.f32.mrf.mxu0
  %v884 = vadd.f32 0.0, %v883
  %v885 = vpop.f32.mrf.mxu0
  %v886 = vadd.f32 0.0, %v885
  %v887 = vpop.f32.mrf.mxu0
  %v888 = vadd.f32 0.0, %v887
  %v889 = vpop.f32.mrf.mxu0
  %v890 = vadd.f32 0.0, %v889
  %891 = vdwg.mxu0
  %v893 = vsel %vm273, %v826, 0
  %v896 = vsel %vm273, %v828, 0
  %898 = vmatprep.subr.bf16.mxu0 %v432
  %899 = vmatpush1.bf16.msra.mxu0 %v431
  %900 = vmatprep.subr.bf16.mxu0 %v430
  %901 = vmatpush1.bf16.msra.mxu0 %v429
  %902 = vmatprep.subr.bf16.mxu0 %v428
  %903 = vmatpush1.bf16.msra.mxu0 %v427
  %904 = vmatprep.subr.bf16.mxu0 %v426
  %905 = vmatpush1.bf16.msra.mxu0 %v425
  %906 = vmatprep.subr.bf16.mxu0 %v424
  %907 = vmatpush1.bf16.msra.mxu0 %v423
  %908 = vmatprep.subr.bf16.mxu0 %v422
  %909 = vmatpush1.bf16.msra.mxu0 %v421
  %910 = vmatprep.subr.bf16.mxu0 %v420
  %911 = vmatpush1.bf16.msra.mxu0 %v419
  %912 = vmatprep.subr.bf16.mxu0 %v418
  %913 = vmatpush1.bf16.msra.mxu0 %v417
  %914 = vmatprep.subr.bf16.mxu0 0
  %915 = vmatpush2.bf16.msra.mxu0 0
  %916 = vmatprep.subr.bf16.mxu0 0
  %917 = vmatpush2.bf16.msra.mxu0 0
  %918 = vmatprep.subr.bf16.mxu0 %v444
  %919 = vmatpush2.bf16.msra.mxu0 %v443
  %920 = vmatprep.subr.bf16.mxu0 %v442
  %921 = vmatpush2.bf16.msra.mxu0 %v441
  %922 = vmatprep.subr.bf16.mxu0 %v440
  %923 = vmatpush2.bf16.msra.mxu0 %v439
  %924 = vmatprep.subr.bf16.mxu0 %v438
  %925 = vmatpush2.bf16.msra.mxu0 %v437
  %926 = vmatprep.subr.bf16.mxu0 %v436
  %927 = vmatpush2.bf16.msra.mxu0 %v435
  %928 = vmatprep.subr.bf16.mxu0 %v434
  %929 = vmatpush2.bf16.msra.mxu0 %v433
  %930 = vmatprep.mubr.bf16.mxu0 %v893
  %931 = vmatmul.mubr.bf16.gmra.mxu0 %v825
  %v932 = vpop.f32.mrf.mxu0
  %v933 = vadd.f32 %v874, %v932
  %v934 = vpop.f32.mrf.mxu0
  %v935 = vadd.f32 %v876, %v934
  %v936 = vpop.f32.mrf.mxu0
  %v937 = vadd.f32 %v878, %v936
  %v938 = vpop.f32.mrf.mxu0
  %v939 = vadd.f32 %v880, %v938
  %940 = vmatprep.mubr.bf16.mxu0 %v896
  %941 = vmatmul.mubr.bf16.gmra.mxu0 %v827
  %v942 = vpop.f32.mrf.mxu0
  %v943 = vadd.f32 %v884, %v942
  %v944 = vpop.f32.mrf.mxu0
  %v945 = vadd.f32 %v886, %v944
  %v946 = vpop.f32.mrf.mxu0
  %v947 = vadd.f32 %v888, %v946
  %v948 = vpop.f32.mrf.mxu0
  %v949 = vadd.f32 %v890, %v948
  %950 = vdwg.mxu0
  %v952 = vshrl.u32 %v825, 16
  %v954 = vshll.u32 %v825, 16
  %v956 = vrot.slane %v954, 1
  %v957 = vor.u32 %v952, %v956
  %v959 = vshll.u32 %v827, 16
  %v961 = vrot.slane %v959, 1
  %v962 = vsel %vm532, %v957, %v961
  %v963 = vshrl.u32 %v826, 16
  %v965 = vshll.u32 %v826, 16
  %v967 = vrot.slane %v965, 1
  %v968 = vor.u32 %v963, %v967
  %v969 = vshll.u32 %v828, 16
  %v971 = vrot.slane %v969, 1
  %v972 = vsel %vm532, %v968, %v971
  %v973 = vshrl.u32 %v827, 16
  %v975 = vor.u32 %v973, %v961
  %v976 = vshrl.u32 %v828, 16
  %v978 = vor.u32 %v976, %v971
  %v982 = vsel %vm273, %v972, 0
  %v985 = vsel %vm273, %v978, 0
  %987 = vmatprep.subr.bf16.mxu0 %v662
  %988 = vmatpush1.bf16.msra.mxu0 %v661
  %989 = vmatprep.subr.bf16.mxu0 %v660
  %990 = vmatpush1.bf16.msra.mxu0 %v659
  %991 = vmatprep.subr.bf16.mxu0 %v658
  %992 = vmatpush1.bf16.msra.mxu0 %v657
  %993 = vmatprep.subr.bf16.mxu0 %v656
  %994 = vmatpush1.bf16.msra.mxu0 %v655
  %995 = vmatprep.subr.bf16.mxu0 %v654
  %996 = vmatpush1.bf16.msra.mxu0 %v653
  %997 = vmatprep.subr.bf16.mxu0 %v652
  %998 = vmatpush1.bf16.msra.mxu0 %v651
  %999 = vmatprep.subr.bf16.mxu0 %v650
  %1000 = vmatpush1.bf16.msra.mxu0 %v649
  %1001 = vmatprep.subr.bf16.mxu0 %v648
  %1002 = vmatpush1.bf16.msra.mxu0 %v647
  %1003 = vmatprep.subr.bf16.mxu0 0
  %1004 = vmatpush2.bf16.msra.mxu0 0
  %1005 = vmatprep.subr.bf16.mxu0 0
  %1006 = vmatpush2.bf16.msra.mxu0 0
  %1007 = vmatprep.subr.bf16.mxu0 %v674
  %1008 = vmatpush2.bf16.msra.mxu0 %v673
  %1009 = vmatprep.subr.bf16.mxu0 %v672
  %1010 = vmatpush2.bf16.msra.mxu0 %v671
  %1011 = vmatprep.subr.bf16.mxu0 %v670
  %1012 = vmatpush2.bf16.msra.mxu0 %v669
  %1013 = vmatprep.subr.bf16.mxu0 %v668
  %1014 = vmatpush2.bf16.msra.mxu0 %v667
  %1015 = vmatprep.subr.bf16.mxu0 %v666
  %1016 = vmatpush2.bf16.msra.mxu0 %v665
  %1017 = vmatprep.subr.bf16.mxu0 %v664
  %1018 = vmatpush2.bf16.msra.mxu0 %v663
  %1019 = vmatprep.mubr.bf16.mxu0 %v982
  %1020 = vmatmul.mubr.bf16.gmra.mxu0 %v962
  %v1021 = vpop.f32.mrf.mxu0
  %v1022 = vadd.f32 0.0, %v1021
  %v1023 = vpop.f32.mrf.mxu0
  %v1024 = vadd.f32 0.0, %v1023
  %v1025 = vpop.f32.mrf.mxu0
  %v1026 = vadd.f32 0.0, %v1025
  %v1027 = vpop.f32.mrf.mxu0
  %v1028 = vadd.f32 0.0, %v1027
  %1029 = vmatprep.mubr.bf16.mxu0 %v985
  %1030 = vmatmul.mubr.bf16.gmra.mxu0 %v975
  %v1031 = vpop.f32.mrf.mxu0
  %v1032 = vadd.f32 0.0, %v1031
  %v1033 = vpop.f32.mrf.mxu0
  %v1034 = vadd.f32 0.0, %v1033
  %v1035 = vpop.f32.mrf.mxu0
  %v1036 = vadd.f32 0.0, %v1035
  %v1037 = vpop.f32.mrf.mxu0
  %v1038 = vadd.f32 0.0, %v1037
  %1039 = vdwg.mxu0
  %v1040 = vadd.f32 %v933, %v1022
  %v1041 = vadd.f32 %v935, %v1024
  %v1042 = vadd.f32 %v937, %v1026
  %v1043 = vadd.f32 %v939, %v1028
  %v1044 = vadd.f32 %v943, %v1032
  %v1045 = vadd.f32 %v945, %v1034
  %v1046 = vadd.f32 %v947, %v1036
  %v1047 = vadd.f32 %v949, %v1038
  %v1048 = vadd.f32 %v1040, %v774
  %v1049 = vadd.f32 %v1041, %v778
  %v1050 = vadd.f32 %v1042, %v774
  %v1051 = vadd.f32 %v1043, %v778
  %v1052 = vadd.f32 %v1044, %v774
  %v1053 = vadd.f32 %v1045, %v778
  %v1054 = vadd.f32 %v1046, %v774
  %v1055 = vadd.f32 %v1047, %v778
  %v1056 = vmax.f32 %v1048, 0.0
  %v1057 = vmax.f32 %v1049, 0.0
  %v1058 = vmax.f32 %v1050, 0.0
  %v1059 = vmax.f32 %v1051, 0.0
  %v1060 = vmax.f32 %v1052, 0.0
  %v1061 = vmax.f32 %v1053, 0.0
  %v1062 = vmax.f32 %v1054, 0.0
  %v1063 = vmax.f32 %v1055, 0.0
  %s1064 = scalar_lea.vmem %s6, 64
  %1065 = vst [vmem:[%s1064] sm:$0xff] %v1056
  %1066 = vst.msk [vmem:[%s1064 + $0x8] sm:$0xff] %vm798, %v1057
  %1067 = vst [vmem:[%s1064 + $0x10] sm:$0xff] %v1058
  %1068 = vst.msk [vmem:[%s1064 + $0x18] sm:$0xff] %vm798, %v1059
  %1069 = vst [vmem:[%s1064 + $0x20] sm:$0xff] %v1060
  %1070 = vst.msk [vmem:[%s1064 + $0x28] sm:$0xff] %vm798, %v1061
  %1071 = vst [vmem:[%s1064 + $0x30] sm:$0x1] %v1062
  %1072 = vst.msk [vmem:[%s1064 + $0x38] sm:$0x1] %vm805, %v1063
  // Predicated region
  $region26: #{rerank_forward.8} parent=0 // pred_check
    _
  $region27: #{rerank_forward.8} parent=0 // pred_check_branch
    %1074 = sbr.rel (0) target = $region29
  $region28: #{rerank_forward.8} parent=0 // pred_region
    _
  $region29: #{rerank_forward.8} parent=0 // pred_fallthru
    _
  // Predicated region
  $region30: #{rerank_forward.8} parent=0 // pred_check
    _
  $region31: #{rerank_forward.8} parent=0 // pred_check_branch
    %1076 = sbr.rel (0) target = $region33
  $region32: #{rerank_forward.8} parent=0 // pred_region
    _
  $region33: #{rerank_forward.8} parent=0 // pred_fallthru
    _

// kernel: rerank_forward.7
$region0: #{rerank_forward.7}
  #allocation0 [shape = 'u32[]', space=smem, size = 0x4, offset = 0x4, fixed_abs, tag = 'smem constant byte address 0x4 - core index']
  #allocation1 [shape = 'u32[144,128]{1,0:T(1,128)}', space=vmem, size = 0x12000, scoped, tag = 'internal scratch']
  %s0 = inlined_call_operand.vmem [shape: f32[2,51,420], index: 0, kind: input, shape index: {}]
  %s1 = inlined_call_operand.vmem [shape: f32[2,51,420], index: 1, kind: input, shape index: {}]
  %s2 = inlined_call_operand.vmem [shape: bf16[420,160], index: 2, kind: input, shape index: {}]
  %s3 = inlined_call_operand.vmem [shape: bf16[420,160], index: 3, kind: input, shape index: {}]
  %s4 = inlined_call_operand.vmem [shape: bf16[420,160], index: 4, kind: input, shape index: {}]
  %s5 = inlined_call_operand.vmem [shape: f32[1,160], index: 5, kind: input, shape index: {}]
  %s6 = inlined_call_operand.vmem [shape: f32[2,50,160], index: 6, kind: output, shape index: {}]
  %s7 = sld [smem:[#allocation0]]
  $region34: #{rerank_forward.7} parent=0
    _
  %s9 = ssub.s32 1, %s7
  %s10 = scalar_select 0, %s9, %s7
  // Predicated region
  $region2: #{rerank_forward.7} parent=0 // pred_check
    _
  $region3: #{rerank_forward.7} parent=0 // pred_check_branch
    %12 = sbr.rel (0) target = $region5
  $region4: #{rerank_forward.7} parent=0 // pred_region
    _
  $region5: #{rerank_forward.7} parent=0 // pred_fallthru
    _
  // Predicated region
  $region6: #{rerank_forward.7} parent=0 // pred_check
    _
  $region7: #{rerank_forward.7} parent=0 // pred_check_branch
    %14 = sbr.rel (0) target = $region9
  $region8: #{rerank_forward.7} parent=0 // pred_region
    _
  $region9: #{rerank_forward.7} parent=0 // pred_fallthru
    _
  // Predicated region
  $region10: #{rerank_forward.7} parent=0 // pred_check
    _
  $region11: #{rerank_forward.7} parent=0 // pred_check_branch
    %16 = sbr.rel (0) target = $region13
  $region12: #{rerank_forward.7} parent=0 // pred_region
    _
  $region13: #{rerank_forward.7} parent=0 // pred_fallthru
    _
  // Predicated region
  $region14: #{rerank_forward.7} parent=0 // pred_check
    _
  $region15: #{rerank_forward.7} parent=0 // pred_check_branch
    %18 = sbr.rel (0) target = $region17
  $region16: #{rerank_forward.7} parent=0 // pred_region
    _
  $region17: #{rerank_forward.7} parent=0 // pred_fallthru
    _
  // Predicated region
  $region18: #{rerank_forward.7} parent=0 // pred_check
    _
  $region19: #{rerank_forward.7} parent=0 // pred_check_branch
    %20 = sbr.rel (0) target = $region21
  $region20: #{rerank_forward.7} parent=0 // pred_region
    _
  $region21: #{rerank_forward.7} parent=0 // pred_fallthru
    _
  // Predicated region
  $region22: #{rerank_forward.7} parent=0 // pred_check
    _
  $region23: #{rerank_forward.7} parent=0 // pred_check_branch
    %22 = sbr.rel (0) target = $region25
  $region24: #{rerank_forward.7} parent=0 // pred_region
    _
  $region25: #{rerank_forward.7} parent=0 // pred_fallthru
    _
  %v24 = vld [vmem:[%s2] sm:$0xff]
  %v25 = vld [vmem:[%s2 + $0x8] sm:$0xff]
  %v26 = vld [vmem:[%s2 + $0x10] sm:$0xff]
  %v27 = vld [vmem:[%s2 + $0x18] sm:$0xff]
  %v28 = vld [vmem:[%s2 + $0x20] sm:$0xff]
  %v29 = vld [vmem:[%s2 + $0x28] sm:$0xff]
  %v30 = vld [vmem:[%s2 + $0x30] sm:$0xff]
  %v31 = vld [vmem:[%s2 + $0x38] sm:$0xff]
  %v32 = vld [vmem:[%s2 + $0x40] sm:$0xff]
  %v33 = vld [vmem:[%s2 + $0x48] sm:$0xff]
  %v34 = vld [vmem:[%s2 + $0x50] sm:$0xff]
  %v35 = vld [vmem:[%s2 + $0x58] sm:$0xff]
  %v36 = vld [vmem:[%s2 + $0x60] sm:$0xff]
  %v37 = vld [vmem:[%s2 + $0x68] sm:$0xff]
  %v38 = vld [vmem:[%s2 + $0x70] sm:$0xff]
  %v39 = vld [vmem:[%s2 + $0x78] sm:$0xff]
  %v40 = vld [vmem:[%s2 + $0x80] sm:$0xff]
  %v41 = vld [vmem:[%s2 + $0x88] sm:$0xff]
  %v42 = vld [vmem:[%s2 + $0x90] sm:$0xff]
  %v43 = vld [vmem:[%s2 + $0x98] sm:$0xff]
  %v44 = vld [vmem:[%s2 + $0xa0] sm:$0xff]
  %v45 = vld [vmem:[%s2 + $0xa8] sm:$0xff]
  %v46 = vld [vmem:[%s2 + $0xb0] sm:$0xff]
  %v47 = vld [vmem:[%s2 + $0xb8] sm:$0xff]
  %v48 = vld [vmem:[%s2 + $0xc0] sm:$0xff]
  %v49 = vld [vmem:[%s2 + $0xc8] sm:$0xff]
  %v50 = vld [vmem:[%s2 + $0xd0] sm:$0xff]
  %v51 = vld [vmem:[%s2 + $0xd8] sm:$0xff]
  %v52 = vld [vmem:[%s2 + $0xe0] sm:$0xff]
  %v53 = vld [vmem:[%s2 + $0xe8] sm:$0xff]
  %v54 = vld [vmem:[%s2 + $0xf0] sm:$0xff]
  %v55 = vld [vmem:[%s2 + $0xf8] sm:$0xff]
  %v56 = vld [vmem:[%s2 + $0x100] sm:$0xff]
  %v57 = vld [vmem:[%s2 + $0x108] sm:$0xff]
  %v58 = vld [vmem:[%s2 + $0x110] sm:$0xff]
  %v59 = vld [vmem:[%s2 + $0x118] sm:$0xff]
  %v60 = vld [vmem:[%s2 + $0x120] sm:$0xff]
  %v61 = vld [vmem:[%s2 + $0x128] sm:$0xff]
  %v62 = vld [vmem:[%s2 + $0x130] sm:$0xff]
  %v63 = vld [vmem:[%s2 + $0x138] sm:$0xff]
  %v64 = vld [vmem:[%s2 + $0x140] sm:$0xff]
  %v65 = vld [vmem:[%s2 + $0x148] sm:$0xff]
  %v66 = vld [vmem:[%s2 + $0x150] sm:$0xff]
  %v67 = vld [vmem:[%s2 + $0x158] sm:$0xff]
  %v68 = vld [vmem:[%s2 + $0x160] sm:$0xff]
  %v69 = vld [vmem:[%s2 + $0x168] sm:$0xff]
  %v70 = vld [vmem:[%s2 + $0x170] sm:$0xff]
  %v71 = vld [vmem:[%s2 + $0x178] sm:$0xff]
  %v72 = vld [vmem:[%s2 + $0x180] sm:$0xff]
  %v73 = vld [vmem:[%s2 + $0x188] sm:$0xff]
  %v74 = vld [vmem:[%s2 + $0x190] sm:$0xff]
  %v75 = vld [vmem:[%s2 + $0x198] sm:$0xff]
  %v76 = vld [vmem:[%s2 + $0x1a0] sm:$0x33]
  %v77 = vld [vmem:[%s3] sm:$0xff]
  %v78 = vld [vmem:[%s3 + $0x8] sm:$0xff]
  %v79 = vld [vmem:[%s3 + $0x10] sm:$0xff]
  %v80 = vld [vmem:[%s3 + $0x18] sm:$0xff]
  %v81 = vld [vmem:[%s3 + $0x20] sm:$0xff]
  %v82 = vld [vmem:[%s3 + $0x28] sm:$0xff]
  %v83 = vld [vmem:[%s3 + $0x30] sm:$0xff]
  %v84 = vld [vmem:[%s3 + $0x38] sm:$0xff]
  %v85 = vld [vmem:[%s3 + $0x40] sm:$0xff]
  %v86 = vld [vmem:[%s3 + $0x48] sm:$0xff]
  %v87 = vld [vmem:[%s3 + $0x50] sm:$0xff]
  %v88 = vld [vmem:[%s3 + $0x58] sm:$0xff]
  %v89 = vld [vmem:[%s3 + $0x60] sm:$0xff]
  %v90 = vld [vmem:[%s3 + $0x68] sm:$0xff]
  %v91 = vld [vmem:[%s3 + $0x70] sm:$0xff]
  %v92 = vld [vmem:[%s3 + $0x78] sm:$0xff]
  %v93 = vld [vmem:[%s3 + $0x80] sm:$0xff]
  %v94 = vld [vmem:[%s3 + $0x88] sm:$0xff]
  %v95 = vld [vmem:[%s3 + $0x90] sm:$0xff]
  %v96 = vld [vmem:[%s3 + $0x98] sm:$0xff]
  %v97 = vld [vmem:[%s3 + $0xa0] sm:$0xff]
  %v98 = vld [vmem:[%s3 + $0xa8] sm:$0xff]
  %v99 = vld [vmem:[%s3 + $0xb0] sm:$0xff]
  %v100 = vld [vmem:[%s3 + $0xb8] sm:$0xff]
  %v101 = vld [vmem:[%s3 + $0xc0] sm:$0xff]
  %v102 = vld [vmem:[%s3 + $0xc8] sm:$0xff]
  %v103 = vld [vmem:[%s3 + $0xd0] sm:$0xff]
  %v104 = vld [vmem:[%s3 + $0xd8] sm:$0xff]
  %v105 = vld [vmem:[%s3 + $0xe0] sm:$0xff]
  %v106 = vld [vmem:[%s3 + $0xe8] sm:$0xff]
  %v107 = vld [vmem:[%s3 + $0xf0] sm:$0xff]
  %v108 = vld [vmem:[%s3 + $0xf8] sm:$0xff]
  %v109 = vld [vmem:[%s3 + $0x100] sm:$0xff]
  %v110 = vld [vmem:[%s3 + $0x108] sm:$0xff]
  %v111 = vld [vmem:[%s3 + $0x110] sm:$0xff]
  %v112 = vld [vmem:[%s3 + $0x118] sm:$0xff]
  %v113 = vld [vmem:[%s3 + $0x120] sm:$0xff]
  %v114 = vld [vmem:[%s3 + $0x128] sm:$0xff]
  %v115 = vld [vmem:[%s3 + $0x130] sm:$0xff]
  %v116 = vld [vmem:[%s3 + $0x138] sm:$0xff]
  %v117 = vld [vmem:[%s3 + $0x140] sm:$0xff]
  %v118 = vld [vmem:[%s3 + $0x148] sm:$0xff]
  %v119 = vld [vmem:[%s3 + $0x150] sm:$0xff]
  %v120 = vld [vmem:[%s3 + $0x158] sm:$0xff]
  %v121 = vld [vmem:[%s3 + $0x160] sm:$0xff]
  %v122 = vld [vmem:[%s3 + $0x168] sm:$0xff]
  %v123 = vld [vmem:[%s3 + $0x170] sm:$0xff]
  %v124 = vld [vmem:[%s3 + $0x178] sm:$0xff]
  %v125 = vld [vmem:[%s3 + $0x180] sm:$0xff]
  %v126 = vld [vmem:[%s3 + $0x188] sm:$0xff]
  %v127 = vld [vmem:[%s3 + $0x190] sm:$0xff]
  %v128 = vld [vmem:[%s3 + $0x198] sm:$0xff]
  %v129 = vld [vmem:[%s3 + $0x1a0] sm:$0x33]
  %v130 = vld [vmem:[%s4] sm:$0xff]
  %v131 = vld [vmem:[%s4 + $0x8] sm:$0xff]
  %v132 = vld [vmem:[%s4 + $0x10] sm:$0xff]
  %v133 = vld [vmem:[%s4 + $0x18] sm:$0xff]
  %v134 = vld [vmem:[%s4 + $0x20] sm:$0xff]
  %v135 = vld [vmem:[%s4 + $0x28] sm:$0xff]
  %v136 = vld [vmem:[%s4 + $0x30] sm:$0xff]
  %v137 = vld [vmem:[%s4 + $0x38] sm:$0xff]
  %v138 = vld [vmem:[%s4 + $0x40] sm:$0xff]
  %v139 = vld [vmem:[%s4 + $0x48] sm:$0xff]
  %v140 = vld [vmem:[%s4 + $0x50] sm:$0xff]
  %v141 = vld [vmem:[%s4 + $0x58] sm:$0xff]
  %v142 = vld [vmem:[%s4 + $0x60] sm:$0xff]
  %v143 = vld [vmem:[%s4 + $0x68] sm:$0xff]
  %v144 = vld [vmem:[%s4 + $0x70] sm:$0xff]
  %v145 = vld [vmem:[%s4 + $0x78] sm:$0xff]
  %v146 = vld [vmem:[%s4 + $0x80] sm:$0xff]
  %v147 = vld [vmem:[%s4 + $0x88] sm:$0xff]
  %v148 = vld [vmem:[%s4 + $0x90] sm:$0xff]
  %v149 = vld [vmem:[%s4 + $0x98] sm:$0xff]
  %v150 = vld [vmem:[%s4 + $0xa0] sm:$0xff]
  %v151 = vld [vmem:[%s4 + $0xa8] sm:$0xff]
  %v152 = vld [vmem:[%s4 + $0xb0] sm:$0xff]
  %v153 = vld [vmem:[%s4 + $0xb8] sm:$0xff]
  %v154 = vld [vmem:[%s4 + $0xc0] sm:$0xff]
  %v155 = vld [vmem:[%s4 + $0xc8] sm:$0xff]
  %v156 = vld [vmem:[%s4 + $0xd0] sm:$0xff]
  %v157 = vld [vmem:[%s4 + $0xd8] sm:$0xff]
  %v158 = vld [vmem:[%s4 + $0xe0] sm:$0xff]
  %v159 = vld [vmem:[%s4 + $0xe8] sm:$0xff]
  %v160 = vld [vmem:[%s4 + $0xf0] sm:$0xff]
  %v161 = vld [vmem:[%s4 + $0xf8] sm:$0xff]
  %v162 = vld [vmem:[%s4 + $0x100] sm:$0xff]
  %v163 = vld [vmem:[%s4 + $0x108] sm:$0xff]
  %v164 = vld [vmem:[%s4 + $0x110] sm:$0xff]
  %v165 = vld [vmem:[%s4 + $0x118] sm:$0xff]
  %v166 = vld [vmem:[%s4 + $0x120] sm:$0xff]
  %v167 = vld [vmem:[%s4 + $0x128] sm:$0xff]
  %v168 = vld [vmem:[%s4 + $0x130] sm:$0xff]
  %v169 = vld [vmem:[%s4 + $0x138] sm:$0xff]
  %v170 = vld [vmem:[%s4 + $0x140] sm:$0xff]
  %v171 = vld [vmem:[%s4 + $0x148] sm:$0xff]
  %v172 = vld [vmem:[%s4 + $0x150] sm:$0xff]
  %v173 = vld [vmem:[%s4 + $0x158] sm:$0xff]
  %v174 = vld [vmem:[%s4 + $0x160] sm:$0xff]
  %v175 = vld [vmem:[%s4 + $0x168] sm:$0xff]
  %v176 = vld [vmem:[%s4 + $0x170] sm:$0xff]
  %v177 = vld [vmem:[%s4 + $0x178] sm:$0xff]
  %v178 = vld [vmem:[%s4 + $0x180] sm:$0xff]
  %v179 = vld [vmem:[%s4 + $0x188] sm:$0xff]
  %v180 = vld [vmem:[%s4 + $0x190] sm:$0xff]
  %v181 = vld [vmem:[%s4 + $0x198] sm:$0xff]
  %v182 = vld [vmem:[%s4 + $0x1a0] sm:$0x33]
  %v183 = vld [vmem:[%s5] sm:$0x3]
  %v184 = vld [vmem:[%s0] sm:$0xff]
  %v185 = vld [vmem:[%s0 + $0x8] sm:$0xff]
  %v186 = vld [vmem:[%s0 + $0x10] sm:$0xff]
  %v187 = vld [vmem:[%s0 + $0x18] sm:$0xff]
  %v188 = vld [vmem:[%s0 + $0x20] sm:$0xff]
  %v189 = vld [vmem:[%s0 + $0x28] sm:$0xff]
  %v190 = vld [vmem:[%s0 + $0x30] sm:$0xff]
  %v191 = vld [vmem:[%s0 + $0x38] sm:$0xff]
  %v192 = vld [vmem:[%s0 + $0x40] sm:$0xff]
  %v193 = vld [vmem:[%s0 + $0x48] sm:$0xff]
  %v194 = vld [vmem:[%s0 + $0x50] sm:$0xff]
  %v195 = vld [vmem:[%s0 + $0x58] sm:$0xff]
  %v196 = vld [vmem:[%s0 + $0x60] sm:$0xff]
  %v197 = vld [vmem:[%s0 + $0x68] sm:$0xff]
  %v198 = vld [vmem:[%s0 + $0x70] sm:$0xff]
  %v199 = vld [vmem:[%s0 + $0x78] sm:$0xff]
  %v200 = vld [vmem:[%s0 + $0x80] sm:$0xff]
  %v201 = vld [vmem:[%s0 + $0x88] sm:$0xff]
  %v202 = vld [vmem:[%s0 + $0x90] sm:$0xff]
  %v203 = vld [vmem:[%s0 + $0x98] sm:$0xff]
  %v204 = vld [vmem:[%s0 + $0xa0] sm:$0xff]
  %v205 = vld [vmem:[%s0 + $0xa8] sm:$0xff]
  %v206 = vld [vmem:[%s0 + $0xb0] sm:$0xff]
  %v207 = vld [vmem:[%s0 + $0xb8] sm:$0xff]
  %v208 = vld [vmem:[%s0 + $0xc0] sm:$0x7]
  %v209 = vld [vmem:[%s0 + $0xc8] sm:$0x7]
  %v210 = vld [vmem:[%s0 + $0xd0] sm:$0x7]
  %v211 = vld [vmem:[%s0 + $0xd8] sm:$0x7]
  %v212 = vld [vmem:[%s1] sm:$0xff]
  %v213 = vld [vmem:[%s1 + $0x8] sm:$0xff]
  %v214 = vld [vmem:[%s1 + $0x10] sm:$0xff]
  %v215 = vld [vmem:[%s1 + $0x18] sm:$0xff]
  %v216 = vld [vmem:[%s1 + $0x20] sm:$0xff]
  %v217 = vld [vmem:[%s1 + $0x28] sm:$0xff]
  %v218 = vld [vmem:[%s1 + $0x30] sm:$0xff]
  %v219 = vld [vmem:[%s1 + $0x38] sm:$0xff]
  %v220 = vld [vmem:[%s1 + $0x40] sm:$0xff]
  %v221 = vld [vmem:[%s1 + $0x48] sm:$0xff]
  %v222 = vld [vmem:[%s1 + $0x50] sm:$0xff]
  %v223 = vld [vmem:[%s1 + $0x58] sm:$0xff]
  %v224 = vld [vmem:[%s1 + $0x60] sm:$0xff]
  %v225 = vld [vmem:[%s1 + $0x68] sm:$0xff]
  %v226 = vld [vmem:[%s1 + $0x70] sm:$0xff]
  %v227 = vld [vmem:[%s1 + $0x78] sm:$0xff]
  %v228 = vld [vmem:[%s1 + $0x80] sm:$0xff]
  %v229 = vld [vmem:[%s1 + $0x88] sm:$0xff]
  %v230 = vld [vmem:[%s1 + $0x90] sm:$0xff]
  %v231 = vld [vmem:[%s1 + $0x98] sm:$0xff]
  %v232 = vld [vmem:[%s1 + $0xa0] sm:$0xff]
  %v233 = vld [vmem:[%s1 + $0xa8] sm:$0xff]
  %v234 = vld [vmem:[%s1 + $0xb0] sm:$0xff]
  %v235 = vld [vmem:[%s1 + $0xb8] sm:$0xff]
  %v236 = vld [vmem:[%s1 + $0xc0] sm:$0x7]
  %v237 = vld [vmem:[%s1 + $0xc8] sm:$0x7]
  %v238 = vld [vmem:[%s1 + $0xd0] sm:$0x7]
  %v239 = vld [vmem:[%s1 + $0xd8] sm:$0x7]
  %v240 = vpack.c.bf16 %v188, %v184
  %v241 = vpack.c.bf16 %v189, %v185
  %v242 = vpack.c.bf16 %v190, %v186
  %v243 = vpack.c.bf16 %v191, %v187
  %v244 = vpack.c.bf16 %v196, %v192
  %v245 = vpack.c.bf16 %v197, %v193
  %v246 = vpack.c.bf16 %v198, %v194
  %v247 = vpack.c.bf16 %v199, %v195
  %v248 = vpack.c.bf16 %v204, %v200
  %v249 = vpack.c.bf16 %v205, %v201
  %v250 = vpack.c.bf16 %v206, %v202
  %v251 = vpack.c.bf16 %v207, %v203
  %v252 = vpack.c.bf16 %v208, %v208
  %v253 = vpack.c.bf16 %v209, %v209
  %v254 = vpack.c.bf16 %v210, %v210
  %v255 = vpack.c.bf16 %v211, %v211
  %v256 = vpack.c.bf16 %v216, %v212
  %v257 = vpack.c.bf16 %v217, %v213
  %v258 = vpack.c.bf16 %v218, %v214
  %v259 = vpack.c.bf16 %v219, %v215
  %v260 = vpack.c.bf16 %v224, %v220
  %v261 = vpack.c.bf16 %v225, %v221
  %v262 = vpack.c.bf16 %v226, %v222
  %v263 = vpack.c.bf16 %v227, %v223
  %v264 = vpack.c.bf16 %v232, %v228
  %v265 = vpack.c.bf16 %v233, %v229
  %v266 = vpack.c.bf16 %v234, %v230
  %v267 = vpack.c.bf16 %v235, %v231
  %v268 = vpack.c.bf16 %v236, %v236
  %v269 = vpack.c.bf16 %v237, %v237
  %v270 = vpack.c.bf16 %v238, %v238
  %v271 = vpack.c.bf16 %v239, %v239
  %v325 = vunpack.c.l.b16 %v77
  %v326 = vunpack.c.h.b16 %v77
  %v327 = vunpack.c.l.b16 %v78
  %v328 = vunpack.c.h.b16 %v78
  %v329 = vunpack.c.l.b16 %v79
  %v330 = vunpack.c.h.b16 %v79
  %v331 = vunpack.c.l.b16 %v80
  %v332 = vunpack.c.h.b16 %v80
  %v333 = vunpack.c.l.b16 %v81
  %v334 = vunpack.c.h.b16 %v81
  %v335 = vunpack.c.l.b16 %v82
  %v336 = vunpack.c.h.b16 %v82
  %v337 = vunpack.c.l.b16 %v83
  %v338 = vunpack.c.h.b16 %v83
  %v339 = vunpack.c.l.b16 %v84
  %v340 = vunpack.c.h.b16 %v84
  %v341 = vunpack.c.l.b16 %v85
  %v342 = vunpack.c.h.b16 %v85
  %v343 = vunpack.c.l.b16 %v86
  %v344 = vunpack.c.h.b16 %v86
  %v345 = vunpack.c.l.b16 %v87
  %v346 = vunpack.c.h.b16 %v87
  %v347 = vunpack.c.l.b16 %v88
  %v348 = vunpack.c.h.b16 %v88
  %v349 = vunpack.c.l.b16 %v89
  %v350 = vunpack.c.h.b16 %v89
  %v351 = vunpack.c.l.b16 %v90
  %v352 = vunpack.c.h.b16 %v90
  %v353 = vunpack.c.l.b16 %v91
  %v354 = vunpack.c.h.b16 %v91
  %v355 = vunpack.c.l.b16 %v92
  %v356 = vunpack.c.h.b16 %v92
  %v357 = vunpack.c.l.b16 %v93
  %v358 = vunpack.c.h.b16 %v93
  %v359 = vunpack.c.l.b16 %v94
  %v360 = vunpack.c.h.b16 %v94
  %v361 = vunpack.c.l.b16 %v95
  %v362 = vunpack.c.h.b16 %v95
  %v363 = vunpack.c.l.b16 %v96
  %v364 = vunpack.c.h.b16 %v96
  %v365 = vunpack.c.l.b16 %v97
  %v366 = vunpack.c.h.b16 %v97
  %v367 = vunpack.c.l.b16 %v98
  %v368 = vunpack.c.h.b16 %v98
  %v369 = vunpack.c.l.b16 %v99
  %v370 = vunpack.c.h.b16 %v99
  %v371 = vunpack.c.l.b16 %v100
  %v372 = vunpack.c.h.b16 %v100
  %v373 = vunpack.c.l.b16 %v101
  %v374 = vunpack.c.h.b16 %v101
  %v375 = vunpack.c.l.b16 %v102
  %v376 = vunpack.c.h.b16 %v102
  %v377 = vunpack.c.l.b16 %v103
  %v378 = vunpack.c.h.b16 %v103
  %v379 = vunpack.c.l.b16 %v104
  %v380 = vunpack.c.h.b16 %v104
  %v381 = vunpack.c.l.b16 %v105
  %v382 = vunpack.c.h.b16 %v105
  %v383 = vunpack.c.l.b16 %v106
  %v384 = vunpack.c.h.b16 %v106
  %v385 = vunpack.c.l.b16 %v107
  %v386 = vunpack.c.h.b16 %v107
  %v387 = vunpack.c.l.b16 %v108
  %v388 = vunpack.c.h.b16 %v108
  %v389 = vunpack.c.l.b16 %v109
  %v390 = vunpack.c.h.b16 %v109
  %v391 = vunpack.c.l.b16 %v110
  %v392 = vunpack.c.h.b16 %v110
  %v393 = vunpack.c.l.b16 %v111
  %v394 = vunpack.c.h.b16 %v111
  %v395 = vunpack.c.l.b16 %v112
  %v396 = vunpack.c.h.b16 %v112
  %v397 = vunpack.c.l.b16 %v113
  %v398 = vunpack.c.h.b16 %v113
  %v399 = vunpack.c.l.b16 %v114
  %v400 = vunpack.c.h.b16 %v114
  %v401 = vunpack.c.l.b16 %v115
  %v402 = vunpack.c.h.b16 %v115
  %v403 = vunpack.c.l.b16 %v116
  %v404 = vunpack.c.h.b16 %v116
  %v405 = vunpack.c.l.b16 %v117
  %v406 = vunpack.c.h.b16 %v117
  %v407 = vunpack.c.l.b16 %v118
  %v408 = vunpack.c.h.b16 %v118
  %v409 = vunpack.c.l.b16 %v119
  %v410 = vunpack.c.h.b16 %v119
  %v411 = vunpack.c.l.b16 %v120
  %v412 = vunpack.c.h.b16 %v120
  %v413 = vunpack.c.l.b16 %v121
  %v414 = vunpack.c.h.b16 %v121
  %v415 = vunpack.c.l.b16 %v122
  %v416 = vunpack.c.h.b16 %v122
  %v417 = vunpack.c.l.b16 %v123
  %v418 = vunpack.c.h.b16 %v123
  %v419 = vunpack.c.l.b16 %v124
  %v420 = vunpack.c.h.b16 %v124
  %v421 = vunpack.c.l.b16 %v125
  %v422 = vunpack.c.h.b16 %v125
  %v423 = vunpack.c.l.b16 %v126
  %v424 = vunpack.c.h.b16 %v126
  %v425 = vunpack.c.l.b16 %v127
  %v426 = vunpack.c.h.b16 %v127
  %v427 = vunpack.c.l.b16 %v128
  %v428 = vunpack.c.h.b16 %v128
  %v429 = vunpack.c.l.b16 %v129
  %v430 = vunpack.c.h.b16 %v129
  %v431 = vpack.c.b16 %v327, %v325
  %v432 = vpack.c.b16 %v328, %v326
  %v433 = vpack.c.b16 %v331, %v329
  %v434 = vpack.c.b16 %v332, %v330
  %v435 = vpack.c.b16 %v335, %v333
  %v436 = vpack.c.b16 %v336, %v334
  %v437 = vpack.c.b16 %v339, %v337
  %v438 = vpack.c.b16 %v340, %v338
  %v439 = vpack.c.b16 %v343, %v341
  %v440 = vpack.c.b16 %v344, %v342
  %v441 = vpack.c.b16 %v347, %v345
  %v442 = vpack.c.b16 %v348, %v346
  %v443 = vpack.c.b16 %v351, %v349
  %v444 = vpack.c.b16 %v352, %v350
  %v445 = vpack.c.b16 %v355, %v353
  %v446 = vpack.c.b16 %v356, %v354
  %v447 = vpack.c.b16 %v359, %v357
  %v448 = vpack.c.b16 %v360, %v358
  %v449 = vpack.c.b16 %v363, %v361
  %v450 = vpack.c.b16 %v364, %v362
  %v451 = vpack.c.b16 %v367, %v365
  %v452 = vpack.c.b16 %v368, %v366
  %v453 = vpack.c.b16 %v371, %v369
  %v454 = vpack.c.b16 %v372, %v370
  %v455 = vpack.c.b16 %v375, %v373
  %v456 = vpack.c.b16 %v376, %v374
  %v457 = vpack.c.b16 %v379, %v377
  %v458 = vpack.c.b16 %v380, %v378
  %v459 = vpack.c.b16 %v383, %v381
  %v460 = vpack.c.b16 %v384, %v382
  %v461 = vpack.c.b16 %v387, %v385
  %v462 = vpack.c.b16 %v388, %v386
  %v463 = vpack.c.b16 %v391, %v389
  %v464 = vpack.c.b16 %v392, %v390
  %v465 = vpack.c.b16 %v395, %v393
  %v466 = vpack.c.b16 %v396, %v394
  %v467 = vpack.c.b16 %v399, %v397
  %v468 = vpack.c.b16 %v400, %v398
  %v469 = vpack.c.b16 %v403, %v401
  %v470 = vpack.c.b16 %v404, %v402
  %v471 = vpack.c.b16 %v407, %v405
  %v472 = vpack.c.b16 %v408, %v406
  %v473 = vpack.c.b16 %v411, %v409
  %v474 = vpack.c.b16 %v412, %v410
  %v475 = vpack.c.b16 %v415, %v413
  %v476 = vpack.c.b16 %v416, %v414
  %v477 = vpack.c.b16 %v419, %v417
  %v478 = vpack.c.b16 %v420, %v418
  %v479 = vpack.c.b16 %v423, %v421
  %v480 = vpack.c.b16 %v424, %v422
  %v481 = vpack.c.b16 %v427, %v425
  %v482 = vpack.c.b16 %v428, %v426
  %v483 = vpack.c.b16 %v429, %v429
  %v484 = vpack.c.b16 %v430, %v430
  %vm537 = vcmask 293888
  %v539 = vsel %vm537, %v259, 0
  %v542 = vsel %vm537, %v263, 0
  %v545 = vsel %vm537, %v267, 0
  %v548 = vsel %vm537, %v271, 0
  %vm550 = vcmask 1041408
  %v552 = vsel %vm550, %v483, 0
  %v555 = vsel %vm550, %v484, 0
  %557 = vmatprep.subr.bf16.mxu0 %v446
  %558 = vmatpush1.bf16.msra.mxu0 %v445
  %559 = vmatprep.subr.bf16.mxu0 %v444
  %560 = vmatpush1.bf16.msra.mxu0 %v443
  %561 = vmatprep.subr.bf16.mxu0 %v442
  %562 = vmatpush1.bf16.msra.mxu0 %v441
  %563 = vmatprep.subr.bf16.mxu0 %v440
  %564 = vmatpush1.bf16.msra.mxu0 %v439
  %565 = vmatprep.subr.bf16.mxu0 %v438
  %566 = vmatpush1.bf16.msra.mxu0 %v437
  %567 = vmatprep.subr.bf16.mxu0 %v436
  %568 = vmatpush1.bf16.msra.mxu0 %v435
  %569 = vmatprep.subr.bf16.mxu0 %v434
  %570 = vmatpush1.bf16.msra.mxu0 %v433
  %571 = vmatprep.subr.bf16.mxu0 %v432
  %572 = vmatpush1.bf16.msra.mxu0 %v431
  %573 = vmatprep.subr.bf16.mxu0 %v462
  %574 = vmatpush2.bf16.msra.mxu0 %v461
  %575 = vmatprep.subr.bf16.mxu0 %v460
  %576 = vmatpush2.bf16.msra.mxu0 %v459
  %577 = vmatprep.subr.bf16.mxu0 %v458
  %578 = vmatpush2.bf16.msra.mxu0 %v457
  %579 = vmatprep.subr.bf16.mxu0 %v456
  %580 = vmatpush2.bf16.msra.mxu0 %v455
  %581 = vmatprep.subr.bf16.mxu0 %v454
  %582 = vmatpush2.bf16.msra.mxu0 %v453
  %583 = vmatprep.subr.bf16.mxu0 %v452
  %584 = vmatpush2.bf16.msra.mxu0 %v451
  %585 = vmatprep.subr.bf16.mxu0 %v450
  %586 = vmatpush2.bf16.msra.mxu0 %v449
  %587 = vmatprep.subr.bf16.mxu0 %v448
  %588 = vmatpush2.bf16.msra.mxu0 %v447
  %589 = vmatprep.mubr.bf16.mxu0 %v257
  %590 = vmatmul.mubr.bf16.gmra.mxu0 %v256
  %v591 = vpop.f32.mrf.mxu0
  %v592 = vadd.f32 0.0, %v591
  %v593 = vpop.f32.mrf.mxu0
  %v594 = vadd.f32 0.0, %v593
  %v595 = vpop.f32.mrf.mxu0
  %v596 = vadd.f32 0.0, %v595
  %v597 = vpop.f32.mrf.mxu0
  %v598 = vadd.f32 0.0, %v597
  %599 = vmatprep.mubr.bf16.mxu0 %v261
  %600 = vmatmul.mubr.bf16.gmra.mxu0 %v260
  %v601 = vpop.f32.mrf.mxu0
  %v602 = vadd.f32 0.0, %v601
  %v603 = vpop.f32.mrf.mxu0
  %v604 = vadd.f32 0.0, %v603
  %v605 = vpop.f32.mrf.mxu0
  %v606 = vadd.f32 0.0, %v605
  %v607 = vpop.f32.mrf.mxu0
  %v608 = vadd.f32 0.0, %v607
  %609 = vmatprep.mubr.bf16.mxu0 %v265
  %610 = vmatmul.mubr.bf16.gmra.mxu0 %v264
  %v611 = vpop.f32.mrf.mxu0
  %v612 = vadd.f32 0.0, %v611
  %v613 = vpop.f32.mrf.mxu0
  %v614 = vadd.f32 0.0, %v613
  %v615 = vpop.f32.mrf.mxu0
  %v616 = vadd.f32 0.0, %v615
  %v617 = vpop.f32.mrf.mxu0
  %v618 = vadd.f32 0.0, %v617
  %619 = vmatprep.mubr.bf16.mxu0 %v269
  %620 = vmatmul.mubr.bf16.gmra.mxu0 %v268
  %v621 = vpop.f32.mrf.mxu0
  %v622 = vadd.f32 0.0, %v621
  %v623 = vpop.f32.mrf.mxu0
  %v624 = vadd.f32 0.0, %v623
  %v625 = vpop.f32.mrf.mxu0
  %v626 = vpop.f32.mrf.mxu0
  %627 = vdwg.mxu0
  %628 = vmatprep.subr.bf16.mxu0 %v478
  %629 = vmatpush1.bf16.msra.mxu0 %v477
  %630 = vmatprep.subr.bf16.mxu0 %v476
  %631 = vmatpush1.bf16.msra.mxu0 %v475
  %632 = vmatprep.subr.bf16.mxu0 %v474
  %633 = vmatpush1.bf16.msra.mxu0 %v473
  %634 = vmatprep.subr.bf16.mxu0 %v472
  %635 = vmatpush1.bf16.msra.mxu0 %v471
  %636 = vmatprep.subr.bf16.mxu0 %v470
  %637 = vmatpush1.bf16.msra.mxu0 %v469
  %638 = vmatprep.subr.bf16.mxu0 %v468
  %639 = vmatpush1.bf16.msra.mxu0 %v467
  %640 = vmatprep.subr.bf16.mxu0 %v466
  %641 = vmatpush1.bf16.msra.mxu0 %v465
  %642 = vmatprep.subr.bf16.mxu0 %v464
  %643 = vmatpush1.bf16.msra.mxu0 %v463
  %644 = vmatprep.subr.bf16.mxu0 0
  %645 = vmatpush2.bf16.msra.mxu0 0
  %646 = vmatprep.subr.bf16.mxu0 0
  %647 = vmatpush2.bf16.msra.mxu0 0
  %648 = vmatprep.subr.bf16.mxu0 0
  %649 = vmatpush2.bf16.msra.mxu0 0
  %650 = vmatprep.subr.bf16.mxu0 0
  %651 = vmatpush2.bf16.msra.mxu0 0
  %652 = vmatprep.subr.bf16.mxu0 0
  %653 = vmatpush2.bf16.msra.mxu0 0
  %654 = vmatprep.subr.bf16.mxu0 %v555
  %655 = vmatpush2.bf16.msra.mxu0 %v552
  %656 = vmatprep.subr.bf16.mxu0 %v482
  %657 = vmatpush2.bf16.msra.mxu0 %v481
  %658 = vmatprep.subr.bf16.mxu0 %v480
  %659 = vmatpush2.bf16.msra.mxu0 %v479
  %660 = vmatprep.mubr.bf16.mxu0 %v539
  %661 = vmatmul.mubr.bf16.gmra.mxu0 %v258
  %v662 = vpop.f32.mrf.mxu0
  %v663 = vadd.f32 %v592, %v662
  %v664 = vpop.f32.mrf.mxu0
  %v665 = vadd.f32 %v594, %v664
  %v666 = vpop.f32.mrf.mxu0
  %v667 = vadd.f32 %v596, %v666
  %v668 = vpop.f32.mrf.mxu0
  %v669 = vadd.f32 %v598, %v668
  %670 = vmatprep.mubr.bf16.mxu0 %v542
  %671 = vmatmul.mubr.bf16.gmra.mxu0 %v262
  %v672 = vpop.f32.mrf.mxu0
  %v673 = vadd.f32 %v602, %v672
  %v674 = vpop.f32.mrf.mxu0
  %v675 = vadd.f32 %v604, %v674
  %v676 = vpop.f32.mrf.mxu0
  %v677 = vadd.f32 %v606, %v676
  %v678 = vpop.f32.mrf.mxu0
  %v679 = vadd.f32 %v608, %v678
  %680 = vmatprep.mubr.bf16.mxu0 %v545
  %681 = vmatmul.mubr.bf16.gmra.mxu0 %v266
  %v682 = vpop.f32.mrf.mxu0
  %v683 = vadd.f32 %v612, %v682
  %v684 = vpop.f32.mrf.mxu0
  %v685 = vadd.f32 %v614, %v684
  %v686 = vpop.f32.mrf.mxu0
  %v687 = vadd.f32 %v616, %v686
  %v688 = vpop.f32.mrf.mxu0
  %v689 = vadd.f32 %v618, %v688
  %690 = vmatprep.mubr.bf16.mxu0 %v548
  %691 = vmatmul.mubr.bf16.gmra.mxu0 %v270
  %v692 = vpop.f32.mrf.mxu0
  %v693 = vadd.f32 %v622, %v692
  %v694 = vpop.f32.mrf.mxu0
  %v695 = vadd.f32 %v624, %v694
  %v696 = vpop.f32.mrf.mxu0
  %v697 = vpop.f32.mrf.mxu0
  %698 = vdwg.mxu0
  %v752 = vunpack.c.l.b16 %v24
  %v753 = vunpack.c.h.b16 %v24
  %v754 = vunpack.c.l.b16 %v25
  %v755 = vunpack.c.h.b16 %v25
  %v756 = vunpack.c.l.b16 %v26
  %v757 = vunpack.c.h.b16 %v26
  %v758 = vunpack.c.l.b16 %v27
  %v759 = vunpack.c.h.b16 %v27
  %v760 = vunpack.c.l.b16 %v28
  %v761 = vunpack.c.h.b16 %v28
  %v762 = vunpack.c.l.b16 %v29
  %v763 = vunpack.c.h.b16 %v29
  %v764 = vunpack.c.l.b16 %v30
  %v765 = vunpack.c.h.b16 %v30
  %v766 = vunpack.c.l.b16 %v31
  %v767 = vunpack.c.h.b16 %v31
  %v768 = vunpack.c.l.b16 %v32
  %v769 = vunpack.c.h.b16 %v32
  %v770 = vunpack.c.l.b16 %v33
  %v771 = vunpack.c.h.b16 %v33
  %v772 = vunpack.c.l.b16 %v34
  %v773 = vunpack.c.h.b16 %v34
  %v774 = vunpack.c.l.b16 %v35
  %v775 = vunpack.c.h.b16 %v35
  %v776 = vunpack.c.l.b16 %v36
  %v777 = vunpack.c.h.b16 %v36
  %v778 = vunpack.c.l.b16 %v37
  %v779 = vunpack.c.h.b16 %v37
  %v780 = vunpack.c.l.b16 %v38
  %v781 = vunpack.c.h.b16 %v38
  %v782 = vunpack.c.l.b16 %v39
  %v783 = vunpack.c.h.b16 %v39
  %v784 = vunpack.c.l.b16 %v40
  %v785 = vunpack.c.h.b16 %v40
  %v786 = vunpack.c.l.b16 %v41
  %v787 = vunpack.c.h.b16 %v41
  %v788 = vunpack.c.l.b16 %v42
  %v789 = vunpack.c.h.b16 %v42
  %v790 = vunpack.c.l.b16 %v43
  %v791 = vunpack.c.h.b16 %v43
  %v792 = vunpack.c.l.b16 %v44
  %v793 = vunpack.c.h.b16 %v44
  %v794 = vunpack.c.l.b16 %v45
  %v795 = vunpack.c.h.b16 %v45
  %v796 = vunpack.c.l.b16 %v46
  %v797 = vunpack.c.h.b16 %v46
  %v798 = vunpack.c.l.b16 %v47
  %v799 = vunpack.c.h.b16 %v47
  %v800 = vunpack.c.l.b16 %v48
  %v801 = vunpack.c.h.b16 %v48
  %v802 = vunpack.c.l.b16 %v49
  %v803 = vunpack.c.h.b16 %v49
  %v804 = vunpack.c.l.b16 %v50
  %v805 = vunpack.c.h.b16 %v50
  %v806 = vunpack.c.l.b16 %v51
  %v807 = vunpack.c.h.b16 %v51
  %v808 = vunpack.c.l.b16 %v52
  %v809 = vunpack.c.h.b16 %v52
  %v810 = vunpack.c.l.b16 %v53
  %v811 = vunpack.c.h.b16 %v53
  %v812 = vunpack.c.l.b16 %v54
  %v813 = vunpack.c.h.b16 %v54
  %v814 = vunpack.c.l.b16 %v55
  %v815 = vunpack.c.h.b16 %v55
  %v816 = vunpack.c.l.b16 %v56
  %v817 = vunpack.c.h.b16 %v56
  %v818 = vunpack.c.l.b16 %v57
  %v819 = vunpack.c.h.b16 %v57
  %v820 = vunpack.c.l.b16 %v58
  %v821 = vunpack.c.h.b16 %v58
  %v822 = vunpack.c.l.b16 %v59
  %v823 = vunpack.c.h.b16 %v59
  %v824 = vunpack.c.l.b16 %v60
  %v825 = vunpack.c.h.b16 %v60
  %v826 = vunpack.c.l.b16 %v61
  %v827 = vunpack.c.h.b16 %v61
  %v828 = vunpack.c.l.b16 %v62
  %v829 = vunpack.c.h.b16 %v62
  %v830 = vunpack.c.l.b16 %v63
  %v831 = vunpack.c.h.b16 %v63
  %v832 = vunpack.c.l.b16 %v64
  %v833 = vunpack.c.h.b16 %v64
  %v834 = vunpack.c.l.b16 %v65
  %v835 = vunpack.c.h.b16 %v65
  %v836 = vunpack.c.l.b16 %v66
  %v837 = vunpack.c.h.b16 %v66
  %v838 = vunpack.c.l.b16 %v67
  %v839 = vunpack.c.h.b16 %v67
  %v840 = vunpack.c.l.b16 %v68
  %v841 = vunpack.c.h.b16 %v68
  %v842 = vunpack.c.l.b16 %v69
  %v843 = vunpack.c.h.b16 %v69
  %v844 = vunpack.c.l.b16 %v70
  %v845 = vunpack.c.h.b16 %v70
  %v846 = vunpack.c.l.b16 %v71
  %v847 = vunpack.c.h.b16 %v71
  %v848 = vunpack.c.l.b16 %v72
  %v849 = vunpack.c.h.b16 %v72
  %v850 = vunpack.c.l.b16 %v73
  %v851 = vunpack.c.h.b16 %v73
  %v852 = vunpack.c.l.b16 %v74
  %v853 = vunpack.c.h.b16 %v74
  %v854 = vunpack.c.l.b16 %v75
  %v855 = vunpack.c.h.b16 %v75
  %v856 = vunpack.c.l.b16 %v76
  %v857 = vunpack.c.h.b16 %v76
  %v858 = vpack.c.b16 %v754, %v752
  %v859 = vpack.c.b16 %v755, %v753
  %v860 = vpack.c.b16 %v758, %v756
  %v861 = vpack.c.b16 %v759, %v757
  %v862 = vpack.c.b16 %v762, %v760
  %v863 = vpack.c.b16 %v763, %v761
  %v864 = vpack.c.b16 %v766, %v764
  %v865 = vpack.c.b16 %v767, %v765
  %v866 = vpack.c.b16 %v770, %v768
  %v867 = vpack.c.b16 %v771, %v769
  %v868 = vpack.c.b16 %v774, %v772
  %v869 = vpack.c.b16 %v775, %v773
  %v870 = vpack.c.b16 %v778, %v776
  %v871 = vpack.c.b16 %v779, %v777
  %v872 = vpack.c.b16 %v782, %v780
  %v873 = vpack.c.b16 %v783, %v781
  %v874 = vpack.c.b16 %v786, %v784
  %v875 = vpack.c.b16 %v787, %v785
  %v876 = vpack.c.b16 %v790, %v788
  %v877 = vpack.c.b16 %v791, %v789
  %v878 = vpack.c.b16 %v794, %v792
  %v879 = vpack.c.b16 %v795, %v793
  %v880 = vpack.c.b16 %v798, %v796
  %v881 = vpack.c.b16 %v799, %v797
  %v882 = vpack.c.b16 %v802, %v800
  %v883 = vpack.c.b16 %v803, %v801
  %v884 = vpack.c.b16 %v806, %v804
  %v885 = vpack.c.b16 %v807, %v805
  %v886 = vpack.c.b16 %v810, %v808
  %v887 = vpack.c.b16 %v811, %v809
  %v888 = vpack.c.b16 %v814, %v812
  %v889 = vpack.c.b16 %v815, %v813
  %v890 = vpack.c.b16 %v818, %v816
  %v891 = vpack.c.b16 %v819, %v817
  %v892 = vpack.c.b16 %v822, %v820
  %v893 = vpack.c.b16 %v823, %v821
  %v894 = vpack.c.b16 %v826, %v824
  %v895 = vpack.c.b16 %v827, %v825
  %v896 = vpack.c.b16 %v830, %v828
  %v897 = vpack.c.b16 %v831, %v829
  %v898 = vpack.c.b16 %v834, %v832
  %v899 = vpack.c.b16 %v835, %v833
  %v900 = vpack.c.b16 %v838, %v836
  %v901 = vpack.c.b16 %v839, %v837
  %v902 = vpack.c.b16 %v842, %v840
  %v903 = vpack.c.b16 %v843, %v841
  %v904 = vpack.c.b16 %v846, %v844
  %v905 = vpack.c.b16 %v847, %v845
  %v906 = vpack.c.b16 %v850, %v848
  %v907 = vpack.c.b16 %v851, %v849
  %v908 = vpack.c.b16 %v854, %v852
  %v909 = vpack.c.b16 %v855, %v853
  %v910 = vpack.c.b16 %v856, %v856
  %v911 = vpack.c.b16 %v857, %v857
  %v965 = vsel %vm537, %v243, 0
  %v968 = vsel %vm537, %v247, 0
  %v971 = vsel %vm537, %v251, 0
  %v974 = vsel %vm537, %v255, 0
  %v977 = vsel %vm550, %v910, 0
  %v980 = vsel %vm550, %v911, 0
  %982 = vmatprep.subr.bf16.mxu0 %v873
  %983 = vmatpush1.bf16.msra.mxu0 %v872
  %984 = vmatprep.subr.bf16.mxu0 %v871
  %985 = vmatpush1.bf16.msra.mxu0 %v870
  %986 = vmatprep.subr.bf16.mxu0 %v869
  %987 = vmatpush1.bf16.msra.mxu0 %v868
  %988 = vmatprep.subr.bf16.mxu0 %v867
  %989 = vmatpush1.bf16.msra.mxu0 %v866
  %990 = vmatprep.subr.bf16.mxu0 %v865
  %991 = vmatpush1.bf16.msra.mxu0 %v864
  %992 = vmatprep.subr.bf16.mxu0 %v863
  %993 = vmatpush1.bf16.msra.mxu0 %v862
  %994 = vmatprep.subr.bf16.mxu0 %v861
  %995 = vmatpush1.bf16.msra.mxu0 %v860
  %996 = vmatprep.subr.bf16.mxu0 %v859
  %997 = vmatpush1.bf16.msra.mxu0 %v858
  %998 = vmatprep.subr.bf16.mxu0 %v889
  %999 = vmatpush2.bf16.msra.mxu0 %v888
  %1000 = vmatprep.subr.bf16.mxu0 %v887
  %1001 = vmatpush2.bf16.msra.mxu0 %v886
  %1002 = vmatprep.subr.bf16.mxu0 %v885
  %1003 = vmatpush2.bf16.msra.mxu0 %v884
  %1004 = vmatprep.subr.bf16.mxu0 %v883
  %1005 = vmatpush2.bf16.msra.mxu0 %v882
  %1006 = vmatprep.subr.bf16.mxu0 %v881
  %1007 = vmatpush2.bf16.msra.mxu0 %v880
  %1008 = vmatprep.subr.bf16.mxu0 %v879
  %1009 = vmatpush2.bf16.msra.mxu0 %v878
  %1010 = vmatprep.subr.bf16.mxu0 %v877
  %1011 = vmatpush2.bf16.msra.mxu0 %v876
  %1012 = vmatprep.subr.bf16.mxu0 %v875
  %1013 = vmatpush2.bf16.msra.mxu0 %v874
  %1014 = vmatprep.mubr.bf16.mxu0 %v241
  %1015 = vmatmul.mubr.bf16.gmra.mxu0 %v240
  %v1016 = vpop.f32.mrf.mxu0
  %v1017 = vadd.f32 %v663, %v1016
  %v1018 = vpop.f32.mrf.mxu0
  %v1019 = vadd.f32 %v665, %v1018
  %v1020 = vpop.f32.mrf.mxu0
  %v1021 = vadd.f32 %v667, %v1020
  %v1022 = vpop.f32.mrf.mxu0
  %v1023 = vadd.f32 %v669, %v1022
  %1024 = vmatprep.mubr.bf16.mxu0 %v245
  %1025 = vmatmul.mubr.bf16.gmra.mxu0 %v244
  %v1026 = vpop.f32.mrf.mxu0
  %v1027 = vadd.f32 %v673, %v1026
  %v1028 = vpop.f32.mrf.mxu0
  %v1029 = vadd.f32 %v675, %v1028
  %v1030 = vpop.f32.mrf.mxu0
  %v1031 = vadd.f32 %v677, %v1030
  %v1032 = vpop.f32.mrf.mxu0
  %v1033 = vadd.f32 %v679, %v1032
  %1034 = vmatprep.mubr.bf16.mxu0 %v249
  %1035 = vmatmul.mubr.bf16.gmra.mxu0 %v248
  %v1036 = vpop.f32.mrf.mxu0
  %v1037 = vadd.f32 %v683, %v1036
  %v1038 = vpop.f32.mrf.mxu0
  %v1039 = vadd.f32 %v685, %v1038
  %v1040 = vpop.f32.mrf.mxu0
  %v1041 = vadd.f32 %v687, %v1040
  %v1042 = vpop.f32.mrf.mxu0
  %v1043 = vadd.f32 %v689, %v1042
  %1044 = vmatprep.mubr.bf16.mxu0 %v253
  %1045 = vmatmul.mubr.bf16.gmra.mxu0 %v252
  %v1046 = vpop.f32.mrf.mxu0
  %v1047 = vadd.f32 %v693, %v1046
  %v1048 = vpop.f32.mrf.mxu0
  %v1049 = vadd.f32 %v695, %v1048
  %v1050 = vpop.f32.mrf.mxu0
  %v1051 = vpop.f32.mrf.mxu0
  %1052 = vdwg.mxu0
  %1053 = vmatprep.subr.bf16.mxu0 %v905
  %1054 = vmatpush1.bf16.msra.mxu0 %v904
  %1055 = vmatprep.subr.bf16.mxu0 %v903
  %1056 = vmatpush1.bf16.msra.mxu0 %v902
  %1057 = vmatprep.subr.bf16.mxu0 %v901
  %1058 = vmatpush1.bf16.msra.mxu0 %v900
  %1059 = vmatprep.subr.bf16.mxu0 %v899
  %1060 = vmatpush1.bf16.msra.mxu0 %v898
  %1061 = vmatprep.subr.bf16.mxu0 %v897
  %1062 = vmatpush1.bf16.msra.mxu0 %v896
  %1063 = vmatprep.subr.bf16.mxu0 %v895
  %1064 = vmatpush1.bf16.msra.mxu0 %v894
  %1065 = vmatprep.subr.bf16.mxu0 %v893
  %1066 = vmatpush1.bf16.msra.mxu0 %v892
  %1067 = vmatprep.subr.bf16.mxu0 %v891
  %1068 = vmatpush1.bf16.msra.mxu0 %v890
  %1069 = vmatprep.subr.bf16.mxu0 0
  %1070 = vmatpush2.bf16.msra.mxu0 0
  %1071 = vmatprep.subr.bf16.mxu0 0
  %1072 = vmatpush2.bf16.msra.mxu0 0
  %1073 = vmatprep.subr.bf16.mxu0 0
  %1074 = vmatpush2.bf16.msra.mxu0 0
  %1075 = vmatprep.subr.bf16.mxu0 0
  %1076 = vmatpush2.bf16.msra.mxu0 0
  %1077 = vmatprep.subr.bf16.mxu0 0
  %1078 = vmatpush2.bf16.msra.mxu0 0
  %1079 = vmatprep.subr.bf16.mxu0 %v980
  %1080 = vmatpush2.bf16.msra.mxu0 %v977
  %1081 = vmatprep.subr.bf16.mxu0 %v909
  %1082 = vmatpush2.bf16.msra.mxu0 %v908
  %1083 = vmatprep.subr.bf16.mxu0 %v907
  %1084 = vmatpush2.bf16.msra.mxu0 %v906
  %1085 = vmatprep.mubr.bf16.mxu0 %v965
  %1086 = vmatmul.mubr.bf16.gmra.mxu0 %v242
  %v1087 = vpop.f32.mrf.mxu0
  %v1088 = vadd.f32 %v1017, %v1087
  %v1089 = vpop.f32.mrf.mxu0
  %v1090 = vadd.f32 %v1019, %v1089
  %v1091 = vpop.f32.mrf.mxu0
  %v1092 = vadd.f32 %v1021, %v1091
  %v1093 = vpop.f32.mrf.mxu0
  %v1094 = vadd.f32 %v1023, %v1093
  %1095 = vmatprep.mubr.bf16.mxu0 %v968
  %1096 = vmatmul.mubr.bf16.gmra.mxu0 %v246
  %v1097 = vpop.f32.mrf.mxu0
  %v1098 = vadd.f32 %v1027, %v1097
  %v1099 = vpop.f32.mrf.mxu0
  %v1100 = vadd.f32 %v1029, %v1099
  %v1101 = vpop.f32.mrf.mxu0
  %v1102 = vadd.f32 %v1031, %v1101
  %v1103 = vpop.f32.mrf.mxu0
  %v1104 = vadd.f32 %v1033, %v1103
  %1105 = vmatprep.mubr.bf16.mxu0 %v971
  %1106 = vmatmul.mubr.bf16.gmra.mxu0 %v250
  %v1107 = vpop.f32.mrf.mxu0
  %v1108 = vadd.f32 %v1037, %v1107
  %v1109 = vpop.f32.mrf.mxu0
  %v1110 = vadd.f32 %v1039, %v1109
  %v1111 = vpop.f32.mrf.mxu0
  %v1112 = vadd.f32 %v1041, %v1111
  %v1113 = vpop.f32.mrf.mxu0
  %v1114 = vadd.f32 %v1043, %v1113
  %1115 = vmatprep.mubr.bf16.mxu0 %v974
  %1116 = vmatmul.mubr.bf16.gmra.mxu0 %v254
  %v1117 = vpop.f32.mrf.mxu0
  %v1118 = vadd.f32 %v1047, %v1117
  %v1119 = vpop.f32.mrf.mxu0
  %v1120 = vadd.f32 %v1049, %v1119
  %v1121 = vpop.f32.mrf.mxu0
  %v1122 = vpop.f32.mrf.mxu0
  %1123 = vdwg.mxu0
  %vm1124 = vsmask.f32 7424
  %v1126 = vshrl.u32 %v240, 16
  %v1128 = vshll.u32 %v240, 16
  %v1130 = vrot.slane %v1128, 1
  %v1131 = vor.u32 %v1126, %v1130
  %v1133 = vshll.u32 %v244, 16
  %v1135 = vrot.slane %v1133, 1
  %v1136 = vsel %vm1124, %v1131, %v1135
  %v1138 = vshrl.u32 %v241, 16
  %v1140 = vshll.u32 %v241, 16
  %v1142 = vrot.slane %v1140, 1
  %v1143 = vor.u32 %v1138, %v1142
  %v1145 = vshll.u32 %v245, 16
  %v1147 = vrot.slane %v1145, 1
  %v1148 = vsel %vm1124, %v1143, %v1147
  %v1150 = vshrl.u32 %v242, 16
  %v1152 = vshll.u32 %v242, 16
  %v1154 = vrot.slane %v1152, 1
  %v1155 = vor.u32 %v1150, %v1154
  %v1157 = vshll.u32 %v246, 16
  %v1159 = vrot.slane %v1157, 1
  %v1160 = vsel %vm1124, %v1155, %v1159
  %v1161 = vshrl.u32 %v243, 16
  %v1163 = vshll.u32 %v243, 16
  %v1165 = vrot.slane %v1163, 1
  %v1166 = vor.u32 %v1161, %v1165
  %v1167 = vshll.u32 %v247, 16
  %v1169 = vrot.slane %v1167, 1
  %v1170 = vsel %vm1124, %v1166, %v1169
  %v1171 = vshrl.u32 %v244, 16
  %v1173 = vor.u32 %v1171, %v1135
  %v1175 = vshll.u32 %v248, 16
  %v1177 = vrot.slane %v1175, 1
  %v1178 = vsel %vm1124, %v1173, %v1177
  %v1179 = vshrl.u32 %v245, 16
  %v1181 = vor.u32 %v1179, %v1147
  %v1183 = vshll.u32 %v249, 16
  %v1185 = vrot.slane %v1183, 1
  %v1186 = vsel %vm1124, %v1181, %v1185
  %v1187 = vshrl.u32 %v246, 16
  %v1189 = vor.u32 %v1187, %v1159
  %v1191 = vshll.u32 %v250, 16
  %v1193 = vrot.slane %v1191, 1
  %v1194 = vsel %vm1124, %v1189, %v1193
  %v1195 = vshrl.u32 %v247, 16
  %v1197 = vor.u32 %v1195, %v1169
  %v1198 = vshll.u32 %v251, 16
  %v1200 = vrot.slane %v1198, 1
  %v1201 = vsel %vm1124, %v1197, %v1200
  %v1202 = vshrl.u32 %v248, 16
  %v1204 = vor.u32 %v1202, %v1177
  %v1206 = vshll.u32 %v252, 16
  %v1208 = vrot.slane %v1206, 1
  %v1209 = vsel %vm1124, %v1204, %v1208
  %v1210 = vshrl.u32 %v249, 16
  %v1212 = vor.u32 %v1210, %v1185
  %v1214 = vshll.u32 %v253, 16
  %v1216 = vrot.slane %v1214, 1
  %v1217 = vsel %vm1124, %v1212, %v1216
  %v1218 = vshrl.u32 %v250, 16
  %v1220 = vor.u32 %v1218, %v1193
  %v1222 = vshll.u32 %v254, 16
  %v1224 = vrot.slane %v1222, 1
  %v1225 = vsel %vm1124, %v1220, %v1224
  %v1226 = vshrl.u32 %v251, 16
  %v1228 = vor.u32 %v1226, %v1200
  %v1229 = vshll.u32 %v255, 16
  %v1231 = vrot.slane %v1229, 1
  %v1232 = vsel %vm1124, %v1228, %v1231
  %v1233 = vshrl.u32 %v252, 16
  %v1235 = vor.u32 %v1233, %v1208
  %v1236 = vshrl.u32 %v253, 16
  %v1238 = vor.u32 %v1236, %v1216
  %v1239 = vshrl.u32 %v254, 16
  %v1241 = vor.u32 %v1239, %v1224
  %v1242 = vshrl.u32 %v255, 16
  %v1244 = vor.u32 %v1242, %v1231
  %v1310 = vunpack.c.l.b16 %v130
  %v1311 = vunpack.c.h.b16 %v130
  %v1312 = vunpack.c.l.b16 %v131
  %v1313 = vunpack.c.h.b16 %v131
  %v1314 = vunpack.c.l.b16 %v132
  %v1315 = vunpack.c.h.b16 %v132
  %v1316 = vunpack.c.l.b16 %v133
  %v1317 = vunpack.c.h.b16 %v133
  %v1318 = vunpack.c.l.b16 %v134
  %v1319 = vunpack.c.h.b16 %v134
  %v1320 = vunpack.c.l.b16 %v135
  %v1321 = vunpack.c.h.b16 %v135
  %v1322 = vunpack.c.l.b16 %v136
  %v1323 = vunpack.c.h.b16 %v136
  %v1324 = vunpack.c.l.b16 %v137
  %v1325 = vunpack.c.h.b16 %v137
  %v1326 = vunpack.c.l.b16 %v138
  %v1327 = vunpack.c.h.b16 %v138
  %v1328 = vunpack.c.l.b16 %v139
  %v1329 = vunpack.c.h.b16 %v139
  %v1330 = vunpack.c.l.b16 %v140
  %v1331 = vunpack.c.h.b16 %v140
  %v1332 = vunpack.c.l.b16 %v141
  %v1333 = vunpack.c.h.b16 %v141
  %v1334 = vunpack.c.l.b16 %v142
  %v1335 = vunpack.c.h.b16 %v142
  %v1336 = vunpack.c.l.b16 %v143
  %v1337 = vunpack.c.h.b16 %v143
  %v1338 = vunpack.c.l.b16 %v144
  %v1339 = vunpack.c.h.b16 %v144
  %v1340 = vunpack.c.l.b16 %v145
  %v1341 = vunpack.c.h.b16 %v145
  %v1342 = vunpack.c.l.b16 %v146
  %v1343 = vunpack.c.h.b16 %v146
  %v1344 = vunpack.c.l.b16 %v147
  %v1345 = vunpack.c.h.b16 %v147
  %v1346 = vunpack.c.l.b16 %v148
  %v1347 = vunpack.c.h.b16 %v148
  %v1348 = vunpack.c.l.b16 %v149
  %v1349 = vunpack.c.h.b16 %v149
  %v1350 = vunpack.c.l.b16 %v150
  %v1351 = vunpack.c.h.b16 %v150
  %v1352 = vunpack.c.l.b16 %v151
  %v1353 = vunpack.c.h.b16 %v151
  %v1354 = vunpack.c.l.b16 %v152
  %v1355 = vunpack.c.h.b16 %v152
  %v1356 = vunpack.c.l.b16 %v153
  %v1357 = vunpack.c.h.b16 %v153
  %v1358 = vunpack.c.l.b16 %v154
  %v1359 = vunpack.c.h.b16 %v154
  %v1360 = vunpack.c.l.b16 %v155
  %v1361 = vunpack.c.h.b16 %v155
  %v1362 = vunpack.c.l.b16 %v156
  %v1363 = vunpack.c.h.b16 %v156
  %v1364 = vunpack.c.l.b16 %v157
  %v1365 = vunpack.c.h.b16 %v157
  %v1366 = vunpack.c.l.b16 %v158
  %v1367 = vunpack.c.h.b16 %v158
  %v1368 = vunpack.c.l.b16 %v159
  %v1369 = vunpack.c.h.b16 %v159
  %v1370 = vunpack.c.l.b16 %v160
  %v1371 = vunpack.c.h.b16 %v160
  %v1372 = vunpack.c.l.b16 %v161
  %v1373 = vunpack.c.h.b16 %v161
  %v1374 = vunpack.c.l.b16 %v162
  %v1375 = vunpack.c.h.b16 %v162
  %v1376 = vunpack.c.l.b16 %v163
  %v1377 = vunpack.c.h.b16 %v163
  %v1378 = vunpack.c.l.b16 %v164
  %v1379 = vunpack.c.h.b16 %v164
  %v1380 = vunpack.c.l.b16 %v165
  %v1381 = vunpack.c.h.b16 %v165
  %v1382 = vunpack.c.l.b16 %v166
  %v1383 = vunpack.c.h.b16 %v166
  %v1384 = vunpack.c.l.b16 %v167
  %v1385 = vunpack.c.h.b16 %v167
  %v1386 = vunpack.c.l.b16 %v168
  %v1387 = vunpack.c.h.b16 %v168
  %v1388 = vunpack.c.l.b16 %v169
  %v1389 = vunpack.c.h.b16 %v169
  %v1390 = vunpack.c.l.b16 %v170
  %v1391 = vunpack.c.h.b16 %v170
  %v1392 = vunpack.c.l.b16 %v171
  %v1393 = vunpack.c.h.b16 %v171
  %v1394 = vunpack.c.l.b16 %v172
  %v1395 = vunpack.c.h.b16 %v172
  %v1396 = vunpack.c.l.b16 %v173
  %v1397 = vunpack.c.h.b16 %v173
  %v1398 = vunpack.c.l.b16 %v174
  %v1399 = vunpack.c.h.b16 %v174
  %v1400 = vunpack.c.l.b16 %v175
  %v1401 = vunpack.c.h.b16 %v175
  %v1402 = vunpack.c.l.b16 %v176
  %v1403 = vunpack.c.h.b16 %v176
  %v1404 = vunpack.c.l.b16 %v177
  %v1405 = vunpack.c.h.b16 %v177
  %v1406 = vunpack.c.l.b16 %v178
  %v1407 = vunpack.c.h.b16 %v178
  %v1408 = vunpack.c.l.b16 %v179
  %v1409 = vunpack.c.h.b16 %v179
  %v1410 = vunpack.c.l.b16 %v180
  %v1411 = vunpack.c.h.b16 %v180
  %v1412 = vunpack.c.l.b16 %v181
  %v1413 = vunpack.c.h.b16 %v181
  %v1414 = vunpack.c.l.b16 %v182
  %v1415 = vunpack.c.h.b16 %v182
  %v1416 = vpack.c.b16 %v1312, %v1310
  %v1417 = vpack.c.b16 %v1313, %v1311
  %v1418 = vpack.c.b16 %v1316, %v1314
  %v1419 = vpack.c.b16 %v1317, %v1315
  %v1420 = vpack.c.b16 %v1320, %v1318
  %v1421 = vpack.c.b16 %v1321, %v1319
  %v1422 = vpack.c.b16 %v1324, %v1322
  %v1423 = vpack.c.b16 %v1325, %v1323
  %v1424 = vpack.c.b16 %v1328, %v1326
  %v1425 = vpack.c.b16 %v1329, %v1327
  %v1426 = vpack.c.b16 %v1332, %v1330
  %v1427 = vpack.c.b16 %v1333, %v1331
  %v1428 = vpack.c.b16 %v1336, %v1334
  %v1429 = vpack.c.b16 %v1337, %v1335
  %v1430 = vpack.c.b16 %v1340, %v1338
  %v1431 = vpack.c.b16 %v1341, %v1339
  %v1432 = vpack.c.b16 %v1344, %v1342
  %v1433 = vpack.c.b16 %v1345, %v1343
  %v1434 = vpack.c.b16 %v1348, %v1346
  %v1435 = vpack.c.b16 %v1349, %v1347
  %v1436 = vpack.c.b16 %v1352, %v1350
  %v1437 = vpack.c.b16 %v1353, %v1351
  %v1438 = vpack.c.b16 %v1356, %v1354
  %v1439 = vpack.c.b16 %v1357, %v1355
  %v1440 = vpack.c.b16 %v1360, %v1358
  %v1441 = vpack.c.b16 %v1361, %v1359
  %v1442 = vpack.c.b16 %v1364, %v1362
  %v1443 = vpack.c.b16 %v1365, %v1363
  %v1444 = vpack.c.b16 %v1368, %v1366
  %v1445 = vpack.c.b16 %v1369, %v1367
  %v1446 = vpack.c.b16 %v1372, %v1370
  %v1447 = vpack.c.b16 %v1373, %v1371
  %v1448 = vpack.c.b16 %v1376, %v1374
  %v1449 = vpack.c.b16 %v1377, %v1375
  %v1450 = vpack.c.b16 %v1380, %v1378
  %v1451 = vpack.c.b16 %v1381, %v1379
  %v1452 = vpack.c.b16 %v1384, %v1382
  %v1453 = vpack.c.b16 %v1385, %v1383
  %v1454 = vpack.c.b16 %v1388, %v1386
  %v1455 = vpack.c.b16 %v1389, %v1387
  %v1456 = vpack.c.b16 %v1392, %v1390
  %v1457 = vpack.c.b16 %v1393, %v1391
  %v1458 = vpack.c.b16 %v1396, %v1394
  %v1459 = vpack.c.b16 %v1397, %v1395
  %v1460 = vpack.c.b16 %v1400, %v1398
  %v1461 = vpack.c.b16 %v1401, %v1399
  %v1462 = vpack.c.b16 %v1404, %v1402
  %v1463 = vpack.c.b16 %v1405, %v1403
  %v1464 = vpack.c.b16 %v1408, %v1406
  %v1465 = vpack.c.b16 %v1409, %v1407
  %v1466 = vpack.c.b16 %v1412, %v1410
  %v1467 = vpack.c.b16 %v1413, %v1411
  %v1468 = vpack.c.b16 %v1414, %v1414
  %v1469 = vpack.c.b16 %v1415, %v1415
  %v1523 = vsel %vm537, %v1170, 0
  %v1526 = vsel %vm537, %v1201, 0
  %v1529 = vsel %vm537, %v1232, 0
  %v1532 = vsel %vm537, %v1244, 0
  %v1535 = vsel %vm550, %v1468, 0
  %v1538 = vsel %vm550, %v1469, 0
  %1540 = vmatprep.subr.bf16.mxu0 %v1431
  %1541 = vmatpush1.bf16.msra.mxu0 %v1430
  %1542 = vmatprep.subr.bf16.mxu0 %v1429
  %1543 = vmatpush1.bf16.msra.mxu0 %v1428
  %1544 = vmatprep.subr.bf16.mxu0 %v1427
  %1545 = vmatpush1.bf16.msra.mxu0 %v1426
  %1546 = vmatprep.subr.bf16.mxu0 %v1425
  %1547 = vmatpush1.bf16.msra.mxu0 %v1424
  %1548 = vmatprep.subr.bf16.mxu0 %v1423
  %1549 = vmatpush1.bf16.msra.mxu0 %v1422
  %1550 = vmatprep.subr.bf16.mxu0 %v1421
  %1551 = vmatpush1.bf16.msra.mxu0 %v1420
  %1552 = vmatprep.subr.bf16.mxu0 %v1419
  %1553 = vmatpush1.bf16.msra.mxu0 %v1418
  %1554 = vmatprep.subr.bf16.mxu0 %v1417
  %1555 = vmatpush1.bf16.msra.mxu0 %v1416
  %1556 = vmatprep.subr.bf16.mxu0 %v1447
  %1557 = vmatpush2.bf16.msra.mxu0 %v1446
  %1558 = vmatprep.subr.bf16.mxu0 %v1445
  %1559 = vmatpush2.bf16.msra.mxu0 %v1444
  %1560 = vmatprep.subr.bf16.mxu0 %v1443
  %1561 = vmatpush2.bf16.msra.mxu0 %v1442
  %1562 = vmatprep.subr.bf16.mxu0 %v1441
  %1563 = vmatpush2.bf16.msra.mxu0 %v1440
  %1564 = vmatprep.subr.bf16.mxu0 %v1439
  %1565 = vmatpush2.bf16.msra.mxu0 %v1438
  %1566 = vmatprep.subr.bf16.mxu0 %v1437
  %1567 = vmatpush2.bf16.msra.mxu0 %v1436
  %1568 = vmatprep.subr.bf16.mxu0 %v1435
  %1569 = vmatpush2.bf16.msra.mxu0 %v1434
  %1570 = vmatprep.subr.bf16.mxu0 %v1433
  %1571 = vmatpush2.bf16.msra.mxu0 %v1432
  %1572 = vmatprep.mubr.bf16.mxu0 %v1148
  %1573 = vmatmul.mubr.bf16.gmra.mxu0 %v1136
  %v1574 = vpop.f32.mrf.mxu0
  %v1575 = vadd.f32 0.0, %v1574
  %v1576 = vpop.f32.mrf.mxu0
  %v1577 = vadd.f32 0.0, %v1576
  %v1578 = vpop.f32.mrf.mxu0
  %v1579 = vadd.f32 0.0, %v1578
  %v1580 = vpop.f32.mrf.mxu0
  %v1581 = vadd.f32 0.0, %v1580
  %1582 = vmatprep.mubr.bf16.mxu0 %v1186
  %1583 = vmatmul.mubr.bf16.gmra.mxu0 %v1178
  %v1584 = vpop.f32.mrf.mxu0
  %v1585 = vadd.f32 0.0, %v1584
  %v1586 = vpop.f32.mrf.mxu0
  %v1587 = vadd.f32 0.0, %v1586
  %v1588 = vpop.f32.mrf.mxu0
  %v1589 = vadd.f32 0.0, %v1588
  %v1590 = vpop.f32.mrf.mxu0
  %v1591 = vadd.f32 0.0, %v1590
  %1592 = vmatprep.mubr.bf16.mxu0 %v1217
  %1593 = vmatmul.mubr.bf16.gmra.mxu0 %v1209
  %v1594 = vpop.f32.mrf.mxu0
  %v1595 = vadd.f32 0.0, %v1594
  %v1596 = vpop.f32.mrf.mxu0
  %v1597 = vadd.f32 0.0, %v1596
  %v1598 = vpop.f32.mrf.mxu0
  %v1599 = vadd.f32 0.0, %v1598
  %v1600 = vpop.f32.mrf.mxu0
  %v1601 = vadd.f32 0.0, %v1600
  %1602 = vmatprep.mubr.bf16.mxu0 %v1238
  %1603 = vmatmul.mubr.bf16.gmra.mxu0 %v1235
  %v1604 = vpop.f32.mrf.mxu0
  %v1605 = vadd.f32 0.0, %v1604
  %v1606 = vpop.f32.mrf.mxu0
  %v1607 = vadd.f32 0.0, %v1606
  %v1608 = vpop.f32.mrf.mxu0
  %v1609 = vpop.f32.mrf.mxu0
  %1610 = vdwg.mxu0
  %1611 = vmatprep.subr.bf16.mxu0 %v1463
  %1612 = vmatpush1.bf16.msra.mxu0 %v1462
  %1613 = vmatprep.subr.bf16.mxu0 %v1461
  %1614 = vmatpush1.bf16.msra.mxu0 %v1460
  %1615 = vmatprep.subr.bf16.mxu0 %v1459
  %1616 = vmatpush1.bf16.msra.mxu0 %v1458
  %1617 = vmatprep.subr.bf16.mxu0 %v1457
  %1618 = vmatpush1.bf16.msra.mxu0 %v1456
  %1619 = vmatprep.subr.bf16.mxu0 %v1455
  %1620 = vmatpush1.bf16.msra.mxu0 %v1454
  %1621 = vmatprep.subr.bf16.mxu0 %v1453
  %1622 = vmatpush1.bf16.msra.mxu0 %v1452
  %1623 = vmatprep.subr.bf16.mxu0 %v1451
  %1624 = vmatpush1.bf16.msra.mxu0 %v1450
  %1625 = vmatprep.subr.bf16.mxu0 %v1449
  %1626 = vmatpush1.bf16.msra.mxu0 %v1448
  %1627 = vmatprep.subr.bf16.mxu0 0
  %1628 = vmatpush2.bf16.msra.mxu0 0
  %1629 = vmatprep.subr.bf16.mxu0 0
  %1630 = vmatpush2.bf16.msra.mxu0 0
  %1631 = vmatprep.subr.bf16.mxu0 0
  %1632 = vmatpush2.bf16.msra.mxu0 0
  %1633 = vmatprep.subr.bf16.mxu0 0
  %1634 = vmatpush2.bf16.msra.mxu0 0
  %1635 = vmatprep.subr.bf16.mxu0 0
  %1636 = vmatpush2.bf16.msra.mxu0 0
  %1637 = vmatprep.subr.bf16.mxu0 %v1538
  %1638 = vmatpush2.bf16.msra.mxu0 %v1535
  %1639 = vmatprep.subr.bf16.mxu0 %v1467
  %1640 = vmatpush2.bf16.msra.mxu0 %v1466
  %1641 = vmatprep.subr.bf16.mxu0 %v1465
  %1642 = vmatpush2.bf16.msra.mxu0 %v1464
  %1643 = vmatprep.mubr.bf16.mxu0 %v1523
  %1644 = vmatmul.mubr.bf16.gmra.mxu0 %v1160
  %v1645 = vpop.f32.mrf.mxu0
  %v1646 = vadd.f32 %v1575, %v1645
  %v1647 = vpop.f32.mrf.mxu0
  %v1648 = vadd.f32 %v1577, %v1647
  %v1649 = vpop.f32.mrf.mxu0
  %v1650 = vadd.f32 %v1579, %v1649
  %v1651 = vpop.f32.mrf.mxu0
  %v1652 = vadd.f32 %v1581, %v1651
  %1653 = vmatprep.mubr.bf16.mxu0 %v1526
  %1654 = vmatmul.mubr.bf16.gmra.mxu0 %v1194
  %v1655 = vpop.f32.mrf.mxu0
  %v1656 = vadd.f32 %v1585, %v1655
  %v1657 = vpop.f32.mrf.mxu0
  %v1658 = vadd.f32 %v1587, %v1657
  %v1659 = vpop.f32.mrf.mxu0
  %v1660 = vadd.f32 %v1589, %v1659
  %v1661 = vpop.f32.mrf.mxu0
  %v1662 = vadd.f32 %v1591, %v1661
  %1663 = vmatprep.mubr.bf16.mxu0 %v1529
  %1664 = vmatmul.mubr.bf16.gmra.mxu0 %v1225
  %v1665 = vpop.f32.mrf.mxu0
  %v1666 = vadd.f32 %v1595, %v1665
  %v1667 = vpop.f32.mrf.mxu0
  %v1668 = vadd.f32 %v1597, %v1667
  %v1669 = vpop.f32.mrf.mxu0
  %v1670 = vadd.f32 %v1599, %v1669
  %v1671 = vpop.f32.mrf.mxu0
  %v1672 = vadd.f32 %v1601, %v1671
  %1673 = vmatprep.mubr.bf16.mxu0 %v1532
  %1674 = vmatmul.mubr.bf16.gmra.mxu0 %v1241
  %v1675 = vpop.f32.mrf.mxu0
  %v1676 = vadd.f32 %v1605, %v1675
  %v1677 = vpop.f32.mrf.mxu0
  %v1678 = vadd.f32 %v1607, %v1677
  %v1679 = vpop.f32.mrf.mxu0
  %v1680 = vpop.f32.mrf.mxu0
  %1681 = vdwg.mxu0
  %v1682 = vadd.f32 %v1088, %v1646
  %v1683 = vadd.f32 %v1090, %v1648
  %v1684 = vadd.f32 %v1092, %v1650
  %v1685 = vadd.f32 %v1094, %v1652
  %v1686 = vadd.f32 %v1098, %v1656
  %v1687 = vadd.f32 %v1100, %v1658
  %v1688 = vadd.f32 %v1102, %v1660
  %v1689 = vadd.f32 %v1104, %v1662
  %v1690 = vadd.f32 %v1108, %v1666
  %v1691 = vadd.f32 %v1110, %v1668
  %v1692 = vadd.f32 %v1112, %v1670
  %v1693 = vadd.f32 %v1114, %v1672
  %v1694 = vadd.f32 %v1118, %v1676
  %v1695 = vadd.f32 %v1120, %v1678
  %v1697 = vlaneseq
  %v1698 = vshrl.u32 %v1697, 7
  %v1699 = vsub.s32 0, %v1698
  %v1700 = vrot.slane %v183, %v1699
  %v1701 = vlaneseq
  %v1702 = vshrl.u32 %v1701, 7
  %v1703 = vsub.s32 1, %v1702
  %v1704 = vrot.slane %v183, %v1703
  %v1707 = vadd.f32 %v1682, %v1700
  %v1708 = vadd.f32 %v1683, %v1704
  %v1709 = vadd.f32 %v1684, %v1700
  %v1710 = vadd.f32 %v1685, %v1704
  %v1711 = vadd.f32 %v1686, %v1700
  %v1712 = vadd.f32 %v1687, %v1704
  %v1713 = vadd.f32 %v1688, %v1700
  %v1714 = vadd.f32 %v1689, %v1704
  %v1715 = vadd.f32 %v1690, %v1700
  %v1716 = vadd.f32 %v1691, %v1704
  %v1717 = vadd.f32 %v1692, %v1700
  %v1718 = vadd.f32 %v1693, %v1704
  %v1719 = vadd.f32 %v1694, %v1700
  %v1720 = vadd.f32 %v1695, %v1704
  %v1721 = vmax.f32 %v1707, 0.0
  %v1722 = vmax.f32 %v1708, 0.0
  %v1723 = vmax.f32 %v1709, 0.0
  %v1724 = vmax.f32 %v1710, 0.0
  %v1725 = vmax.f32 %v1711, 0.0
  %v1726 = vmax.f32 %v1712, 0.0
  %v1727 = vmax.f32 %v1713, 0.0
  %v1728 = vmax.f32 %v1714, 0.0
  %v1729 = vmax.f32 %v1715, 0.0
  %v1730 = vmax.f32 %v1716, 0.0
  %v1731 = vmax.f32 %v1717, 0.0
  %v1732 = vmax.f32 %v1718, 0.0
  %v1733 = vmax.f32 %v1719, 0.0
  %v1734 = vmax.f32 %v1720, 0.0
  %1735 = vst [vmem:[%s6] sm:$0xff] %v1721
  %vm1736 = vcmask 261120
  %1737 = vst.msk [vmem:[%s6 + $0x8] sm:$0xff] %vm1736, %v1722
  %1738 = vst [vmem:[%s6 + $0x10] sm:$0xff] %v1723
  %1739 = vst.msk [vmem:[%s6 + $0x18] sm:$0xff] %vm1736, %v1724
  %1740 = vst [vmem:[%s6 + $0x20] sm:$0xff] %v1725
  %1741 = vst.msk [vmem:[%s6 + $0x28] sm:$0xff] %vm1736, %v1726
  %1742 = vst [vmem:[%s6 + $0x30] sm:$0xff] %v1727
  %1743 = vst.msk [vmem:[%s6 + $0x38] sm:$0xff] %vm1736, %v1728
  %1744 = vst [vmem:[%s6 + $0x40] sm:$0xff] %v1729
  %1745 = vst.msk [vmem:[%s6 + $0x48] sm:$0xff] %vm1736, %v1730
  %1746 = vst [vmem:[%s6 + $0x50] sm:$0xff] %v1731
  %1747 = vst.msk [vmem:[%s6 + $0x58] sm:$0xff] %vm1736, %v1732
  %1748 = vst [vmem:[%s6 + $0x60] sm:$0x3] %v1733
  %vm1749 = vcmask 254976
  %1750 = vst.msk [vmem:[%s6 + $0x68] sm:$0x3] %vm1749, %v1734
  %s1751 = scalar_lea.vmem %s0, 224
  %v1752 = vld [vmem:[%s1751] sm:$0xff]
  %v1753 = vld [vmem:[%s1751 + $0x8] sm:$0xff]
  %v1754 = vld [vmem:[%s1751 + $0x10] sm:$0xff]
  %v1755 = vld [vmem:[%s1751 + $0x18] sm:$0xff]
  %v1756 = vld [vmem:[%s1751 + $0x20] sm:$0xff]
  %v1757 = vld [vmem:[%s1751 + $0x28] sm:$0xff]
  %v1758 = vld [vmem:[%s1751 + $0x30] sm:$0xff]
  %v1759 = vld [vmem:[%s1751 + $0x38] sm:$0xff]
  %v1760 = vld [vmem:[%s1751 + $0x40] sm:$0xff]
  %v1761 = vld [vmem:[%s1751 + $0x48] sm:$0xff]
  %v1762 = vld [vmem:[%s1751 + $0x50] sm:$0xff]
  %v1763 = vld [vmem:[%s1751 + $0x58] sm:$0xff]
  %v1764 = vld [vmem:[%s1751 + $0x60] sm:$0xff]
  %v1765 = vld [vmem:[%s1751 + $0x68] sm:$0xff]
  %v1766 = vld [vmem:[%s1751 + $0x70] sm:$0xff]
  %v1767 = vld [vmem:[%s1751 + $0x78] sm:$0xff]
  %v1768 = vld [vmem:[%s1751 + $0x80] sm:$0xff]
  %v1769 = vld [vmem:[%s1751 + $0x88] sm:$0xff]
  %v1770 = vld [vmem:[%s1751 + $0x90] sm:$0xff]
  %v1771 = vld [vmem:[%s1751 + $0x98] sm:$0xff]
  %v1772 = vld [vmem:[%s1751 + $0xa0] sm:$0xff]
  %v1773 = vld [vmem:[%s1751 + $0xa8] sm:$0xff]
  %v1774 = vld [vmem:[%s1751 + $0xb0] sm:$0xff]
  %v1775 = vld [vmem:[%s1751 + $0xb8] sm:$0xff]
  %v1776 = vld [vmem:[%s1751 + $0xc0] sm:$0x7]
  %v1777 = vld [vmem:[%s1751 + $0xc8] sm:$0x7]
  %v1778 = vld [vmem:[%s1751 + $0xd0] sm:$0x7]
  %v1779 = vld [vmem:[%s1751 + $0xd8] sm:$0x7]
  %s1780 = scalar_lea.vmem %s1, 224
  %v1781 = vld [vmem:[%s1780] sm:$0xff]
  %v1782 = vld [vmem:[%s1780 + $0x8] sm:$0xff]
  %v1783 = vld [vmem:[%s1780 + $0x10] sm:$0xff]
  %v1784 = vld [vmem:[%s1780 + $0x18] sm:$0xff]
  %v1785 = vld [vmem:[%s1780 + $0x20] sm:$0xff]
  %v1786 = vld [vmem:[%s1780 + $0x28] sm:$0xff]
  %v1787 = vld [vmem:[%s1780 + $0x30] sm:$0xff]
  %v1788 = vld [vmem:[%s1780 + $0x38] sm:$0xff]
  %v1789 = vld [vmem:[%s1780 + $0x40] sm:$0xff]
  %v1790 = vld [vmem:[%s1780 + $0x48] sm:$0xff]
  %v1791 = vld [vmem:[%s1780 + $0x50] sm:$0xff]
  %v1792 = vld [vmem:[%s1780 + $0x58] sm:$0xff]
  %v1793 = vld [vmem:[%s1780 + $0x60] sm:$0xff]
  %v1794 = vld [vmem:[%s1780 + $0x68] sm:$0xff]
  %v1795 = vld [vmem:[%s1780 + $0x70] sm:$0xff]
  %v1796 = vld [vmem:[%s1780 + $0x78] sm:$0xff]
  %v1797 = vld [vmem:[%s1780 + $0x80] sm:$0xff]
  %v1798 = vld [vmem:[%s1780 + $0x88] sm:$0xff]
  %v1799 = vld [vmem:[%s1780 + $0x90] sm:$0xff]
  %v1800 = vld [vmem:[%s1780 + $0x98] sm:$0xff]
  %v1801 = vld [vmem:[%s1780 + $0xa0] sm:$0xff]
  %v1802 = vld [vmem:[%s1780 + $0xa8] sm:$0xff]
  %v1803 = vld [vmem:[%s1780 + $0xb0] sm:$0xff]
  %v1804 = vld [vmem:[%s1780 + $0xb8] sm:$0xff]
  %v1805 = vld [vmem:[%s1780 + $0xc0] sm:$0x7]
  %v1806 = vld [vmem:[%s1780 + $0xc8] sm:$0x7]
  %v1807 = vld [vmem:[%s1780 + $0xd0] sm:$0x7]
  %v1808 = vld [vmem:[%s1780 + $0xd8] sm:$0x7]
  %v1809 = vpack.c.bf16 %v1756, %v1752
  %v1810 = vpack.c.bf16 %v1757, %v1753
  %v1811 = vpack.c.bf16 %v1758, %v1754
  %v1812 = vpack.c.bf16 %v1759, %v1755
  %v1813 = vpack.c.bf16 %v1764, %v1760
  %v1814 = vpack.c.bf16 %v1765, %v1761
  %v1815 = vpack.c.bf16 %v1766, %v1762
  %v1816 = vpack.c.bf16 %v1767, %v1763
  %v1817 = vpack.c.bf16 %v1772, %v1768
  %v1818 = vpack.c.bf16 %v1773, %v1769
  %v1819 = vpack.c.bf16 %v1774, %v1770
  %v1820 = vpack.c.bf16 %v1775, %v1771
  %v1821 = vpack.c.bf16 %v1776, %v1776
  %v1822 = vpack.c.bf16 %v1777, %v1777
  %v1823 = vpack.c.bf16 %v1778, %v1778
  %v1824 = vpack.c.bf16 %v1779, %v1779
  %v1825 = vpack.c.bf16 %v1785, %v1781
  %v1826 = vpack.c.bf16 %v1786, %v1782
  %v1827 = vpack.c.bf16 %v1787, %v1783
  %v1828 = vpack.c.bf16 %v1788, %v1784
  %v1829 = vpack.c.bf16 %v1793, %v1789
  %v1830 = vpack.c.bf16 %v1794, %v1790
  %v1831 = vpack.c.bf16 %v1795, %v1791
  %v1832 = vpack.c.bf16 %v1796, %v1792
  %v1833 = vpack.c.bf16 %v1801, %v1797
  %v1834 = vpack.c.bf16 %v1802, %v1798
  %v1835 = vpack.c.bf16 %v1803, %v1799
  %v1836 = vpack.c.bf16 %v1804, %v1800
  %v1837 = vpack.c.bf16 %v1805, %v1805
  %v1838 = vpack.c.bf16 %v1806, %v1806
  %v1839 = vpack.c.bf16 %v1807, %v1807
  %v1840 = vpack.c.bf16 %v1808, %v1808
  %v1842 = vsel %vm537, %v1828, 0
  %v1845 = vsel %vm537, %v1832, 0
  %v1848 = vsel %vm537, %v1836, 0
  %v1851 = vsel %vm537, %v1840, 0
  %1853 = vmatprep.subr.bf16.mxu0 %v446
  %1854 = vmatpush1.bf16.msra.mxu0 %v445
  %1855 = vmatprep.subr.bf16.mxu0 %v444
  %1856 = vmatpush1.bf16.msra.mxu0 %v443
  %1857 = vmatprep.subr.bf16.mxu0 %v442
  %1858 = vmatpush1.bf16.msra.mxu0 %v441
  %1859 = vmatprep.subr.bf16.mxu0 %v440
  %1860 = vmatpush1.bf16.msra.mxu0 %v439
  %1861 = vmatprep.subr.bf16.mxu0 %v438
  %1862 = vmatpush1.bf16.msra.mxu0 %v437
  %1863 = vmatprep.subr.bf16.mxu0 %v436
  %1864 = vmatpush1.bf16.msra.mxu0 %v435
  %1865 = vmatprep.subr.bf16.mxu0 %v434
  %1866 = vmatpush1.bf16.msra.mxu0 %v433
  %1867 = vmatprep.subr.bf16.mxu0 %v432
  %1868 = vmatpush1.bf16.msra.mxu0 %v431
  %1869 = vmatprep.subr.bf16.mxu0 %v462
  %1870 = vmatpush2.bf16.msra.mxu0 %v461
  %1871 = vmatprep.subr.bf16.mxu0 %v460
  %1872 = vmatpush2.bf16.msra.mxu0 %v459
  %1873 = vmatprep.subr.bf16.mxu0 %v458
  %1874 = vmatpush2.bf16.msra.mxu0 %v457
  %1875 = vmatprep.subr.bf16.mxu0 %v456
  %1876 = vmatpush2.bf16.msra.mxu0 %v455
  %1877 = vmatprep.subr.bf16.mxu0 %v454
  %1878 = vmatpush2.bf16.msra.mxu0 %v453
  %1879 = vmatprep.subr.bf16.mxu0 %v452
  %1880 = vmatpush2.bf16.msra.mxu0 %v451
  %1881 = vmatprep.subr.bf16.mxu0 %v450
  %1882 = vmatpush2.bf16.msra.mxu0 %v449
  %1883 = vmatprep.subr.bf16.mxu0 %v448
  %1884 = vmatpush2.bf16.msra.mxu0 %v447
  %1885 = vmatprep.mubr.bf16.mxu0 %v1826
  %1886 = vmatmul.mubr.bf16.gmra.mxu0 %v1825
  %v1887 = vpop.f32.mrf.mxu0
  %v1888 = vadd.f32 0.0, %v1887
  %v1889 = vpop.f32.mrf.mxu0
  %v1890 = vadd.f32 0.0, %v1889
  %v1891 = vpop.f32.mrf.mxu0
  %v1892 = vadd.f32 0.0, %v1891
  %v1893 = vpop.f32.mrf.mxu0
  %v1894 = vadd.f32 0.0, %v1893
  %1895 = vmatprep.mubr.bf16.mxu0 %v1830
  %1896 = vmatmul.mubr.bf16.gmra.mxu0 %v1829
  %v1897 = vpop.f32.mrf.mxu0
  %v1898 = vadd.f32 0.0, %v1897
  %v1899 = vpop.f32.mrf.mxu0
  %v1900 = vadd.f32 0.0, %v1899
  %v1901 = vpop.f32.mrf.mxu0
  %v1902 = vadd.f32 0.0, %v1901
  %v1903 = vpop.f32.mrf.mxu0
  %v1904 = vadd.f32 0.0, %v1903
  %1905 = vmatprep.mubr.bf16.mxu0 %v1834
  %1906 = vmatmul.mubr.bf16.gmra.mxu0 %v1833
  %v1907 = vpop.f32.mrf.mxu0
  %v1908 = vadd.f32 0.0, %v1907
  %v1909 = vpop.f32.mrf.mxu0
  %v1910 = vadd.f32 0.0, %v1909
  %v1911 = vpop.f32.mrf.mxu0
  %v1912 = vadd.f32 0.0, %v1911
  %v1913 = vpop.f32.mrf.mxu0
  %v1914 = vadd.f32 0.0, %v1913
  %1915 = vmatprep.mubr.bf16.mxu0 %v1838
  %1916 = vmatmul.mubr.bf16.gmra.mxu0 %v1837
  %v1917 = vpop.f32.mrf.mxu0
  %v1918 = vadd.f32 0.0, %v1917
  %v1919 = vpop.f32.mrf.mxu0
  %v1920 = vadd.f32 0.0, %v1919
  %v1921 = vpop.f32.mrf.mxu0
  %v1922 = vpop.f32.mrf.mxu0
  %1923 = vdwg.mxu0
  %1924 = vmatprep.subr.bf16.mxu0 %v478
  %1925 = vmatpush1.bf16.msra.mxu0 %v477
  %1926 = vmatprep.subr.bf16.mxu0 %v476
  %1927 = vmatpush1.bf16.msra.mxu0 %v475
  %1928 = vmatprep.subr.bf16.mxu0 %v474
  %1929 = vmatpush1.bf16.msra.mxu0 %v473
  %1930 = vmatprep.subr.bf16.mxu0 %v472
  %1931 = vmatpush1.bf16.msra.mxu0 %v471
  %1932 = vmatprep.subr.bf16.mxu0 %v470
  %1933 = vmatpush1.bf16.msra.mxu0 %v469
  %1934 = vmatprep.subr.bf16.mxu0 %v468
  %1935 = vmatpush1.bf16.msra.mxu0 %v467
  %1936 = vmatprep.subr.bf16.mxu0 %v466
  %1937 = vmatpush1.bf16.msra.mxu0 %v465
  %1938 = vmatprep.subr.bf16.mxu0 %v464
  %1939 = vmatpush1.bf16.msra.mxu0 %v463
  %1940 = vmatprep.subr.bf16.mxu0 0
  %1941 = vmatpush2.bf16.msra.mxu0 0
  %1942 = vmatprep.subr.bf16.mxu0 0
  %1943 = vmatpush2.bf16.msra.mxu0 0
  %1944 = vmatprep.subr.bf16.mxu0 0
  %1945 = vmatpush2.bf16.msra.mxu0 0
  %1946 = vmatprep.subr.bf16.mxu0 0
  %1947 = vmatpush2.bf16.msra.mxu0 0
  %1948 = vmatprep.subr.bf16.mxu0 0
  %1949 = vmatpush2.bf16.msra.mxu0 0
  %1950 = vmatprep.subr.bf16.mxu0 %v555
  %1951 = vmatpush2.bf16.msra.mxu0 %v552
  %1952 = vmatprep.subr.bf16.mxu0 %v482
  %1953 = vmatpush2.bf16.msra.mxu0 %v481
  %1954 = vmatprep.subr.bf16.mxu0 %v480
  %1955 = vmatpush2.bf16.msra.mxu0 %v479
  %1956 = vmatprep.mubr.bf16.mxu0 %v1842
  %1957 = vmatmul.mubr.bf16.gmra.mxu0 %v1827
  %v1958 = vpop.f32.mrf.mxu0
  %v1959 = vadd.f32 %v1888, %v1958
  %v1960 = vpop.f32.mrf.mxu0
  %v1961 = vadd.f32 %v1890, %v1960
  %v1962 = vpop.f32.mrf.mxu0
  %v1963 = vadd.f32 %v1892, %v1962
  %v1964 = vpop.f32.mrf.mxu0
  %v1965 = vadd.f32 %v1894, %v1964
  %1966 = vmatprep.mubr.bf16.mxu0 %v1845
  %1967 = vmatmul.mubr.bf16.gmra.mxu0 %v1831
  %v1968 = vpop.f32.mrf.mxu0
  %v1969 = vadd.f32 %v1898, %v1968
  %v1970 = vpop.f32.mrf.mxu0
  %v1971 = vadd.f32 %v1900, %v1970
  %v1972 = vpop.f32.mrf.mxu0
  %v1973 = vadd.f32 %v1902, %v1972
  %v1974 = vpop.f32.mrf.mxu0
  %v1975 = vadd.f32 %v1904, %v1974
  %1976 = vmatprep.mubr.bf16.mxu0 %v1848
  %1977 = vmatmul.mubr.bf16.gmra.mxu0 %v1835
  %v1978 = vpop.f32.mrf.mxu0
  %v1979 = vadd.f32 %v1908, %v1978
  %v1980 = vpop.f32.mrf.mxu0
  %v1981 = vadd.f32 %v1910, %v1980
  %v1982 = vpop.f32.mrf.mxu0
  %v1983 = vadd.f32 %v1912, %v1982
  %v1984 = vpop.f32.mrf.mxu0
  %v1985 = vadd.f32 %v1914, %v1984
  %1986 = vmatprep.mubr.bf16.mxu0 %v1851
  %1987 = vmatmul.mubr.bf16.gmra.mxu0 %v1839
  %v1988 = vpop.f32.mrf.mxu0
  %v1989 = vadd.f32 %v1918, %v1988
  %v1990 = vpop.f32.mrf.mxu0
  %v1991 = vadd.f32 %v1920, %v1990
  %v1992 = vpop.f32.mrf.mxu0
  %v1993 = vpop.f32.mrf.mxu0
  %1994 = vdwg.mxu0
  %v1996 = vsel %vm537, %v1812, 0
  %v1999 = vsel %vm537, %v1816, 0
  %v2002 = vsel %vm537, %v1820, 0
  %v2005 = vsel %vm537, %v1824, 0
  %2007 = vmatprep.subr.bf16.mxu0 %v873
  %2008 = vmatpush1.bf16.msra.mxu0 %v872
  %2009 = vmatprep.subr.bf16.mxu0 %v871
  %2010 = vmatpush1.bf16.msra.mxu0 %v870
  %2011 = vmatprep.subr.bf16.mxu0 %v869
  %2012 = vmatpush1.bf16.msra.mxu0 %v868
  %2013 = vmatprep.subr.bf16.mxu0 %v867
  %2014 = vmatpush1.bf16.msra.mxu0 %v866
  %2015 = vmatprep.subr.bf16.mxu0 %v865
  %2016 = vmatpush1.bf16.msra.mxu0 %v864
  %2017 = vmatprep.subr.bf16.mxu0 %v863
  %2018 = vmatpush1.bf16.msra.mxu0 %v862
  %2019 = vmatprep.subr.bf16.mxu0 %v861
  %2020 = vmatpush1.bf16.msra.mxu0 %v860
  %2021 = vmatprep.subr.bf16.mxu0 %v859
  %2022 = vmatpush1.bf16.msra.mxu0 %v858
  %2023 = vmatprep.subr.bf16.mxu0 %v889
  %2024 = vmatpush2.bf16.msra.mxu0 %v888
  %2025 = vmatprep.subr.bf16.mxu0 %v887
  %2026 = vmatpush2.bf16.msra.mxu0 %v886
  %2027 = vmatprep.subr.bf16.mxu0 %v885
  %2028 = vmatpush2.bf16.msra.mxu0 %v884
  %2029 = vmatprep.subr.bf16.mxu0 %v883
  %2030 = vmatpush2.bf16.msra.mxu0 %v882
  %2031 = vmatprep.subr.bf16.mxu0 %v881
  %2032 = vmatpush2.bf16.msra.mxu0 %v880
  %2033 = vmatprep.subr.bf16.mxu0 %v879
  %2034 = vmatpush2.bf16.msra.mxu0 %v878
  %2035 = vmatprep.subr.bf16.mxu0 %v877
  %2036 = vmatpush2.bf16.msra.mxu0 %v876
  %2037 = vmatprep.subr.bf16.mxu0 %v875
  %2038 = vmatpush2.bf16.msra.mxu0 %v874
  %2039 = vmatprep.mubr.bf16.mxu0 %v1810
  %2040 = vmatmul.mubr.bf16.gmra.mxu0 %v1809
  %v2041 = vpop.f32.mrf.mxu0
  %v2042 = vadd.f32 %v1959, %v2041
  %v2043 = vpop.f32.mrf.mxu0
  %v2044 = vadd.f32 %v1961, %v2043
  %v2045 = vpop.f32.mrf.mxu0
  %v2046 = vadd.f32 %v1963, %v2045
  %v2047 = vpop.f32.mrf.mxu0
  %v2048 = vadd.f32 %v1965, %v2047
  %2049 = vmatprep.mubr.bf16.mxu0 %v1814
  %2050 = vmatmul.mubr.bf16.gmra.mxu0 %v1813
  %v2051 = vpop.f32.mrf.mxu0
  %v2052 = vadd.f32 %v1969, %v2051
  %v2053 = vpop.f32.mrf.mxu0
  %v2054 = vadd.f32 %v1971, %v2053
  %v2055 = vpop.f32.mrf.mxu0
  %v2056 = vadd.f32 %v1973, %v2055
  %v2057 = vpop.f32.mrf.mxu0
  %v2058 = vadd.f32 %v1975, %v2057
  %2059 = vmatprep.mubr.bf16.mxu0 %v1818
  %2060 = vmatmul.mubr.bf16.gmra.mxu0 %v1817
  %v2061 = vpop.f32.mrf.mxu0
  %v2062 = vadd.f32 %v1979, %v2061
  %v2063 = vpop.f32.mrf.mxu0
  %v2064 = vadd.f32 %v1981, %v2063
  %v2065 = vpop.f32.mrf.mxu0
  %v2066 = vadd.f32 %v1983, %v2065
  %v2067 = vpop.f32.mrf.mxu0
  %v2068 = vadd.f32 %v1985, %v2067
  %2069 = vmatprep.mubr.bf16.mxu0 %v1822
  %2070 = vmatmul.mubr.bf16.gmra.mxu0 %v1821
  %v2071 = vpop.f32.mrf.mxu0
  %v2072 = vadd.f32 %v1989, %v2071
  %v2073 = vpop.f32.mrf.mxu0
  %v2074 = vadd.f32 %v1991, %v2073
  %v2075 = vpop.f32.mrf.mxu0
  %v2076 = vpop.f32.mrf.mxu0
  %2077 = vdwg.mxu0
  %2078 = vmatprep.subr.bf16.mxu0 %v905
  %2079 = vmatpush1.bf16.msra.mxu0 %v904
  %2080 = vmatprep.subr.bf16.mxu0 %v903
  %2081 = vmatpush1.bf16.msra.mxu0 %v902
  %2082 = vmatprep.subr.bf16.mxu0 %v901
  %2083 = vmatpush1.bf16.msra.mxu0 %v900
  %2084 = vmatprep.subr.bf16.mxu0 %v899
  %2085 = vmatpush1.bf16.msra.mxu0 %v898
  %2086 = vmatprep.subr.bf16.mxu0 %v897
  %2087 = vmatpush1.bf16.msra.mxu0 %v896
  %2088 = vmatprep.subr.bf16.mxu0 %v895
  %2089 = vmatpush1.bf16.msra.mxu0 %v894
  %2090 = vmatprep.subr.bf16.mxu0 %v893
  %2091 = vmatpush1.bf16.msra.mxu0 %v892
  %2092 = vmatprep.subr.bf16.mxu0 %v891
  %2093 = vmatpush1.bf16.msra.mxu0 %v890
  %2094 = vmatprep.subr.bf16.mxu0 0
  %2095 = vmatpush2.bf16.msra.mxu0 0
  %2096 = vmatprep.subr.bf16.mxu0 0
  %2097 = vmatpush2.bf16.msra.mxu0 0
  %2098 = vmatprep.subr.bf16.mxu0 0
  %2099 = vmatpush2.bf16.msra.mxu0 0
  %2100 = vmatprep.subr.bf16.mxu0 0
  %2101 = vmatpush2.bf16.msra.mxu0 0
  %2102 = vmatprep.subr.bf16.mxu0 0
  %2103 = vmatpush2.bf16.msra.mxu0 0
  %2104 = vmatprep.subr.bf16.mxu0 %v980
  %2105 = vmatpush2.bf16.msra.mxu0 %v977
  %2106 = vmatprep.subr.bf16.mxu0 %v909
  %2107 = vmatpush2.bf16.msra.mxu0 %v908
  %2108 = vmatprep.subr.bf16.mxu0 %v907
  %2109 = vmatpush2.bf16.msra.mxu0 %v906
  %2110 = vmatprep.mubr.bf16.mxu0 %v1996
  %2111 = vmatmul.mubr.bf16.gmra.mxu0 %v1811
  %v2112 = vpop.f32.mrf.mxu0
  %v2113 = vadd.f32 %v2042, %v2112
  %v2114 = vpop.f32.mrf.mxu0
  %v2115 = vadd.f32 %v2044, %v2114
  %v2116 = vpop.f32.mrf.mxu0
  %v2117 = vadd.f32 %v2046, %v2116
  %v2118 = vpop.f32.mrf.mxu0
  %v2119 = vadd.f32 %v2048, %v2118
  %2120 = vmatprep.mubr.bf16.mxu0 %v1999
  %2121 = vmatmul.mubr.bf16.gmra.mxu0 %v1815
  %v2122 = vpop.f32.mrf.mxu0
  %v2123 = vadd.f32 %v2052, %v2122
  %v2124 = vpop.f32.mrf.mxu0
  %v2125 = vadd.f32 %v2054, %v2124
  %v2126 = vpop.f32.mrf.mxu0
  %v2127 = vadd.f32 %v2056, %v2126
  %v2128 = vpop.f32.mrf.mxu0
  %v2129 = vadd.f32 %v2058, %v2128
  %2130 = vmatprep.mubr.bf16.mxu0 %v2002
  %2131 = vmatmul.mubr.bf16.gmra.mxu0 %v1819
  %v2132 = vpop.f32.mrf.mxu0
  %v2133 = vadd.f32 %v2062, %v2132
  %v2134 = vpop.f32.mrf.mxu0
  %v2135 = vadd.f32 %v2064, %v2134
  %v2136 = vpop.f32.mrf.mxu0
  %v2137 = vadd.f32 %v2066, %v2136
  %v2138 = vpop.f32.mrf.mxu0
  %v2139 = vadd.f32 %v2068, %v2138
  %2140 = vmatprep.mubr.bf16.mxu0 %v2005
  %2141 = vmatmul.mubr.bf16.gmra.mxu0 %v1823
  %v2142 = vpop.f32.mrf.mxu0
  %v2143 = vadd.f32 %v2072, %v2142
  %v2144 = vpop.f32.mrf.mxu0
  %v2145 = vadd.f32 %v2074, %v2144
  %v2146 = vpop.f32.mrf.mxu0
  %v2147 = vpop.f32.mrf.mxu0
  %2148 = vdwg.mxu0
  %v2150 = vshrl.u32 %v1809, 16
  %v2152 = vshll.u32 %v1809, 16
  %v2154 = vrot.slane %v2152, 1
  %v2155 = vor.u32 %v2150, %v2154
  %v2157 = vshll.u32 %v1813, 16
  %v2159 = vrot.slane %v2157, 1
  %v2160 = vsel %vm1124, %v2155, %v2159
  %v2162 = vshrl.u32 %v1810, 16
  %v2164 = vshll.u32 %v1810, 16
  %v2166 = vrot.slane %v2164, 1
  %v2167 = vor.u32 %v2162, %v2166
  %v2169 = vshll.u32 %v1814, 16
  %v2171 = vrot.slane %v2169, 1
  %v2172 = vsel %vm1124, %v2167, %v2171
  %v2174 = vshrl.u32 %v1811, 16
  %v2176 = vshll.u32 %v1811, 16
  %v2178 = vrot.slane %v2176, 1
  %v2179 = vor.u32 %v2174, %v2178
  %v2181 = vshll.u32 %v1815, 16
  %v2183 = vrot.slane %v2181, 1
  %v2184 = vsel %vm1124, %v2179, %v2183
  %v2185 = vshrl.u32 %v1812, 16
  %v2187 = vshll.u32 %v1812, 16
  %v2189 = vrot.slane %v2187, 1
  %v2190 = vor.u32 %v2185, %v2189
  %v2191 = vshll.u32 %v1816, 16
  %v2193 = vrot.slane %v2191, 1
  %v2194 = vsel %vm1124, %v2190, %v2193
  %v2195 = vshrl.u32 %v1813, 16
  %v2197 = vor.u32 %v2195, %v2159
  %v2199 = vshll.u32 %v1817, 16
  %v2201 = vrot.slane %v2199, 1
  %v2202 = vsel %vm1124, %v2197, %v2201
  %v2203 = vshrl.u32 %v1814, 16
  %v2205 = vor.u32 %v2203, %v2171
  %v2207 = vshll.u32 %v1818, 16
  %v2209 = vrot.slane %v2207, 1
  %v2210 = vsel %vm1124, %v2205, %v2209
  %v2211 = vshrl.u32 %v1815, 16
  %v2213 = vor.u32 %v2211, %v2183
  %v2215 = vshll.u32 %v1819, 16
  %v2217 = vrot.slane %v2215, 1
  %v2218 = vsel %vm1124, %v2213, %v2217
  %v2219 = vshrl.u32 %v1816, 16
  %v2221 = vor.u32 %v2219, %v2193
  %v2222 = vshll.u32 %v1820, 16
  %v2224 = vrot.slane %v2222, 1
  %v2225 = vsel %vm1124, %v2221, %v2224
  %v2226 = vshrl.u32 %v1817, 16
  %v2228 = vor.u32 %v2226, %v2201
  %v2230 = vshll.u32 %v1821, 16
  %v2232 = vrot.slane %v2230, 1
  %v2233 = vsel %vm1124, %v2228, %v2232
  %v2234 = vshrl.u32 %v1818, 16
  %v2236 = vor.u32 %v2234, %v2209
  %v2238 = vshll.u32 %v1822, 16
  %v2240 = vrot.slane %v2238, 1
  %v2241 = vsel %vm1124, %v2236, %v2240
  %v2242 = vshrl.u32 %v1819, 16
  %v2244 = vor.u32 %v2242, %v2217
  %v2246 = vshll.u32 %v1823, 16
  %v2248 = vrot.slane %v2246, 1
  %v2249 = vsel %vm1124, %v2244, %v2248
  %v2250 = vshrl.u32 %v1820, 16
  %v2252 = vor.u32 %v2250, %v2224
  %v2253 = vshll.u32 %v1824, 16
  %v2255 = vrot.slane %v2253, 1
  %v2256 = vsel %vm1124, %v2252, %v2255
  %v2257 = vshrl.u32 %v1821, 16
  %v2259 = vor.u32 %v2257, %v2232
  %v2260 = vshrl.u32 %v1822, 16
  %v2262 = vor.u32 %v2260, %v2240
  %v2263 = vshrl.u32 %v1823, 16
  %v2265 = vor.u32 %v2263, %v2248
  %v2266 = vshrl.u32 %v1824, 16
  %v2268 = vor.u32 %v2266, %v2255
  %v2282 = vsel %vm537, %v2194, 0
  %v2285 = vsel %vm537, %v2225, 0
  %v2288 = vsel %vm537, %v2256, 0
  %v2291 = vsel %vm537, %v2268, 0
  %2293 = vmatprep.subr.bf16.mxu0 %v1431
  %2294 = vmatpush1.bf16.msra.mxu0 %v1430
  %2295 = vmatprep.subr.bf16.mxu0 %v1429
  %2296 = vmatpush1.bf16.msra.mxu0 %v1428
  %2297 = vmatprep.subr.bf16.mxu0 %v1427
  %2298 = vmatpush1.bf16.msra.mxu0 %v1426
  %2299 = vmatprep.subr.bf16.mxu0 %v1425
  %2300 = vmatpush1.bf16.msra.mxu0 %v1424
  %2301 = vmatprep.subr.bf16.mxu0 %v1423
  %2302 = vmatpush1.bf16.msra.mxu0 %v1422
  %2303 = vmatprep.subr.bf16.mxu0 %v1421
  %2304 = vmatpush1.bf16.msra.mxu0 %v1420
  %2305 = vmatprep.subr.bf16.mxu0 %v1419
  %2306 = vmatpush1.bf16.msra.mxu0 %v1418
  %2307 = vmatprep.subr.bf16.mxu0 %v1417
  %2308 = vmatpush1.bf16.msra.mxu0 %v1416
  %2309 = vmatprep.subr.bf16.mxu0 %v1447
  %2310 = vmatpush2.bf16.msra.mxu0 %v1446
  %2311 = vmatprep.subr.bf16.mxu0 %v1445
  %2312 = vmatpush2.bf16.msra.mxu0 %v1444
  %2313 = vmatprep.subr.bf16.mxu0 %v1443
  %2314 = vmatpush2.bf16.msra.mxu0 %v1442
  %2315 = vmatprep.subr.bf16.mxu0 %v1441
  %2316 = vmatpush2.bf16.msra.mxu0 %v1440
  %2317 = vmatprep.subr.bf16.mxu0 %v1439
  %2318 = vmatpush2.bf16.msra.mxu0 %v1438
  %2319 = vmatprep.subr.bf16.mxu0 %v1437
  %2320 = vmatpush2.bf16.msra.mxu0 %v1436
  %2321 = vmatprep.subr.bf16.mxu0 %v1435
  %2322 = vmatpush2.bf16.msra.mxu0 %v1434
  %2323 = vmatprep.subr.bf16.mxu0 %v1433
  %2324 = vmatpush2.bf16.msra.mxu0 %v1432
  %2325 = vmatprep.mubr.bf16.mxu0 %v2172
  %2326 = vmatmul.mubr.bf16.gmra.mxu0 %v2160
  %v2327 = vpop.f32.mrf.mxu0
  %v2328 = vadd.f32 0.0, %v2327
  %v2329 = vpop.f32.mrf.mxu0
  %v2330 = vadd.f32 0.0, %v2329
  %v2331 = vpop.f32.mrf.mxu0
  %v2332 = vadd.f32 0.0, %v2331
  %v2333 = vpop.f32.mrf.mxu0
  %v2334 = vadd.f32 0.0, %v2333
  %2335 = vmatprep.mubr.bf16.mxu0 %v2210
  %2336 = vmatmul.mubr.bf16.gmra.mxu0 %v2202
  %v2337 = vpop.f32.mrf.mxu0
  %v2338 = vadd.f32 0.0, %v2337
  %v2339 = vpop.f32.mrf.mxu0
  %v2340 = vadd.f32 0.0, %v2339
  %v2341 = vpop.f32.mrf.mxu0
  %v2342 = vadd.f32 0.0, %v2341
  %v2343 = vpop.f32.mrf.mxu0
  %v2344 = vadd.f32 0.0, %v2343
  %2345 = vmatprep.mubr.bf16.mxu0 %v2241
  %2346 = vmatmul.mubr.bf16.gmra.mxu0 %v2233
  %v2347 = vpop.f32.mrf.mxu0
  %v2348 = vadd.f32 0.0, %v2347
  %v2349 = vpop.f32.mrf.mxu0
  %v2350 = vadd.f32 0.0, %v2349
  %v2351 = vpop.f32.mrf.mxu0
  %v2352 = vadd.f32 0.0, %v2351
  %v2353 = vpop.f32.mrf.mxu0
  %v2354 = vadd.f32 0.0, %v2353
  %2355 = vmatprep.mubr.bf16.mxu0 %v2262
  %2356 = vmatmul.mubr.bf16.gmra.mxu0 %v2259
  %v2357 = vpop.f32.mrf.mxu0
  %v2358 = vadd.f32 0.0, %v2357
  %v2359 = vpop.f32.mrf.mxu0
  %v2360 = vadd.f32 0.0, %v2359
  %v2361 = vpop.f32.mrf.mxu0
  %v2362 = vpop.f32.mrf.mxu0
  %2363 = vdwg.mxu0
  %2364 = vmatprep.subr.bf16.mxu0 %v1463
  %2365 = vmatpush1.bf16.msra.mxu0 %v1462
  %2366 = vmatprep.subr.bf16.mxu0 %v1461
  %2367 = vmatpush1.bf16.msra.mxu0 %v1460
  %2368 = vmatprep.subr.bf16.mxu0 %v1459
  %2369 = vmatpush1.bf16.msra.mxu0 %v1458
  %2370 = vmatprep.subr.bf16.mxu0 %v1457
  %2371 = vmatpush1.bf16.msra.mxu0 %v1456
  %2372 = vmatprep.subr.bf16.mxu0 %v1455
  %2373 = vmatpush1.bf16.msra.mxu0 %v1454
  %2374 = vmatprep.subr.bf16.mxu0 %v1453
  %2375 = vmatpush1.bf16.msra.mxu0 %v1452
  %2376 = vmatprep.subr.bf16.mxu0 %v1451
  %2377 = vmatpush1.bf16.msra.mxu0 %v1450
  %2378 = vmatprep.subr.bf16.mxu0 %v1449
  %2379 = vmatpush1.bf16.msra.mxu0 %v1448
  %2380 = vmatprep.subr.bf16.mxu0 0
  %2381 = vmatpush2.bf16.msra.mxu0 0
  %2382 = vmatprep.subr.bf16.mxu0 0
  %2383 = vmatpush2.bf16.msra.mxu0 0
  %2384 = vmatprep.subr.bf16.mxu0 0
  %2385 = vmatpush2.bf16.msra.mxu0 0
  %2386 = vmatprep.subr.bf16.mxu0 0
  %2387 = vmatpush2.bf16.msra.mxu0 0
  %2388 = vmatprep.subr.bf16.mxu0 0
  %2389 = vmatpush2.bf16.msra.mxu0 0
  %2390 = vmatprep.subr.bf16.mxu0 %v1538
  %2391 = vmatpush2.bf16.msra.mxu0 %v1535
  %2392 = vmatprep.subr.bf16.mxu0 %v1467
  %2393 = vmatpush2.bf16.msra.mxu0 %v1466
  %2394 = vmatprep.subr.bf16.mxu0 %v1465
  %2395 = vmatpush2.bf16.msra.mxu0 %v1464
  %2396 = vmatprep.mubr.bf16.mxu0 %v2282
  %2397 = vmatmul.mubr.bf16.gmra.mxu0 %v2184
  %v2398 = vpop.f32.mrf.mxu0
  %v2399 = vadd.f32 %v2328, %v2398
  %v2400 = vpop.f32.mrf.mxu0
  %v2401 = vadd.f32 %v2330, %v2400
  %v2402 = vpop.f32.mrf.mxu0
  %v2403 = vadd.f32 %v2332, %v2402
  %v2404 = vpop.f32.mrf.mxu0
  %v2405 = vadd.f32 %v2334, %v2404
  %2406 = vmatprep.mubr.bf16.mxu0 %v2285
  %2407 = vmatmul.mubr.bf16.gmra.mxu0 %v2218
  %v2408 = vpop.f32.mrf.mxu0
  %v2409 = vadd.f32 %v2338, %v2408
  %v2410 = vpop.f32.mrf.mxu0
  %v2411 = vadd.f32 %v2340, %v2410
  %v2412 = vpop.f32.mrf.mxu0
  %v2413 = vadd.f32 %v2342, %v2412
  %v2414 = vpop.f32.mrf.mxu0
  %v2415 = vadd.f32 %v2344, %v2414
  %2416 = vmatprep.mubr.bf16.mxu0 %v2288
  %2417 = vmatmul.mubr.bf16.gmra.mxu0 %v2249
  %v2418 = vpop.f32.mrf.mxu0
  %v2419 = vadd.f32 %v2348, %v2418
  %v2420 = vpop.f32.mrf.mxu0
  %v2421 = vadd.f32 %v2350, %v2420
  %v2422 = vpop.f32.mrf.mxu0
  %v2423 = vadd.f32 %v2352, %v2422
  %v2424 = vpop.f32.mrf.mxu0
  %v2425 = vadd.f32 %v2354, %v2424
  %2426 = vmatprep.mubr.bf16.mxu0 %v2291
  %2427 = vmatmul.mubr.bf16.gmra.mxu0 %v2265
  %v2428 = vpop.f32.mrf.mxu0
  %v2429 = vadd.f32 %v2358, %v2428
  %v2430 = vpop.f32.mrf.mxu0
  %v2431 = vadd.f32 %v2360, %v2430
  %v2432 = vpop.f32.mrf.mxu0
  %v2433 = vpop.f32.mrf.mxu0
  %2434 = vdwg.mxu0
  %v2435 = vadd.f32 %v2113, %v2399
  %v2436 = vadd.f32 %v2115, %v2401
  %v2437 = vadd.f32 %v2117, %v2403
  %v2438 = vadd.f32 %v2119, %v2405
  %v2439 = vadd.f32 %v2123, %v2409
  %v2440 = vadd.f32 %v2125, %v2411
  %v2441 = vadd.f32 %v2127, %v2413
  %v2442 = vadd.f32 %v2129, %v2415
  %v2443 = vadd.f32 %v2133, %v2419
  %v2444 = vadd.f32 %v2135, %v2421
  %v2445 = vadd.f32 %v2137, %v2423
  %v2446 = vadd.f32 %v2139, %v2425
  %v2447 = vadd.f32 %v2143, %v2429
  %v2448 = vadd.f32 %v2145, %v2431
  %v2449 = vadd.f32 %v2435, %v1700
  %v2450 = vadd.f32 %v2436, %v1704
  %v2451 = vadd.f32 %v2437, %v1700
  %v2452 = vadd.f32 %v2438, %v1704
  %v2453 = vadd.f32 %v2439, %v1700
  %v2454 = vadd.f32 %v2440, %v1704
  %v2455 = vadd.f32 %v2441, %v1700
  %v2456 = vadd.f32 %v2442, %v1704
  %v2457 = vadd.f32 %v2443, %v1700
  %v2458 = vadd.f32 %v2444, %v1704
  %v2459 = vadd.f32 %v2445, %v1700
  %v2460 = vadd.f32 %v2446, %v1704
  %v2461 = vadd.f32 %v2447, %v1700
  %v2462 = vadd.f32 %v2448, %v1704
  %v2463 = vmax.f32 %v2449, 0.0
  %v2464 = vmax.f32 %v2450, 0.0
  %v2465 = vmax.f32 %v2451, 0.0
  %v2466 = vmax.f32 %v2452, 0.0
  %v2467 = vmax.f32 %v2453, 0.0
  %v2468 = vmax.f32 %v2454, 0.0
  %v2469 = vmax.f32 %v2455, 0.0
  %v2470 = vmax.f32 %v2456, 0.0
  %v2471 = vmax.f32 %v2457, 0.0
  %v2472 = vmax.f32 %v2458, 0.0
  %v2473 = vmax.f32 %v2459, 0.0
  %v2474 = vmax.f32 %v2460, 0.0
  %v2475 = vmax.f32 %v2461, 0.0
  %v2476 = vmax.f32 %v2462, 0.0
  %s2477 = scalar_lea.vmem %s6, 112
  %2478 = vst [vmem:[%s2477] sm:$0xff] %v2463
  %2479 = vst.msk [vmem:[%s2477 + $0x8] sm:$0xff] %vm1736, %v2464
  %2480 = vst [vmem:[%s2477 + $0x10] sm:$0xff] %v2465
  %2481 = vst.msk [vmem:[%s2477 + $0x18] sm:$0xff] %vm1736, %v2466
  %2482 = vst [vmem:[%s2477 + $0x20] sm:$0xff] %v2467
  %2483 = vst.msk [vmem:[%s2477 + $0x28] sm:$0xff] %vm1736, %v2468
  %2484 = vst [vmem:[%s2477 + $0x30] sm:$0xff] %v2469
  %2485 = vst.msk [vmem:[%s2477 + $0x38] sm:$0xff] %vm1736, %v2470
  %2486 = vst [vmem:[%s2477 + $0x40] sm:$0xff] %v2471
  %2487 = vst.msk [vmem:[%s2477 + $0x48] sm:$0xff] %vm1736, %v2472
  %2488 = vst [vmem:[%s2477 + $0x50] sm:$0xff] %v2473
  %2489 = vst.msk [vmem:[%s2477 + $0x58] sm:$0xff] %vm1736, %v2474
  %2490 = vst [vmem:[%s2477 + $0x60] sm:$0x3] %v2475
  %2491 = vst.msk [vmem:[%s2477 + $0x68] sm:$0x3] %vm1749, %v2476
  // Predicated region
  $region26: #{rerank_forward.7} parent=0 // pred_check
    _
  $region27: #{rerank_forward.7} parent=0 // pred_check_branch
    %2493 = sbr.rel (0) target = $region29
  $region28: #{rerank_forward.7} parent=0 // pred_region
    _
  $region29: #{rerank_forward.7} parent=0 // pred_fallthru
    _
  // Predicated region
  $region30: #{rerank_forward.7} parent=0 // pred_check
    _
  $region31: #{rerank_forward.7} parent=0 // pred_check_branch
    %2495 = sbr.rel (0) target = $region33
  $region32: #{rerank_forward.7} parent=0 // pred_region
    _
  $region33: #{rerank_forward.7} parent=0 // pred_fallthru
    _

// kernel: rerank_forward.9
$region0: #{rerank_forward.9}
  #allocation0 [shape = 'u32[]', space=smem, size = 0x4, offset = 0x4, fixed_abs, tag = 'smem constant byte address 0x4 - core index']
  #allocation1 [shape = 'u32[144,128]{1,0:T(1,128)}', space=vmem, size = 0x12000, scoped, tag = 'internal scratch']
  %s0 = inlined_call_operand.vmem [shape: f32[2,14,320], index: 0, kind: input, shape index: {}]
  %s1 = inlined_call_operand.vmem [shape: f32[2,13,320], index: 1, kind: input, shape index: {}]
  %s2 = inlined_call_operand.vmem [shape: bf16[320,256], index: 2, kind: input, shape index: {}]
  %s3 = inlined_call_operand.vmem [shape: bf16[320,256], index: 3, kind: input, shape index: {}]
  %s4 = inlined_call_operand.vmem [shape: bf16[320,256], index: 4, kind: input, shape index: {}]
  %s5 = inlined_call_operand.vmem [shape: f32[1,256], index: 5, kind: input, shape index: {}]
  %s6 = inlined_call_operand.vmem [shape: f32[2,13,256], index: 6, kind: output, shape index: {}]
  %s7 = sld [smem:[#allocation0]]
  $region34: #{rerank_forward.9} parent=0
    _
  %s9 = ssub.s32 1, %s7
  %s10 = scalar_select 0, %s9, %s7
  // Predicated region
  $region2: #{rerank_forward.9} parent=0 // pred_check
    _
  $region3: #{rerank_forward.9} parent=0 // pred_check_branch
    %12 = sbr.rel (0) target = $region5
  $region4: #{rerank_forward.9} parent=0 // pred_region
    _
  $region5: #{rerank_forward.9} parent=0 // pred_fallthru
    _
  // Predicated region
  $region6: #{rerank_forward.9} parent=0 // pred_check
    _
  $region7: #{rerank_forward.9} parent=0 // pred_check_branch
    %14 = sbr.rel (0) target = $region9
  $region8: #{rerank_forward.9} parent=0 // pred_region
    _
  $region9: #{rerank_forward.9} parent=0 // pred_fallthru
    _
  // Predicated region
  $region10: #{rerank_forward.9} parent=0 // pred_check
    _
  $region11: #{rerank_forward.9} parent=0 // pred_check_branch
    %16 = sbr.rel (0) target = $region13
  $region12: #{rerank_forward.9} parent=0 // pred_region
    _
  $region13: #{rerank_forward.9} parent=0 // pred_fallthru
    _
  // Predicated region
  $region14: #{rerank_forward.9} parent=0 // pred_check
    _
  $region15: #{rerank_forward.9} parent=0 // pred_check_branch
    %18 = sbr.rel (0) target = $region17
  $region16: #{rerank_forward.9} parent=0 // pred_region
    _
  $region17: #{rerank_forward.9} parent=0 // pred_fallthru
    _
  // Predicated region
  $region18: #{rerank_forward.9} parent=0 // pred_check
    _
  $region19: #{rerank_forward.9} parent=0 // pred_check_branch
    %20 = sbr.rel (0) target = $region21
  $region20: #{rerank_forward.9} parent=0 // pred_region
    _
  $region21: #{rerank_forward.9} parent=0 // pred_fallthru
    _
  // Predicated region
  $region22: #{rerank_forward.9} parent=0 // pred_check
    _
  $region23: #{rerank_forward.9} parent=0 // pred_check_branch
    %22 = sbr.rel (0) target = $region25
  $region24: #{rerank_forward.9} parent=0 // pred_region
    _
  $region25: #{rerank_forward.9} parent=0 // pred_fallthru
    _
  %v24 = vld [vmem:[%s2] sm:$0xff]
  %v25 = vld [vmem:[%s2 + $0x8] sm:$0xff]
  %v26 = vld [vmem:[%s2 + $0x10] sm:$0xff]
  %v27 = vld [vmem:[%s2 + $0x18] sm:$0xff]
  %v28 = vld [vmem:[%s2 + $0x20] sm:$0xff]
  %v29 = vld [vmem:[%s2 + $0x28] sm:$0xff]
  %v30 = vld [vmem:[%s2 + $0x30] sm:$0xff]
  %v31 = vld [vmem:[%s2 + $0x38] sm:$0xff]
  %v32 = vld [vmem:[%s2 + $0x40] sm:$0xff]
  %v33 = vld [vmem:[%s2 + $0x48] sm:$0xff]
  %v34 = vld [vmem:[%s2 + $0x50] sm:$0xff]
  %v35 = vld [vmem:[%s2 + $0x58] sm:$0xff]
  %v36 = vld [vmem:[%s2 + $0x60] sm:$0xff]
  %v37 = vld [vmem:[%s2 + $0x68] sm:$0xff]
  %v38 = vld [vmem:[%s2 + $0x70] sm:$0xff]
  %v39 = vld [vmem:[%s2 + $0x78] sm:$0xff]
  %v40 = vld [vmem:[%s2 + $0x80] sm:$0xff]
  %v41 = vld [vmem:[%s2 + $0x88] sm:$0xff]
  %v42 = vld [vmem:[%s2 + $0x90] sm:$0xff]
  %v43 = vld [vmem:[%s2 + $0x98] sm:$0xff]
  %v44 = vld [vmem:[%s2 + $0xa0] sm:$0xff]
  %v45 = vld [vmem:[%s2 + $0xa8] sm:$0xff]
  %v46 = vld [vmem:[%s2 + $0xb0] sm:$0xff]
  %v47 = vld [vmem:[%s2 + $0xb8] sm:$0xff]
  %v48 = vld [vmem:[%s2 + $0xc0] sm:$0xff]
  %v49 = vld [vmem:[%s2 + $0xc8] sm:$0xff]
  %v50 = vld [vmem:[%s2 + $0xd0] sm:$0xff]
  %v51 = vld [vmem:[%s2 + $0xd8] sm:$0xff]
  %v52 = vld [vmem:[%s2 + $0xe0] sm:$0xff]
  %v53 = vld [vmem:[%s2 + $0xe8] sm:$0xff]
  %v54 = vld [vmem:[%s2 + $0xf0] sm:$0xff]
  %v55 = vld [vmem:[%s2 + $0xf8] sm:$0xff]
  %v56 = vld [vmem:[%s2 + $0x100] sm:$0xff]
  %v57 = vld [vmem:[%s2 + $0x108] sm:$0xff]
  %v58 = vld [vmem:[%s2 + $0x110] sm:$0xff]
  %v59 = vld [vmem:[%s2 + $0x118] sm:$0xff]
  %v60 = vld [vmem:[%s2 + $0x120] sm:$0xff]
  %v61 = vld [vmem:[%s2 + $0x128] sm:$0xff]
  %v62 = vld [vmem:[%s2 + $0x130] sm:$0xff]
  %v63 = vld [vmem:[%s2 + $0x138] sm:$0xff]
  %v64 = vld [vmem:[%s3] sm:$0xff]
  %v65 = vld [vmem:[%s3 + $0x8] sm:$0xff]
  %v66 = vld [vmem:[%s3 + $0x10] sm:$0xff]
  %v67 = vld [vmem:[%s3 + $0x18] sm:$0xff]
  %v68 = vld [vmem:[%s3 + $0x20] sm:$0xff]
  %v69 = vld [vmem:[%s3 + $0x28] sm:$0xff]
  %v70 = vld [vmem:[%s3 + $0x30] sm:$0xff]
  %v71 = vld [vmem:[%s3 + $0x38] sm:$0xff]
  %v72 = vld [vmem:[%s3 + $0x40] sm:$0xff]
  %v73 = vld [vmem:[%s3 + $0x48] sm:$0xff]
  %v74 = vld [vmem:[%s3 + $0x50] sm:$0xff]
  %v75 = vld [vmem:[%s3 + $0x58] sm:$0xff]
  %v76 = vld [vmem:[%s3 + $0x60] sm:$0xff]
  %v77 = vld [vmem:[%s3 + $0x68] sm:$0xff]
  %v78 = vld [vmem:[%s3 + $0x70] sm:$0xff]
  %v79 = vld [vmem:[%s3 + $0x78] sm:$0xff]
  %v80 = vld [vmem:[%s3 + $0x80] sm:$0xff]
  %v81 = vld [vmem:[%s3 + $0x88] sm:$0xff]
  %v82 = vld [vmem:[%s3 + $0x90] sm:$0xff]
  %v83 = vld [vmem:[%s3 + $0x98] sm:$0xff]
  %v84 = vld [vmem:[%s3 + $0xa0] sm:$0xff]
  %v85 = vld [vmem:[%s3 + $0xa8] sm:$0xff]
  %v86 = vld [vmem:[%s3 + $0xb0] sm:$0xff]
  %v87 = vld [vmem:[%s3 + $0xb8] sm:$0xff]
  %v88 = vld [vmem:[%s3 + $0xc0] sm:$0xff]
  %v89 = vld [vmem:[%s3 + $0xc8] sm:$0xff]
  %v90 = vld [vmem:[%s3 + $0xd0] sm:$0xff]
  %v91 = vld [vmem:[%s3 + $0xd8] sm:$0xff]
  %v92 = vld [vmem:[%s3 + $0xe0] sm:$0xff]
  %v93 = vld [vmem:[%s3 + $0xe8] sm:$0xff]
  %v94 = vld [vmem:[%s3 + $0xf0] sm:$0xff]
  %v95 = vld [vmem:[%s3 + $0xf8] sm:$0xff]
  %v96 = vld [vmem:[%s3 + $0x100] sm:$0xff]
  %v97 = vld [vmem:[%s3 + $0x108] sm:$0xff]
  %v98 = vld [vmem:[%s3 + $0x110] sm:$0xff]
  %v99 = vld [vmem:[%s3 + $0x118] sm:$0xff]
  %v100 = vld [vmem:[%s3 + $0x120] sm:$0xff]
  %v101 = vld [vmem:[%s3 + $0x128] sm:$0xff]
  %v102 = vld [vmem:[%s3 + $0x130] sm:$0xff]
  %v103 = vld [vmem:[%s3 + $0x138] sm:$0xff]
  %v104 = vld [vmem:[%s4] sm:$0xff]
  %v105 = vld [vmem:[%s4 + $0x8] sm:$0xff]
  %v106 = vld [vmem:[%s4 + $0x10] sm:$0xff]
  %v107 = vld [vmem:[%s4 + $0x18] sm:$0xff]
  %v108 = vld [vmem:[%s4 + $0x20] sm:$0xff]
  %v109 = vld [vmem:[%s4 + $0x28] sm:$0xff]
  %v110 = vld [vmem:[%s4 + $0x30] sm:$0xff]
  %v111 = vld [vmem:[%s4 + $0x38] sm:$0xff]
  %v112 = vld [vmem:[%s4 + $0x40] sm:$0xff]
  %v113 = vld [vmem:[%s4 + $0x48] sm:$0xff]
  %v114 = vld [vmem:[%s4 + $0x50] sm:$0xff]
  %v115 = vld [vmem:[%s4 + $0x58] sm:$0xff]
  %v116 = vld [vmem:[%s4 + $0x60] sm:$0xff]
  %v117 = vld [vmem:[%s4 + $0x68] sm:$0xff]
  %v118 = vld [vmem:[%s4 + $0x70] sm:$0xff]
  %v119 = vld [vmem:[%s4 + $0x78] sm:$0xff]
  %v120 = vld [vmem:[%s4 + $0x80] sm:$0xff]
  %v121 = vld [vmem:[%s4 + $0x88] sm:$0xff]
  %v122 = vld [vmem:[%s4 + $0x90] sm:$0xff]
  %v123 = vld [vmem:[%s4 + $0x98] sm:$0xff]
  %v124 = vld [vmem:[%s4 + $0xa0] sm:$0xff]
  %v125 = vld [vmem:[%s4 + $0xa8] sm:$0xff]
  %v126 = vld [vmem:[%s4 + $0xb0] sm:$0xff]
  %v127 = vld [vmem:[%s4 + $0xb8] sm:$0xff]
  %v128 = vld [vmem:[%s4 + $0xc0] sm:$0xff]
  %v129 = vld [vmem:[%s4 + $0xc8] sm:$0xff]
  %v130 = vld [vmem:[%s4 + $0xd0] sm:$0xff]
  %v131 = vld [vmem:[%s4 + $0xd8] sm:$0xff]
  %v132 = vld [vmem:[%s4 + $0xe0] sm:$0xff]
  %v133 = vld [vmem:[%s4 + $0xe8] sm:$0xff]
  %v134 = vld [vmem:[%s4 + $0xf0] sm:$0xff]
  %v135 = vld [vmem:[%s4 + $0xf8] sm:$0xff]
  %v136 = vld [vmem:[%s4 + $0x100] sm:$0xff]
  %v137 = vld [vmem:[%s4 + $0x108] sm:$0xff]
  %v138 = vld [vmem:[%s4 + $0x110] sm:$0xff]
  %v139 = vld [vmem:[%s4 + $0x118] sm:$0xff]
  %v140 = vld [vmem:[%s4 + $0x120] sm:$0xff]
  %v141 = vld [vmem:[%s4 + $0x128] sm:$0xff]
  %v142 = vld [vmem:[%s4 + $0x130] sm:$0xff]
  %v143 = vld [vmem:[%s4 + $0x138] sm:$0xff]
  %v144 = vld [vmem:[%s5] sm:$0x3]
  %v145 = vld [vmem:[%s0] sm:$0xff]
  %v146 = vld [vmem:[%s0 + $0x8] sm:$0xff]
  %v147 = vld [vmem:[%s0 + $0x10] sm:$0xff]
  %v148 = vld [vmem:[%s0 + $0x18] sm:$0x3f]
  %v149 = vld [vmem:[%s0 + $0x20] sm:$0x3f]
  %v150 = vld [vmem:[%s0 + $0x28] sm:$0x3f]
  %v151 = vld [vmem:[%s1] sm:$0xff]
  %v152 = vld [vmem:[%s1 + $0x8] sm:$0xff]
  %v153 = vld [vmem:[%s1 + $0x10] sm:$0xff]
  %v154 = vld [vmem:[%s1 + $0x18] sm:$0x1f]
  %v155 = vld [vmem:[%s1 + $0x20] sm:$0x1f]
  %v156 = vld [vmem:[%s1 + $0x28] sm:$0x1f]
  %v157 = vpack.c.bf16 %v148, %v145
  %v158 = vpack.c.bf16 %v149, %v146
  %v159 = vpack.c.bf16 %v150, %v147
  %v160 = vpack.c.bf16 %v154, %v151
  %v161 = vpack.c.bf16 %v155, %v152
  %v162 = vpack.c.bf16 %v156, %v153
  %v203 = vunpack.c.l.b16 %v64
  %v204 = vunpack.c.h.b16 %v64
  %v205 = vunpack.c.l.b16 %v65
  %v206 = vunpack.c.h.b16 %v65
  %v207 = vunpack.c.l.b16 %v66
  %v208 = vunpack.c.h.b16 %v66
  %v209 = vunpack.c.l.b16 %v67
  %v210 = vunpack.c.h.b16 %v67
  %v211 = vunpack.c.l.b16 %v68
  %v212 = vunpack.c.h.b16 %v68
  %v213 = vunpack.c.l.b16 %v69
  %v214 = vunpack.c.h.b16 %v69
  %v215 = vunpack.c.l.b16 %v70
  %v216 = vunpack.c.h.b16 %v70
  %v217 = vunpack.c.l.b16 %v71
  %v218 = vunpack.c.h.b16 %v71
  %v219 = vunpack.c.l.b16 %v72
  %v220 = vunpack.c.h.b16 %v72
  %v221 = vunpack.c.l.b16 %v73
  %v222 = vunpack.c.h.b16 %v73
  %v223 = vunpack.c.l.b16 %v74
  %v224 = vunpack.c.h.b16 %v74
  %v225 = vunpack.c.l.b16 %v75
  %v226 = vunpack.c.h.b16 %v75
  %v227 = vunpack.c.l.b16 %v76
  %v228 = vunpack.c.h.b16 %v76
  %v229 = vunpack.c.l.b16 %v77
  %v230 = vunpack.c.h.b16 %v77
  %v231 = vunpack.c.l.b16 %v78
  %v232 = vunpack.c.h.b16 %v78
  %v233 = vunpack.c.l.b16 %v79
  %v234 = vunpack.c.h.b16 %v79
  %v235 = vunpack.c.l.b16 %v80
  %v236 = vunpack.c.h.b16 %v80
  %v237 = vunpack.c.l.b16 %v81
  %v238 = vunpack.c.h.b16 %v81
  %v239 = vunpack.c.l.b16 %v82
  %v240 = vunpack.c.h.b16 %v82
  %v241 = vunpack.c.l.b16 %v83
  %v242 = vunpack.c.h.b16 %v83
  %v243 = vunpack.c.l.b16 %v84
  %v244 = vunpack.c.h.b16 %v84
  %v245 = vunpack.c.l.b16 %v85
  %v246 = vunpack.c.h.b16 %v85
  %v247 = vunpack.c.l.b16 %v86
  %v248 = vunpack.c.h.b16 %v86
  %v249 = vunpack.c.l.b16 %v87
  %v250 = vunpack.c.h.b16 %v87
  %v251 = vunpack.c.l.b16 %v88
  %v252 = vunpack.c.h.b16 %v88
  %v253 = vunpack.c.l.b16 %v89
  %v254 = vunpack.c.h.b16 %v89
  %v255 = vunpack.c.l.b16 %v90
  %v256 = vunpack.c.h.b16 %v90
  %v257 = vunpack.c.l.b16 %v91
  %v258 = vunpack.c.h.b16 %v91
  %v259 = vunpack.c.l.b16 %v92
  %v260 = vunpack.c.h.b16 %v92
  %v261 = vunpack.c.l.b16 %v93
  %v262 = vunpack.c.h.b16 %v93
  %v263 = vunpack.c.l.b16 %v94
  %v264 = vunpack.c.h.b16 %v94
  %v265 = vunpack.c.l.b16 %v95
  %v266 = vunpack.c.h.b16 %v95
  %v267 = vunpack.c.l.b16 %v96
  %v268 = vunpack.c.h.b16 %v96
  %v269 = vunpack.c.l.b16 %v97
  %v270 = vunpack.c.h.b16 %v97
  %v271 = vunpack.c.l.b16 %v98
  %v272 = vunpack.c.h.b16 %v98
  %v273 = vunpack.c.l.b16 %v99
  %v274 = vunpack.c.h.b16 %v99
  %v275 = vunpack.c.l.b16 %v100
  %v276 = vunpack.c.h.b16 %v100
  %v277 = vunpack.c.l.b16 %v101
  %v278 = vunpack.c.h.b16 %v101
  %v279 = vunpack.c.l.b16 %v102
  %v280 = vunpack.c.h.b16 %v102
  %v281 = vunpack.c.l.b16 %v103
  %v282 = vunpack.c.h.b16 %v103
  %v283 = vpack.c.b16 %v205, %v203
  %v284 = vpack.c.b16 %v206, %v204
  %v285 = vpack.c.b16 %v209, %v207
  %v286 = vpack.c.b16 %v210, %v208
  %v287 = vpack.c.b16 %v213, %v211
  %v288 = vpack.c.b16 %v214, %v212
  %v289 = vpack.c.b16 %v217, %v215
  %v290 = vpack.c.b16 %v218, %v216
  %v291 = vpack.c.b16 %v221, %v219
  %v292 = vpack.c.b16 %v222, %v220
  %v293 = vpack.c.b16 %v225, %v223
  %v294 = vpack.c.b16 %v226, %v224
  %v295 = vpack.c.b16 %v229, %v227
  %v296 = vpack.c.b16 %v230, %v228
  %v297 = vpack.c.b16 %v233, %v231
  %v298 = vpack.c.b16 %v234, %v232
  %v299 = vpack.c.b16 %v237, %v235
  %v300 = vpack.c.b16 %v238, %v236
  %v301 = vpack.c.b16 %v241, %v239
  %v302 = vpack.c.b16 %v242, %v240
  %v303 = vpack.c.b16 %v245, %v243
  %v304 = vpack.c.b16 %v246, %v244
  %v305 = vpack.c.b16 %v249, %v247
  %v306 = vpack.c.b16 %v250, %v248
  %v307 = vpack.c.b16 %v253, %v251
  %v308 = vpack.c.b16 %v254, %v252
  %v309 = vpack.c.b16 %v257, %v255
  %v310 = vpack.c.b16 %v258, %v256
  %v311 = vpack.c.b16 %v261, %v259
  %v312 = vpack.c.b16 %v262, %v260
  %v313 = vpack.c.b16 %v265, %v263
  %v314 = vpack.c.b16 %v266, %v264
  %v315 = vpack.c.b16 %v269, %v267
  %v316 = vpack.c.b16 %v270, %v268
  %v317 = vpack.c.b16 %v273, %v271
  %v318 = vpack.c.b16 %v274, %v272
  %v319 = vpack.c.b16 %v277, %v275
  %v320 = vpack.c.b16 %v278, %v276
  %v321 = vpack.c.b16 %v281, %v279
  %v322 = vpack.c.b16 %v282, %v280
  %vm363 = vcmask 523264
  %v365 = vsel %vm363, %v162, 0
  %367 = vmatprep.subr.bf16.mxu0 %v298
  %368 = vmatpush1.bf16.msra.mxu0 %v297
  %369 = vmatprep.subr.bf16.mxu0 %v296
  %370 = vmatpush1.bf16.msra.mxu0 %v295
  %371 = vmatprep.subr.bf16.mxu0 %v294
  %372 = vmatpush1.bf16.msra.mxu0 %v293
  %373 = vmatprep.subr.bf16.mxu0 %v292
  %374 = vmatpush1.bf16.msra.mxu0 %v291
  %375 = vmatprep.subr.bf16.mxu0 %v290
  %376 = vmatpush1.bf16.msra.mxu0 %v289
  %377 = vmatprep.subr.bf16.mxu0 %v288
  %378 = vmatpush1.bf16.msra.mxu0 %v287
  %379 = vmatprep.subr.bf16.mxu0 %v286
  %380 = vmatpush1.bf16.msra.mxu0 %v285
  %381 = vmatprep.subr.bf16.mxu0 %v284
  %382 = vmatpush1.bf16.msra.mxu0 %v283
  %383 = vmatprep.subr.bf16.mxu0 %v314
  %384 = vmatpush2.bf16.msra.mxu0 %v313
  %385 = vmatprep.subr.bf16.mxu0 %v312
  %386 = vmatpush2.bf16.msra.mxu0 %v311
  %387 = vmatprep.subr.bf16.mxu0 %v310
  %388 = vmatpush2.bf16.msra.mxu0 %v309
  %389 = vmatprep.subr.bf16.mxu0 %v308
  %390 = vmatpush2.bf16.msra.mxu0 %v307
  %391 = vmatprep.subr.bf16.mxu0 %v306
  %392 = vmatpush2.bf16.msra.mxu0 %v305
  %393 = vmatprep.subr.bf16.mxu0 %v304
  %394 = vmatpush2.bf16.msra.mxu0 %v303
  %395 = vmatprep.subr.bf16.mxu0 %v302
  %396 = vmatpush2.bf16.msra.mxu0 %v301
  %397 = vmatprep.subr.bf16.mxu0 %v300
  %398 = vmatpush2.bf16.msra.mxu0 %v299
  %399 = vmatprep.mubr.bf16.mxu0 %v161
  %400 = vmatmul.mubr.bf16.gmra.mxu0 %v160
  %v401 = vpop.f32.mrf.mxu0
  %v402 = vadd.f32 0.0, %v401
  %v403 = vpop.f32.mrf.mxu0
  %v404 = vadd.f32 0.0, %v403
  %v405 = vpop.f32.mrf.mxu0
  %v406 = vadd.f32 0.0, %v405
  %v407 = vpop.f32.mrf.mxu0
  %v408 = vadd.f32 0.0, %v407
  %409 = vdwg.mxu0
  %410 = vmatprep.subr.bf16.mxu0 0
  %411 = vmatpush1.bf16.msra.mxu0 0
  %412 = vmatprep.subr.bf16.mxu0 0
  %413 = vmatpush1.bf16.msra.mxu0 0
  %414 = vmatprep.subr.bf16.mxu0 0
  %415 = vmatpush1.bf16.msra.mxu0 0
  %416 = vmatprep.subr.bf16.mxu0 0
  %417 = vmatpush1.bf16.msra.mxu0 0
  %418 = vmatprep.subr.bf16.mxu0 %v322
  %419 = vmatpush1.bf16.msra.mxu0 %v321
  %420 = vmatprep.subr.bf16.mxu0 %v320
  %421 = vmatpush1.bf16.msra.mxu0 %v319
  %422 = vmatprep.subr.bf16.mxu0 %v318
  %423 = vmatpush1.bf16.msra.mxu0 %v317
  %424 = vmatprep.subr.bf16.mxu0 %v316
  %425 = vmatpush1.bf16.msra.mxu0 %v315
  %426 = vmatprep.subr.bf16.mxu0 0
  %427 = vmatpush2.bf16.msra.mxu0 0
  %428 = vmatprep.subr.bf16.mxu0 0
  %429 = vmatpush2.bf16.msra.mxu0 0
  %430 = vmatprep.subr.bf16.mxu0 0
  %431 = vmatpush2.bf16.msra.mxu0 0
  %432 = vmatprep.subr.bf16.mxu0 0
  %433 = vmatpush2.bf16.msra.mxu0 0
  %434 = vmatprep.subr.bf16.mxu0 0
  %435 = vmatpush2.bf16.msra.mxu0 0
  %436 = vmatprep.subr.bf16.mxu0 0
  %437 = vmatpush2.bf16.msra.mxu0 0
  %438 = vmatprep.subr.bf16.mxu0 0
  %439 = vmatpush2.bf16.msra.mxu0 0
  %440 = vmatprep.subr.bf16.mxu0 0
  %441 = vmatpush2.bf16.msra.mxu0 0
  %442 = vmatprep.mubr.bf16.mxu0 0
  %443 = vmatmul.mubr.bf16.gmra.mxu0 %v365
  %v444 = vpop.f32.mrf.mxu0
  %v445 = vadd.f32 %v402, %v444
  %v446 = vpop.f32.mrf.mxu0
  %v447 = vadd.f32 %v404, %v446
  %v448 = vpop.f32.mrf.mxu0
  %v449 = vadd.f32 %v406, %v448
  %v450 = vpop.f32.mrf.mxu0
  %v451 = vadd.f32 %v408, %v450
  %452 = vdwg.mxu0
  %v493 = vunpack.c.l.b16 %v24
  %v494 = vunpack.c.h.b16 %v24
  %v495 = vunpack.c.l.b16 %v25
  %v496 = vunpack.c.h.b16 %v25
  %v497 = vunpack.c.l.b16 %v26
  %v498 = vunpack.c.h.b16 %v26
  %v499 = vunpack.c.l.b16 %v27
  %v500 = vunpack.c.h.b16 %v27
  %v501 = vunpack.c.l.b16 %v28
  %v502 = vunpack.c.h.b16 %v28
  %v503 = vunpack.c.l.b16 %v29
  %v504 = vunpack.c.h.b16 %v29
  %v505 = vunpack.c.l.b16 %v30
  %v506 = vunpack.c.h.b16 %v30
  %v507 = vunpack.c.l.b16 %v31
  %v508 = vunpack.c.h.b16 %v31
  %v509 = vunpack.c.l.b16 %v32
  %v510 = vunpack.c.h.b16 %v32
  %v511 = vunpack.c.l.b16 %v33
  %v512 = vunpack.c.h.b16 %v33
  %v513 = vunpack.c.l.b16 %v34
  %v514 = vunpack.c.h.b16 %v34
  %v515 = vunpack.c.l.b16 %v35
  %v516 = vunpack.c.h.b16 %v35
  %v517 = vunpack.c.l.b16 %v36
  %v518 = vunpack.c.h.b16 %v36
  %v519 = vunpack.c.l.b16 %v37
  %v520 = vunpack.c.h.b16 %v37
  %v521 = vunpack.c.l.b16 %v38
  %v522 = vunpack.c.h.b16 %v38
  %v523 = vunpack.c.l.b16 %v39
  %v524 = vunpack.c.h.b16 %v39
  %v525 = vunpack.c.l.b16 %v40
  %v526 = vunpack.c.h.b16 %v40
  %v527 = vunpack.c.l.b16 %v41
  %v528 = vunpack.c.h.b16 %v41
  %v529 = vunpack.c.l.b16 %v42
  %v530 = vunpack.c.h.b16 %v42
  %v531 = vunpack.c.l.b16 %v43
  %v532 = vunpack.c.h.b16 %v43
  %v533 = vunpack.c.l.b16 %v44
  %v534 = vunpack.c.h.b16 %v44
  %v535 = vunpack.c.l.b16 %v45
  %v536 = vunpack.c.h.b16 %v45
  %v537 = vunpack.c.l.b16 %v46
  %v538 = vunpack.c.h.b16 %v46
  %v539 = vunpack.c.l.b16 %v47
  %v540 = vunpack.c.h.b16 %v47
  %v541 = vunpack.c.l.b16 %v48
  %v542 = vunpack.c.h.b16 %v48
  %v543 = vunpack.c.l.b16 %v49
  %v544 = vunpack.c.h.b16 %v49
  %v545 = vunpack.c.l.b16 %v50
  %v546 = vunpack.c.h.b16 %v50
  %v547 = vunpack.c.l.b16 %v51
  %v548 = vunpack.c.h.b16 %v51
  %v549 = vunpack.c.l.b16 %v52
  %v550 = vunpack.c.h.b16 %v52
  %v551 = vunpack.c.l.b16 %v53
  %v552 = vunpack.c.h.b16 %v53
  %v553 = vunpack.c.l.b16 %v54
  %v554 = vunpack.c.h.b16 %v54
  %v555 = vunpack.c.l.b16 %v55
  %v556 = vunpack.c.h.b16 %v55
  %v557 = vunpack.c.l.b16 %v56
  %v558 = vunpack.c.h.b16 %v56
  %v559 = vunpack.c.l.b16 %v57
  %v560 = vunpack.c.h.b16 %v57
  %v561 = vunpack.c.l.b16 %v58
  %v562 = vunpack.c.h.b16 %v58
  %v563 = vunpack.c.l.b16 %v59
  %v564 = vunpack.c.h.b16 %v59
  %v565 = vunpack.c.l.b16 %v60
  %v566 = vunpack.c.h.b16 %v60
  %v567 = vunpack.c.l.b16 %v61
  %v568 = vunpack.c.h.b16 %v61
  %v569 = vunpack.c.l.b16 %v62
  %v570 = vunpack.c.h.b16 %v62
  %v571 = vunpack.c.l.b16 %v63
  %v572 = vunpack.c.h.b16 %v63
  %v573 = vpack.c.b16 %v495, %v493
  %v574 = vpack.c.b16 %v496, %v494
  %v575 = vpack.c.b16 %v499, %v497
  %v576 = vpack.c.b16 %v500, %v498
  %v577 = vpack.c.b16 %v503, %v501
  %v578 = vpack.c.b16 %v504, %v502
  %v579 = vpack.c.b16 %v507, %v505
  %v580 = vpack.c.b16 %v508, %v506
  %v581 = vpack.c.b16 %v511, %v509
  %v582 = vpack.c.b16 %v512, %v510
  %v583 = vpack.c.b16 %v515, %v513
  %v584 = vpack.c.b16 %v516, %v514
  %v585 = vpack.c.b16 %v519, %v517
  %v586 = vpack.c.b16 %v520, %v518
  %v587 = vpack.c.b16 %v523, %v521
  %v588 = vpack.c.b16 %v524, %v522
  %v589 = vpack.c.b16 %v527, %v525
  %v590 = vpack.c.b16 %v528, %v526
  %v591 = vpack.c.b16 %v531, %v529
  %v592 = vpack.c.b16 %v532, %v530
  %v593 = vpack.c.b16 %v535, %v533
  %v594 = vpack.c.b16 %v536, %v534
  %v595 = vpack.c.b16 %v539, %v537
  %v596 = vpack.c.b16 %v540, %v538
  %v597 = vpack.c.b16 %v543, %v541
  %v598 = vpack.c.b16 %v544, %v542
  %v599 = vpack.c.b16 %v547, %v545
  %v600 = vpack.c.b16 %v548, %v546
  %v601 = vpack.c.b16 %v551, %v549
  %v602 = vpack.c.b16 %v552, %v550
  %v603 = vpack.c.b16 %v555, %v553
  %v604 = vpack.c.b16 %v556, %v554
  %v605 = vpack.c.b16 %v559, %v557
  %v606 = vpack.c.b16 %v560, %v558
  %v607 = vpack.c.b16 %v563, %v561
  %v608 = vpack.c.b16 %v564, %v562
  %v609 = vpack.c.b16 %v567, %v565
  %v610 = vpack.c.b16 %v568, %v566
  %v611 = vpack.c.b16 %v571, %v569
  %v612 = vpack.c.b16 %v572, %v570
  %v654 = vsel %vm363, %v159, 0
  %656 = vmatprep.subr.bf16.mxu0 %v588
  %657 = vmatpush1.bf16.msra.mxu0 %v587
  %658 = vmatprep.subr.bf16.mxu0 %v586
  %659 = vmatpush1.bf16.msra.mxu0 %v585
  %660 = vmatprep.subr.bf16.mxu0 %v584
  %661 = vmatpush1.bf16.msra.mxu0 %v583
  %662 = vmatprep.subr.bf16.mxu0 %v582
  %663 = vmatpush1.bf16.msra.mxu0 %v581
  %664 = vmatprep.subr.bf16.mxu0 %v580
  %665 = vmatpush1.bf16.msra.mxu0 %v579
  %666 = vmatprep.subr.bf16.mxu0 %v578
  %667 = vmatpush1.bf16.msra.mxu0 %v577
  %668 = vmatprep.subr.bf16.mxu0 %v576
  %669 = vmatpush1.bf16.msra.mxu0 %v575
  %670 = vmatprep.subr.bf16.mxu0 %v574
  %671 = vmatpush1.bf16.msra.mxu0 %v573
  %672 = vmatprep.subr.bf16.mxu0 %v604
  %673 = vmatpush2.bf16.msra.mxu0 %v603
  %674 = vmatprep.subr.bf16.mxu0 %v602
  %675 = vmatpush2.bf16.msra.mxu0 %v601
  %676 = vmatprep.subr.bf16.mxu0 %v600
  %677 = vmatpush2.bf16.msra.mxu0 %v599
  %678 = vmatprep.subr.bf16.mxu0 %v598
  %679 = vmatpush2.bf16.msra.mxu0 %v597
  %680 = vmatprep.subr.bf16.mxu0 %v596
  %681 = vmatpush2.bf16.msra.mxu0 %v595
  %682 = vmatprep.subr.bf16.mxu0 %v594
  %683 = vmatpush2.bf16.msra.mxu0 %v593
  %684 = vmatprep.subr.bf16.mxu0 %v592
  %685 = vmatpush2.bf16.msra.mxu0 %v591
  %686 = vmatprep.subr.bf16.mxu0 %v590
  %687 = vmatpush2.bf16.msra.mxu0 %v589
  %688 = vmatprep.mubr.bf16.mxu0 %v158
  %689 = vmatmul.mubr.bf16.gmra.mxu0 %v157
  %v690 = vpop.f32.mrf.mxu0
  %v691 = vadd.f32 %v445, %v690
  %v692 = vpop.f32.mrf.mxu0
  %v693 = vadd.f32 %v447, %v692
  %v694 = vpop.f32.mrf.mxu0
  %v695 = vadd.f32 %v449, %v694
  %v696 = vpop.f32.mrf.mxu0
  %v697 = vadd.f32 %v451, %v696
  %698 = vdwg.mxu0
  %699 = vmatprep.subr.bf16.mxu0 0
  %700 = vmatpush1.bf16.msra.mxu0 0
  %701 = vmatprep.subr.bf16.mxu0 0
  %702 = vmatpush1.bf16.msra.mxu0 0
  %703 = vmatprep.subr.bf16.mxu0 0
  %704 = vmatpush1.bf16.msra.mxu0 0
  %705 = vmatprep.subr.bf16.mxu0 0
  %706 = vmatpush1.bf16.msra.mxu0 0
  %707 = vmatprep.subr.bf16.mxu0 %v612
  %708 = vmatpush1.bf16.msra.mxu0 %v611
  %709 = vmatprep.subr.bf16.mxu0 %v610
  %710 = vmatpush1.bf16.msra.mxu0 %v609
  %711 = vmatprep.subr.bf16.mxu0 %v608
  %712 = vmatpush1.bf16.msra.mxu0 %v607
  %713 = vmatprep.subr.bf16.mxu0 %v606
  %714 = vmatpush1.bf16.msra.mxu0 %v605
  %715 = vmatprep.subr.bf16.mxu0 0
  %716 = vmatpush2.bf16.msra.mxu0 0
  %717 = vmatprep.subr.bf16.mxu0 0
  %718 = vmatpush2.bf16.msra.mxu0 0
  %719 = vmatprep.subr.bf16.mxu0 0
  %720 = vmatpush2.bf16.msra.mxu0 0
  %721 = vmatprep.subr.bf16.mxu0 0
  %722 = vmatpush2.bf16.msra.mxu0 0
  %723 = vmatprep.subr.bf16.mxu0 0
  %724 = vmatpush2.bf16.msra.mxu0 0
  %725 = vmatprep.subr.bf16.mxu0 0
  %726 = vmatpush2.bf16.msra.mxu0 0
  %727 = vmatprep.subr.bf16.mxu0 0
  %728 = vmatpush2.bf16.msra.mxu0 0
  %729 = vmatprep.subr.bf16.mxu0 0
  %730 = vmatpush2.bf16.msra.mxu0 0
  %731 = vmatprep.mubr.bf16.mxu0 0
  %732 = vmatmul.mubr.bf16.gmra.mxu0 %v654
  %v733 = vpop.f32.mrf.mxu0
  %v734 = vadd.f32 %v691, %v733
  %v735 = vpop.f32.mrf.mxu0
  %v736 = vadd.f32 %v693, %v735
  %v737 = vpop.f32.mrf.mxu0
  %v738 = vadd.f32 %v695, %v737
  %v739 = vpop.f32.mrf.mxu0
  %v740 = vadd.f32 %v697, %v739
  %741 = vdwg.mxu0
  %v743 = vshrl.u32 %v157, 16
  %v745 = vshll.u32 %v157, 16
  %v747 = vrot.slane %v745, 1
  %v748 = vor.u32 %v743, %v747
  %v750 = vshrl.u32 %v158, 16
  %v752 = vshll.u32 %v158, 16
  %v754 = vrot.slane %v752, 1
  %v755 = vor.u32 %v750, %v754
  %v756 = vshrl.u32 %v159, 16
  %v758 = vshll.u32 %v159, 16
  %v760 = vrot.slane %v758, 1
  %v761 = vor.u32 %v756, %v760
  %v804 = vunpack.c.l.b16 %v104
  %v805 = vunpack.c.h.b16 %v104
  %v806 = vunpack.c.l.b16 %v105
  %v807 = vunpack.c.h.b16 %v105
  %v808 = vunpack.c.l.b16 %v106
  %v809 = vunpack.c.h.b16 %v106
  %v810 = vunpack.c.l.b16 %v107
  %v811 = vunpack.c.h.b16 %v107
  %v812 = vunpack.c.l.b16 %v108
  %v813 = vunpack.c.h.b16 %v108
  %v814 = vunpack.c.l.b16 %v109
  %v815 = vunpack.c.h.b16 %v109
  %v816 = vunpack.c.l.b16 %v110
  %v817 = vunpack.c.h.b16 %v110
  %v818 = vunpack.c.l.b16 %v111
  %v819 = vunpack.c.h.b16 %v111
  %v820 = vunpack.c.l.b16 %v112
  %v821 = vunpack.c.h.b16 %v112
  %v822 = vunpack.c.l.b16 %v113
  %v823 = vunpack.c.h.b16 %v113
  %v824 = vunpack.c.l.b16 %v114
  %v825 = vunpack.c.h.b16 %v114
  %v826 = vunpack.c.l.b16 %v115
  %v827 = vunpack.c.h.b16 %v115
  %v828 = vunpack.c.l.b16 %v116
  %v829 = vunpack.c.h.b16 %v116
  %v830 = vunpack.c.l.b16 %v117
  %v831 = vunpack.c.h.b16 %v117
  %v832 = vunpack.c.l.b16 %v118
  %v833 = vunpack.c.h.b16 %v118
  %v834 = vunpack.c.l.b16 %v119
  %v835 = vunpack.c.h.b16 %v119
  %v836 = vunpack.c.l.b16 %v120
  %v837 = vunpack.c.h.b16 %v120
  %v838 = vunpack.c.l.b16 %v121
  %v839 = vunpack.c.h.b16 %v121
  %v840 = vunpack.c.l.b16 %v122
  %v841 = vunpack.c.h.b16 %v122
  %v842 = vunpack.c.l.b16 %v123
  %v843 = vunpack.c.h.b16 %v123
  %v844 = vunpack.c.l.b16 %v124
  %v845 = vunpack.c.h.b16 %v124
  %v846 = vunpack.c.l.b16 %v125
  %v847 = vunpack.c.h.b16 %v125
  %v848 = vunpack.c.l.b16 %v126
  %v849 = vunpack.c.h.b16 %v126
  %v850 = vunpack.c.l.b16 %v127
  %v851 = vunpack.c.h.b16 %v127
  %v852 = vunpack.c.l.b16 %v128
  %v853 = vunpack.c.h.b16 %v128
  %v854 = vunpack.c.l.b16 %v129
  %v855 = vunpack.c.h.b16 %v129
  %v856 = vunpack.c.l.b16 %v130
  %v857 = vunpack.c.h.b16 %v130
  %v858 = vunpack.c.l.b16 %v131
  %v859 = vunpack.c.h.b16 %v131
  %v860 = vunpack.c.l.b16 %v132
  %v861 = vunpack.c.h.b16 %v132
  %v862 = vunpack.c.l.b16 %v133
  %v863 = vunpack.c.h.b16 %v133
  %v864 = vunpack.c.l.b16 %v134
  %v865 = vunpack.c.h.b16 %v134
  %v866 = vunpack.c.l.b16 %v135
  %v867 = vunpack.c.h.b16 %v135
  %v868 = vunpack.c.l.b16 %v136
  %v869 = vunpack.c.h.b16 %v136
  %v870 = vunpack.c.l.b16 %v137
  %v871 = vunpack.c.h.b16 %v137
  %v872 = vunpack.c.l.b16 %v138
  %v873 = vunpack.c.h.b16 %v138
  %v874 = vunpack.c.l.b16 %v139
  %v875 = vunpack.c.h.b16 %v139
  %v876 = vunpack.c.l.b16 %v140
  %v877 = vunpack.c.h.b16 %v140
  %v878 = vunpack.c.l.b16 %v141
  %v879 = vunpack.c.h.b16 %v141
  %v880 = vunpack.c.l.b16 %v142
  %v881 = vunpack.c.h.b16 %v142
  %v882 = vunpack.c.l.b16 %v143
  %v883 = vunpack.c.h.b16 %v143
  %v884 = vpack.c.b16 %v806, %v804
  %v885 = vpack.c.b16 %v807, %v805
  %v886 = vpack.c.b16 %v810, %v808
  %v887 = vpack.c.b16 %v811, %v809
  %v888 = vpack.c.b16 %v814, %v812
  %v889 = vpack.c.b16 %v815, %v813
  %v890 = vpack.c.b16 %v818, %v816
  %v891 = vpack.c.b16 %v819, %v817
  %v892 = vpack.c.b16 %v822, %v820
  %v893 = vpack.c.b16 %v823, %v821
  %v894 = vpack.c.b16 %v826, %v824
  %v895 = vpack.c.b16 %v827, %v825
  %v896 = vpack.c.b16 %v830, %v828
  %v897 = vpack.c.b16 %v831, %v829
  %v898 = vpack.c.b16 %v834, %v832
  %v899 = vpack.c.b16 %v835, %v833
  %v900 = vpack.c.b16 %v838, %v836
  %v901 = vpack.c.b16 %v839, %v837
  %v902 = vpack.c.b16 %v842, %v840
  %v903 = vpack.c.b16 %v843, %v841
  %v904 = vpack.c.b16 %v846, %v844
  %v905 = vpack.c.b16 %v847, %v845
  %v906 = vpack.c.b16 %v850, %v848
  %v907 = vpack.c.b16 %v851, %v849
  %v908 = vpack.c.b16 %v854, %v852
  %v909 = vpack.c.b16 %v855, %v853
  %v910 = vpack.c.b16 %v858, %v856
  %v911 = vpack.c.b16 %v859, %v857
  %v912 = vpack.c.b16 %v862, %v860
  %v913 = vpack.c.b16 %v863, %v861
  %v914 = vpack.c.b16 %v866, %v864
  %v915 = vpack.c.b16 %v867, %v865
  %v916 = vpack.c.b16 %v870, %v868
  %v917 = vpack.c.b16 %v871, %v869
  %v918 = vpack.c.b16 %v874, %v872
  %v919 = vpack.c.b16 %v875, %v873
  %v920 = vpack.c.b16 %v878, %v876
  %v921 = vpack.c.b16 %v879, %v877
  %v922 = vpack.c.b16 %v882, %v880
  %v923 = vpack.c.b16 %v883, %v881
  %v965 = vsel %vm363, %v761, 0
  %967 = vmatprep.subr.bf16.mxu0 %v899
  %968 = vmatpush1.bf16.msra.mxu0 %v898
  %969 = vmatprep.subr.bf16.mxu0 %v897
  %970 = vmatpush1.bf16.msra.mxu0 %v896
  %971 = vmatprep.subr.bf16.mxu0 %v895
  %972 = vmatpush1.bf16.msra.mxu0 %v894
  %973 = vmatprep.subr.bf16.mxu0 %v893
  %974 = vmatpush1.bf16.msra.mxu0 %v892
  %975 = vmatprep.subr.bf16.mxu0 %v891
  %976 = vmatpush1.bf16.msra.mxu0 %v890
  %977 = vmatprep.subr.bf16.mxu0 %v889
  %978 = vmatpush1.bf16.msra.mxu0 %v888
  %979 = vmatprep.subr.bf16.mxu0 %v887
  %980 = vmatpush1.bf16.msra.mxu0 %v886
  %981 = vmatprep.subr.bf16.mxu0 %v885
  %982 = vmatpush1.bf16.msra.mxu0 %v884
  %983 = vmatprep.subr.bf16.mxu0 %v915
  %984 = vmatpush2.bf16.msra.mxu0 %v914
  %985 = vmatprep.subr.bf16.mxu0 %v913
  %986 = vmatpush2.bf16.msra.mxu0 %v912
  %987 = vmatprep.subr.bf16.mxu0 %v911
  %988 = vmatpush2.bf16.msra.mxu0 %v910
  %989 = vmatprep.subr.bf16.mxu0 %v909
  %990 = vmatpush2.bf16.msra.mxu0 %v908
  %991 = vmatprep.subr.bf16.mxu0 %v907
  %992 = vmatpush2.bf16.msra.mxu0 %v906
  %993 = vmatprep.subr.bf16.mxu0 %v905
  %994 = vmatpush2.bf16.msra.mxu0 %v904
  %995 = vmatprep.subr.bf16.mxu0 %v903
  %996 = vmatpush2.bf16.msra.mxu0 %v902
  %997 = vmatprep.subr.bf16.mxu0 %v901
  %998 = vmatpush2.bf16.msra.mxu0 %v900
  %999 = vmatprep.mubr.bf16.mxu0 %v755
  %1000 = vmatmul.mubr.bf16.gmra.mxu0 %v748
  %v1001 = vpop.f32.mrf.mxu0
  %v1002 = vadd.f32 0.0, %v1001
  %v1003 = vpop.f32.mrf.mxu0
  %v1004 = vadd.f32 0.0, %v1003
  %v1005 = vpop.f32.mrf.mxu0
  %v1006 = vadd.f32 0.0, %v1005
  %v1007 = vpop.f32.mrf.mxu0
  %v1008 = vadd.f32 0.0, %v1007
  %1009 = vdwg.mxu0
  %1010 = vmatprep.subr.bf16.mxu0 0
  %1011 = vmatpush1.bf16.msra.mxu0 0
  %1012 = vmatprep.subr.bf16.mxu0 0
  %1013 = vmatpush1.bf16.msra.mxu0 0
  %1014 = vmatprep.subr.bf16.mxu0 0
  %1015 = vmatpush1.bf16.msra.mxu0 0
  %1016 = vmatprep.subr.bf16.mxu0 0
  %1017 = vmatpush1.bf16.msra.mxu0 0
  %1018 = vmatprep.subr.bf16.mxu0 %v923
  %1019 = vmatpush1.bf16.msra.mxu0 %v922
  %1020 = vmatprep.subr.bf16.mxu0 %v921
  %1021 = vmatpush1.bf16.msra.mxu0 %v920
  %1022 = vmatprep.subr.bf16.mxu0 %v919
  %1023 = vmatpush1.bf16.msra.mxu0 %v918
  %1024 = vmatprep.subr.bf16.mxu0 %v917
  %1025 = vmatpush1.bf16.msra.mxu0 %v916
  %1026 = vmatprep.subr.bf16.mxu0 0
  %1027 = vmatpush2.bf16.msra.mxu0 0
  %1028 = vmatprep.subr.bf16.mxu0 0
  %1029 = vmatpush2.bf16.msra.mxu0 0
  %1030 = vmatprep.subr.bf16.mxu0 0
  %1031 = vmatpush2.bf16.msra.mxu0 0
  %1032 = vmatprep.subr.bf16.mxu0 0
  %1033 = vmatpush2.bf16.msra.mxu0 0
  %1034 = vmatprep.subr.bf16.mxu0 0
  %1035 = vmatpush2.bf16.msra.mxu0 0
  %1036 = vmatprep.subr.bf16.mxu0 0
  %1037 = vmatpush2.bf16.msra.mxu0 0
  %1038 = vmatprep.subr.bf16.mxu0 0
  %1039 = vmatpush2.bf16.msra.mxu0 0
  %1040 = vmatprep.subr.bf16.mxu0 0
  %1041 = vmatpush2.bf16.msra.mxu0 0
  %1042 = vmatprep.mubr.bf16.mxu0 0
  %1043 = vmatmul.mubr.bf16.gmra.mxu0 %v965
  %v1044 = vpop.f32.mrf.mxu0
  %v1045 = vadd.f32 %v1002, %v1044
  %v1046 = vpop.f32.mrf.mxu0
  %v1047 = vadd.f32 %v1004, %v1046
  %v1048 = vpop.f32.mrf.mxu0
  %v1049 = vadd.f32 %v1006, %v1048
  %v1050 = vpop.f32.mrf.mxu0
  %v1051 = vadd.f32 %v1008, %v1050
  %1052 = vdwg.mxu0
  %v1053 = vadd.f32 %v734, %v1045
  %v1054 = vadd.f32 %v736, %v1047
  %v1055 = vadd.f32 %v738, %v1049
  %v1056 = vadd.f32 %v740, %v1051
  %v1058 = vlaneseq
  %v1059 = vshrl.u32 %v1058, 7
  %v1060 = vsub.s32 0, %v1059
  %v1061 = vrot.slane %v144, %v1060
  %v1062 = vlaneseq
  %v1063 = vshrl.u32 %v1062, 7
  %v1064 = vsub.s32 1, %v1063
  %v1065 = vrot.slane %v144, %v1064
  %v1068 = vadd.f32 %v1053, %v1061
  %v1069 = vadd.f32 %v1054, %v1065
  %v1070 = vadd.f32 %v1055, %v1061
  %v1071 = vadd.f32 %v1056, %v1065
  %v1072 = vmax.f32 %v1068, 0.0
  %v1073 = vmax.f32 %v1069, 0.0
  %v1074 = vmax.f32 %v1070, 0.0
  %v1075 = vmax.f32 %v1071, 0.0
  %1076 = vst [vmem:[%s6] sm:$0xff] %v1072
  %1077 = vst [vmem:[%s6 + $0x8] sm:$0xff] %v1073
  %1078 = vst [vmem:[%s6 + $0x10] sm:$0x1f] %v1074
  %1079 = vst [vmem:[%s6 + $0x18] sm:$0x1f] %v1075
  %s1080 = scalar_lea.vmem %s0, 48
  %v1081 = vld [vmem:[%s1080] sm:$0xff]
  %v1082 = vld [vmem:[%s1080 + $0x8] sm:$0xff]
  %v1083 = vld [vmem:[%s1080 + $0x10] sm:$0xff]
  %v1084 = vld [vmem:[%s1080 + $0x18] sm:$0x3f]
  %v1085 = vld [vmem:[%s1080 + $0x20] sm:$0x3f]
  %v1086 = vld [vmem:[%s1080 + $0x28] sm:$0x3f]
  %s1087 = scalar_lea.vmem %s1, 48
  %v1088 = vld [vmem:[%s1087] sm:$0xff]
  %v1089 = vld [vmem:[%s1087 + $0x8] sm:$0xff]
  %v1090 = vld [vmem:[%s1087 + $0x10] sm:$0xff]
  %v1091 = vld [vmem:[%s1087 + $0x18] sm:$0x1f]
  %v1092 = vld [vmem:[%s1087 + $0x20] sm:$0x1f]
  %v1093 = vld [vmem:[%s1087 + $0x28] sm:$0x1f]
  %v1094 = vpack.c.bf16 %v1084, %v1081
  %v1095 = vpack.c.bf16 %v1085, %v1082
  %v1096 = vpack.c.bf16 %v1086, %v1083
  %v1097 = vpack.c.bf16 %v1091, %v1088
  %v1098 = vpack.c.bf16 %v1092, %v1089
  %v1099 = vpack.c.bf16 %v1093, %v1090
  %v1101 = vsel %vm363, %v1099, 0
  %1103 = vmatprep.subr.bf16.mxu0 %v298
  %1104 = vmatpush1.bf16.msra.mxu0 %v297
  %1105 = vmatprep.subr.bf16.mxu0 %v296
  %1106 = vmatpush1.bf16.msra.mxu0 %v295
  %1107 = vmatprep.subr.bf16.mxu0 %v294
  %1108 = vmatpush1.bf16.msra.mxu0 %v293
  %1109 = vmatprep.subr.bf16.mxu0 %v292
  %1110 = vmatpush1.bf16.msra.mxu0 %v291
  %1111 = vmatprep.subr.bf16.mxu0 %v290
  %1112 = vmatpush1.bf16.msra.mxu0 %v289
  %1113 = vmatprep.subr.bf16.mxu0 %v288
  %1114 = vmatpush1.bf16.msra.mxu0 %v287
  %1115 = vmatprep.subr.bf16.mxu0 %v286
  %1116 = vmatpush1.bf16.msra.mxu0 %v285
  %1117 = vmatprep.subr.bf16.mxu0 %v284
  %1118 = vmatpush1.bf16.msra.mxu0 %v283
  %1119 = vmatprep.subr.bf16.mxu0 %v314
  %1120 = vmatpush2.bf16.msra.mxu0 %v313
  %1121 = vmatprep.subr.bf16.mxu0 %v312
  %1122 = vmatpush2.bf16.msra.mxu0 %v311
  %1123 = vmatprep.subr.bf16.mxu0 %v310
  %1124 = vmatpush2.bf16.msra.mxu0 %v309
  %1125 = vmatprep.subr.bf16.mxu0 %v308
  %1126 = vmatpush2.bf16.msra.mxu0 %v307
  %1127 = vmatprep.subr.bf16.mxu0 %v306
  %1128 = vmatpush2.bf16.msra.mxu0 %v305
  %1129 = vmatprep.subr.bf16.mxu0 %v304
  %1130 = vmatpush2.bf16.msra.mxu0 %v303
  %1131 = vmatprep.subr.bf16.mxu0 %v302
  %1132 = vmatpush2.bf16.msra.mxu0 %v301
  %1133 = vmatprep.subr.bf16.mxu0 %v300
  %1134 = vmatpush2.bf16.msra.mxu0 %v299
  %1135 = vmatprep.mubr.bf16.mxu0 %v1098
  %1136 = vmatmul.mubr.bf16.gmra.mxu0 %v1097
  %v1137 = vpop.f32.mrf.mxu0
  %v1138 = vadd.f32 0.0, %v1137
  %v1139 = vpop.f32.mrf.mxu0
  %v1140 = vadd.f32 0.0, %v1139
  %v1141 = vpop.f32.mrf.mxu0
  %v1142 = vadd.f32 0.0, %v1141
  %v1143 = vpop.f32.mrf.mxu0
  %v1144 = vadd.f32 0.0, %v1143
  %1145 = vdwg.mxu0
  %1146 = vmatprep.subr.bf16.mxu0 0
  %1147 = vmatpush1.bf16.msra.mxu0 0
  %1148 = vmatprep.subr.bf16.mxu0 0
  %1149 = vmatpush1.bf16.msra.mxu0 0
  %1150 = vmatprep.subr.bf16.mxu0 0
  %1151 = vmatpush1.bf16.msra.mxu0 0
  %1152 = vmatprep.subr.bf16.mxu0 0
  %1153 = vmatpush1.bf16.msra.mxu0 0
  %1154 = vmatprep.subr.bf16.mxu0 %v322
  %1155 = vmatpush1.bf16.msra.mxu0 %v321
  %1156 = vmatprep.subr.bf16.mxu0 %v320
  %1157 = vmatpush1.bf16.msra.mxu0 %v319
  %1158 = vmatprep.subr.bf16.mxu0 %v318
  %1159 = vmatpush1.bf16.msra.mxu0 %v317
  %1160 = vmatprep.subr.bf16.mxu0 %v316
  %1161 = vmatpush1.bf16.msra.mxu0 %v315
  %1162 = vmatprep.subr.bf16.mxu0 0
  %1163 = vmatpush2.bf16.msra.mxu0 0
  %1164 = vmatprep.subr.bf16.mxu0 0
  %1165 = vmatpush2.bf16.msra.mxu0 0
  %1166 = vmatprep.subr.bf16.mxu0 0
  %1167 = vmatpush2.bf16.msra.mxu0 0
  %1168 = vmatprep.subr.bf16.mxu0 0
  %1169 = vmatpush2.bf16.msra.mxu0 0
  %1170 = vmatprep.subr.bf16.mxu0 0
  %1171 = vmatpush2.bf16.msra.mxu0 0
  %1172 = vmatprep.subr.bf16.mxu0 0
  %1173 = vmatpush2.bf16.msra.mxu0 0
  %1174 = vmatprep.subr.bf16.mxu0 0
  %1175 = vmatpush2.bf16.msra.mxu0 0
  %1176 = vmatprep.subr.bf16.mxu0 0
  %1177 = vmatpush2.bf16.msra.mxu0 0
  %1178 = vmatprep.mubr.bf16.mxu0 0
  %1179 = vmatmul.mubr.bf16.gmra.mxu0 %v1101
  %v1180 = vpop.f32.mrf.mxu0
  %v1181 = vadd.f32 %v1138, %v1180
  %v1182 = vpop.f32.mrf.mxu0
  %v1183 = vadd.f32 %v1140, %v1182
  %v1184 = vpop.f32.mrf.mxu0
  %v1185 = vadd.f32 %v1142, %v1184
  %v1186 = vpop.f32.mrf.mxu0
  %v1187 = vadd.f32 %v1144, %v1186
  %1188 = vdwg.mxu0
  %v1190 = vsel %vm363, %v1096, 0
  %1192 = vmatprep.subr.bf16.mxu0 %v588
  %1193 = vmatpush1.bf16.msra.mxu0 %v587
  %1194 = vmatprep.subr.bf16.mxu0 %v586
  %1195 = vmatpush1.bf16.msra.mxu0 %v585
  %1196 = vmatprep.subr.bf16.mxu0 %v584
  %1197 = vmatpush1.bf16.msra.mxu0 %v583
  %1198 = vmatprep.subr.bf16.mxu0 %v582
  %1199 = vmatpush1.bf16.msra.mxu0 %v581
  %1200 = vmatprep.subr.bf16.mxu0 %v580
  %1201 = vmatpush1.bf16.msra.mxu0 %v579
  %1202 = vmatprep.subr.bf16.mxu0 %v578
  %1203 = vmatpush1.bf16.msra.mxu0 %v577
  %1204 = vmatprep.subr.bf16.mxu0 %v576
  %1205 = vmatpush1.bf16.msra.mxu0 %v575
  %1206 = vmatprep.subr.bf16.mxu0 %v574
  %1207 = vmatpush1.bf16.msra.mxu0 %v573
  %1208 = vmatprep.subr.bf16.mxu0 %v604
  %1209 = vmatpush2.bf16.msra.mxu0 %v603
  %1210 = vmatprep.subr.bf16.mxu0 %v602
  %1211 = vmatpush2.bf16.msra.mxu0 %v601
  %1212 = vmatprep.subr.bf16.mxu0 %v600
  %1213 = vmatpush2.bf16.msra.mxu0 %v599
  %1214 = vmatprep.subr.bf16.mxu0 %v598
  %1215 = vmatpush2.bf16.msra.mxu0 %v597
  %1216 = vmatprep.subr.bf16.mxu0 %v596
  %1217 = vmatpush2.bf16.msra.mxu0 %v595
  %1218 = vmatprep.subr.bf16.mxu0 %v594
  %1219 = vmatpush2.bf16.msra.mxu0 %v593
  %1220 = vmatprep.subr.bf16.mxu0 %v592
  %1221 = vmatpush2.bf16.msra.mxu0 %v591
  %1222 = vmatprep.subr.bf16.mxu0 %v590
  %1223 = vmatpush2.bf16.msra.mxu0 %v589
  %1224 = vmatprep.mubr.bf16.mxu0 %v1095
  %1225 = vmatmul.mubr.bf16.gmra.mxu0 %v1094
  %v1226 = vpop.f32.mrf.mxu0
  %v1227 = vadd.f32 %v1181, %v1226
  %v1228 = vpop.f32.mrf.mxu0
  %v1229 = vadd.f32 %v1183, %v1228
  %v1230 = vpop.f32.mrf.mxu0
  %v1231 = vadd.f32 %v1185, %v1230
  %v1232 = vpop.f32.mrf.mxu0
  %v1233 = vadd.f32 %v1187, %v1232
  %1234 = vdwg.mxu0
  %1235 = vmatprep.subr.bf16.mxu0 0
  %1236 = vmatpush1.bf16.msra.mxu0 0
  %1237 = vmatprep.subr.bf16.mxu0 0
  %1238 = vmatpush1.bf16.msra.mxu0 0
  %1239 = vmatprep.subr.bf16.mxu0 0
  %1240 = vmatpush1.bf16.msra.mxu0 0
  %1241 = vmatprep.subr.bf16.mxu0 0
  %1242 = vmatpush1.bf16.msra.mxu0 0
  %1243 = vmatprep.subr.bf16.mxu0 %v612
  %1244 = vmatpush1.bf16.msra.mxu0 %v611
  %1245 = vmatprep.subr.bf16.mxu0 %v610
  %1246 = vmatpush1.bf16.msra.mxu0 %v609
  %1247 = vmatprep.subr.bf16.mxu0 %v608
  %1248 = vmatpush1.bf16.msra.mxu0 %v607
  %1249 = vmatprep.subr.bf16.mxu0 %v606
  %1250 = vmatpush1.bf16.msra.mxu0 %v605
  %1251 = vmatprep.subr.bf16.mxu0 0
  %1252 = vmatpush2.bf16.msra.mxu0 0
  %1253 = vmatprep.subr.bf16.mxu0 0
  %1254 = vmatpush2.bf16.msra.mxu0 0
  %1255 = vmatprep.subr.bf16.mxu0 0
  %1256 = vmatpush2.bf16.msra.mxu0 0
  %1257 = vmatprep.subr.bf16.mxu0 0
  %1258 = vmatpush2.bf16.msra.mxu0 0
  %1259 = vmatprep.subr.bf16.mxu0 0
  %1260 = vmatpush2.bf16.msra.mxu0 0
  %1261 = vmatprep.subr.bf16.mxu0 0
  %1262 = vmatpush2.bf16.msra.mxu0 0
  %1263 = vmatprep.subr.bf16.mxu0 0
  %1264 = vmatpush2.bf16.msra.mxu0 0
  %1265 = vmatprep.subr.bf16.mxu0 0
  %1266 = vmatpush2.bf16.msra.mxu0 0
  %1267 = vmatprep.mubr.bf16.mxu0 0
  %1268 = vmatmul.mubr.bf16.gmra.mxu0 %v1190
  %v1269 = vpop.f32.mrf.mxu0
  %v1270 = vadd.f32 %v1227, %v1269
  %v1271 = vpop.f32.mrf.mxu0
  %v1272 = vadd.f32 %v1229, %v1271
  %v1273 = vpop.f32.mrf.mxu0
  %v1274 = vadd.f32 %v1231, %v1273
  %v1275 = vpop.f32.mrf.mxu0
  %v1276 = vadd.f32 %v1233, %v1275
  %1277 = vdwg.mxu0
  %v1279 = vshrl.u32 %v1094, 16
  %v1281 = vshll.u32 %v1094, 16
  %v1283 = vrot.slane %v1281, 1
  %v1284 = vor.u32 %v1279, %v1283
  %v1286 = vshrl.u32 %v1095, 16
  %v1288 = vshll.u32 %v1095, 16
  %v1290 = vrot.slane %v1288, 1
  %v1291 = vor.u32 %v1286, %v1290
  %v1292 = vshrl.u32 %v1096, 16
  %v1294 = vshll.u32 %v1096, 16
  %v1296 = vrot.slane %v1294, 1
  %v1297 = vor.u32 %v1292, %v1296
  %v1301 = vsel %vm363, %v1297, 0
  %1303 = vmatprep.subr.bf16.mxu0 %v899
  %1304 = vmatpush1.bf16.msra.mxu0 %v898
  %1305 = vmatprep.subr.bf16.mxu0 %v897
  %1306 = vmatpush1.bf16.msra.mxu0 %v896
  %1307 = vmatprep.subr.bf16.mxu0 %v895
  %1308 = vmatpush1.bf16.msra.mxu0 %v894
  %1309 = vmatprep.subr.bf16.mxu0 %v893
  %1310 = vmatpush1.bf16.msra.mxu0 %v892
  %1311 = vmatprep.subr.bf16.mxu0 %v891
  %1312 = vmatpush1.bf16.msra.mxu0 %v890
  %1313 = vmatprep.subr.bf16.mxu0 %v889
  %1314 = vmatpush1.bf16.msra.mxu0 %v888
  %1315 = vmatprep.subr.bf16.mxu0 %v887
  %1316 = vmatpush1.bf16.msra.mxu0 %v886
  %1317 = vmatprep.subr.bf16.mxu0 %v885
  %1318 = vmatpush1.bf16.msra.mxu0 %v884
  %1319 = vmatprep.subr.bf16.mxu0 %v915
  %1320 = vmatpush2.bf16.msra.mxu0 %v914
  %1321 = vmatprep.subr.bf16.mxu0 %v913
  %1322 = vmatpush2.bf16.msra.mxu0 %v912
  %1323 = vmatprep.subr.bf16.mxu0 %v911
  %1324 = vmatpush2.bf16.msra.mxu0 %v910
  %1325 = vmatprep.subr.bf16.mxu0 %v909
  %1326 = vmatpush2.bf16.msra.mxu0 %v908
  %1327 = vmatprep.subr.bf16.mxu0 %v907
  %1328 = vmatpush2.bf16.msra.mxu0 %v906
  %1329 = vmatprep.subr.bf16.mxu0 %v905
  %1330 = vmatpush2.bf16.msra.mxu0 %v904
  %1331 = vmatprep.subr.bf16.mxu0 %v903
  %1332 = vmatpush2.bf16.msra.mxu0 %v902
  %1333 = vmatprep.subr.bf16.mxu0 %v901
  %1334 = vmatpush2.bf16.msra.mxu0 %v900
  %1335 = vmatprep.mubr.bf16.mxu0 %v1291
  %1336 = vmatmul.mubr.bf16.gmra.mxu0 %v1284
  %v1337 = vpop.f32.mrf.mxu0
  %v1338 = vadd.f32 0.0, %v1337
  %v1339 = vpop.f32.mrf.mxu0
  %v1340 = vadd.f32 0.0, %v1339
  %v1341 = vpop.f32.mrf.mxu0
  %v1342 = vadd.f32 0.0, %v1341
  %v1343 = vpop.f32.mrf.mxu0
  %v1344 = vadd.f32 0.0, %v1343
  %1345 = vdwg.mxu0
  %1346 = vmatprep.subr.bf16.mxu0 0
  %1347 = vmatpush1.bf16.msra.mxu0 0
  %1348 = vmatprep.subr.bf16.mxu0 0
  %1349 = vmatpush1.bf16.msra.mxu0 0
  %1350 = vmatprep.subr.bf16.mxu0 0
  %1351 = vmatpush1.bf16.msra.mxu0 0
  %1352 = vmatprep.subr.bf16.mxu0 0
  %1353 = vmatpush1.bf16.msra.mxu0 0
  %1354 = vmatprep.subr.bf16.mxu0 %v923
  %1355 = vmatpush1.bf16.msra.mxu0 %v922
  %1356 = vmatprep.subr.bf16.mxu0 %v921
  %1357 = vmatpush1.bf16.msra.mxu0 %v920
  %1358 = vmatprep.subr.bf16.mxu0 %v919
  %1359 = vmatpush1.bf16.msra.mxu0 %v918
  %1360 = vmatprep.subr.bf16.mxu0 %v917
  %1361 = vmatpush1.bf16.msra.mxu0 %v916
  %1362 = vmatprep.subr.bf16.mxu0 0
  %1363 = vmatpush2.bf16.msra.mxu0 0
  %1364 = vmatprep.subr.bf16.mxu0 0
  %1365 = vmatpush2.bf16.msra.mxu0 0
  %1366 = vmatprep.subr.bf16.mxu0 0
  %1367 = vmatpush2.bf16.msra.mxu0 0
  %1368 = vmatprep.subr.bf16.mxu0 0
  %1369 = vmatpush2.bf16.msra.mxu0 0
  %1370 = vmatprep.subr.bf16.mxu0 0
  %1371 = vmatpush2.bf16.msra.mxu0 0
  %1372 = vmatprep.subr.bf16.mxu0 0
  %1373 = vmatpush2.bf16.msra.mxu0 0
  %1374 = vmatprep.subr.bf16.mxu0 0
  %1375 = vmatpush2.bf16.msra.mxu0 0
  %1376 = vmatprep.subr.bf16.mxu0 0
  %1377 = vmatpush2.bf16.msra.mxu0 0
  %1378 = vmatprep.mubr.bf16.mxu0 0
  %1379 = vmatmul.mubr.bf16.gmra.mxu0 %v1301
  %v1380 = vpop.f32.mrf.mxu0
  %v1381 = vadd.f32 %v1338, %v1380
  %v1382 = vpop.f32.mrf.mxu0
  %v1383 = vadd.f32 %v1340, %v1382
  %v1384 = vpop.f32.mrf.mxu0
  %v1385 = vadd.f32 %v1342, %v1384
  %v1386 = vpop.f32.mrf.mxu0
  %v1387 = vadd.f32 %v1344, %v1386
  %1388 = vdwg.mxu0
  %v1389 = vadd.f32 %v1270, %v1381
  %v1390 = vadd.f32 %v1272, %v1383
  %v1391 = vadd.f32 %v1274, %v1385
  %v1392 = vadd.f32 %v1276, %v1387
  %v1393 = vadd.f32 %v1389, %v1061
  %v1394 = vadd.f32 %v1390, %v1065
  %v1395 = vadd.f32 %v1391, %v1061
  %v1396 = vadd.f32 %v1392, %v1065
  %v1397 = vmax.f32 %v1393, 0.0
  %v1398 = vmax.f32 %v1394, 0.0
  %v1399 = vmax.f32 %v1395, 0.0
  %v1400 = vmax.f32 %v1396, 0.0
  %s1401 = scalar_lea.vmem %s6, 32
  %1402 = vst [vmem:[%s1401] sm:$0xff] %v1397
  %1403 = vst [vmem:[%s1401 + $0x8] sm:$0xff] %v1398
  %1404 = vst [vmem:[%s1401 + $0x10] sm:$0x1f] %v1399
  %1405 = vst [vmem:[%s1401 + $0x18] sm:$0x1f] %v1400
  // Predicated region
  $region26: #{rerank_forward.9} parent=0 // pred_check
    _
  $region27: #{rerank_forward.9} parent=0 // pred_check_branch
    %1407 = sbr.rel (0) target = $region29
  $region28: #{rerank_forward.9} parent=0 // pred_region
    _
  $region29: #{rerank_forward.9} parent=0 // pred_fallthru
    _
  // Predicated region
  $region30: #{rerank_forward.9} parent=0 // pred_check
    _
  $region31: #{rerank_forward.9} parent=0 // pred_check_branch
    %1409 = sbr.rel (0) target = $region33
  $region32: #{rerank_forward.9} parent=0 // pred_region
    _
  $region33: #{rerank_forward.9} parent=0 // pred_fallthru
    _

// kernel: rerank_forward.10
$region0: #{rerank_forward.10}
  #allocation0 [shape = 'u32[]', space=smem, size = 0x4, offset = 0x4, fixed_abs, tag = 'smem constant byte address 0x4 - core index']
  #allocation1 [shape = 'u32[144,128]{1,0:T(1,128)}', space=vmem, size = 0x12000, scoped, tag = 'internal scratch']
  %s0 = inlined_call_operand.vmem [shape: f32[2,8,512], index: 0, kind: input, shape index: {}]
  %s1 = inlined_call_operand.vmem [shape: f32[2,7,512], index: 1, kind: input, shape index: {}]
  %s2 = inlined_call_operand.vmem [shape: bf16[512,128], index: 2, kind: input, shape index: {}]
  %s3 = inlined_call_operand.vmem [shape: bf16[512,128], index: 3, kind: input, shape index: {}]
  %s4 = inlined_call_operand.vmem [shape: bf16[512,128], index: 4, kind: input, shape index: {}]
  %s5 = inlined_call_operand.vmem [shape: f32[1,128], index: 5, kind: input, shape index: {}]
  %s6 = inlined_call_operand.vmem [shape: f32[2,7,128], index: 6, kind: output, shape index: {}]
  %s7 = sld [smem:[#allocation0]]
  $region34: #{rerank_forward.10} parent=0
    _
  %s9 = ssub.s32 1, %s7
  %s10 = scalar_select 0, %s9, %s7
  // Predicated region
  $region2: #{rerank_forward.10} parent=0 // pred_check
    _
  $region3: #{rerank_forward.10} parent=0 // pred_check_branch
    %12 = sbr.rel (0) target = $region5
  $region4: #{rerank_forward.10} parent=0 // pred_region
    _
  $region5: #{rerank_forward.10} parent=0 // pred_fallthru
    _
  // Predicated region
  $region6: #{rerank_forward.10} parent=0 // pred_check
    _
  $region7: #{rerank_forward.10} parent=0 // pred_check_branch
    %14 = sbr.rel (0) target = $region9
  $region8: #{rerank_forward.10} parent=0 // pred_region
    _
  $region9: #{rerank_forward.10} parent=0 // pred_fallthru
    _
  // Predicated region
  $region10: #{rerank_forward.10} parent=0 // pred_check
    _
  $region11: #{rerank_forward.10} parent=0 // pred_check_branch
    %16 = sbr.rel (0) target = $region13
  $region12: #{rerank_forward.10} parent=0 // pred_region
    _
  $region13: #{rerank_forward.10} parent=0 // pred_fallthru
    _
  // Predicated region
  $region14: #{rerank_forward.10} parent=0 // pred_check
    _
  $region15: #{rerank_forward.10} parent=0 // pred_check_branch
    %18 = sbr.rel (0) target = $region17
  $region16: #{rerank_forward.10} parent=0 // pred_region
    _
  $region17: #{rerank_forward.10} parent=0 // pred_fallthru
    _
  // Predicated region
  $region18: #{rerank_forward.10} parent=0 // pred_check
    _
  $region19: #{rerank_forward.10} parent=0 // pred_check_branch
    %20 = sbr.rel (0) target = $region21
  $region20: #{rerank_forward.10} parent=0 // pred_region
    _
  $region21: #{rerank_forward.10} parent=0 // pred_fallthru
    _
  // Predicated region
  $region22: #{rerank_forward.10} parent=0 // pred_check
    _
  $region23: #{rerank_forward.10} parent=0 // pred_check_branch
    %22 = sbr.rel (0) target = $region25
  $region24: #{rerank_forward.10} parent=0 // pred_region
    _
  $region25: #{rerank_forward.10} parent=0 // pred_fallthru
    _
  %v24 = vld [vmem:[%s2] sm:$0xf]
  %v25 = vld [vmem:[%s2 + $0x4] sm:$0xf]
  %v26 = vld [vmem:[%s2 + $0x8] sm:$0xf]
  %v27 = vld [vmem:[%s2 + $0xc] sm:$0xf]
  %v28 = vld [vmem:[%s2 + $0x10] sm:$0xf]
  %v29 = vld [vmem:[%s2 + $0x14] sm:$0xf]
  %v30 = vld [vmem:[%s2 + $0x18] sm:$0xf]
  %v31 = vld [vmem:[%s2 + $0x1c] sm:$0xf]
  %v32 = vld [vmem:[%s2 + $0x20] sm:$0xf]
  %v33 = vld [vmem:[%s2 + $0x24] sm:$0xf]
  %v34 = vld [vmem:[%s2 + $0x28] sm:$0xf]
  %v35 = vld [vmem:[%s2 + $0x2c] sm:$0xf]
  %v36 = vld [vmem:[%s2 + $0x30] sm:$0xf]
  %v37 = vld [vmem:[%s2 + $0x34] sm:$0xf]
  %v38 = vld [vmem:[%s2 + $0x38] sm:$0xf]
  %v39 = vld [vmem:[%s2 + $0x3c] sm:$0xf]
  %v40 = vld [vmem:[%s2 + $0x40] sm:$0xf]
  %v41 = vld [vmem:[%s2 + $0x44] sm:$0xf]
  %v42 = vld [vmem:[%s2 + $0x48] sm:$0xf]
  %v43 = vld [vmem:[%s2 + $0x4c] sm:$0xf]
  %v44 = vld [vmem:[%s2 + $0x50] sm:$0xf]
  %v45 = vld [vmem:[%s2 + $0x54] sm:$0xf]
  %v46 = vld [vmem:[%s2 + $0x58] sm:$0xf]
  %v47 = vld [vmem:[%s2 + $0x5c] sm:$0xf]
  %v48 = vld [vmem:[%s2 + $0x60] sm:$0xf]
  %v49 = vld [vmem:[%s2 + $0x64] sm:$0xf]
  %v50 = vld [vmem:[%s2 + $0x68] sm:$0xf]
  %v51 = vld [vmem:[%s2 + $0x6c] sm:$0xf]
  %v52 = vld [vmem:[%s2 + $0x70] sm:$0xf]
  %v53 = vld [vmem:[%s2 + $0x74] sm:$0xf]
  %v54 = vld [vmem:[%s2 + $0x78] sm:$0xf]
  %v55 = vld [vmem:[%s2 + $0x7c] sm:$0xf]
  %v56 = vld [vmem:[%s2 + $0x80] sm:$0xf]
  %v57 = vld [vmem:[%s2 + $0x84] sm:$0xf]
  %v58 = vld [vmem:[%s2 + $0x88] sm:$0xf]
  %v59 = vld [vmem:[%s2 + $0x8c] sm:$0xf]
  %v60 = vld [vmem:[%s2 + $0x90] sm:$0xf]
  %v61 = vld [vmem:[%s2 + $0x94] sm:$0xf]
  %v62 = vld [vmem:[%s2 + $0x98] sm:$0xf]
  %v63 = vld [vmem:[%s2 + $0x9c] sm:$0xf]
  %v64 = vld [vmem:[%s2 + $0xa0] sm:$0xf]
  %v65 = vld [vmem:[%s2 + $0xa4] sm:$0xf]
  %v66 = vld [vmem:[%s2 + $0xa8] sm:$0xf]
  %v67 = vld [vmem:[%s2 + $0xac] sm:$0xf]
  %v68 = vld [vmem:[%s2 + $0xb0] sm:$0xf]
  %v69 = vld [vmem:[%s2 + $0xb4] sm:$0xf]
  %v70 = vld [vmem:[%s2 + $0xb8] sm:$0xf]
  %v71 = vld [vmem:[%s2 + $0xbc] sm:$0xf]
  %v72 = vld [vmem:[%s2 + $0xc0] sm:$0xf]
  %v73 = vld [vmem:[%s2 + $0xc4] sm:$0xf]
  %v74 = vld [vmem:[%s2 + $0xc8] sm:$0xf]
  %v75 = vld [vmem:[%s2 + $0xcc] sm:$0xf]
  %v76 = vld [vmem:[%s2 + $0xd0] sm:$0xf]
  %v77 = vld [vmem:[%s2 + $0xd4] sm:$0xf]
  %v78 = vld [vmem:[%s2 + $0xd8] sm:$0xf]
  %v79 = vld [vmem:[%s2 + $0xdc] sm:$0xf]
  %v80 = vld [vmem:[%s2 + $0xe0] sm:$0xf]
  %v81 = vld [vmem:[%s2 + $0xe4] sm:$0xf]
  %v82 = vld [vmem:[%s2 + $0xe8] sm:$0xf]
  %v83 = vld [vmem:[%s2 + $0xec] sm:$0xf]
  %v84 = vld [vmem:[%s2 + $0xf0] sm:$0xf]
  %v85 = vld [vmem:[%s2 + $0xf4] sm:$0xf]
  %v86 = vld [vmem:[%s2 + $0xf8] sm:$0xf]
  %v87 = vld [vmem:[%s2 + $0xfc] sm:$0xf]
  %v88 = vld [vmem:[%s3] sm:$0xf]
  %v89 = vld [vmem:[%s3 + $0x4] sm:$0xf]
  %v90 = vld [vmem:[%s3 + $0x8] sm:$0xf]
  %v91 = vld [vmem:[%s3 + $0xc] sm:$0xf]
  %v92 = vld [vmem:[%s3 + $0x10] sm:$0xf]
  %v93 = vld [vmem:[%s3 + $0x14] sm:$0xf]
  %v94 = vld [vmem:[%s3 + $0x18] sm:$0xf]
  %v95 = vld [vmem:[%s3 + $0x1c] sm:$0xf]
  %v96 = vld [vmem:[%s3 + $0x20] sm:$0xf]
  %v97 = vld [vmem:[%s3 + $0x24] sm:$0xf]
  %v98 = vld [vmem:[%s3 + $0x28] sm:$0xf]
  %v99 = vld [vmem:[%s3 + $0x2c] sm:$0xf]
  %v100 = vld [vmem:[%s3 + $0x30] sm:$0xf]
  %v101 = vld [vmem:[%s3 + $0x34] sm:$0xf]
  %v102 = vld [vmem:[%s3 + $0x38] sm:$0xf]
  %v103 = vld [vmem:[%s3 + $0x3c] sm:$0xf]
  %v104 = vld [vmem:[%s3 + $0x40] sm:$0xf]
  %v105 = vld [vmem:[%s3 + $0x44] sm:$0xf]
  %v106 = vld [vmem:[%s3 + $0x48] sm:$0xf]
  %v107 = vld [vmem:[%s3 + $0x4c] sm:$0xf]
  %v108 = vld [vmem:[%s3 + $0x50] sm:$0xf]
  %v109 = vld [vmem:[%s3 + $0x54] sm:$0xf]
  %v110 = vld [vmem:[%s3 + $0x58] sm:$0xf]
  %v111 = vld [vmem:[%s3 + $0x5c] sm:$0xf]
  %v112 = vld [vmem:[%s3 + $0x60] sm:$0xf]
  %v113 = vld [vmem:[%s3 + $0x64] sm:$0xf]
  %v114 = vld [vmem:[%s3 + $0x68] sm:$0xf]
  %v115 = vld [vmem:[%s3 + $0x6c] sm:$0xf]
  %v116 = vld [vmem:[%s3 + $0x70] sm:$0xf]
  %v117 = vld [vmem:[%s3 + $0x74] sm:$0xf]
  %v118 = vld [vmem:[%s3 + $0x78] sm:$0xf]
  %v119 = vld [vmem:[%s3 + $0x7c] sm:$0xf]
  %v120 = vld [vmem:[%s3 + $0x80] sm:$0xf]
  %v121 = vld [vmem:[%s3 + $0x84] sm:$0xf]
  %v122 = vld [vmem:[%s3 + $0x88] sm:$0xf]
  %v123 = vld [vmem:[%s3 + $0x8c] sm:$0xf]
  %v124 = vld [vmem:[%s3 + $0x90] sm:$0xf]
  %v125 = vld [vmem:[%s3 + $0x94] sm:$0xf]
  %v126 = vld [vmem:[%s3 + $0x98] sm:$0xf]
  %v127 = vld [vmem:[%s3 + $0x9c] sm:$0xf]
  %v128 = vld [vmem:[%s3 + $0xa0] sm:$0xf]
  %v129 = vld [vmem:[%s3 + $0xa4] sm:$0xf]
  %v130 = vld [vmem:[%s3 + $0xa8] sm:$0xf]
  %v131 = vld [vmem:[%s3 + $0xac] sm:$0xf]
  %v132 = vld [vmem:[%s3 + $0xb0] sm:$0xf]
  %v133 = vld [vmem:[%s3 + $0xb4] sm:$0xf]
  %v134 = vld [vmem:[%s3 + $0xb8] sm:$0xf]
  %v135 = vld [vmem:[%s3 + $0xbc] sm:$0xf]
  %v136 = vld [vmem:[%s3 + $0xc0] sm:$0xf]
  %v137 = vld [vmem:[%s3 + $0xc4] sm:$0xf]
  %v138 = vld [vmem:[%s3 + $0xc8] sm:$0xf]
  %v139 = vld [vmem:[%s3 + $0xcc] sm:$0xf]
  %v140 = vld [vmem:[%s3 + $0xd0] sm:$0xf]
  %v141 = vld [vmem:[%s3 + $0xd4] sm:$0xf]
  %v142 = vld [vmem:[%s3 + $0xd8] sm:$0xf]
  %v143 = vld [vmem:[%s3 + $0xdc] sm:$0xf]
  %v144 = vld [vmem:[%s3 + $0xe0] sm:$0xf]
  %v145 = vld [vmem:[%s3 + $0xe4] sm:$0xf]
  %v146 = vld [vmem:[%s3 + $0xe8] sm:$0xf]
  %v147 = vld [vmem:[%s3 + $0xec] sm:$0xf]
  %v148 = vld [vmem:[%s3 + $0xf0] sm:$0xf]
  %v149 = vld [vmem:[%s3 + $0xf4] sm:$0xf]
  %v150 = vld [vmem:[%s3 + $0xf8] sm:$0xf]
  %v151 = vld [vmem:[%s3 + $0xfc] sm:$0xf]
  %v152 = vld [vmem:[%s4] sm:$0xf]
  %v153 = vld [vmem:[%s4 + $0x4] sm:$0xf]
  %v154 = vld [vmem:[%s4 + $0x8] sm:$0xf]
  %v155 = vld [vmem:[%s4 + $0xc] sm:$0xf]
  %v156 = vld [vmem:[%s4 + $0x10] sm:$0xf]
  %v157 = vld [vmem:[%s4 + $0x14] sm:$0xf]
  %v158 = vld [vmem:[%s4 + $0x18] sm:$0xf]
  %v159 = vld [vmem:[%s4 + $0x1c] sm:$0xf]
  %v160 = vld [vmem:[%s4 + $0x20] sm:$0xf]
  %v161 = vld [vmem:[%s4 + $0x24] sm:$0xf]
  %v162 = vld [vmem:[%s4 + $0x28] sm:$0xf]
  %v163 = vld [vmem:[%s4 + $0x2c] sm:$0xf]
  %v164 = vld [vmem:[%s4 + $0x30] sm:$0xf]
  %v165 = vld [vmem:[%s4 + $0x34] sm:$0xf]
  %v166 = vld [vmem:[%s4 + $0x38] sm:$0xf]
  %v167 = vld [vmem:[%s4 + $0x3c] sm:$0xf]
  %v168 = vld [vmem:[%s4 + $0x40] sm:$0xf]
  %v169 = vld [vmem:[%s4 + $0x44] sm:$0xf]
  %v170 = vld [vmem:[%s4 + $0x48] sm:$0xf]
  %v171 = vld [vmem:[%s4 + $0x4c] sm:$0xf]
  %v172 = vld [vmem:[%s4 + $0x50] sm:$0xf]
  %v173 = vld [vmem:[%s4 + $0x54] sm:$0xf]
  %v174 = vld [vmem:[%s4 + $0x58] sm:$0xf]
  %v175 = vld [vmem:[%s4 + $0x5c] sm:$0xf]
  %v176 = vld [vmem:[%s4 + $0x60] sm:$0xf]
  %v177 = vld [vmem:[%s4 + $0x64] sm:$0xf]
  %v178 = vld [vmem:[%s4 + $0x68] sm:$0xf]
  %v179 = vld [vmem:[%s4 + $0x6c] sm:$0xf]
  %v180 = vld [vmem:[%s4 + $0x70] sm:$0xf]
  %v181 = vld [vmem:[%s4 + $0x74] sm:$0xf]
  %v182 = vld [vmem:[%s4 + $0x78] sm:$0xf]
  %v183 = vld [vmem:[%s4 + $0x7c] sm:$0xf]
  %v184 = vld [vmem:[%s4 + $0x80] sm:$0xf]
  %v185 = vld [vmem:[%s4 + $0x84] sm:$0xf]
  %v186 = vld [vmem:[%s4 + $0x88] sm:$0xf]
  %v187 = vld [vmem:[%s4 + $0x8c] sm:$0xf]
  %v188 = vld [vmem:[%s4 + $0x90] sm:$0xf]
  %v189 = vld [vmem:[%s4 + $0x94] sm:$0xf]
  %v190 = vld [vmem:[%s4 + $0x98] sm:$0xf]
  %v191 = vld [vmem:[%s4 + $0x9c] sm:$0xf]
  %v192 = vld [vmem:[%s4 + $0xa0] sm:$0xf]
  %v193 = vld [vmem:[%s4 + $0xa4] sm:$0xf]
  %v194 = vld [vmem:[%s4 + $0xa8] sm:$0xf]
  %v195 = vld [vmem:[%s4 + $0xac] sm:$0xf]
  %v196 = vld [vmem:[%s4 + $0xb0] sm:$0xf]
  %v197 = vld [vmem:[%s4 + $0xb4] sm:$0xf]
  %v198 = vld [vmem:[%s4 + $0xb8] sm:$0xf]
  %v199 = vld [vmem:[%s4 + $0xbc] sm:$0xf]
  %v200 = vld [vmem:[%s4 + $0xc0] sm:$0xf]
  %v201 = vld [vmem:[%s4 + $0xc4] sm:$0xf]
  %v202 = vld [vmem:[%s4 + $0xc8] sm:$0xf]
  %v203 = vld [vmem:[%s4 + $0xcc] sm:$0xf]
  %v204 = vld [vmem:[%s4 + $0xd0] sm:$0xf]
  %v205 = vld [vmem:[%s4 + $0xd4] sm:$0xf]
  %v206 = vld [vmem:[%s4 + $0xd8] sm:$0xf]
  %v207 = vld [vmem:[%s4 + $0xdc] sm:$0xf]
  %v208 = vld [vmem:[%s4 + $0xe0] sm:$0xf]
  %v209 = vld [vmem:[%s4 + $0xe4] sm:$0xf]
  %v210 = vld [vmem:[%s4 + $0xe8] sm:$0xf]
  %v211 = vld [vmem:[%s4 + $0xec] sm:$0xf]
  %v212 = vld [vmem:[%s4 + $0xf0] sm:$0xf]
  %v213 = vld [vmem:[%s4 + $0xf4] sm:$0xf]
  %v214 = vld [vmem:[%s4 + $0xf8] sm:$0xf]
  %v215 = vld [vmem:[%s4 + $0xfc] sm:$0xf]
  %v216 = vld [vmem:[%s5] sm:$0x1]
  %v217 = vld [vmem:[%s0] sm:$0xff]
  %v218 = vld [vmem:[%s0 + $0x8] sm:$0xff]
  %v219 = vld [vmem:[%s0 + $0x10] sm:$0xff]
  %v220 = vld [vmem:[%s0 + $0x18] sm:$0xff]
  %v221 = vld [vmem:[%s1] sm:$0x7f]
  %v222 = vld [vmem:[%s1 + $0x8] sm:$0x7f]
  %v223 = vld [vmem:[%s1 + $0x10] sm:$0x7f]
  %v224 = vld [vmem:[%s1 + $0x18] sm:$0x7f]
  %v225 = vpack.c.bf16 %v217, %v217
  %v226 = vpack.c.bf16 %v218, %v218
  %v227 = vpack.c.bf16 %v219, %v219
  %v228 = vpack.c.bf16 %v220, %v220
  %v229 = vpack.c.bf16 %v221, %v221
  %v230 = vpack.c.bf16 %v222, %v222
  %v231 = vpack.c.bf16 %v223, %v223
  %v232 = vpack.c.bf16 %v224, %v224
  %v297 = vunpack.c.l.b16 %v88
  %v298 = vunpack.c.l.b16 %v89
  %v299 = vunpack.c.l.b16 %v90
  %v300 = vunpack.c.l.b16 %v91
  %v301 = vunpack.c.l.b16 %v92
  %v302 = vunpack.c.l.b16 %v93
  %v303 = vunpack.c.l.b16 %v94
  %v304 = vunpack.c.l.b16 %v95
  %v305 = vunpack.c.l.b16 %v96
  %v306 = vunpack.c.l.b16 %v97
  %v307 = vunpack.c.l.b16 %v98
  %v308 = vunpack.c.l.b16 %v99
  %v309 = vunpack.c.l.b16 %v100
  %v310 = vunpack.c.l.b16 %v101
  %v311 = vunpack.c.l.b16 %v102
  %v312 = vunpack.c.l.b16 %v103
  %v313 = vunpack.c.l.b16 %v104
  %v314 = vunpack.c.l.b16 %v105
  %v315 = vunpack.c.l.b16 %v106
  %v316 = vunpack.c.l.b16 %v107
  %v317 = vunpack.c.l.b16 %v108
  %v318 = vunpack.c.l.b16 %v109
  %v319 = vunpack.c.l.b16 %v110
  %v320 = vunpack.c.l.b16 %v111
  %v321 = vunpack.c.l.b16 %v112
  %v322 = vunpack.c.l.b16 %v113
  %v323 = vunpack.c.l.b16 %v114
  %v324 = vunpack.c.l.b16 %v115
  %v325 = vunpack.c.l.b16 %v116
  %v326 = vunpack.c.l.b16 %v117
  %v327 = vunpack.c.l.b16 %v118
  %v328 = vunpack.c.l.b16 %v119
  %v329 = vunpack.c.l.b16 %v120
  %v330 = vunpack.c.l.b16 %v121
  %v331 = vunpack.c.l.b16 %v122
  %v332 = vunpack.c.l.b16 %v123
  %v333 = vunpack.c.l.b16 %v124
  %v334 = vunpack.c.l.b16 %v125
  %v335 = vunpack.c.l.b16 %v126
  %v336 = vunpack.c.l.b16 %v127
  %v337 = vunpack.c.l.b16 %v128
  %v338 = vunpack.c.l.b16 %v129
  %v339 = vunpack.c.l.b16 %v130
  %v340 = vunpack.c.l.b16 %v131
  %v341 = vunpack.c.l.b16 %v132
  %v342 = vunpack.c.l.b16 %v133
  %v343 = vunpack.c.l.b16 %v134
  %v344 = vunpack.c.l.b16 %v135
  %v345 = vunpack.c.l.b16 %v136
  %v346 = vunpack.c.l.b16 %v137
  %v347 = vunpack.c.l.b16 %v138
  %v348 = vunpack.c.l.b16 %v139
  %v349 = vunpack.c.l.b16 %v140
  %v350 = vunpack.c.l.b16 %v141
  %v351 = vunpack.c.l.b16 %v142
  %v352 = vunpack.c.l.b16 %v143
  %v353 = vunpack.c.l.b16 %v144
  %v354 = vunpack.c.l.b16 %v145
  %v355 = vunpack.c.l.b16 %v146
  %v356 = vunpack.c.l.b16 %v147
  %v357 = vunpack.c.l.b16 %v148
  %v358 = vunpack.c.l.b16 %v149
  %v359 = vunpack.c.l.b16 %v150
  %v360 = vunpack.c.l.b16 %v151
  %v361 = vpack.c.b16 %v298, %v297
  %v362 = vpack.c.b16 %v300, %v299
  %v363 = vpack.c.b16 %v302, %v301
  %v364 = vpack.c.b16 %v304, %v303
  %v365 = vpack.c.b16 %v306, %v305
  %v366 = vpack.c.b16 %v308, %v307
  %v367 = vpack.c.b16 %v310, %v309
  %v368 = vpack.c.b16 %v312, %v311
  %v369 = vpack.c.b16 %v314, %v313
  %v370 = vpack.c.b16 %v316, %v315
  %v371 = vpack.c.b16 %v318, %v317
  %v372 = vpack.c.b16 %v320, %v319
  %v373 = vpack.c.b16 %v322, %v321
  %v374 = vpack.c.b16 %v324, %v323
  %v375 = vpack.c.b16 %v326, %v325
  %v376 = vpack.c.b16 %v328, %v327
  %v377 = vpack.c.b16 %v330, %v329
  %v378 = vpack.c.b16 %v332, %v331
  %v379 = vpack.c.b16 %v334, %v333
  %v380 = vpack.c.b16 %v336, %v335
  %v381 = vpack.c.b16 %v338, %v337
  %v382 = vpack.c.b16 %v340, %v339
  %v383 = vpack.c.b16 %v342, %v341
  %v384 = vpack.c.b16 %v344, %v343
  %v385 = vpack.c.b16 %v346, %v345
  %v386 = vpack.c.b16 %v348, %v347
  %v387 = vpack.c.b16 %v350, %v349
  %v388 = vpack.c.b16 %v352, %v351
  %v389 = vpack.c.b16 %v354, %v353
  %v390 = vpack.c.b16 %v356, %v355
  %v391 = vpack.c.b16 %v358, %v357
  %v392 = vpack.c.b16 %v360, %v359
  %425 = vmatprep.subr.bf16.mxu0 0
  %426 = vmatpush1.bf16.msra.mxu0 %v368
  %427 = vmatprep.subr.bf16.mxu0 0
  %428 = vmatpush1.bf16.msra.mxu0 %v367
  %429 = vmatprep.subr.bf16.mxu0 0
  %430 = vmatpush1.bf16.msra.mxu0 %v366
  %431 = vmatprep.subr.bf16.mxu0 0
  %432 = vmatpush1.bf16.msra.mxu0 %v365
  %433 = vmatprep.subr.bf16.mxu0 0
  %434 = vmatpush1.bf16.msra.mxu0 %v364
  %435 = vmatprep.subr.bf16.mxu0 0
  %436 = vmatpush1.bf16.msra.mxu0 %v363
  %437 = vmatprep.subr.bf16.mxu0 0
  %438 = vmatpush1.bf16.msra.mxu0 %v362
  %439 = vmatprep.subr.bf16.mxu0 0
  %440 = vmatpush1.bf16.msra.mxu0 %v361
  %441 = vmatprep.subr.bf16.mxu0 0
  %442 = vmatpush2.bf16.msra.mxu0 %v376
  %443 = vmatprep.subr.bf16.mxu0 0
  %444 = vmatpush2.bf16.msra.mxu0 %v375
  %445 = vmatprep.subr.bf16.mxu0 0
  %446 = vmatpush2.bf16.msra.mxu0 %v374
  %447 = vmatprep.subr.bf16.mxu0 0
  %448 = vmatpush2.bf16.msra.mxu0 %v373
  %449 = vmatprep.subr.bf16.mxu0 0
  %450 = vmatpush2.bf16.msra.mxu0 %v372
  %451 = vmatprep.subr.bf16.mxu0 0
  %452 = vmatpush2.bf16.msra.mxu0 %v371
  %453 = vmatprep.subr.bf16.mxu0 0
  %454 = vmatpush2.bf16.msra.mxu0 %v370
  %455 = vmatprep.subr.bf16.mxu0 0
  %456 = vmatpush2.bf16.msra.mxu0 %v369
  %457 = vmatprep.mubr.bf16.mxu0 %v230
  %458 = vmatmul.mubr.bf16.gmra.mxu0 %v229
  %v459 = vpop.f32.mrf.mxu0
  %v460 = vadd.f32 0.0, %v459
  %v461 = vpop.f32.mrf.mxu0
  %v462 = vpop.f32.mrf.mxu0
  %v463 = vpop.f32.mrf.mxu0
  %464 = vdwg.mxu0
  %465 = vmatprep.subr.bf16.mxu0 0
  %466 = vmatpush1.bf16.msra.mxu0 %v384
  %467 = vmatprep.subr.bf16.mxu0 0
  %468 = vmatpush1.bf16.msra.mxu0 %v383
  %469 = vmatprep.subr.bf16.mxu0 0
  %470 = vmatpush1.bf16.msra.mxu0 %v382
  %471 = vmatprep.subr.bf16.mxu0 0
  %472 = vmatpush1.bf16.msra.mxu0 %v381
  %473 = vmatprep.subr.bf16.mxu0 0
  %474 = vmatpush1.bf16.msra.mxu0 %v380
  %475 = vmatprep.subr.bf16.mxu0 0
  %476 = vmatpush1.bf16.msra.mxu0 %v379
  %477 = vmatprep.subr.bf16.mxu0 0
  %478 = vmatpush1.bf16.msra.mxu0 %v378
  %479 = vmatprep.subr.bf16.mxu0 0
  %480 = vmatpush1.bf16.msra.mxu0 %v377
  %481 = vmatprep.subr.bf16.mxu0 0
  %482 = vmatpush2.bf16.msra.mxu0 %v392
  %483 = vmatprep.subr.bf16.mxu0 0
  %484 = vmatpush2.bf16.msra.mxu0 %v391
  %485 = vmatprep.subr.bf16.mxu0 0
  %486 = vmatpush2.bf16.msra.mxu0 %v390
  %487 = vmatprep.subr.bf16.mxu0 0
  %488 = vmatpush2.bf16.msra.mxu0 %v389
  %489 = vmatprep.subr.bf16.mxu0 0
  %490 = vmatpush2.bf16.msra.mxu0 %v388
  %491 = vmatprep.subr.bf16.mxu0 0
  %492 = vmatpush2.bf16.msra.mxu0 %v387
  %493 = vmatprep.subr.bf16.mxu0 0
  %494 = vmatpush2.bf16.msra.mxu0 %v386
  %495 = vmatprep.subr.bf16.mxu0 0
  %496 = vmatpush2.bf16.msra.mxu0 %v385
  %497 = vmatprep.mubr.bf16.mxu0 %v232
  %498 = vmatmul.mubr.bf16.gmra.mxu0 %v231
  %v499 = vpop.f32.mrf.mxu0
  %v500 = vadd.f32 %v460, %v499
  %v501 = vpop.f32.mrf.mxu0
  %v502 = vpop.f32.mrf.mxu0
  %v503 = vpop.f32.mrf.mxu0
  %504 = vdwg.mxu0
  %v569 = vunpack.c.l.b16 %v24
  %v570 = vunpack.c.l.b16 %v25
  %v571 = vunpack.c.l.b16 %v26
  %v572 = vunpack.c.l.b16 %v27
  %v573 = vunpack.c.l.b16 %v28
  %v574 = vunpack.c.l.b16 %v29
  %v575 = vunpack.c.l.b16 %v30
  %v576 = vunpack.c.l.b16 %v31
  %v577 = vunpack.c.l.b16 %v32
  %v578 = vunpack.c.l.b16 %v33
  %v579 = vunpack.c.l.b16 %v34
  %v580 = vunpack.c.l.b16 %v35
  %v581 = vunpack.c.l.b16 %v36
  %v582 = vunpack.c.l.b16 %v37
  %v583 = vunpack.c.l.b16 %v38
  %v584 = vunpack.c.l.b16 %v39
  %v585 = vunpack.c.l.b16 %v40
  %v586 = vunpack.c.l.b16 %v41
  %v587 = vunpack.c.l.b16 %v42
  %v588 = vunpack.c.l.b16 %v43
  %v589 = vunpack.c.l.b16 %v44
  %v590 = vunpack.c.l.b16 %v45
  %v591 = vunpack.c.l.b16 %v46
  %v592 = vunpack.c.l.b16 %v47
  %v593 = vunpack.c.l.b16 %v48
  %v594 = vunpack.c.l.b16 %v49
  %v595 = vunpack.c.l.b16 %v50
  %v596 = vunpack.c.l.b16 %v51
  %v597 = vunpack.c.l.b16 %v52
  %v598 = vunpack.c.l.b16 %v53
  %v599 = vunpack.c.l.b16 %v54
  %v600 = vunpack.c.l.b16 %v55
  %v601 = vunpack.c.l.b16 %v56
  %v602 = vunpack.c.l.b16 %v57
  %v603 = vunpack.c.l.b16 %v58
  %v604 = vunpack.c.l.b16 %v59
  %v605 = vunpack.c.l.b16 %v60
  %v606 = vunpack.c.l.b16 %v61
  %v607 = vunpack.c.l.b16 %v62
  %v608 = vunpack.c.l.b16 %v63
  %v609 = vunpack.c.l.b16 %v64
  %v610 = vunpack.c.l.b16 %v65
  %v611 = vunpack.c.l.b16 %v66
  %v612 = vunpack.c.l.b16 %v67
  %v613 = vunpack.c.l.b16 %v68
  %v614 = vunpack.c.l.b16 %v69
  %v615 = vunpack.c.l.b16 %v70
  %v616 = vunpack.c.l.b16 %v71
  %v617 = vunpack.c.l.b16 %v72
  %v618 = vunpack.c.l.b16 %v73
  %v619 = vunpack.c.l.b16 %v74
  %v620 = vunpack.c.l.b16 %v75
  %v621 = vunpack.c.l.b16 %v76
  %v622 = vunpack.c.l.b16 %v77
  %v623 = vunpack.c.l.b16 %v78
  %v624 = vunpack.c.l.b16 %v79
  %v625 = vunpack.c.l.b16 %v80
  %v626 = vunpack.c.l.b16 %v81
  %v627 = vunpack.c.l.b16 %v82
  %v628 = vunpack.c.l.b16 %v83
  %v629 = vunpack.c.l.b16 %v84
  %v630 = vunpack.c.l.b16 %v85
  %v631 = vunpack.c.l.b16 %v86
  %v632 = vunpack.c.l.b16 %v87
  %v633 = vpack.c.b16 %v570, %v569
  %v634 = vpack.c.b16 %v572, %v571
  %v635 = vpack.c.b16 %v574, %v573
  %v636 = vpack.c.b16 %v576, %v575
  %v637 = vpack.c.b16 %v578, %v577
  %v638 = vpack.c.b16 %v580, %v579
  %v639 = vpack.c.b16 %v582, %v581
  %v640 = vpack.c.b16 %v584, %v583
  %v641 = vpack.c.b16 %v586, %v585
  %v642 = vpack.c.b16 %v588, %v587
  %v643 = vpack.c.b16 %v590, %v589
  %v644 = vpack.c.b16 %v592, %v591
  %v645 = vpack.c.b16 %v594, %v593
  %v646 = vpack.c.b16 %v596, %v595
  %v647 = vpack.c.b16 %v598, %v597
  %v648 = vpack.c.b16 %v600, %v599
  %v649 = vpack.c.b16 %v602, %v601
  %v650 = vpack.c.b16 %v604, %v603
  %v651 = vpack.c.b16 %v606, %v605
  %v652 = vpack.c.b16 %v608, %v607
  %v653 = vpack.c.b16 %v610, %v609
  %v654 = vpack.c.b16 %v612, %v611
  %v655 = vpack.c.b16 %v614, %v613
  %v656 = vpack.c.b16 %v616, %v615
  %v657 = vpack.c.b16 %v618, %v617
  %v658 = vpack.c.b16 %v620, %v619
  %v659 = vpack.c.b16 %v622, %v621
  %v660 = vpack.c.b16 %v624, %v623
  %v661 = vpack.c.b16 %v626, %v625
  %v662 = vpack.c.b16 %v628, %v627
  %v663 = vpack.c.b16 %v630, %v629
  %v664 = vpack.c.b16 %v632, %v631
  %697 = vmatprep.subr.bf16.mxu0 0
  %698 = vmatpush1.bf16.msra.mxu0 %v640
  %699 = vmatprep.subr.bf16.mxu0 0
  %700 = vmatpush1.bf16.msra.mxu0 %v639
  %701 = vmatprep.subr.bf16.mxu0 0
  %702 = vmatpush1.bf16.msra.mxu0 %v638
  %703 = vmatprep.subr.bf16.mxu0 0
  %704 = vmatpush1.bf16.msra.mxu0 %v637
  %705 = vmatprep.subr.bf16.mxu0 0
  %706 = vmatpush1.bf16.msra.mxu0 %v636
  %707 = vmatprep.subr.bf16.mxu0 0
  %708 = vmatpush1.bf16.msra.mxu0 %v635
  %709 = vmatprep.subr.bf16.mxu0 0
  %710 = vmatpush1.bf16.msra.mxu0 %v634
  %711 = vmatprep.subr.bf16.mxu0 0
  %712 = vmatpush1.bf16.msra.mxu0 %v633
  %713 = vmatprep.subr.bf16.mxu0 0
  %714 = vmatpush2.bf16.msra.mxu0 %v648
  %715 = vmatprep.subr.bf16.mxu0 0
  %716 = vmatpush2.bf16.msra.mxu0 %v647
  %717 = vmatprep.subr.bf16.mxu0 0
  %718 = vmatpush2.bf16.msra.mxu0 %v646
  %719 = vmatprep.subr.bf16.mxu0 0
  %720 = vmatpush2.bf16.msra.mxu0 %v645
  %721 = vmatprep.subr.bf16.mxu0 0
  %722 = vmatpush2.bf16.msra.mxu0 %v644
  %723 = vmatprep.subr.bf16.mxu0 0
  %724 = vmatpush2.bf16.msra.mxu0 %v643
  %725 = vmatprep.subr.bf16.mxu0 0
  %726 = vmatpush2.bf16.msra.mxu0 %v642
  %727 = vmatprep.subr.bf16.mxu0 0
  %728 = vmatpush2.bf16.msra.mxu0 %v641
  %729 = vmatprep.mubr.bf16.mxu0 %v226
  %730 = vmatmul.mubr.bf16.gmra.mxu0 %v225
  %v731 = vpop.f32.mrf.mxu0
  %v732 = vadd.f32 %v500, %v731
  %v733 = vpop.f32.mrf.mxu0
  %v734 = vpop.f32.mrf.mxu0
  %v735 = vpop.f32.mrf.mxu0
  %736 = vdwg.mxu0
  %737 = vmatprep.subr.bf16.mxu0 0
  %738 = vmatpush1.bf16.msra.mxu0 %v656
  %739 = vmatprep.subr.bf16.mxu0 0
  %740 = vmatpush1.bf16.msra.mxu0 %v655
  %741 = vmatprep.subr.bf16.mxu0 0
  %742 = vmatpush1.bf16.msra.mxu0 %v654
  %743 = vmatprep.subr.bf16.mxu0 0
  %744 = vmatpush1.bf16.msra.mxu0 %v653
  %745 = vmatprep.subr.bf16.mxu0 0
  %746 = vmatpush1.bf16.msra.mxu0 %v652
  %747 = vmatprep.subr.bf16.mxu0 0
  %748 = vmatpush1.bf16.msra.mxu0 %v651
  %749 = vmatprep.subr.bf16.mxu0 0
  %750 = vmatpush1.bf16.msra.mxu0 %v650
  %751 = vmatprep.subr.bf16.mxu0 0
  %752 = vmatpush1.bf16.msra.mxu0 %v649
  %753 = vmatprep.subr.bf16.mxu0 0
  %754 = vmatpush2.bf16.msra.mxu0 %v664
  %755 = vmatprep.subr.bf16.mxu0 0
  %756 = vmatpush2.bf16.msra.mxu0 %v663
  %757 = vmatprep.subr.bf16.mxu0 0
  %758 = vmatpush2.bf16.msra.mxu0 %v662
  %759 = vmatprep.subr.bf16.mxu0 0
  %760 = vmatpush2.bf16.msra.mxu0 %v661
  %761 = vmatprep.subr.bf16.mxu0 0
  %762 = vmatpush2.bf16.msra.mxu0 %v660
  %763 = vmatprep.subr.bf16.mxu0 0
  %764 = vmatpush2.bf16.msra.mxu0 %v659
  %765 = vmatprep.subr.bf16.mxu0 0
  %766 = vmatpush2.bf16.msra.mxu0 %v658
  %767 = vmatprep.subr.bf16.mxu0 0
  %768 = vmatpush2.bf16.msra.mxu0 %v657
  %769 = vmatprep.mubr.bf16.mxu0 %v228
  %770 = vmatmul.mubr.bf16.gmra.mxu0 %v227
  %v771 = vpop.f32.mrf.mxu0
  %v772 = vadd.f32 %v732, %v771
  %v773 = vpop.f32.mrf.mxu0
  %v774 = vpop.f32.mrf.mxu0
  %v775 = vpop.f32.mrf.mxu0
  %776 = vdwg.mxu0
  %v778 = vshrl.u32 %v225, 16
  %v780 = vshll.u32 %v225, 16
  %v782 = vrot.slane %v780, 1
  %v783 = vor.u32 %v778, %v782
  %v785 = vshrl.u32 %v226, 16
  %v787 = vshll.u32 %v226, 16
  %v789 = vrot.slane %v787, 1
  %v790 = vor.u32 %v785, %v789
  %v792 = vshrl.u32 %v227, 16
  %v794 = vshll.u32 %v227, 16
  %v796 = vrot.slane %v794, 1
  %v797 = vor.u32 %v792, %v796
  %v799 = vshrl.u32 %v228, 16
  %v801 = vshll.u32 %v228, 16
  %v803 = vrot.slane %v801, 1
  %v804 = vor.u32 %v799, %v803
  %v873 = vunpack.c.l.b16 %v152
  %v874 = vunpack.c.l.b16 %v153
  %v875 = vunpack.c.l.b16 %v154
  %v876 = vunpack.c.l.b16 %v155
  %v877 = vunpack.c.l.b16 %v156
  %v878 = vunpack.c.l.b16 %v157
  %v879 = vunpack.c.l.b16 %v158
  %v880 = vunpack.c.l.b16 %v159
  %v881 = vunpack.c.l.b16 %v160
  %v882 = vunpack.c.l.b16 %v161
  %v883 = vunpack.c.l.b16 %v162
  %v884 = vunpack.c.l.b16 %v163
  %v885 = vunpack.c.l.b16 %v164
  %v886 = vunpack.c.l.b16 %v165
  %v887 = vunpack.c.l.b16 %v166
  %v888 = vunpack.c.l.b16 %v167
  %v889 = vunpack.c.l.b16 %v168
  %v890 = vunpack.c.l.b16 %v169
  %v891 = vunpack.c.l.b16 %v170
  %v892 = vunpack.c.l.b16 %v171
  %v893 = vunpack.c.l.b16 %v172
  %v894 = vunpack.c.l.b16 %v173
  %v895 = vunpack.c.l.b16 %v174
  %v896 = vunpack.c.l.b16 %v175
  %v897 = vunpack.c.l.b16 %v176
  %v898 = vunpack.c.l.b16 %v177
  %v899 = vunpack.c.l.b16 %v178
  %v900 = vunpack.c.l.b16 %v179
  %v901 = vunpack.c.l.b16 %v180
  %v902 = vunpack.c.l.b16 %v181
  %v903 = vunpack.c.l.b16 %v182
  %v904 = vunpack.c.l.b16 %v183
  %v905 = vunpack.c.l.b16 %v184
  %v906 = vunpack.c.l.b16 %v185
  %v907 = vunpack.c.l.b16 %v186
  %v908 = vunpack.c.l.b16 %v187
  %v909 = vunpack.c.l.b16 %v188
  %v910 = vunpack.c.l.b16 %v189
  %v911 = vunpack.c.l.b16 %v190
  %v912 = vunpack.c.l.b16 %v191
  %v913 = vunpack.c.l.b16 %v192
  %v914 = vunpack.c.l.b16 %v193
  %v915 = vunpack.c.l.b16 %v194
  %v916 = vunpack.c.l.b16 %v195
  %v917 = vunpack.c.l.b16 %v196
  %v918 = vunpack.c.l.b16 %v197
  %v919 = vunpack.c.l.b16 %v198
  %v920 = vunpack.c.l.b16 %v199
  %v921 = vunpack.c.l.b16 %v200
  %v922 = vunpack.c.l.b16 %v201
  %v923 = vunpack.c.l.b16 %v202
  %v924 = vunpack.c.l.b16 %v203
  %v925 = vunpack.c.l.b16 %v204
  %v926 = vunpack.c.l.b16 %v205
  %v927 = vunpack.c.l.b16 %v206
  %v928 = vunpack.c.l.b16 %v207
  %v929 = vunpack.c.l.b16 %v208
  %v930 = vunpack.c.l.b16 %v209
  %v931 = vunpack.c.l.b16 %v210
  %v932 = vunpack.c.l.b16 %v211
  %v933 = vunpack.c.l.b16 %v212
  %v934 = vunpack.c.l.b16 %v213
  %v935 = vunpack.c.l.b16 %v214
  %v936 = vunpack.c.l.b16 %v215
  %v937 = vpack.c.b16 %v874, %v873
  %v938 = vpack.c.b16 %v876, %v875
  %v939 = vpack.c.b16 %v878, %v877
  %v940 = vpack.c.b16 %v880, %v879
  %v941 = vpack.c.b16 %v882, %v881
  %v942 = vpack.c.b16 %v884, %v883
  %v943 = vpack.c.b16 %v886, %v885
  %v944 = vpack.c.b16 %v888, %v887
  %v945 = vpack.c.b16 %v890, %v889
  %v946 = vpack.c.b16 %v892, %v891
  %v947 = vpack.c.b16 %v894, %v893
  %v948 = vpack.c.b16 %v896, %v895
  %v949 = vpack.c.b16 %v898, %v897
  %v950 = vpack.c.b16 %v900, %v899
  %v951 = vpack.c.b16 %v902, %v901
  %v952 = vpack.c.b16 %v904, %v903
  %v953 = vpack.c.b16 %v906, %v905
  %v954 = vpack.c.b16 %v908, %v907
  %v955 = vpack.c.b16 %v910, %v909
  %v956 = vpack.c.b16 %v912, %v911
  %v957 = vpack.c.b16 %v914, %v913
  %v958 = vpack.c.b16 %v916, %v915
  %v959 = vpack.c.b16 %v918, %v917
  %v960 = vpack.c.b16 %v920, %v919
  %v961 = vpack.c.b16 %v922, %v921
  %v962 = vpack.c.b16 %v924, %v923
  %v963 = vpack.c.b16 %v926, %v925
  %v964 = vpack.c.b16 %v928, %v927
  %v965 = vpack.c.b16 %v930, %v929
  %v966 = vpack.c.b16 %v932, %v931
  %v967 = vpack.c.b16 %v934, %v933
  %v968 = vpack.c.b16 %v936, %v935
  %1001 = vmatprep.subr.bf16.mxu0 0
  %1002 = vmatpush1.bf16.msra.mxu0 %v944
  %1003 = vmatprep.subr.bf16.mxu0 0
  %1004 = vmatpush1.bf16.msra.mxu0 %v943
  %1005 = vmatprep.subr.bf16.mxu0 0
  %1006 = vmatpush1.bf16.msra.mxu0 %v942
  %1007 = vmatprep.subr.bf16.mxu0 0
  %1008 = vmatpush1.bf16.msra.mxu0 %v941
  %1009 = vmatprep.subr.bf16.mxu0 0
  %1010 = vmatpush1.bf16.msra.mxu0 %v940
  %1011 = vmatprep.subr.bf16.mxu0 0
  %1012 = vmatpush1.bf16.msra.mxu0 %v939
  %1013 = vmatprep.subr.bf16.mxu0 0
  %1014 = vmatpush1.bf16.msra.mxu0 %v938
  %1015 = vmatprep.subr.bf16.mxu0 0
  %1016 = vmatpush1.bf16.msra.mxu0 %v937
  %1017 = vmatprep.subr.bf16.mxu0 0
  %1018 = vmatpush2.bf16.msra.mxu0 %v952
  %1019 = vmatprep.subr.bf16.mxu0 0
  %1020 = vmatpush2.bf16.msra.mxu0 %v951
  %1021 = vmatprep.subr.bf16.mxu0 0
  %1022 = vmatpush2.bf16.msra.mxu0 %v950
  %1023 = vmatprep.subr.bf16.mxu0 0
  %1024 = vmatpush2.bf16.msra.mxu0 %v949
  %1025 = vmatprep.subr.bf16.mxu0 0
  %1026 = vmatpush2.bf16.msra.mxu0 %v948
  %1027 = vmatprep.subr.bf16.mxu0 0
  %1028 = vmatpush2.bf16.msra.mxu0 %v947
  %1029 = vmatprep.subr.bf16.mxu0 0
  %1030 = vmatpush2.bf16.msra.mxu0 %v946
  %1031 = vmatprep.subr.bf16.mxu0 0
  %1032 = vmatpush2.bf16.msra.mxu0 %v945
  %1033 = vmatprep.mubr.bf16.mxu0 %v790
  %1034 = vmatmul.mubr.bf16.gmra.mxu0 %v783
  %v1035 = vpop.f32.mrf.mxu0
  %v1036 = vadd.f32 0.0, %v1035
  %v1037 = vpop.f32.mrf.mxu0
  %v1038 = vpop.f32.mrf.mxu0
  %v1039 = vpop.f32.mrf.mxu0
  %1040 = vdwg.mxu0
  %1041 = vmatprep.subr.bf16.mxu0 0
  %1042 = vmatpush1.bf16.msra.mxu0 %v960
  %1043 = vmatprep.subr.bf16.mxu0 0
  %1044 = vmatpush1.bf16.msra.mxu0 %v959
  %1045 = vmatprep.subr.bf16.mxu0 0
  %1046 = vmatpush1.bf16.msra.mxu0 %v958
  %1047 = vmatprep.subr.bf16.mxu0 0
  %1048 = vmatpush1.bf16.msra.mxu0 %v957
  %1049 = vmatprep.subr.bf16.mxu0 0
  %1050 = vmatpush1.bf16.msra.mxu0 %v956
  %1051 = vmatprep.subr.bf16.mxu0 0
  %1052 = vmatpush1.bf16.msra.mxu0 %v955
  %1053 = vmatprep.subr.bf16.mxu0 0
  %1054 = vmatpush1.bf16.msra.mxu0 %v954
  %1055 = vmatprep.subr.bf16.mxu0 0
  %1056 = vmatpush1.bf16.msra.mxu0 %v953
  %1057 = vmatprep.subr.bf16.mxu0 0
  %1058 = vmatpush2.bf16.msra.mxu0 %v968
  %1059 = vmatprep.subr.bf16.mxu0 0
  %1060 = vmatpush2.bf16.msra.mxu0 %v967
  %1061 = vmatprep.subr.bf16.mxu0 0
  %1062 = vmatpush2.bf16.msra.mxu0 %v966
  %1063 = vmatprep.subr.bf16.mxu0 0
  %1064 = vmatpush2.bf16.msra.mxu0 %v965
  %1065 = vmatprep.subr.bf16.mxu0 0
  %1066 = vmatpush2.bf16.msra.mxu0 %v964
  %1067 = vmatprep.subr.bf16.mxu0 0
  %1068 = vmatpush2.bf16.msra.mxu0 %v963
  %1069 = vmatprep.subr.bf16.mxu0 0
  %1070 = vmatpush2.bf16.msra.mxu0 %v962
  %1071 = vmatprep.subr.bf16.mxu0 0
  %1072 = vmatpush2.bf16.msra.mxu0 %v961
  %1073 = vmatprep.mubr.bf16.mxu0 %v804
  %1074 = vmatmul.mubr.bf16.gmra.mxu0 %v797
  %v1075 = vpop.f32.mrf.mxu0
  %v1076 = vadd.f32 %v1036, %v1075
  %v1077 = vpop.f32.mrf.mxu0
  %v1078 = vpop.f32.mrf.mxu0
  %v1079 = vpop.f32.mrf.mxu0
  %1080 = vdwg.mxu0
  %v1081 = vadd.f32 %v772, %v1076
  %v1083 = vlaneseq
  %v1084 = vshrl.u32 %v1083, 7
  %v1085 = vsub.s32 0, %v1084
  %v1086 = vrot.slane %v216, %v1085
  %v1088 = vadd.f32 %v1081, %v1086
  %v1089 = vmax.f32 %v1088, 0.0
  %1090 = vst [vmem:[%s6] sm:$0x7f] %v1089
  %s1091 = scalar_lea.vmem %s0, 32
  %v1092 = vld [vmem:[%s1091] sm:$0xff]
  %v1093 = vld [vmem:[%s1091 + $0x8] sm:$0xff]
  %v1094 = vld [vmem:[%s1091 + $0x10] sm:$0xff]
  %v1095 = vld [vmem:[%s1091 + $0x18] sm:$0xff]
  %s1096 = scalar_lea.vmem %s1, 32
  %v1097 = vld [vmem:[%s1096] sm:$0x7f]
  %v1098 = vld [vmem:[%s1096 + $0x8] sm:$0x7f]
  %v1099 = vld [vmem:[%s1096 + $0x10] sm:$0x7f]
  %v1100 = vld [vmem:[%s1096 + $0x18] sm:$0x7f]
  %v1101 = vpack.c.bf16 %v1092, %v1092
  %v1102 = vpack.c.bf16 %v1093, %v1093
  %v1103 = vpack.c.bf16 %v1094, %v1094
  %v1104 = vpack.c.bf16 %v1095, %v1095
  %v1105 = vpack.c.bf16 %v1097, %v1097
  %v1106 = vpack.c.bf16 %v1098, %v1098
  %v1107 = vpack.c.bf16 %v1099, %v1099
  %v1108 = vpack.c.bf16 %v1100, %v1100
  %1109 = vmatprep.subr.bf16.mxu0 0
  %1110 = vmatpush1.bf16.msra.mxu0 %v368
  %1111 = vmatprep.subr.bf16.mxu0 0
  %1112 = vmatpush1.bf16.msra.mxu0 %v367
  %1113 = vmatprep.subr.bf16.mxu0 0
  %1114 = vmatpush1.bf16.msra.mxu0 %v366
  %1115 = vmatprep.subr.bf16.mxu0 0
  %1116 = vmatpush1.bf16.msra.mxu0 %v365
  %1117 = vmatprep.subr.bf16.mxu0 0
  %1118 = vmatpush1.bf16.msra.mxu0 %v364
  %1119 = vmatprep.subr.bf16.mxu0 0
  %1120 = vmatpush1.bf16.msra.mxu0 %v363
  %1121 = vmatprep.subr.bf16.mxu0 0
  %1122 = vmatpush1.bf16.msra.mxu0 %v362
  %1123 = vmatprep.subr.bf16.mxu0 0
  %1124 = vmatpush1.bf16.msra.mxu0 %v361
  %1125 = vmatprep.subr.bf16.mxu0 0
  %1126 = vmatpush2.bf16.msra.mxu0 %v376
  %1127 = vmatprep.subr.bf16.mxu0 0
  %1128 = vmatpush2.bf16.msra.mxu0 %v375
  %1129 = vmatprep.subr.bf16.mxu0 0
  %1130 = vmatpush2.bf16.msra.mxu0 %v374
  %1131 = vmatprep.subr.bf16.mxu0 0
  %1132 = vmatpush2.bf16.msra.mxu0 %v373
  %1133 = vmatprep.subr.bf16.mxu0 0
  %1134 = vmatpush2.bf16.msra.mxu0 %v372
  %1135 = vmatprep.subr.bf16.mxu0 0
  %1136 = vmatpush2.bf16.msra.mxu0 %v371
  %1137 = vmatprep.subr.bf16.mxu0 0
  %1138 = vmatpush2.bf16.msra.mxu0 %v370
  %1139 = vmatprep.subr.bf16.mxu0 0
  %1140 = vmatpush2.bf16.msra.mxu0 %v369
  %1141 = vmatprep.mubr.bf16.mxu0 %v1106
  %1142 = vmatmul.mubr.bf16.gmra.mxu0 %v1105
  %v1143 = vpop.f32.mrf.mxu0
  %v1144 = vadd.f32 0.0, %v1143
  %v1145 = vpop.f32.mrf.mxu0
  %v1146 = vpop.f32.mrf.mxu0
  %v1147 = vpop.f32.mrf.mxu0
  %1148 = vdwg.mxu0
  %1149 = vmatprep.subr.bf16.mxu0 0
  %1150 = vmatpush1.bf16.msra.mxu0 %v384
  %1151 = vmatprep.subr.bf16.mxu0 0
  %1152 = vmatpush1.bf16.msra.mxu0 %v383
  %1153 = vmatprep.subr.bf16.mxu0 0
  %1154 = vmatpush1.bf16.msra.mxu0 %v382
  %1155 = vmatprep.subr.bf16.mxu0 0
  %1156 = vmatpush1.bf16.msra.mxu0 %v381
  %1157 = vmatprep.subr.bf16.mxu0 0
  %1158 = vmatpush1.bf16.msra.mxu0 %v380
  %1159 = vmatprep.subr.bf16.mxu0 0
  %1160 = vmatpush1.bf16.msra.mxu0 %v379
  %1161 = vmatprep.subr.bf16.mxu0 0
  %1162 = vmatpush1.bf16.msra.mxu0 %v378
  %1163 = vmatprep.subr.bf16.mxu0 0
  %1164 = vmatpush1.bf16.msra.mxu0 %v377
  %1165 = vmatprep.subr.bf16.mxu0 0
  %1166 = vmatpush2.bf16.msra.mxu0 %v392
  %1167 = vmatprep.subr.bf16.mxu0 0
  %1168 = vmatpush2.bf16.msra.mxu0 %v391
  %1169 = vmatprep.subr.bf16.mxu0 0
  %1170 = vmatpush2.bf16.msra.mxu0 %v390
  %1171 = vmatprep.subr.bf16.mxu0 0
  %1172 = vmatpush2.bf16.msra.mxu0 %v389
  %1173 = vmatprep.subr.bf16.mxu0 0
  %1174 = vmatpush2.bf16.msra.mxu0 %v388
  %1175 = vmatprep.subr.bf16.mxu0 0
  %1176 = vmatpush2.bf16.msra.mxu0 %v387
  %1177 = vmatprep.subr.bf16.mxu0 0
  %1178 = vmatpush2.bf16.msra.mxu0 %v386
  %1179 = vmatprep.subr.bf16.mxu0 0
  %1180 = vmatpush2.bf16.msra.mxu0 %v385
  %1181 = vmatprep.mubr.bf16.mxu0 %v1108
  %1182 = vmatmul.mubr.bf16.gmra.mxu0 %v1107
  %v1183 = vpop.f32.mrf.mxu0
  %v1184 = vadd.f32 %v1144, %v1183
  %v1185 = vpop.f32.mrf.mxu0
  %v1186 = vpop.f32.mrf.mxu0
  %v1187 = vpop.f32.mrf.mxu0
  %1188 = vdwg.mxu0
  %1189 = vmatprep.subr.bf16.mxu0 0
  %1190 = vmatpush1.bf16.msra.mxu0 %v640
  %1191 = vmatprep.subr.bf16.mxu0 0
  %1192 = vmatpush1.bf16.msra.mxu0 %v639
  %1193 = vmatprep.subr.bf16.mxu0 0
  %1194 = vmatpush1.bf16.msra.mxu0 %v638
  %1195 = vmatprep.subr.bf16.mxu0 0
  %1196 = vmatpush1.bf16.msra.mxu0 %v637
  %1197 = vmatprep.subr.bf16.mxu0 0
  %1198 = vmatpush1.bf16.msra.mxu0 %v636
  %1199 = vmatprep.subr.bf16.mxu0 0
  %1200 = vmatpush1.bf16.msra.mxu0 %v635
  %1201 = vmatprep.subr.bf16.mxu0 0
  %1202 = vmatpush1.bf16.msra.mxu0 %v634
  %1203 = vmatprep.subr.bf16.mxu0 0
  %1204 = vmatpush1.bf16.msra.mxu0 %v633
  %1205 = vmatprep.subr.bf16.mxu0 0
  %1206 = vmatpush2.bf16.msra.mxu0 %v648
  %1207 = vmatprep.subr.bf16.mxu0 0
  %1208 = vmatpush2.bf16.msra.mxu0 %v647
  %1209 = vmatprep.subr.bf16.mxu0 0
  %1210 = vmatpush2.bf16.msra.mxu0 %v646
  %1211 = vmatprep.subr.bf16.mxu0 0
  %1212 = vmatpush2.bf16.msra.mxu0 %v645
  %1213 = vmatprep.subr.bf16.mxu0 0
  %1214 = vmatpush2.bf16.msra.mxu0 %v644
  %1215 = vmatprep.subr.bf16.mxu0 0
  %1216 = vmatpush2.bf16.msra.mxu0 %v643
  %1217 = vmatprep.subr.bf16.mxu0 0
  %1218 = vmatpush2.bf16.msra.mxu0 %v642
  %1219 = vmatprep.subr.bf16.mxu0 0
  %1220 = vmatpush2.bf16.msra.mxu0 %v641
  %1221 = vmatprep.mubr.bf16.mxu0 %v1102
  %1222 = vmatmul.mubr.bf16.gmra.mxu0 %v1101
  %v1223 = vpop.f32.mrf.mxu0
  %v1224 = vadd.f32 %v1184, %v1223
  %v1225 = vpop.f32.mrf.mxu0
  %v1226 = vpop.f32.mrf.mxu0
  %v1227 = vpop.f32.mrf.mxu0
  %1228 = vdwg.mxu0
  %1229 = vmatprep.subr.bf16.mxu0 0
  %1230 = vmatpush1.bf16.msra.mxu0 %v656
  %1231 = vmatprep.subr.bf16.mxu0 0
  %1232 = vmatpush1.bf16.msra.mxu0 %v655
  %1233 = vmatprep.subr.bf16.mxu0 0
  %1234 = vmatpush1.bf16.msra.mxu0 %v654
  %1235 = vmatprep.subr.bf16.mxu0 0
  %1236 = vmatpush1.bf16.msra.mxu0 %v653
  %1237 = vmatprep.subr.bf16.mxu0 0
  %1238 = vmatpush1.bf16.msra.mxu0 %v652
  %1239 = vmatprep.subr.bf16.mxu0 0
  %1240 = vmatpush1.bf16.msra.mxu0 %v651
  %1241 = vmatprep.subr.bf16.mxu0 0
  %1242 = vmatpush1.bf16.msra.mxu0 %v650
  %1243 = vmatprep.subr.bf16.mxu0 0
  %1244 = vmatpush1.bf16.msra.mxu0 %v649
  %1245 = vmatprep.subr.bf16.mxu0 0
  %1246 = vmatpush2.bf16.msra.mxu0 %v664
  %1247 = vmatprep.subr.bf16.mxu0 0
  %1248 = vmatpush2.bf16.msra.mxu0 %v663
  %1249 = vmatprep.subr.bf16.mxu0 0
  %1250 = vmatpush2.bf16.msra.mxu0 %v662
  %1251 = vmatprep.subr.bf16.mxu0 0
  %1252 = vmatpush2.bf16.msra.mxu0 %v661
  %1253 = vmatprep.subr.bf16.mxu0 0
  %1254 = vmatpush2.bf16.msra.mxu0 %v660
  %1255 = vmatprep.subr.bf16.mxu0 0
  %1256 = vmatpush2.bf16.msra.mxu0 %v659
  %1257 = vmatprep.subr.bf16.mxu0 0
  %1258 = vmatpush2.bf16.msra.mxu0 %v658
  %1259 = vmatprep.subr.bf16.mxu0 0
  %1260 = vmatpush2.bf16.msra.mxu0 %v657
  %1261 = vmatprep.mubr.bf16.mxu0 %v1104
  %1262 = vmatmul.mubr.bf16.gmra.mxu0 %v1103
  %v1263 = vpop.f32.mrf.mxu0
  %v1264 = vadd.f32 %v1224, %v1263
  %v1265 = vpop.f32.mrf.mxu0
  %v1266 = vpop.f32.mrf.mxu0
  %v1267 = vpop.f32.mrf.mxu0
  %1268 = vdwg.mxu0
  %v1270 = vshrl.u32 %v1101, 16
  %v1272 = vshll.u32 %v1101, 16
  %v1274 = vrot.slane %v1272, 1
  %v1275 = vor.u32 %v1270, %v1274
  %v1277 = vshrl.u32 %v1102, 16
  %v1279 = vshll.u32 %v1102, 16
  %v1281 = vrot.slane %v1279, 1
  %v1282 = vor.u32 %v1277, %v1281
  %v1284 = vshrl.u32 %v1103, 16
  %v1286 = vshll.u32 %v1103, 16
  %v1288 = vrot.slane %v1286, 1
  %v1289 = vor.u32 %v1284, %v1288
  %v1291 = vshrl.u32 %v1104, 16
  %v1293 = vshll.u32 %v1104, 16
  %v1295 = vrot.slane %v1293, 1
  %v1296 = vor.u32 %v1291, %v1295
  %1301 = vmatprep.subr.bf16.mxu0 0
  %1302 = vmatpush1.bf16.msra.mxu0 %v944
  %1303 = vmatprep.subr.bf16.mxu0 0
  %1304 = vmatpush1.bf16.msra.mxu0 %v943
  %1305 = vmatprep.subr.bf16.mxu0 0
  %1306 = vmatpush1.bf16.msra.mxu0 %v942
  %1307 = vmatprep.subr.bf16.mxu0 0
  %1308 = vmatpush1.bf16.msra.mxu0 %v941
  %1309 = vmatprep.subr.bf16.mxu0 0
  %1310 = vmatpush1.bf16.msra.mxu0 %v940
  %1311 = vmatprep.subr.bf16.mxu0 0
  %1312 = vmatpush1.bf16.msra.mxu0 %v939
  %1313 = vmatprep.subr.bf16.mxu0 0
  %1314 = vmatpush1.bf16.msra.mxu0 %v938
  %1315 = vmatprep.subr.bf16.mxu0 0
  %1316 = vmatpush1.bf16.msra.mxu0 %v937
  %1317 = vmatprep.subr.bf16.mxu0 0
  %1318 = vmatpush2.bf16.msra.mxu0 %v952
  %1319 = vmatprep.subr.bf16.mxu0 0
  %1320 = vmatpush2.bf16.msra.mxu0 %v951
  %1321 = vmatprep.subr.bf16.mxu0 0
  %1322 = vmatpush2.bf16.msra.mxu0 %v950
  %1323 = vmatprep.subr.bf16.mxu0 0
  %1324 = vmatpush2.bf16.msra.mxu0 %v949
  %1325 = vmatprep.subr.bf16.mxu0 0
  %1326 = vmatpush2.bf16.msra.mxu0 %v948
  %1327 = vmatprep.subr.bf16.mxu0 0
  %1328 = vmatpush2.bf16.msra.mxu0 %v947
  %1329 = vmatprep.subr.bf16.mxu0 0
  %1330 = vmatpush2.bf16.msra.mxu0 %v946
  %1331 = vmatprep.subr.bf16.mxu0 0
  %1332 = vmatpush2.bf16.msra.mxu0 %v945
  %1333 = vmatprep.mubr.bf16.mxu0 %v1282
  %1334 = vmatmul.mubr.bf16.gmra.mxu0 %v1275
  %v1335 = vpop.f32.mrf.mxu0
  %v1336 = vadd.f32 0.0, %v1335
  %v1337 = vpop.f32.mrf.mxu0
  %v1338 = vpop.f32.mrf.mxu0
  %v1339 = vpop.f32.mrf.mxu0
  %1340 = vdwg.mxu0
  %1341 = vmatprep.subr.bf16.mxu0 0
  %1342 = vmatpush1.bf16.msra.mxu0 %v960
  %1343 = vmatprep.subr.bf16.mxu0 0
  %1344 = vmatpush1.bf16.msra.mxu0 %v959
  %1345 = vmatprep.subr.bf16.mxu0 0
  %1346 = vmatpush1.bf16.msra.mxu0 %v958
  %1347 = vmatprep.subr.bf16.mxu0 0
  %1348 = vmatpush1.bf16.msra.mxu0 %v957
  %1349 = vmatprep.subr.bf16.mxu0 0
  %1350 = vmatpush1.bf16.msra.mxu0 %v956
  %1351 = vmatprep.subr.bf16.mxu0 0
  %1352 = vmatpush1.bf16.msra.mxu0 %v955
  %1353 = vmatprep.subr.bf16.mxu0 0
  %1354 = vmatpush1.bf16.msra.mxu0 %v954
  %1355 = vmatprep.subr.bf16.mxu0 0
  %1356 = vmatpush1.bf16.msra.mxu0 %v953
  %1357 = vmatprep.subr.bf16.mxu0 0
  %1358 = vmatpush2.bf16.msra.mxu0 %v968
  %1359 = vmatprep.subr.bf16.mxu0 0
  %1360 = vmatpush2.bf16.msra.mxu0 %v967
  %1361 = vmatprep.subr.bf16.mxu0 0
  %1362 = vmatpush2.bf16.msra.mxu0 %v966
  %1363 = vmatprep.subr.bf16.mxu0 0
  %1364 = vmatpush2.bf16.msra.mxu0 %v965
  %1365 = vmatprep.subr.bf16.mxu0 0
  %1366 = vmatpush2.bf16.msra.mxu0 %v964
  %1367 = vmatprep.subr.bf16.mxu0 0
  %1368 = vmatpush2.bf16.msra.mxu0 %v963
  %1369 = vmatprep.subr.bf16.mxu0 0
  %1370 = vmatpush2.bf16.msra.mxu0 %v962
  %1371 = vmatprep.subr.bf16.mxu0 0
  %1372 = vmatpush2.bf16.msra.mxu0 %v961
  %1373 = vmatprep.mubr.bf16.mxu0 %v1296
  %1374 = vmatmul.mubr.bf16.gmra.mxu0 %v1289
  %v1375 = vpop.f32.mrf.mxu0
  %v1376 = vadd.f32 %v1336, %v1375
  %v1377 = vpop.f32.mrf.mxu0
  %v1378 = vpop.f32.mrf.mxu0
  %v1379 = vpop.f32.mrf.mxu0
  %1380 = vdwg.mxu0
  %v1381 = vadd.f32 %v1264, %v1376
  %v1382 = vadd.f32 %v1381, %v1086
  %v1383 = vmax.f32 %v1382, 0.0
  %s1384 = scalar_lea.vmem %s6, 8
  %1385 = vst [vmem:[%s1384] sm:$0x7f] %v1383
  // Predicated region
  $region26: #{rerank_forward.10} parent=0 // pred_check
    _
  $region27: #{rerank_forward.10} parent=0 // pred_check_branch
    %1387 = sbr.rel (0) target = $region29
  $region28: #{rerank_forward.10} parent=0 // pred_region
    _
  $region29: #{rerank_forward.10} parent=0 // pred_fallthru
    _
  // Predicated region
  $region30: #{rerank_forward.10} parent=0 // pred_check
    _
  $region31: #{rerank_forward.10} parent=0 // pred_check_branch
    %1389 = sbr.rel (0) target = $region33
  $region32: #{rerank_forward.10} parent=0 // pred_region
    _
  $region33: #{rerank_forward.10} parent=0 // pred_fallthru
    _

// kernel: rerank_forward.11
$region0: #{rerank_forward.11}
  #allocation0 [shape = 'u32[]', space=smem, size = 0x4, offset = 0x4, fixed_abs, tag = 'smem constant byte address 0x4 - core index']
  #allocation1 [shape = 'u32[144,128]{1,0:T(1,128)}', space=vmem, size = 0x12000, scoped, tag = 'internal scratch']
  %s0 = inlined_call_operand.vmem [shape: f32[2,896], index: 0, kind: input, shape index: {}]
  %s1 = inlined_call_operand.vmem [shape: bf16[896,640], index: 1, kind: input, shape index: {}]
  %s2 = inlined_call_operand.vmem [shape: f32[1,640], index: 2, kind: input, shape index: {}]
  %s3 = inlined_call_operand.vmem [shape: bf16[640,384], index: 3, kind: input, shape index: {}]
  %s4 = inlined_call_operand.vmem [shape: f32[1,384], index: 4, kind: input, shape index: {}]
  %s5 = inlined_call_operand.vmem [shape: bf16[384,120], index: 5, kind: input, shape index: {}]
  %s6 = inlined_call_operand.vmem [shape: f32[1,120], index: 6, kind: input, shape index: {}]
  %s7 = inlined_call_operand.vmem [shape: bf16[120,50], index: 7, kind: input, shape index: {}]
  %s8 = inlined_call_operand.vmem [shape: f32[1,50], index: 8, kind: input, shape index: {}]
  %s9 = inlined_call_operand.vmem [shape: bf16[50,20], index: 9, kind: input, shape index: {}]
  %s10 = inlined_call_operand.vmem [shape: f32[1,20], index: 10, kind: input, shape index: {}]
  %s11 = inlined_call_operand.vmem [shape: bf16[20,2], index: 11, kind: input, shape index: {}]
  %s12 = inlined_call_operand.vmem [shape: f32[1,2], index: 12, kind: input, shape index: {}]
  %s13 = inlined_call_operand.hbm [shape: f32[2,2], index: 13, kind: output, shape index: {}]
  %s14 = sld [smem:[#allocation0]]
  $region62: #{rerank_forward.11} parent=0
    _
  %s16 = ssub.s32 1, %s14
  %s17 = scalar_select 0, %s16, %s14
  $region1: #{rerank_forward.11} parent=0
    #allocation2 [shape = 'u8[1024]{0}', space=vmem, size = 0x400, scoped, tag = 'output window, operand 0, single buffered']
    #allocation3 [shape = 's32[1]{0}', space=sflag, size = 0x4, scoped, tag = 'scoped memory for rerank_forward.11']
    %18 = vsyncpa [#allocation3], 0
    // Predicated region
    $region2: #{rerank_forward.11} parent=1 // pred_check
      _
    $region3: #{rerank_forward.11} parent=1 // pred_check_branch
      %20 = sbr.rel (0) target = $region5
    $region4: #{rerank_forward.11} parent=1 // pred_region
      _
    $region5: #{rerank_forward.11} parent=1 // pred_fallthru
      _
    // Predicated region
    $region6: #{rerank_forward.11} parent=1 // pred_check
      _
    $region7: #{rerank_forward.11} parent=1 // pred_check_branch
      %22 = sbr.rel (0) target = $region9
    $region8: #{rerank_forward.11} parent=1 // pred_region
      _
    $region9: #{rerank_forward.11} parent=1 // pred_fallthru
      _
    // Predicated region
    $region10: #{rerank_forward.11} parent=1 // pred_check
      _
    $region11: #{rerank_forward.11} parent=1 // pred_check_branch
      %24 = sbr.rel (0) target = $region13
    $region12: #{rerank_forward.11} parent=1 // pred_region
      _
    $region13: #{rerank_forward.11} parent=1 // pred_fallthru
      _
    // Predicated region
    $region14: #{rerank_forward.11} parent=1 // pred_check
      _
    $region15: #{rerank_forward.11} parent=1 // pred_check_branch
      %26 = sbr.rel (0) target = $region17
    $region16: #{rerank_forward.11} parent=1 // pred_region
      _
    $region17: #{rerank_forward.11} parent=1 // pred_fallthru
      _
    // Predicated region
    $region18: #{rerank_forward.11} parent=1 // pred_check
      _
    $region19: #{rerank_forward.11} parent=1 // pred_check_branch
      %28 = sbr.rel (0) target = $region21
    $region20: #{rerank_forward.11} parent=1 // pred_region
      _
    $region21: #{rerank_forward.11} parent=1 // pred_fallthru
      _
    // Predicated region
    $region22: #{rerank_forward.11} parent=1 // pred_check
      _
    $region23: #{rerank_forward.11} parent=1 // pred_check_branch
      %30 = sbr.rel (0) target = $region25
    $region24: #{rerank_forward.11} parent=1 // pred_region
      _
    $region25: #{rerank_forward.11} parent=1 // pred_fallthru
      _
    // Predicated region
    $region26: #{rerank_forward.11} parent=1 // pred_check
      _
    $region27: #{rerank_forward.11} parent=1 // pred_check_branch
      %32 = sbr.rel (0) target = $region29
    $region28: #{rerank_forward.11} parent=1 // pred_region
      _
    $region29: #{rerank_forward.11} parent=1 // pred_fallthru
      _
    // Predicated region
    $region30: #{rerank_forward.11} parent=1 // pred_check
      _
    $region31: #{rerank_forward.11} parent=1 // pred_check_branch
      %34 = sbr.rel (0) target = $region33
    $region32: #{rerank_forward.11} parent=1 // pred_region
      _
    $region33: #{rerank_forward.11} parent=1 // pred_fallthru
      _
    // Predicated region
    $region34: #{rerank_forward.11} parent=1 // pred_check
      _
    $region35: #{rerank_forward.11} parent=1 // pred_check_branch
      %36 = sbr.rel (0) target = $region37
    $region36: #{rerank_forward.11} parent=1 // pred_region
      _
    $region37: #{rerank_forward.11} parent=1 // pred_fallthru
      _
    // Predicated region
    $region38: #{rerank_forward.11} parent=1 // pred_check
      _
    $region39: #{rerank_forward.11} parent=1 // pred_check_branch
      %38 = sbr.rel (0) target = $region41
    $region40: #{rerank_forward.11} parent=1 // pred_region
      _
    $region41: #{rerank_forward.11} parent=1 // pred_fallthru
      _
    // Predicated region
    $region42: #{rerank_forward.11} parent=1 // pred_check
      _
    $region43: #{rerank_forward.11} parent=1 // pred_check_branch
      %40 = sbr.rel (0) target = $region45
    $region44: #{rerank_forward.11} parent=1 // pred_region
      _
    $region45: #{rerank_forward.11} parent=1 // pred_fallthru
      _
    // Predicated region
    $region46: #{rerank_forward.11} parent=1 // pred_check
      _
    $region47: #{rerank_forward.11} parent=1 // pred_check_branch
      %42 = sbr.rel (0) target = $region49
    $region48: #{rerank_forward.11} parent=1 // pred_region
      _
    $region49: #{rerank_forward.11} parent=1 // pred_fallthru
      _
    // Predicated region
    $region50: #{rerank_forward.11} parent=1 // pred_check
      _
    $region51: #{rerank_forward.11} parent=1 // pred_check_branch
      %44 = sbr.rel (0) target = $region53
    $region52: #{rerank_forward.11} parent=1 // pred_region
      _
    $region53: #{rerank_forward.11} parent=1 // pred_fallthru
      _
    %v46 = vld [vmem:[%s0] sm:$0xff]
    %v47 = vld [vmem:[%s0 + $0x8] sm:$0x3f]
    %v48 = vld [vmem:[%s1] sm:$0xff]
    %v49 = vld [vmem:[%s1 + $0x8] sm:$0xff]
    %v50 = vld [vmem:[%s1 + $0x10] sm:$0xf]
    %v51 = vld [vmem:[%s1 + $0x14] sm:$0xff]
    %v52 = vld [vmem:[%s1 + $0x1c] sm:$0xff]
    %v53 = vld [vmem:[%s1 + $0x24] sm:$0xf]
    %v54 = vld [vmem:[%s1 + $0x28] sm:$0xff]
    %v55 = vld [vmem:[%s1 + $0x30] sm:$0xff]
    %v56 = vld [vmem:[%s1 + $0x38] sm:$0xf]
    %v57 = vld [vmem:[%s1 + $0x3c] sm:$0xff]
    %v58 = vld [vmem:[%s1 + $0x44] sm:$0xff]
    %v59 = vld [vmem:[%s1 + $0x4c] sm:$0xf]
    %v60 = vld [vmem:[%s1 + $0x50] sm:$0xff]
    %v61 = vld [vmem:[%s1 + $0x58] sm:$0xff]
    %v62 = vld [vmem:[%s1 + $0x60] sm:$0xf]
    %v63 = vld [vmem:[%s1 + $0x64] sm:$0xff]
    %v64 = vld [vmem:[%s1 + $0x6c] sm:$0xff]
    %v65 = vld [vmem:[%s1 + $0x74] sm:$0xf]
    %v66 = vld [vmem:[%s1 + $0x78] sm:$0xff]
    %v67 = vld [vmem:[%s1 + $0x80] sm:$0xff]
    %v68 = vld [vmem:[%s1 + $0x88] sm:$0xf]
    %v69 = vld [vmem:[%s1 + $0x8c] sm:$0xff]
    %v70 = vld [vmem:[%s1 + $0x94] sm:$0xff]
    %v71 = vld [vmem:[%s1 + $0x9c] sm:$0xf]
    %v72 = vld [vmem:[%s1 + $0xa0] sm:$0xff]
    %v73 = vld [vmem:[%s1 + $0xa8] sm:$0xff]
    %v74 = vld [vmem:[%s1 + $0xb0] sm:$0xf]
    %v75 = vld [vmem:[%s1 + $0xb4] sm:$0xff]
    %v76 = vld [vmem:[%s1 + $0xbc] sm:$0xff]
    %v77 = vld [vmem:[%s1 + $0xc4] sm:$0xf]
    %v78 = vld [vmem:[%s1 + $0xc8] sm:$0xff]
    %v79 = vld [vmem:[%s1 + $0xd0] sm:$0xff]
    %v80 = vld [vmem:[%s1 + $0xd8] sm:$0xf]
    %v81 = vld [vmem:[%s1 + $0xdc] sm:$0xff]
    %v82 = vld [vmem:[%s1 + $0xe4] sm:$0xff]
    %v83 = vld [vmem:[%s1 + $0xec] sm:$0xf]
    %v84 = vld [vmem:[%s1 + $0xf0] sm:$0xff]
    %v85 = vld [vmem:[%s1 + $0xf8] sm:$0xff]
    %v86 = vld [vmem:[%s1 + $0x100] sm:$0xf]
    %v87 = vld [vmem:[%s1 + $0x104] sm:$0xff]
    %v88 = vld [vmem:[%s1 + $0x10c] sm:$0xff]
    %v89 = vld [vmem:[%s1 + $0x114] sm:$0xf]
    %v90 = vld [vmem:[%s1 + $0x118] sm:$0xff]
    %v91 = vld [vmem:[%s1 + $0x120] sm:$0xff]
    %v92 = vld [vmem:[%s1 + $0x128] sm:$0xf]
    %v93 = vld [vmem:[%s1 + $0x12c] sm:$0xff]
    %v94 = vld [vmem:[%s1 + $0x134] sm:$0xff]
    %v95 = vld [vmem:[%s1 + $0x13c] sm:$0xf]
    %v96 = vld [vmem:[%s1 + $0x140] sm:$0xff]
    %v97 = vld [vmem:[%s1 + $0x148] sm:$0xff]
    %v98 = vld [vmem:[%s1 + $0x150] sm:$0xf]
    %v99 = vld [vmem:[%s1 + $0x154] sm:$0xff]
    %v100 = vld [vmem:[%s1 + $0x15c] sm:$0xff]
    %v101 = vld [vmem:[%s1 + $0x164] sm:$0xf]
    %v102 = vld [vmem:[%s1 + $0x168] sm:$0xff]
    %v103 = vld [vmem:[%s1 + $0x170] sm:$0xff]
    %v104 = vld [vmem:[%s1 + $0x178] sm:$0xf]
    %v105 = vld [vmem:[%s1 + $0x17c] sm:$0xff]
    %v106 = vld [vmem:[%s1 + $0x184] sm:$0xff]
    %v107 = vld [vmem:[%s1 + $0x18c] sm:$0xf]
    %v108 = vld [vmem:[%s1 + $0x190] sm:$0xff]
    %v109 = vld [vmem:[%s1 + $0x198] sm:$0xff]
    %v110 = vld [vmem:[%s1 + $0x1a0] sm:$0xf]
    %v111 = vld [vmem:[%s1 + $0x1a4] sm:$0xff]
    %v112 = vld [vmem:[%s1 + $0x1ac] sm:$0xff]
    %v113 = vld [vmem:[%s1 + $0x1b4] sm:$0xf]
    %v114 = vld [vmem:[%s1 + $0x1b8] sm:$0xff]
    %v115 = vld [vmem:[%s1 + $0x1c0] sm:$0xff]
    %v116 = vld [vmem:[%s1 + $0x1c8] sm:$0xf]
    %v117 = vld [vmem:[%s1 + $0x1cc] sm:$0xff]
    %v118 = vld [vmem:[%s1 + $0x1d4] sm:$0xff]
    %v119 = vld [vmem:[%s1 + $0x1dc] sm:$0xf]
    %v120 = vld [vmem:[%s1 + $0x1e0] sm:$0xff]
    %v121 = vld [vmem:[%s1 + $0x1e8] sm:$0xff]
    %v122 = vld [vmem:[%s1 + $0x1f0] sm:$0xf]
    %v123 = vld [vmem:[%s1 + $0x1f4] sm:$0xff]
    %v124 = vld [vmem:[%s1 + $0x1fc] sm:$0xff]
    %v125 = vld [vmem:[%s1 + $0x204] sm:$0xf]
    %v126 = vld [vmem:[%s1 + $0x208] sm:$0xff]
    %v127 = vld [vmem:[%s1 + $0x210] sm:$0xff]
    %v128 = vld [vmem:[%s1 + $0x218] sm:$0xf]
    %v129 = vld [vmem:[%s1 + $0x21c] sm:$0xff]
    %v130 = vld [vmem:[%s1 + $0x224] sm:$0xff]
    %v131 = vld [vmem:[%s1 + $0x22c] sm:$0xf]
    %v132 = vld [vmem:[%s1 + $0x230] sm:$0xff]
    %v133 = vld [vmem:[%s1 + $0x238] sm:$0xff]
    %v134 = vld [vmem:[%s1 + $0x240] sm:$0xf]
    %v135 = vld [vmem:[%s1 + $0x244] sm:$0xff]
    %v136 = vld [vmem:[%s1 + $0x24c] sm:$0xff]
    %v137 = vld [vmem:[%s1 + $0x254] sm:$0xf]
    %v138 = vld [vmem:[%s1 + $0x258] sm:$0xff]
    %v139 = vld [vmem:[%s1 + $0x260] sm:$0xff]
    %v140 = vld [vmem:[%s1 + $0x268] sm:$0xf]
    %v141 = vld [vmem:[%s1 + $0x26c] sm:$0xff]
    %v142 = vld [vmem:[%s1 + $0x274] sm:$0xff]
    %v143 = vld [vmem:[%s1 + $0x27c] sm:$0xf]
    %v144 = vld [vmem:[%s1 + $0x280] sm:$0xff]
    %v145 = vld [vmem:[%s1 + $0x288] sm:$0xff]
    %v146 = vld [vmem:[%s1 + $0x290] sm:$0xf]
    %v147 = vld [vmem:[%s1 + $0x294] sm:$0xff]
    %v148 = vld [vmem:[%s1 + $0x29c] sm:$0xff]
    %v149 = vld [vmem:[%s1 + $0x2a4] sm:$0xf]
    %v150 = vld [vmem:[%s1 + $0x2a8] sm:$0xff]
    %v151 = vld [vmem:[%s1 + $0x2b0] sm:$0xff]
    %v152 = vld [vmem:[%s1 + $0x2b8] sm:$0xf]
    %v153 = vld [vmem:[%s1 + $0x2bc] sm:$0xff]
    %v154 = vld [vmem:[%s1 + $0x2c4] sm:$0xff]
    %v155 = vld [vmem:[%s1 + $0x2cc] sm:$0xf]
    %v156 = vld [vmem:[%s1 + $0x2d0] sm:$0xff]
    %v157 = vld [vmem:[%s1 + $0x2d8] sm:$0xff]
    %v158 = vld [vmem:[%s1 + $0x2e0] sm:$0xf]
    %v159 = vld [vmem:[%s1 + $0x2e4] sm:$0xff]
    %v160 = vld [vmem:[%s1 + $0x2ec] sm:$0xff]
    %v161 = vld [vmem:[%s1 + $0x2f4] sm:$0xf]
    %v162 = vld [vmem:[%s1 + $0x2f8] sm:$0xff]
    %v163 = vld [vmem:[%s1 + $0x300] sm:$0xff]
    %v164 = vld [vmem:[%s1 + $0x308] sm:$0xf]
    %v165 = vld [vmem:[%s1 + $0x30c] sm:$0xff]
    %v166 = vld [vmem:[%s1 + $0x314] sm:$0xff]
    %v167 = vld [vmem:[%s1 + $0x31c] sm:$0xf]
    %v168 = vld [vmem:[%s1 + $0x320] sm:$0xff]
    %v169 = vld [vmem:[%s1 + $0x328] sm:$0xff]
    %v170 = vld [vmem:[%s1 + $0x330] sm:$0xf]
    %v171 = vld [vmem:[%s1 + $0x334] sm:$0xff]
    %v172 = vld [vmem:[%s1 + $0x33c] sm:$0xff]
    %v173 = vld [vmem:[%s1 + $0x344] sm:$0xf]
    %v174 = vld [vmem:[%s1 + $0x348] sm:$0xff]
    %v175 = vld [vmem:[%s1 + $0x350] sm:$0xff]
    %v176 = vld [vmem:[%s1 + $0x358] sm:$0xf]
    %v177 = vld [vmem:[%s1 + $0x35c] sm:$0xff]
    %v178 = vld [vmem:[%s1 + $0x364] sm:$0xff]
    %v179 = vld [vmem:[%s1 + $0x36c] sm:$0xf]
    %v180 = vld [vmem:[%s1 + $0x370] sm:$0xff]
    %v181 = vld [vmem:[%s1 + $0x378] sm:$0xff]
    %v182 = vld [vmem:[%s1 + $0x380] sm:$0xf]
    %v183 = vld [vmem:[%s1 + $0x384] sm:$0xff]
    %v184 = vld [vmem:[%s1 + $0x38c] sm:$0xff]
    %v185 = vld [vmem:[%s1 + $0x394] sm:$0xf]
    %v186 = vld [vmem:[%s1 + $0x398] sm:$0xff]
    %v187 = vld [vmem:[%s1 + $0x3a0] sm:$0xff]
    %v188 = vld [vmem:[%s1 + $0x3a8] sm:$0xf]
    %v189 = vld [vmem:[%s1 + $0x3ac] sm:$0xff]
    %v190 = vld [vmem:[%s1 + $0x3b4] sm:$0xff]
    %v191 = vld [vmem:[%s1 + $0x3bc] sm:$0xf]
    %v192 = vld [vmem:[%s1 + $0x3c0] sm:$0xff]
    %v193 = vld [vmem:[%s1 + $0x3c8] sm:$0xff]
    %v194 = vld [vmem:[%s1 + $0x3d0] sm:$0xf]
    %v195 = vld [vmem:[%s1 + $0x3d4] sm:$0xff]
    %v196 = vld [vmem:[%s1 + $0x3dc] sm:$0xff]
    %v197 = vld [vmem:[%s1 + $0x3e4] sm:$0xf]
    %v198 = vld [vmem:[%s1 + $0x3e8] sm:$0xff]
    %v199 = vld [vmem:[%s1 + $0x3f0] sm:$0xff]
    %v200 = vld [vmem:[%s1 + $0x3f8] sm:$0xf]
    %v201 = vld [vmem:[%s1 + $0x3fc] sm:$0xff]
    %v202 = vld [vmem:[%s1 + $0x404] sm:$0xff]
    %v203 = vld [vmem:[%s1 + $0x40c] sm:$0xf]
    %v204 = vld [vmem:[%s1 + $0x410] sm:$0xff]
    %v205 = vld [vmem:[%s1 + $0x418] sm:$0xff]
    %v206 = vld [vmem:[%s1 + $0x420] sm:$0xf]
    %v207 = vld [vmem:[%s1 + $0x424] sm:$0xff]
    %v208 = vld [vmem:[%s1 + $0x42c] sm:$0xff]
    %v209 = vld [vmem:[%s1 + $0x434] sm:$0xf]
    %v210 = vld [vmem:[%s1 + $0x438] sm:$0xff]
    %v211 = vld [vmem:[%s1 + $0x440] sm:$0xff]
    %v212 = vld [vmem:[%s1 + $0x448] sm:$0xf]
    %v213 = vld [vmem:[%s1 + $0x44c] sm:$0xff]
    %v214 = vld [vmem:[%s1 + $0x454] sm:$0xff]
    %v215 = vld [vmem:[%s1 + $0x45c] sm:$0xf]
    %v216 = vld [vmem:[%s1 + $0x460] sm:$0xff]
    %v217 = vld [vmem:[%s1 + $0x468] sm:$0xff]
    %v218 = vld [vmem:[%s1 + $0x470] sm:$0xf]
    %v219 = vld [vmem:[%s1 + $0x474] sm:$0xff]
    %v220 = vld [vmem:[%s1 + $0x47c] sm:$0xff]
    %v221 = vld [vmem:[%s1 + $0x484] sm:$0xf]
    %v222 = vld [vmem:[%s1 + $0x488] sm:$0xff]
    %v223 = vld [vmem:[%s1 + $0x490] sm:$0xff]
    %v224 = vld [vmem:[%s1 + $0x498] sm:$0xf]
    %v225 = vld [vmem:[%s1 + $0x49c] sm:$0xff]
    %v226 = vld [vmem:[%s1 + $0x4a4] sm:$0xff]
    %v227 = vld [vmem:[%s1 + $0x4ac] sm:$0xf]
    %v228 = vld [vmem:[%s1 + $0x4b0] sm:$0xff]
    %v229 = vld [vmem:[%s1 + $0x4b8] sm:$0xff]
    %v230 = vld [vmem:[%s1 + $0x4c0] sm:$0xf]
    %v231 = vld [vmem:[%s1 + $0x4c4] sm:$0xff]
    %v232 = vld [vmem:[%s1 + $0x4cc] sm:$0xff]
    %v233 = vld [vmem:[%s1 + $0x4d4] sm:$0xf]
    %v234 = vld [vmem:[%s1 + $0x4d8] sm:$0xff]
    %v235 = vld [vmem:[%s1 + $0x4e0] sm:$0xff]
    %v236 = vld [vmem:[%s1 + $0x4e8] sm:$0xf]
    %v237 = vld [vmem:[%s1 + $0x4ec] sm:$0xff]
    %v238 = vld [vmem:[%s1 + $0x4f4] sm:$0xff]
    %v239 = vld [vmem:[%s1 + $0x4fc] sm:$0xf]
    %v240 = vld [vmem:[%s1 + $0x500] sm:$0xff]
    %v241 = vld [vmem:[%s1 + $0x508] sm:$0xff]
    %v242 = vld [vmem:[%s1 + $0x510] sm:$0xf]
    %v243 = vld [vmem:[%s1 + $0x514] sm:$0xff]
    %v244 = vld [vmem:[%s1 + $0x51c] sm:$0xff]
    %v245 = vld [vmem:[%s1 + $0x524] sm:$0xf]
    %v246 = vld [vmem:[%s1 + $0x528] sm:$0xff]
    %v247 = vld [vmem:[%s1 + $0x530] sm:$0xff]
    %v248 = vld [vmem:[%s1 + $0x538] sm:$0xf]
    %v249 = vld [vmem:[%s1 + $0x53c] sm:$0xff]
    %v250 = vld [vmem:[%s1 + $0x544] sm:$0xff]
    %v251 = vld [vmem:[%s1 + $0x54c] sm:$0xf]
    %v252 = vld [vmem:[%s1 + $0x550] sm:$0xff]
    %v253 = vld [vmem:[%s1 + $0x558] sm:$0xff]
    %v254 = vld [vmem:[%s1 + $0x560] sm:$0xf]
    %v255 = vld [vmem:[%s1 + $0x564] sm:$0xff]
    %v256 = vld [vmem:[%s1 + $0x56c] sm:$0xff]
    %v257 = vld [vmem:[%s1 + $0x574] sm:$0xf]
    %v258 = vld [vmem:[%s1 + $0x578] sm:$0xff]
    %v259 = vld [vmem:[%s1 + $0x580] sm:$0xff]
    %v260 = vld [vmem:[%s1 + $0x588] sm:$0xf]
    %v261 = vld [vmem:[%s1 + $0x58c] sm:$0xff]
    %v262 = vld [vmem:[%s1 + $0x594] sm:$0xff]
    %v263 = vld [vmem:[%s1 + $0x59c] sm:$0xf]
    %v264 = vld [vmem:[%s1 + $0x5a0] sm:$0xff]
    %v265 = vld [vmem:[%s1 + $0x5a8] sm:$0xff]
    %v266 = vld [vmem:[%s1 + $0x5b0] sm:$0xf]
    %v267 = vld [vmem:[%s1 + $0x5b4] sm:$0xff]
    %v268 = vld [vmem:[%s1 + $0x5bc] sm:$0xff]
    %v269 = vld [vmem:[%s1 + $0x5c4] sm:$0xf]
    %v270 = vld [vmem:[%s1 + $0x5c8] sm:$0xff]
    %v271 = vld [vmem:[%s1 + $0x5d0] sm:$0xff]
    %v272 = vld [vmem:[%s1 + $0x5d8] sm:$0xf]
    %v273 = vld [vmem:[%s1 + $0x5dc] sm:$0xff]
    %v274 = vld [vmem:[%s1 + $0x5e4] sm:$0xff]
    %v275 = vld [vmem:[%s1 + $0x5ec] sm:$0xf]
    %v276 = vld [vmem:[%s1 + $0x5f0] sm:$0xff]
    %v277 = vld [vmem:[%s1 + $0x5f8] sm:$0xff]
    %v278 = vld [vmem:[%s1 + $0x600] sm:$0xf]
    %v279 = vld [vmem:[%s1 + $0x604] sm:$0xff]
    %v280 = vld [vmem:[%s1 + $0x60c] sm:$0xff]
    %v281 = vld [vmem:[%s1 + $0x614] sm:$0xf]
    %v282 = vld [vmem:[%s1 + $0x618] sm:$0xff]
    %v283 = vld [vmem:[%s1 + $0x620] sm:$0xff]
    %v284 = vld [vmem:[%s1 + $0x628] sm:$0xf]
    %v285 = vld [vmem:[%s1 + $0x62c] sm:$0xff]
    %v286 = vld [vmem:[%s1 + $0x634] sm:$0xff]
    %v287 = vld [vmem:[%s1 + $0x63c] sm:$0xf]
    %v288 = vld [vmem:[%s1 + $0x640] sm:$0xff]
    %v289 = vld [vmem:[%s1 + $0x648] sm:$0xff]
    %v290 = vld [vmem:[%s1 + $0x650] sm:$0xf]
    %v291 = vld [vmem:[%s1 + $0x654] sm:$0xff]
    %v292 = vld [vmem:[%s1 + $0x65c] sm:$0xff]
    %v293 = vld [vmem:[%s1 + $0x664] sm:$0xf]
    %v294 = vld [vmem:[%s1 + $0x668] sm:$0xff]
    %v295 = vld [vmem:[%s1 + $0x670] sm:$0xff]
    %v296 = vld [vmem:[%s1 + $0x678] sm:$0xf]
    %v297 = vld [vmem:[%s1 + $0x67c] sm:$0xff]
    %v298 = vld [vmem:[%s1 + $0x684] sm:$0xff]
    %v299 = vld [vmem:[%s1 + $0x68c] sm:$0xf]
    %v300 = vld [vmem:[%s1 + $0x690] sm:$0xff]
    %v301 = vld [vmem:[%s1 + $0x698] sm:$0xff]
    %v302 = vld [vmem:[%s1 + $0x6a0] sm:$0xf]
    %v303 = vld [vmem:[%s1 + $0x6a4] sm:$0xff]
    %v304 = vld [vmem:[%s1 + $0x6ac] sm:$0xff]
    %v305 = vld [vmem:[%s1 + $0x6b4] sm:$0xf]
    %v306 = vld [vmem:[%s1 + $0x6b8] sm:$0xff]
    %v307 = vld [vmem:[%s1 + $0x6c0] sm:$0xff]
    %v308 = vld [vmem:[%s1 + $0x6c8] sm:$0xf]
    %v309 = vld [vmem:[%s1 + $0x6cc] sm:$0xff]
    %v310 = vld [vmem:[%s1 + $0x6d4] sm:$0xff]
    %v311 = vld [vmem:[%s1 + $0x6dc] sm:$0xf]
    %v312 = vld [vmem:[%s1 + $0x6e0] sm:$0xff]
    %v313 = vld [vmem:[%s1 + $0x6e8] sm:$0xff]
    %v314 = vld [vmem:[%s1 + $0x6f0] sm:$0xf]
    %v315 = vld [vmem:[%s1 + $0x6f4] sm:$0xff]
    %v316 = vld [vmem:[%s1 + $0x6fc] sm:$0xff]
    %v317 = vld [vmem:[%s1 + $0x704] sm:$0xf]
    %v318 = vld [vmem:[%s1 + $0x708] sm:$0xff]
    %v319 = vld [vmem:[%s1 + $0x710] sm:$0xff]
    %v320 = vld [vmem:[%s1 + $0x718] sm:$0xf]
    %v321 = vld [vmem:[%s1 + $0x71c] sm:$0xff]
    %v322 = vld [vmem:[%s1 + $0x724] sm:$0xff]
    %v323 = vld [vmem:[%s1 + $0x72c] sm:$0xf]
    %v324 = vld [vmem:[%s1 + $0x730] sm:$0xff]
    %v325 = vld [vmem:[%s1 + $0x738] sm:$0xff]
    %v326 = vld [vmem:[%s1 + $0x740] sm:$0xf]
    %v327 = vld [vmem:[%s1 + $0x744] sm:$0xff]
    %v328 = vld [vmem:[%s1 + $0x74c] sm:$0xff]
    %v329 = vld [vmem:[%s1 + $0x754] sm:$0xf]
    %v330 = vld [vmem:[%s1 + $0x758] sm:$0xff]
    %v331 = vld [vmem:[%s1 + $0x760] sm:$0xff]
    %v332 = vld [vmem:[%s1 + $0x768] sm:$0xf]
    %v333 = vld [vmem:[%s1 + $0x76c] sm:$0xff]
    %v334 = vld [vmem:[%s1 + $0x774] sm:$0xff]
    %v335 = vld [vmem:[%s1 + $0x77c] sm:$0xf]
    %v336 = vld [vmem:[%s1 + $0x780] sm:$0xff]
    %v337 = vld [vmem:[%s1 + $0x788] sm:$0xff]
    %v338 = vld [vmem:[%s1 + $0x790] sm:$0xf]
    %v339 = vld [vmem:[%s1 + $0x794] sm:$0xff]
    %v340 = vld [vmem:[%s1 + $0x79c] sm:$0xff]
    %v341 = vld [vmem:[%s1 + $0x7a4] sm:$0xf]
    %v342 = vld [vmem:[%s1 + $0x7a8] sm:$0xff]
    %v343 = vld [vmem:[%s1 + $0x7b0] sm:$0xff]
    %v344 = vld [vmem:[%s1 + $0x7b8] sm:$0xf]
    %v345 = vld [vmem:[%s1 + $0x7bc] sm:$0xff]
    %v346 = vld [vmem:[%s1 + $0x7c4] sm:$0xff]
    %v347 = vld [vmem:[%s1 + $0x7cc] sm:$0xf]
    %v348 = vld [vmem:[%s1 + $0x7d0] sm:$0xff]
    %v349 = vld [vmem:[%s1 + $0x7d8] sm:$0xff]
    %v350 = vld [vmem:[%s1 + $0x7e0] sm:$0xf]
    %v351 = vld [vmem:[%s1 + $0x7e4] sm:$0xff]
    %v352 = vld [vmem:[%s1 + $0x7ec] sm:$0xff]
    %v353 = vld [vmem:[%s1 + $0x7f4] sm:$0xf]
    %v354 = vld [vmem:[%s1 + $0x7f8] sm:$0xff]
    %v355 = vld [vmem:[%s1 + $0x800] sm:$0xff]
    %v356 = vld [vmem:[%s1 + $0x808] sm:$0xf]
    %v357 = vld [vmem:[%s1 + $0x80c] sm:$0xff]
    %v358 = vld [vmem:[%s1 + $0x814] sm:$0xff]
    %v359 = vld [vmem:[%s1 + $0x81c] sm:$0xf]
    %v360 = vld [vmem:[%s1 + $0x820] sm:$0xff]
    %v361 = vld [vmem:[%s1 + $0x828] sm:$0xff]
    %v362 = vld [vmem:[%s1 + $0x830] sm:$0xf]
    %v363 = vld [vmem:[%s1 + $0x834] sm:$0xff]
    %v364 = vld [vmem:[%s1 + $0x83c] sm:$0xff]
    %v365 = vld [vmem:[%s1 + $0x844] sm:$0xf]
    %v366 = vld [vmem:[%s1 + $0x848] sm:$0xff]
    %v367 = vld [vmem:[%s1 + $0x850] sm:$0xff]
    %v368 = vld [vmem:[%s1 + $0x858] sm:$0xf]
    %v369 = vld [vmem:[%s1 + $0x85c] sm:$0xff]
    %v370 = vld [vmem:[%s1 + $0x864] sm:$0xff]
    %v371 = vld [vmem:[%s1 + $0x86c] sm:$0xf]
    %v372 = vld [vmem:[%s1 + $0x870] sm:$0xff]
    %v373 = vld [vmem:[%s1 + $0x878] sm:$0xff]
    %v374 = vld [vmem:[%s1 + $0x880] sm:$0xf]
    %v375 = vld [vmem:[%s1 + $0x884] sm:$0xff]
    %v376 = vld [vmem:[%s1 + $0x88c] sm:$0xff]
    %v377 = vld [vmem:[%s1 + $0x894] sm:$0xf]
    %v378 = vld [vmem:[%s1 + $0x898] sm:$0xff]
    %v379 = vld [vmem:[%s1 + $0x8a0] sm:$0xff]
    %v380 = vld [vmem:[%s1 + $0x8a8] sm:$0xf]
    %v381 = vld [vmem:[%s1 + $0x8ac] sm:$0xff]
    %v382 = vld [vmem:[%s1 + $0x8b4] sm:$0xff]
    %v383 = vld [vmem:[%s1 + $0x8bc] sm:$0xf]
    %v384 = vld [vmem:[%s2] sm:$0x1f]
    %v387 = vcombine.high %v46, %v46
    %v389 = vunpack.c.l.s4 1983009808
    %v390 = vunpack.c.0.s8 %v389
    %v391 = vlaneseq
    %v392 = vshrl.u32 %v391, 7
    %v393 = vsub.s32 %v390, %v392
    %v394 = vrot.slane %v46, %v393
    %v396 = vunpack.c.l.s4 1983009808
    %v397 = vunpack.c.0.s8 %v396
    %v398 = vlaneseq
    %v399 = vshrl.u32 %v398, 7
    %v400 = vsub.s32 %v397, %v399
    %v401 = vrot.slane %v387, %v400
    %v402 = vcombine.high %v394, %v394
    %v403 = vcombine.high %v401, %v401
    %v404 = vcombine.high %v47, %v47
    %v406 = vunpack.c.l.s4 1983009808
    %v407 = vunpack.c.0.s8 %v406
    %v408 = vlaneseq
    %v409 = vshrl.u32 %v408, 7
    %v410 = vsub.s32 %v407, %v409
    %v411 = vrot.slane %v47, %v410
    %v413 = vunpack.c.l.s4 1983009808
    %v414 = vunpack.c.0.s8 %v413
    %v415 = vlaneseq
    %v416 = vshrl.u32 %v415, 7
    %v417 = vsub.s32 %v414, %v416
    %v418 = vrot.slane %v404, %v417
    %v419 = vcombine.high %v411, %v411
    %v427 = vpack.c.bf16 %v394, %v394
    %v428 = vpack.c.bf16 %v402, %v402
    %v429 = vpack.c.bf16 %v401, %v401
    %v430 = vpack.c.bf16 %v403, %v403
    %v431 = vpack.c.bf16 %v411, %v411
    %v432 = vpack.c.bf16 %v419, %v419
    %v433 = vpack.c.bf16 %v418, %v418
    %v435 = vlaneseq
    %v436 = vshrl.u32 %v435, 7
    %v437 = vsub.s32 0, %v436
    %v438 = vrot.slane %v384, %v437
    %v439 = vlaneseq
    %v440 = vshrl.u32 %v439, 7
    %v441 = vsub.s32 1, %v440
    %v442 = vrot.slane %v384, %v441
    %v443 = vlaneseq
    %v444 = vshrl.u32 %v443, 7
    %v445 = vsub.s32 2, %v444
    %v446 = vrot.slane %v384, %v445
    %v447 = vlaneseq
    %v448 = vshrl.u32 %v447, 7
    %v449 = vsub.s32 3, %v448
    %v450 = vrot.slane %v384, %v449
    %v451 = vlaneseq
    %v452 = vshrl.u32 %v451, 7
    %v453 = vsub.s32 4, %v452
    %v454 = vrot.slane %v384, %v453
    %v796 = vunpack.c.l.b16 %v48
    %v797 = vunpack.c.h.b16 %v48
    %v798 = vunpack.c.l.b16 %v49
    %v799 = vunpack.c.h.b16 %v49
    %v800 = vunpack.c.l.b16 %v50
    %v801 = vunpack.c.l.b16 %v51
    %v802 = vunpack.c.h.b16 %v51
    %v803 = vunpack.c.l.b16 %v52
    %v804 = vunpack.c.h.b16 %v52
    %v805 = vunpack.c.l.b16 %v53
    %v806 = vunpack.c.l.b16 %v54
    %v807 = vunpack.c.h.b16 %v54
    %v808 = vunpack.c.l.b16 %v55
    %v809 = vunpack.c.h.b16 %v55
    %v810 = vunpack.c.l.b16 %v56
    %v811 = vunpack.c.l.b16 %v57
    %v812 = vunpack.c.h.b16 %v57
    %v813 = vunpack.c.l.b16 %v58
    %v814 = vunpack.c.h.b16 %v58
    %v815 = vunpack.c.l.b16 %v59
    %v816 = vunpack.c.l.b16 %v60
    %v817 = vunpack.c.h.b16 %v60
    %v818 = vunpack.c.l.b16 %v61
    %v819 = vunpack.c.h.b16 %v61
    %v820 = vunpack.c.l.b16 %v62
    %v821 = vunpack.c.l.b16 %v63
    %v822 = vunpack.c.h.b16 %v63
    %v823 = vunpack.c.l.b16 %v64
    %v824 = vunpack.c.h.b16 %v64
    %v825 = vunpack.c.l.b16 %v65
    %v826 = vunpack.c.l.b16 %v66
    %v827 = vunpack.c.h.b16 %v66
    %v828 = vunpack.c.l.b16 %v67
    %v829 = vunpack.c.h.b16 %v67
    %v830 = vunpack.c.l.b16 %v68
    %v831 = vunpack.c.l.b16 %v69
    %v832 = vunpack.c.h.b16 %v69
    %v833 = vunpack.c.l.b16 %v70
    %v834 = vunpack.c.h.b16 %v70
    %v835 = vunpack.c.l.b16 %v71
    %v836 = vunpack.c.l.b16 %v72
    %v837 = vunpack.c.h.b16 %v72
    %v838 = vunpack.c.l.b16 %v73
    %v839 = vunpack.c.h.b16 %v73
    %v840 = vunpack.c.l.b16 %v74
    %v841 = vunpack.c.l.b16 %v75
    %v842 = vunpack.c.h.b16 %v75
    %v843 = vunpack.c.l.b16 %v76
    %v844 = vunpack.c.h.b16 %v76
    %v845 = vunpack.c.l.b16 %v77
    %v846 = vunpack.c.l.b16 %v78
    %v847 = vunpack.c.h.b16 %v78
    %v848 = vunpack.c.l.b16 %v79
    %v849 = vunpack.c.h.b16 %v79
    %v850 = vunpack.c.l.b16 %v80
    %v851 = vunpack.c.l.b16 %v81
    %v852 = vunpack.c.h.b16 %v81
    %v853 = vunpack.c.l.b16 %v82
    %v854 = vunpack.c.h.b16 %v82
    %v855 = vunpack.c.l.b16 %v83
    %v856 = vunpack.c.l.b16 %v84
    %v857 = vunpack.c.h.b16 %v84
    %v858 = vunpack.c.l.b16 %v85
    %v859 = vunpack.c.h.b16 %v85
    %v860 = vunpack.c.l.b16 %v86
    %v861 = vunpack.c.l.b16 %v87
    %v862 = vunpack.c.h.b16 %v87
    %v863 = vunpack.c.l.b16 %v88
    %v864 = vunpack.c.h.b16 %v88
    %v865 = vunpack.c.l.b16 %v89
    %v866 = vunpack.c.l.b16 %v90
    %v867 = vunpack.c.h.b16 %v90
    %v868 = vunpack.c.l.b16 %v91
    %v869 = vunpack.c.h.b16 %v91
    %v870 = vunpack.c.l.b16 %v92
    %v871 = vunpack.c.l.b16 %v93
    %v872 = vunpack.c.h.b16 %v93
    %v873 = vunpack.c.l.b16 %v94
    %v874 = vunpack.c.h.b16 %v94
    %v875 = vunpack.c.l.b16 %v95
    %v876 = vunpack.c.l.b16 %v96
    %v877 = vunpack.c.h.b16 %v96
    %v878 = vunpack.c.l.b16 %v97
    %v879 = vunpack.c.h.b16 %v97
    %v880 = vunpack.c.l.b16 %v98
    %v881 = vunpack.c.l.b16 %v99
    %v882 = vunpack.c.h.b16 %v99
    %v883 = vunpack.c.l.b16 %v100
    %v884 = vunpack.c.h.b16 %v100
    %v885 = vunpack.c.l.b16 %v101
    %v886 = vunpack.c.l.b16 %v102
    %v887 = vunpack.c.h.b16 %v102
    %v888 = vunpack.c.l.b16 %v103
    %v889 = vunpack.c.h.b16 %v103
    %v890 = vunpack.c.l.b16 %v104
    %v891 = vunpack.c.l.b16 %v105
    %v892 = vunpack.c.h.b16 %v105
    %v893 = vunpack.c.l.b16 %v106
    %v894 = vunpack.c.h.b16 %v106
    %v895 = vunpack.c.l.b16 %v107
    %v896 = vunpack.c.l.b16 %v108
    %v897 = vunpack.c.h.b16 %v108
    %v898 = vunpack.c.l.b16 %v109
    %v899 = vunpack.c.h.b16 %v109
    %v900 = vunpack.c.l.b16 %v110
    %v901 = vunpack.c.l.b16 %v111
    %v902 = vunpack.c.h.b16 %v111
    %v903 = vunpack.c.l.b16 %v112
    %v904 = vunpack.c.h.b16 %v112
    %v905 = vunpack.c.l.b16 %v113
    %v906 = vunpack.c.l.b16 %v114
    %v907 = vunpack.c.h.b16 %v114
    %v908 = vunpack.c.l.b16 %v115
    %v909 = vunpack.c.h.b16 %v115
    %v910 = vunpack.c.l.b16 %v116
    %v911 = vunpack.c.l.b16 %v117
    %v912 = vunpack.c.h.b16 %v117
    %v913 = vunpack.c.l.b16 %v118
    %v914 = vunpack.c.h.b16 %v118
    %v915 = vunpack.c.l.b16 %v119
    %v916 = vunpack.c.l.b16 %v120
    %v917 = vunpack.c.h.b16 %v120
    %v918 = vunpack.c.l.b16 %v121
    %v919 = vunpack.c.h.b16 %v121
    %v920 = vunpack.c.l.b16 %v122
    %v921 = vunpack.c.l.b16 %v123
    %v922 = vunpack.c.h.b16 %v123
    %v923 = vunpack.c.l.b16 %v124
    %v924 = vunpack.c.h.b16 %v124
    %v925 = vunpack.c.l.b16 %v125
    %v926 = vunpack.c.l.b16 %v126
    %v927 = vunpack.c.h.b16 %v126
    %v928 = vunpack.c.l.b16 %v127
    %v929 = vunpack.c.h.b16 %v127
    %v930 = vunpack.c.l.b16 %v128
    %v931 = vunpack.c.l.b16 %v129
    %v932 = vunpack.c.h.b16 %v129
    %v933 = vunpack.c.l.b16 %v130
    %v934 = vunpack.c.h.b16 %v130
    %v935 = vunpack.c.l.b16 %v131
    %v936 = vunpack.c.l.b16 %v132
    %v937 = vunpack.c.h.b16 %v132
    %v938 = vunpack.c.l.b16 %v133
    %v939 = vunpack.c.h.b16 %v133
    %v940 = vunpack.c.l.b16 %v134
    %v941 = vunpack.c.l.b16 %v135
    %v942 = vunpack.c.h.b16 %v135
    %v943 = vunpack.c.l.b16 %v136
    %v944 = vunpack.c.h.b16 %v136
    %v945 = vunpack.c.l.b16 %v137
    %v946 = vunpack.c.l.b16 %v138
    %v947 = vunpack.c.h.b16 %v138
    %v948 = vunpack.c.l.b16 %v139
    %v949 = vunpack.c.h.b16 %v139
    %v950 = vunpack.c.l.b16 %v140
    %v951 = vunpack.c.l.b16 %v141
    %v952 = vunpack.c.h.b16 %v141
    %v953 = vunpack.c.l.b16 %v142
    %v954 = vunpack.c.h.b16 %v142
    %v955 = vunpack.c.l.b16 %v143
    %v956 = vunpack.c.l.b16 %v144
    %v957 = vunpack.c.h.b16 %v144
    %v958 = vunpack.c.l.b16 %v145
    %v959 = vunpack.c.h.b16 %v145
    %v960 = vunpack.c.l.b16 %v146
    %v961 = vunpack.c.l.b16 %v147
    %v962 = vunpack.c.h.b16 %v147
    %v963 = vunpack.c.l.b16 %v148
    %v964 = vunpack.c.h.b16 %v148
    %v965 = vunpack.c.l.b16 %v149
    %v966 = vunpack.c.l.b16 %v150
    %v967 = vunpack.c.h.b16 %v150
    %v968 = vunpack.c.l.b16 %v151
    %v969 = vunpack.c.h.b16 %v151
    %v970 = vunpack.c.l.b16 %v152
    %v971 = vunpack.c.l.b16 %v153
    %v972 = vunpack.c.h.b16 %v153
    %v973 = vunpack.c.l.b16 %v154
    %v974 = vunpack.c.h.b16 %v154
    %v975 = vunpack.c.l.b16 %v155
    %v976 = vunpack.c.l.b16 %v156
    %v977 = vunpack.c.h.b16 %v156
    %v978 = vunpack.c.l.b16 %v157
    %v979 = vunpack.c.h.b16 %v157
    %v980 = vunpack.c.l.b16 %v158
    %v981 = vunpack.c.l.b16 %v159
    %v982 = vunpack.c.h.b16 %v159
    %v983 = vunpack.c.l.b16 %v160
    %v984 = vunpack.c.h.b16 %v160
    %v985 = vunpack.c.l.b16 %v161
    %v986 = vunpack.c.l.b16 %v162
    %v987 = vunpack.c.h.b16 %v162
    %v988 = vunpack.c.l.b16 %v163
    %v989 = vunpack.c.h.b16 %v163
    %v990 = vunpack.c.l.b16 %v164
    %v991 = vunpack.c.l.b16 %v165
    %v992 = vunpack.c.h.b16 %v165
    %v993 = vunpack.c.l.b16 %v166
    %v994 = vunpack.c.h.b16 %v166
    %v995 = vunpack.c.l.b16 %v167
    %v996 = vunpack.c.l.b16 %v168
    %v997 = vunpack.c.h.b16 %v168
    %v998 = vunpack.c.l.b16 %v169
    %v999 = vunpack.c.h.b16 %v169
    %v1000 = vunpack.c.l.b16 %v170
    %v1001 = vunpack.c.l.b16 %v171
    %v1002 = vunpack.c.h.b16 %v171
    %v1003 = vunpack.c.l.b16 %v172
    %v1004 = vunpack.c.h.b16 %v172
    %v1005 = vunpack.c.l.b16 %v173
    %v1006 = vunpack.c.l.b16 %v174
    %v1007 = vunpack.c.h.b16 %v174
    %v1008 = vunpack.c.l.b16 %v175
    %v1009 = vunpack.c.h.b16 %v175
    %v1010 = vunpack.c.l.b16 %v176
    %v1011 = vunpack.c.l.b16 %v177
    %v1012 = vunpack.c.h.b16 %v177
    %v1013 = vunpack.c.l.b16 %v178
    %v1014 = vunpack.c.h.b16 %v178
    %v1015 = vunpack.c.l.b16 %v179
    %v1016 = vunpack.c.l.b16 %v180
    %v1017 = vunpack.c.h.b16 %v180
    %v1018 = vunpack.c.l.b16 %v181
    %v1019 = vunpack.c.h.b16 %v181
    %v1020 = vunpack.c.l.b16 %v182
    %v1021 = vunpack.c.l.b16 %v183
    %v1022 = vunpack.c.h.b16 %v183
    %v1023 = vunpack.c.l.b16 %v184
    %v1024 = vunpack.c.h.b16 %v184
    %v1025 = vunpack.c.l.b16 %v185
    %v1026 = vunpack.c.l.b16 %v186
    %v1027 = vunpack.c.h.b16 %v186
    %v1028 = vunpack.c.l.b16 %v187
    %v1029 = vunpack.c.h.b16 %v187
    %v1030 = vunpack.c.l.b16 %v188
    %v1031 = vunpack.c.l.b16 %v189
    %v1032 = vunpack.c.h.b16 %v189
    %v1033 = vunpack.c.l.b16 %v190
    %v1034 = vunpack.c.h.b16 %v190
    %v1035 = vunpack.c.l.b16 %v191
    %v1036 = vunpack.c.l.b16 %v192
    %v1037 = vunpack.c.h.b16 %v192
    %v1038 = vunpack.c.l.b16 %v193
    %v1039 = vunpack.c.h.b16 %v193
    %v1040 = vunpack.c.l.b16 %v194
    %v1041 = vunpack.c.l.b16 %v195
    %v1042 = vunpack.c.h.b16 %v195
    %v1043 = vunpack.c.l.b16 %v196
    %v1044 = vunpack.c.h.b16 %v196
    %v1045 = vunpack.c.l.b16 %v197
    %v1046 = vunpack.c.l.b16 %v198
    %v1047 = vunpack.c.h.b16 %v198
    %v1048 = vunpack.c.l.b16 %v199
    %v1049 = vunpack.c.h.b16 %v199
    %v1050 = vunpack.c.l.b16 %v200
    %v1051 = vunpack.c.l.b16 %v201
    %v1052 = vunpack.c.h.b16 %v201
    %v1053 = vunpack.c.l.b16 %v202
    %v1054 = vunpack.c.h.b16 %v202
    %v1055 = vunpack.c.l.b16 %v203
    %v1056 = vunpack.c.l.b16 %v204
    %v1057 = vunpack.c.h.b16 %v204
    %v1058 = vunpack.c.l.b16 %v205
    %v1059 = vunpack.c.h.b16 %v205
    %v1060 = vunpack.c.l.b16 %v206
    %v1061 = vunpack.c.l.b16 %v207
    %v1062 = vunpack.c.h.b16 %v207
    %v1063 = vunpack.c.l.b16 %v208
    %v1064 = vunpack.c.h.b16 %v208
    %v1065 = vunpack.c.l.b16 %v209
    %v1066 = vunpack.c.l.b16 %v210
    %v1067 = vunpack.c.h.b16 %v210
    %v1068 = vunpack.c.l.b16 %v211
    %v1069 = vunpack.c.h.b16 %v211
    %v1070 = vunpack.c.l.b16 %v212
    %v1071 = vunpack.c.l.b16 %v213
    %v1072 = vunpack.c.h.b16 %v213
    %v1073 = vunpack.c.l.b16 %v214
    %v1074 = vunpack.c.h.b16 %v214
    %v1075 = vunpack.c.l.b16 %v215
    %v1076 = vunpack.c.l.b16 %v216
    %v1077 = vunpack.c.h.b16 %v216
    %v1078 = vunpack.c.l.b16 %v217
    %v1079 = vunpack.c.h.b16 %v217
    %v1080 = vunpack.c.l.b16 %v218
    %v1081 = vunpack.c.l.b16 %v219
    %v1082 = vunpack.c.h.b16 %v219
    %v1083 = vunpack.c.l.b16 %v220
    %v1084 = vunpack.c.h.b16 %v220
    %v1085 = vunpack.c.l.b16 %v221
    %v1086 = vunpack.c.l.b16 %v222
    %v1087 = vunpack.c.h.b16 %v222
    %v1088 = vunpack.c.l.b16 %v223
    %v1089 = vunpack.c.h.b16 %v223
    %v1090 = vunpack.c.l.b16 %v224
    %v1091 = vunpack.c.l.b16 %v225
    %v1092 = vunpack.c.h.b16 %v225
    %v1093 = vunpack.c.l.b16 %v226
    %v1094 = vunpack.c.h.b16 %v226
    %v1095 = vunpack.c.l.b16 %v227
    %v1096 = vunpack.c.l.b16 %v228
    %v1097 = vunpack.c.h.b16 %v228
    %v1098 = vunpack.c.l.b16 %v229
    %v1099 = vunpack.c.h.b16 %v229
    %v1100 = vunpack.c.l.b16 %v230
    %v1101 = vunpack.c.l.b16 %v231
    %v1102 = vunpack.c.h.b16 %v231
    %v1103 = vunpack.c.l.b16 %v232
    %v1104 = vunpack.c.h.b16 %v232
    %v1105 = vunpack.c.l.b16 %v233
    %v1106 = vunpack.c.l.b16 %v234
    %v1107 = vunpack.c.h.b16 %v234
    %v1108 = vunpack.c.l.b16 %v235
    %v1109 = vunpack.c.h.b16 %v235
    %v1110 = vunpack.c.l.b16 %v236
    %v1111 = vunpack.c.l.b16 %v237
    %v1112 = vunpack.c.h.b16 %v237
    %v1113 = vunpack.c.l.b16 %v238
    %v1114 = vunpack.c.h.b16 %v238
    %v1115 = vunpack.c.l.b16 %v239
    %v1116 = vunpack.c.l.b16 %v240
    %v1117 = vunpack.c.h.b16 %v240
    %v1118 = vunpack.c.l.b16 %v241
    %v1119 = vunpack.c.h.b16 %v241
    %v1120 = vunpack.c.l.b16 %v242
    %v1121 = vunpack.c.l.b16 %v243
    %v1122 = vunpack.c.h.b16 %v243
    %v1123 = vunpack.c.l.b16 %v244
    %v1124 = vunpack.c.h.b16 %v244
    %v1125 = vunpack.c.l.b16 %v245
    %v1126 = vunpack.c.l.b16 %v246
    %v1127 = vunpack.c.h.b16 %v246
    %v1128 = vunpack.c.l.b16 %v247
    %v1129 = vunpack.c.h.b16 %v247
    %v1130 = vunpack.c.l.b16 %v248
    %v1131 = vunpack.c.l.b16 %v249
    %v1132 = vunpack.c.h.b16 %v249
    %v1133 = vunpack.c.l.b16 %v250
    %v1134 = vunpack.c.h.b16 %v250
    %v1135 = vunpack.c.l.b16 %v251
    %v1136 = vunpack.c.l.b16 %v252
    %v1137 = vunpack.c.h.b16 %v252
    %v1138 = vunpack.c.l.b16 %v253
    %v1139 = vunpack.c.h.b16 %v253
    %v1140 = vunpack.c.l.b16 %v254
    %v1141 = vunpack.c.l.b16 %v255
    %v1142 = vunpack.c.h.b16 %v255
    %v1143 = vunpack.c.l.b16 %v256
    %v1144 = vunpack.c.h.b16 %v256
    %v1145 = vunpack.c.l.b16 %v257
    %v1146 = vunpack.c.l.b16 %v258
    %v1147 = vunpack.c.h.b16 %v258
    %v1148 = vunpack.c.l.b16 %v259
    %v1149 = vunpack.c.h.b16 %v259
    %v1150 = vunpack.c.l.b16 %v260
    %v1151 = vunpack.c.l.b16 %v261
    %v1152 = vunpack.c.h.b16 %v261
    %v1153 = vunpack.c.l.b16 %v262
    %v1154 = vunpack.c.h.b16 %v262
    %v1155 = vunpack.c.l.b16 %v263
    %v1156 = vunpack.c.l.b16 %v264
    %v1157 = vunpack.c.h.b16 %v264
    %v1158 = vunpack.c.l.b16 %v265
    %v1159 = vunpack.c.h.b16 %v265
    %v1160 = vunpack.c.l.b16 %v266
    %v1161 = vunpack.c.l.b16 %v267
    %v1162 = vunpack.c.h.b16 %v267
    %v1163 = vunpack.c.l.b16 %v268
    %v1164 = vunpack.c.h.b16 %v268
    %v1165 = vunpack.c.l.b16 %v269
    %v1166 = vunpack.c.l.b16 %v270
    %v1167 = vunpack.c.h.b16 %v270
    %v1168 = vunpack.c.l.b16 %v271
    %v1169 = vunpack.c.h.b16 %v271
    %v1170 = vunpack.c.l.b16 %v272
    %v1171 = vunpack.c.l.b16 %v273
    %v1172 = vunpack.c.h.b16 %v273
    %v1173 = vunpack.c.l.b16 %v274
    %v1174 = vunpack.c.h.b16 %v274
    %v1175 = vunpack.c.l.b16 %v275
    %v1176 = vunpack.c.l.b16 %v276
    %v1177 = vunpack.c.h.b16 %v276
    %v1178 = vunpack.c.l.b16 %v277
    %v1179 = vunpack.c.h.b16 %v277
    %v1180 = vunpack.c.l.b16 %v278
    %v1181 = vunpack.c.l.b16 %v279
    %v1182 = vunpack.c.h.b16 %v279
    %v1183 = vunpack.c.l.b16 %v280
    %v1184 = vunpack.c.h.b16 %v280
    %v1185 = vunpack.c.l.b16 %v281
    %v1186 = vunpack.c.l.b16 %v282
    %v1187 = vunpack.c.h.b16 %v282
    %v1188 = vunpack.c.l.b16 %v283
    %v1189 = vunpack.c.h.b16 %v283
    %v1190 = vunpack.c.l.b16 %v284
    %v1191 = vunpack.c.l.b16 %v285
    %v1192 = vunpack.c.h.b16 %v285
    %v1193 = vunpack.c.l.b16 %v286
    %v1194 = vunpack.c.h.b16 %v286
    %v1195 = vunpack.c.l.b16 %v287
    %v1196 = vunpack.c.l.b16 %v288
    %v1197 = vunpack.c.h.b16 %v288
    %v1198 = vunpack.c.l.b16 %v289
    %v1199 = vunpack.c.h.b16 %v289
    %v1200 = vunpack.c.l.b16 %v290
    %v1201 = vunpack.c.l.b16 %v291
    %v1202 = vunpack.c.h.b16 %v291
    %v1203 = vunpack.c.l.b16 %v292
    %v1204 = vunpack.c.h.b16 %v292
    %v1205 = vunpack.c.l.b16 %v293
    %v1206 = vunpack.c.l.b16 %v294
    %v1207 = vunpack.c.h.b16 %v294
    %v1208 = vunpack.c.l.b16 %v295
    %v1209 = vunpack.c.h.b16 %v295
    %v1210 = vunpack.c.l.b16 %v296
    %v1211 = vunpack.c.l.b16 %v297
    %v1212 = vunpack.c.h.b16 %v297
    %v1213 = vunpack.c.l.b16 %v298
    %v1214 = vunpack.c.h.b16 %v298
    %v1215 = vunpack.c.l.b16 %v299
    %v1216 = vunpack.c.l.b16 %v300
    %v1217 = vunpack.c.h.b16 %v300
    %v1218 = vunpack.c.l.b16 %v301
    %v1219 = vunpack.c.h.b16 %v301
    %v1220 = vunpack.c.l.b16 %v302
    %v1221 = vunpack.c.l.b16 %v303
    %v1222 = vunpack.c.h.b16 %v303
    %v1223 = vunpack.c.l.b16 %v304
    %v1224 = vunpack.c.h.b16 %v304
    %v1225 = vunpack.c.l.b16 %v305
    %v1226 = vunpack.c.l.b16 %v306
    %v1227 = vunpack.c.h.b16 %v306
    %v1228 = vunpack.c.l.b16 %v307
    %v1229 = vunpack.c.h.b16 %v307
    %v1230 = vunpack.c.l.b16 %v308
    %v1231 = vunpack.c.l.b16 %v309
    %v1232 = vunpack.c.h.b16 %v309
    %v1233 = vunpack.c.l.b16 %v310
    %v1234 = vunpack.c.h.b16 %v310
    %v1235 = vunpack.c.l.b16 %v311
    %v1236 = vunpack.c.l.b16 %v312
    %v1237 = vunpack.c.h.b16 %v312
    %v1238 = vunpack.c.l.b16 %v313
    %v1239 = vunpack.c.h.b16 %v313
    %v1240 = vunpack.c.l.b16 %v314
    %v1241 = vunpack.c.l.b16 %v315
    %v1242 = vunpack.c.h.b16 %v315
    %v1243 = vunpack.c.l.b16 %v316
    %v1244 = vunpack.c.h.b16 %v316
    %v1245 = vunpack.c.l.b16 %v317
    %v1246 = vunpack.c.l.b16 %v318
    %v1247 = vunpack.c.h.b16 %v318
    %v1248 = vunpack.c.l.b16 %v319
    %v1249 = vunpack.c.h.b16 %v319
    %v1250 = vunpack.c.l.b16 %v320
    %v1251 = vunpack.c.l.b16 %v321
    %v1252 = vunpack.c.h.b16 %v321
    %v1253 = vunpack.c.l.b16 %v322
    %v1254 = vunpack.c.h.b16 %v322
    %v1255 = vunpack.c.l.b16 %v323
    %v1256 = vunpack.c.l.b16 %v324
    %v1257 = vunpack.c.h.b16 %v324
    %v1258 = vunpack.c.l.b16 %v325
    %v1259 = vunpack.c.h.b16 %v325
    %v1260 = vunpack.c.l.b16 %v326
    %v1261 = vunpack.c.l.b16 %v327
    %v1262 = vunpack.c.h.b16 %v327
    %v1263 = vunpack.c.l.b16 %v328
    %v1264 = vunpack.c.h.b16 %v328
    %v1265 = vunpack.c.l.b16 %v329
    %v1266 = vunpack.c.l.b16 %v330
    %v1267 = vunpack.c.h.b16 %v330
    %v1268 = vunpack.c.l.b16 %v331
    %v1269 = vunpack.c.h.b16 %v331
    %v1270 = vunpack.c.l.b16 %v332
    %v1271 = vunpack.c.l.b16 %v333
    %v1272 = vunpack.c.h.b16 %v333
    %v1273 = vunpack.c.l.b16 %v334
    %v1274 = vunpack.c.h.b16 %v334
    %v1275 = vunpack.c.l.b16 %v335
    %v1276 = vunpack.c.l.b16 %v336
    %v1277 = vunpack.c.h.b16 %v336
    %v1278 = vunpack.c.l.b16 %v337
    %v1279 = vunpack.c.h.b16 %v337
    %v1280 = vunpack.c.l.b16 %v338
    %v1281 = vunpack.c.l.b16 %v339
    %v1282 = vunpack.c.h.b16 %v339
    %v1283 = vunpack.c.l.b16 %v340
    %v1284 = vunpack.c.h.b16 %v340
    %v1285 = vunpack.c.l.b16 %v341
    %v1286 = vunpack.c.l.b16 %v342
    %v1287 = vunpack.c.h.b16 %v342
    %v1288 = vunpack.c.l.b16 %v343
    %v1289 = vunpack.c.h.b16 %v343
    %v1290 = vunpack.c.l.b16 %v344
    %v1291 = vunpack.c.l.b16 %v345
    %v1292 = vunpack.c.h.b16 %v345
    %v1293 = vunpack.c.l.b16 %v346
    %v1294 = vunpack.c.h.b16 %v346
    %v1295 = vunpack.c.l.b16 %v347
    %v1296 = vunpack.c.l.b16 %v348
    %v1297 = vunpack.c.h.b16 %v348
    %v1298 = vunpack.c.l.b16 %v349
    %v1299 = vunpack.c.h.b16 %v349
    %v1300 = vunpack.c.l.b16 %v350
    %v1301 = vunpack.c.l.b16 %v351
    %v1302 = vunpack.c.h.b16 %v351
    %v1303 = vunpack.c.l.b16 %v352
    %v1304 = vunpack.c.h.b16 %v352
    %v1305 = vunpack.c.l.b16 %v353
    %v1306 = vunpack.c.l.b16 %v354
    %v1307 = vunpack.c.h.b16 %v354
    %v1308 = vunpack.c.l.b16 %v355
    %v1309 = vunpack.c.h.b16 %v355
    %v1310 = vunpack.c.l.b16 %v356
    %v1311 = vunpack.c.l.b16 %v357
    %v1312 = vunpack.c.h.b16 %v357
    %v1313 = vunpack.c.l.b16 %v358
    %v1314 = vunpack.c.h.b16 %v358
    %v1315 = vunpack.c.l.b16 %v359
    %v1316 = vunpack.c.l.b16 %v360
    %v1317 = vunpack.c.h.b16 %v360
    %v1318 = vunpack.c.l.b16 %v361
    %v1319 = vunpack.c.h.b16 %v361
    %v1320 = vunpack.c.l.b16 %v362
    %v1321 = vunpack.c.l.b16 %v363
    %v1322 = vunpack.c.h.b16 %v363
    %v1323 = vunpack.c.l.b16 %v364
    %v1324 = vunpack.c.h.b16 %v364
    %v1325 = vunpack.c.l.b16 %v365
    %v1326 = vunpack.c.l.b16 %v366
    %v1327 = vunpack.c.h.b16 %v366
    %v1328 = vunpack.c.l.b16 %v367
    %v1329 = vunpack.c.h.b16 %v367
    %v1330 = vunpack.c.l.b16 %v368
    %v1331 = vunpack.c.l.b16 %v369
    %v1332 = vunpack.c.h.b16 %v369
    %v1333 = vunpack.c.l.b16 %v370
    %v1334 = vunpack.c.h.b16 %v370
    %v1335 = vunpack.c.l.b16 %v371
    %v1336 = vunpack.c.l.b16 %v372
    %v1337 = vunpack.c.h.b16 %v372
    %v1338 = vunpack.c.l.b16 %v373
    %v1339 = vunpack.c.h.b16 %v373
    %v1340 = vunpack.c.l.b16 %v374
    %v1341 = vunpack.c.l.b16 %v375
    %v1342 = vunpack.c.h.b16 %v375
    %v1343 = vunpack.c.l.b16 %v376
    %v1344 = vunpack.c.h.b16 %v376
    %v1345 = vunpack.c.l.b16 %v377
    %v1346 = vunpack.c.l.b16 %v378
    %v1347 = vunpack.c.h.b16 %v378
    %v1348 = vunpack.c.l.b16 %v379
    %v1349 = vunpack.c.h.b16 %v379
    %v1350 = vunpack.c.l.b16 %v380
    %v1351 = vunpack.c.l.b16 %v381
    %v1352 = vunpack.c.h.b16 %v381
    %v1353 = vunpack.c.l.b16 %v382
    %v1354 = vunpack.c.h.b16 %v382
    %v1355 = vunpack.c.l.b16 %v383
    %v1356 = vpack.c.b16 %v801, %v796
    %v1357 = vpack.c.b16 %v802, %v797
    %v1358 = vpack.c.b16 %v803, %v798
    %v1359 = vpack.c.b16 %v804, %v799
    %v1360 = vpack.c.b16 %v805, %v800
    %v1361 = vpack.c.b16 %v811, %v806
    %v1362 = vpack.c.b16 %v812, %v807
    %v1363 = vpack.c.b16 %v813, %v808
    %v1364 = vpack.c.b16 %v814, %v809
    %v1365 = vpack.c.b16 %v815, %v810
    %v1366 = vpack.c.b16 %v821, %v816
    %v1367 = vpack.c.b16 %v822, %v817
    %v1368 = vpack.c.b16 %v823, %v818
    %v1369 = vpack.c.b16 %v824, %v819
    %v1370 = vpack.c.b16 %v825, %v820
    %v1371 = vpack.c.b16 %v831, %v826
    %v1372 = vpack.c.b16 %v832, %v827
    %v1373 = vpack.c.b16 %v833, %v828
    %v1374 = vpack.c.b16 %v834, %v829
    %v1375 = vpack.c.b16 %v835, %v830
    %v1376 = vpack.c.b16 %v841, %v836
    %v1377 = vpack.c.b16 %v842, %v837
    %v1378 = vpack.c.b16 %v843, %v838
    %v1379 = vpack.c.b16 %v844, %v839
    %v1380 = vpack.c.b16 %v845, %v840
    %v1381 = vpack.c.b16 %v851, %v846
    %v1382 = vpack.c.b16 %v852, %v847
    %v1383 = vpack.c.b16 %v853, %v848
    %v1384 = vpack.c.b16 %v854, %v849
    %v1385 = vpack.c.b16 %v855, %v850
    %v1386 = vpack.c.b16 %v861, %v856
    %v1387 = vpack.c.b16 %v862, %v857
    %v1388 = vpack.c.b16 %v863, %v858
    %v1389 = vpack.c.b16 %v864, %v859
    %v1390 = vpack.c.b16 %v865, %v860
    %v1391 = vpack.c.b16 %v871, %v866
    %v1392 = vpack.c.b16 %v872, %v867
    %v1393 = vpack.c.b16 %v873, %v868
    %v1394 = vpack.c.b16 %v874, %v869
    %v1395 = vpack.c.b16 %v875, %v870
    %v1396 = vpack.c.b16 %v881, %v876
    %v1397 = vpack.c.b16 %v882, %v877
    %v1398 = vpack.c.b16 %v883, %v878
    %v1399 = vpack.c.b16 %v884, %v879
    %v1400 = vpack.c.b16 %v885, %v880
    %v1401 = vpack.c.b16 %v891, %v886
    %v1402 = vpack.c.b16 %v892, %v887
    %v1403 = vpack.c.b16 %v893, %v888
    %v1404 = vpack.c.b16 %v894, %v889
    %v1405 = vpack.c.b16 %v895, %v890
    %v1406 = vpack.c.b16 %v901, %v896
    %v1407 = vpack.c.b16 %v902, %v897
    %v1408 = vpack.c.b16 %v903, %v898
    %v1409 = vpack.c.b16 %v904, %v899
    %v1410 = vpack.c.b16 %v905, %v900
    %v1411 = vpack.c.b16 %v911, %v906
    %v1412 = vpack.c.b16 %v912, %v907
    %v1413 = vpack.c.b16 %v913, %v908
    %v1414 = vpack.c.b16 %v914, %v909
    %v1415 = vpack.c.b16 %v915, %v910
    %v1416 = vpack.c.b16 %v921, %v916
    %v1417 = vpack.c.b16 %v922, %v917
    %v1418 = vpack.c.b16 %v923, %v918
    %v1419 = vpack.c.b16 %v924, %v919
    %v1420 = vpack.c.b16 %v925, %v920
    %v1421 = vpack.c.b16 %v931, %v926
    %v1422 = vpack.c.b16 %v932, %v927
    %v1423 = vpack.c.b16 %v933, %v928
    %v1424 = vpack.c.b16 %v934, %v929
    %v1425 = vpack.c.b16 %v935, %v930
    %v1426 = vpack.c.b16 %v941, %v936
    %v1427 = vpack.c.b16 %v942, %v937
    %v1428 = vpack.c.b16 %v943, %v938
    %v1429 = vpack.c.b16 %v944, %v939
    %v1430 = vpack.c.b16 %v945, %v940
    %v1431 = vpack.c.b16 %v951, %v946
    %v1432 = vpack.c.b16 %v952, %v947
    %v1433 = vpack.c.b16 %v953, %v948
    %v1434 = vpack.c.b16 %v954, %v949
    %v1435 = vpack.c.b16 %v955, %v950
    %v1436 = vpack.c.b16 %v961, %v956
    %v1437 = vpack.c.b16 %v962, %v957
    %v1438 = vpack.c.b16 %v963, %v958
    %v1439 = vpack.c.b16 %v964, %v959
    %v1440 = vpack.c.b16 %v965, %v960
    %v1441 = vpack.c.b16 %v971, %v966
    %v1442 = vpack.c.b16 %v972, %v967
    %v1443 = vpack.c.b16 %v973, %v968
    %v1444 = vpack.c.b16 %v974, %v969
    %v1445 = vpack.c.b16 %v975, %v970
    %v1446 = vpack.c.b16 %v981, %v976
    %v1447 = vpack.c.b16 %v982, %v977
    %v1448 = vpack.c.b16 %v983, %v978
    %v1449 = vpack.c.b16 %v984, %v979
    %v1450 = vpack.c.b16 %v985, %v980
    %v1451 = vpack.c.b16 %v991, %v986
    %v1452 = vpack.c.b16 %v992, %v987
    %v1453 = vpack.c.b16 %v993, %v988
    %v1454 = vpack.c.b16 %v994, %v989
    %v1455 = vpack.c.b16 %v995, %v990
    %v1456 = vpack.c.b16 %v1001, %v996
    %v1457 = vpack.c.b16 %v1002, %v997
    %v1458 = vpack.c.b16 %v1003, %v998
    %v1459 = vpack.c.b16 %v1004, %v999
    %v1460 = vpack.c.b16 %v1005, %v1000
    %v1461 = vpack.c.b16 %v1011, %v1006
    %v1462 = vpack.c.b16 %v1012, %v1007
    %v1463 = vpack.c.b16 %v1013, %v1008
    %v1464 = vpack.c.b16 %v1014, %v1009
    %v1465 = vpack.c.b16 %v1015, %v1010
    %v1466 = vpack.c.b16 %v1021, %v1016
    %v1467 = vpack.c.b16 %v1022, %v1017
    %v1468 = vpack.c.b16 %v1023, %v1018
    %v1469 = vpack.c.b16 %v1024, %v1019
    %v1470 = vpack.c.b16 %v1025, %v1020
    %v1471 = vpack.c.b16 %v1031, %v1026
    %v1472 = vpack.c.b16 %v1032, %v1027
    %v1473 = vpack.c.b16 %v1033, %v1028
    %v1474 = vpack.c.b16 %v1034, %v1029
    %v1475 = vpack.c.b16 %v1035, %v1030
    %v1476 = vpack.c.b16 %v1041, %v1036
    %v1477 = vpack.c.b16 %v1042, %v1037
    %v1478 = vpack.c.b16 %v1043, %v1038
    %v1479 = vpack.c.b16 %v1044, %v1039
    %v1480 = vpack.c.b16 %v1045, %v1040
    %v1481 = vpack.c.b16 %v1051, %v1046
    %v1482 = vpack.c.b16 %v1052, %v1047
    %v1483 = vpack.c.b16 %v1053, %v1048
    %v1484 = vpack.c.b16 %v1054, %v1049
    %v1485 = vpack.c.b16 %v1055, %v1050
    %v1486 = vpack.c.b16 %v1061, %v1056
    %v1487 = vpack.c.b16 %v1062, %v1057
    %v1488 = vpack.c.b16 %v1063, %v1058
    %v1489 = vpack.c.b16 %v1064, %v1059
    %v1490 = vpack.c.b16 %v1065, %v1060
    %v1491 = vpack.c.b16 %v1071, %v1066
    %v1492 = vpack.c.b16 %v1072, %v1067
    %v1493 = vpack.c.b16 %v1073, %v1068
    %v1494 = vpack.c.b16 %v1074, %v1069
    %v1495 = vpack.c.b16 %v1075, %v1070
    %v1496 = vpack.c.b16 %v1081, %v1076
    %v1497 = vpack.c.b16 %v1082, %v1077
    %v1498 = vpack.c.b16 %v1083, %v1078
    %v1499 = vpack.c.b16 %v1084, %v1079
    %v1500 = vpack.c.b16 %v1085, %v1080
    %v1501 = vpack.c.b16 %v1091, %v1086
    %v1502 = vpack.c.b16 %v1092, %v1087
    %v1503 = vpack.c.b16 %v1093, %v1088
    %v1504 = vpack.c.b16 %v1094, %v1089
    %v1505 = vpack.c.b16 %v1095, %v1090
    %v1506 = vpack.c.b16 %v1101, %v1096
    %v1507 = vpack.c.b16 %v1102, %v1097
    %v1508 = vpack.c.b16 %v1103, %v1098
    %v1509 = vpack.c.b16 %v1104, %v1099
    %v1510 = vpack.c.b16 %v1105, %v1100
    %v1511 = vpack.c.b16 %v1111, %v1106
    %v1512 = vpack.c.b16 %v1112, %v1107
    %v1513 = vpack.c.b16 %v1113, %v1108
    %v1514 = vpack.c.b16 %v1114, %v1109
    %v1515 = vpack.c.b16 %v1115, %v1110
    %v1516 = vpack.c.b16 %v1121, %v1116
    %v1517 = vpack.c.b16 %v1122, %v1117
    %v1518 = vpack.c.b16 %v1123, %v1118
    %v1519 = vpack.c.b16 %v1124, %v1119
    %v1520 = vpack.c.b16 %v1125, %v1120
    %v1521 = vpack.c.b16 %v1131, %v1126
    %v1522 = vpack.c.b16 %v1132, %v1127
    %v1523 = vpack.c.b16 %v1133, %v1128
    %v1524 = vpack.c.b16 %v1134, %v1129
    %v1525 = vpack.c.b16 %v1135, %v1130
    %v1526 = vpack.c.b16 %v1141, %v1136
    %v1527 = vpack.c.b16 %v1142, %v1137
    %v1528 = vpack.c.b16 %v1143, %v1138
    %v1529 = vpack.c.b16 %v1144, %v1139
    %v1530 = vpack.c.b16 %v1145, %v1140
    %v1531 = vpack.c.b16 %v1151, %v1146
    %v1532 = vpack.c.b16 %v1152, %v1147
    %v1533 = vpack.c.b16 %v1153, %v1148
    %v1534 = vpack.c.b16 %v1154, %v1149
    %v1535 = vpack.c.b16 %v1155, %v1150
    %v1536 = vpack.c.b16 %v1161, %v1156
    %v1537 = vpack.c.b16 %v1162, %v1157
    %v1538 = vpack.c.b16 %v1163, %v1158
    %v1539 = vpack.c.b16 %v1164, %v1159
    %v1540 = vpack.c.b16 %v1165, %v1160
    %v1541 = vpack.c.b16 %v1171, %v1166
    %v1542 = vpack.c.b16 %v1172, %v1167
    %v1543 = vpack.c.b16 %v1173, %v1168
    %v1544 = vpack.c.b16 %v1174, %v1169
    %v1545 = vpack.c.b16 %v1175, %v1170
    %v1546 = vpack.c.b16 %v1181, %v1176
    %v1547 = vpack.c.b16 %v1182, %v1177
    %v1548 = vpack.c.b16 %v1183, %v1178
    %v1549 = vpack.c.b16 %v1184, %v1179
    %v1550 = vpack.c.b16 %v1185, %v1180
    %v1551 = vpack.c.b16 %v1191, %v1186
    %v1552 = vpack.c.b16 %v1192, %v1187
    %v1553 = vpack.c.b16 %v1193, %v1188
    %v1554 = vpack.c.b16 %v1194, %v1189
    %v1555 = vpack.c.b16 %v1195, %v1190
    %v1556 = vpack.c.b16 %v1201, %v1196
    %v1557 = vpack.c.b16 %v1202, %v1197
    %v1558 = vpack.c.b16 %v1203, %v1198
    %v1559 = vpack.c.b16 %v1204, %v1199
    %v1560 = vpack.c.b16 %v1205, %v1200
    %v1561 = vpack.c.b16 %v1211, %v1206
    %v1562 = vpack.c.b16 %v1212, %v1207
    %v1563 = vpack.c.b16 %v1213, %v1208
    %v1564 = vpack.c.b16 %v1214, %v1209
    %v1565 = vpack.c.b16 %v1215, %v1210
    %v1566 = vpack.c.b16 %v1221, %v1216
    %v1567 = vpack.c.b16 %v1222, %v1217
    %v1568 = vpack.c.b16 %v1223, %v1218
    %v1569 = vpack.c.b16 %v1224, %v1219
    %v1570 = vpack.c.b16 %v1225, %v1220
    %v1571 = vpack.c.b16 %v1231, %v1226
    %v1572 = vpack.c.b16 %v1232, %v1227
    %v1573 = vpack.c.b16 %v1233, %v1228
    %v1574 = vpack.c.b16 %v1234, %v1229
    %v1575 = vpack.c.b16 %v1235, %v1230
    %v1576 = vpack.c.b16 %v1241, %v1236
    %v1577 = vpack.c.b16 %v1242, %v1237
    %v1578 = vpack.c.b16 %v1243, %v1238
    %v1579 = vpack.c.b16 %v1244, %v1239
    %v1580 = vpack.c.b16 %v1245, %v1240
    %v1581 = vpack.c.b16 %v1251, %v1246
    %v1582 = vpack.c.b16 %v1252, %v1247
    %v1583 = vpack.c.b16 %v1253, %v1248
    %v1584 = vpack.c.b16 %v1254, %v1249
    %v1585 = vpack.c.b16 %v1255, %v1250
    %v1586 = vpack.c.b16 %v1261, %v1256
    %v1587 = vpack.c.b16 %v1262, %v1257
    %v1588 = vpack.c.b16 %v1263, %v1258
    %v1589 = vpack.c.b16 %v1264, %v1259
    %v1590 = vpack.c.b16 %v1265, %v1260
    %v1591 = vpack.c.b16 %v1271, %v1266
    %v1592 = vpack.c.b16 %v1272, %v1267
    %v1593 = vpack.c.b16 %v1273, %v1268
    %v1594 = vpack.c.b16 %v1274, %v1269
    %v1595 = vpack.c.b16 %v1275, %v1270
    %v1596 = vpack.c.b16 %v1281, %v1276
    %v1597 = vpack.c.b16 %v1282, %v1277
    %v1598 = vpack.c.b16 %v1283, %v1278
    %v1599 = vpack.c.b16 %v1284, %v1279
    %v1600 = vpack.c.b16 %v1285, %v1280
    %v1601 = vpack.c.b16 %v1291, %v1286
    %v1602 = vpack.c.b16 %v1292, %v1287
    %v1603 = vpack.c.b16 %v1293, %v1288
    %v1604 = vpack.c.b16 %v1294, %v1289
    %v1605 = vpack.c.b16 %v1295, %v1290
    %v1606 = vpack.c.b16 %v1301, %v1296
    %v1607 = vpack.c.b16 %v1302, %v1297
    %v1608 = vpack.c.b16 %v1303, %v1298
    %v1609 = vpack.c.b16 %v1304, %v1299
    %v1610 = vpack.c.b16 %v1305, %v1300
    %v1611 = vpack.c.b16 %v1311, %v1306
    %v1612 = vpack.c.b16 %v1312, %v1307
    %v1613 = vpack.c.b16 %v1313, %v1308
    %v1614 = vpack.c.b16 %v1314, %v1309
    %v1615 = vpack.c.b16 %v1315, %v1310
    %v1616 = vpack.c.b16 %v1321, %v1316
    %v1617 = vpack.c.b16 %v1322, %v1317
    %v1618 = vpack.c.b16 %v1323, %v1318
    %v1619 = vpack.c.b16 %v1324, %v1319
    %v1620 = vpack.c.b16 %v1325, %v1320
    %v1621 = vpack.c.b16 %v1331, %v1326
    %v1622 = vpack.c.b16 %v1332, %v1327
    %v1623 = vpack.c.b16 %v1333, %v1328
    %v1624 = vpack.c.b16 %v1334, %v1329
    %v1625 = vpack.c.b16 %v1335, %v1330
    %v1626 = vpack.c.b16 %v1341, %v1336
    %v1627 = vpack.c.b16 %v1342, %v1337
    %v1628 = vpack.c.b16 %v1343, %v1338
    %v1629 = vpack.c.b16 %v1344, %v1339
    %v1630 = vpack.c.b16 %v1345, %v1340
    %v1631 = vpack.c.b16 %v1351, %v1346
    %v1632 = vpack.c.b16 %v1352, %v1347
    %v1633 = vpack.c.b16 %v1353, %v1348
    %v1634 = vpack.c.b16 %v1354, %v1349
    %v1635 = vpack.c.b16 %v1355, %v1350
    %1916 = vmatprep.subr.bf16.mxu0 %v1392
    %1917 = vmatpush1.bf16.msra.mxu0 %v1391
    %1918 = vmatprep.subr.bf16.mxu0 %v1387
    %1919 = vmatpush1.bf16.msra.mxu0 %v1386
    %1920 = vmatprep.subr.bf16.mxu0 %v1382
    %1921 = vmatpush1.bf16.msra.mxu0 %v1381
    %1922 = vmatprep.subr.bf16.mxu0 %v1377
    %1923 = vmatpush1.bf16.msra.mxu0 %v1376
    %1924 = vmatprep.subr.bf16.mxu0 %v1372
    %1925 = vmatpush1.bf16.msra.mxu0 %v1371
    %1926 = vmatprep.subr.bf16.mxu0 %v1367
    %1927 = vmatpush1.bf16.msra.mxu0 %v1366
    %1928 = vmatprep.subr.bf16.mxu0 %v1362
    %1929 = vmatpush1.bf16.msra.mxu0 %v1361
    %1930 = vmatprep.subr.bf16.mxu0 %v1357
    %1931 = vmatpush1.bf16.msra.mxu0 %v1356
    %1932 = vmatprep.subr.bf16.mxu0 %v1432
    %1933 = vmatpush2.bf16.msra.mxu0 %v1431
    %1934 = vmatprep.subr.bf16.mxu0 %v1427
    %1935 = vmatpush2.bf16.msra.mxu0 %v1426
    %1936 = vmatprep.subr.bf16.mxu0 %v1422
    %1937 = vmatpush2.bf16.msra.mxu0 %v1421
    %1938 = vmatprep.subr.bf16.mxu0 %v1417
    %1939 = vmatpush2.bf16.msra.mxu0 %v1416
    %1940 = vmatprep.subr.bf16.mxu0 %v1412
    %1941 = vmatpush2.bf16.msra.mxu0 %v1411
    %1942 = vmatprep.subr.bf16.mxu0 %v1407
    %1943 = vmatpush2.bf16.msra.mxu0 %v1406
    %1944 = vmatprep.subr.bf16.mxu0 %v1402
    %1945 = vmatpush2.bf16.msra.mxu0 %v1401
    %1946 = vmatprep.subr.bf16.mxu0 %v1397
    %1947 = vmatpush2.bf16.msra.mxu0 %v1396
    %1948 = vmatprep.mubr.bf16.mxu0 %v428
    %1949 = vmatmul.mubr.bf16.gmra.mxu0 %v427
    %v1950 = vpop.f32.mrf.mxu0
    %v1951 = vadd.f32 %v438, %v1950
    %v1952 = vpop.f32.mrf.mxu0
    %v1953 = vadd.f32 %v442, %v1952
    %v1954 = vpop.f32.mrf.mxu0
    %v1955 = vpop.f32.mrf.mxu0
    %1956 = vdwg.mxu0
    %1957 = vmatprep.subr.bf16.mxu0 %v1472
    %1958 = vmatpush1.bf16.msra.mxu0 %v1471
    %1959 = vmatprep.subr.bf16.mxu0 %v1467
    %1960 = vmatpush1.bf16.msra.mxu0 %v1466
    %1961 = vmatprep.subr.bf16.mxu0 %v1462
    %1962 = vmatpush1.bf16.msra.mxu0 %v1461
    %1963 = vmatprep.subr.bf16.mxu0 %v1457
    %1964 = vmatpush1.bf16.msra.mxu0 %v1456
    %1965 = vmatprep.subr.bf16.mxu0 %v1452
    %1966 = vmatpush1.bf16.msra.mxu0 %v1451
    %1967 = vmatprep.subr.bf16.mxu0 %v1447
    %1968 = vmatpush1.bf16.msra.mxu0 %v1446
    %1969 = vmatprep.subr.bf16.mxu0 %v1442
    %1970 = vmatpush1.bf16.msra.mxu0 %v1441
    %1971 = vmatprep.subr.bf16.mxu0 %v1437
    %1972 = vmatpush1.bf16.msra.mxu0 %v1436
    %1973 = vmatprep.subr.bf16.mxu0 %v1512
    %1974 = vmatpush2.bf16.msra.mxu0 %v1511
    %1975 = vmatprep.subr.bf16.mxu0 %v1507
    %1976 = vmatpush2.bf16.msra.mxu0 %v1506
    %1977 = vmatprep.subr.bf16.mxu0 %v1502
    %1978 = vmatpush2.bf16.msra.mxu0 %v1501
    %1979 = vmatprep.subr.bf16.mxu0 %v1497
    %1980 = vmatpush2.bf16.msra.mxu0 %v1496
    %1981 = vmatprep.subr.bf16.mxu0 %v1492
    %1982 = vmatpush2.bf16.msra.mxu0 %v1491
    %1983 = vmatprep.subr.bf16.mxu0 %v1487
    %1984 = vmatpush2.bf16.msra.mxu0 %v1486
    %1985 = vmatprep.subr.bf16.mxu0 %v1482
    %1986 = vmatpush2.bf16.msra.mxu0 %v1481
    %1987 = vmatprep.subr.bf16.mxu0 %v1477
    %1988 = vmatpush2.bf16.msra.mxu0 %v1476
    %1989 = vmatprep.mubr.bf16.mxu0 %v430
    %1990 = vmatmul.mubr.bf16.gmra.mxu0 %v429
    %v1991 = vpop.f32.mrf.mxu0
    %v1992 = vadd.f32 %v1951, %v1991
    %v1993 = vpop.f32.mrf.mxu0
    %v1994 = vadd.f32 %v1953, %v1993
    %v1995 = vpop.f32.mrf.mxu0
    %v1996 = vpop.f32.mrf.mxu0
    %1997 = vdwg.mxu0
    %1998 = vmatprep.subr.bf16.mxu0 %v1552
    %1999 = vmatpush1.bf16.msra.mxu0 %v1551
    %2000 = vmatprep.subr.bf16.mxu0 %v1547
    %2001 = vmatpush1.bf16.msra.mxu0 %v1546
    %2002 = vmatprep.subr.bf16.mxu0 %v1542
    %2003 = vmatpush1.bf16.msra.mxu0 %v1541
    %2004 = vmatprep.subr.bf16.mxu0 %v1537
    %2005 = vmatpush1.bf16.msra.mxu0 %v1536
    %2006 = vmatprep.subr.bf16.mxu0 %v1532
    %2007 = vmatpush1.bf16.msra.mxu0 %v1531
    %2008 = vmatprep.subr.bf16.mxu0 %v1527
    %2009 = vmatpush1.bf16.msra.mxu0 %v1526
    %2010 = vmatprep.subr.bf16.mxu0 %v1522
    %2011 = vmatpush1.bf16.msra.mxu0 %v1521
    %2012 = vmatprep.subr.bf16.mxu0 %v1517
    %2013 = vmatpush1.bf16.msra.mxu0 %v1516
    %2014 = vmatprep.subr.bf16.mxu0 %v1592
    %2015 = vmatpush2.bf16.msra.mxu0 %v1591
    %2016 = vmatprep.subr.bf16.mxu0 %v1587
    %2017 = vmatpush2.bf16.msra.mxu0 %v1586
    %2018 = vmatprep.subr.bf16.mxu0 %v1582
    %2019 = vmatpush2.bf16.msra.mxu0 %v1581
    %2020 = vmatprep.subr.bf16.mxu0 %v1577
    %2021 = vmatpush2.bf16.msra.mxu0 %v1576
    %2022 = vmatprep.subr.bf16.mxu0 %v1572
    %2023 = vmatpush2.bf16.msra.mxu0 %v1571
    %2024 = vmatprep.subr.bf16.mxu0 %v1567
    %2025 = vmatpush2.bf16.msra.mxu0 %v1566
    %2026 = vmatprep.subr.bf16.mxu0 %v1562
    %2027 = vmatpush2.bf16.msra.mxu0 %v1561
    %2028 = vmatprep.subr.bf16.mxu0 %v1557
    %2029 = vmatpush2.bf16.msra.mxu0 %v1556
    %2030 = vmatprep.mubr.bf16.mxu0 %v432
    %2031 = vmatmul.mubr.bf16.gmra.mxu0 %v431
    %v2032 = vpop.f32.mrf.mxu0
    %v2033 = vadd.f32 %v1992, %v2032
    %v2034 = vpop.f32.mrf.mxu0
    %v2035 = vadd.f32 %v1994, %v2034
    %v2036 = vpop.f32.mrf.mxu0
    %v2037 = vpop.f32.mrf.mxu0
    %2038 = vdwg.mxu0
    %2039 = vmatprep.subr.bf16.mxu0 %v1632
    %2040 = vmatpush1.bf16.msra.mxu0 %v1631
    %2041 = vmatprep.subr.bf16.mxu0 %v1627
    %2042 = vmatpush1.bf16.msra.mxu0 %v1626
    %2043 = vmatprep.subr.bf16.mxu0 %v1622
    %2044 = vmatpush1.bf16.msra.mxu0 %v1621
    %2045 = vmatprep.subr.bf16.mxu0 %v1617
    %2046 = vmatpush1.bf16.msra.mxu0 %v1616
    %2047 = vmatprep.subr.bf16.mxu0 %v1612
    %2048 = vmatpush1.bf16.msra.mxu0 %v1611
    %2049 = vmatprep.subr.bf16.mxu0 %v1607
    %2050 = vmatpush1.bf16.msra.mxu0 %v1606
    %2051 = vmatprep.subr.bf16.mxu0 %v1602
    %2052 = vmatpush1.bf16.msra.mxu0 %v1601
    %2053 = vmatprep.subr.bf16.mxu0 %v1597
    %2054 = vmatpush1.bf16.msra.mxu0 %v1596
    %2055 = vmatprep.subr.bf16.mxu0 0
    %2056 = vmatpush2.bf16.msra.mxu0 0
    %2057 = vmatprep.subr.bf16.mxu0 0
    %2058 = vmatpush2.bf16.msra.mxu0 0
    %2059 = vmatprep.subr.bf16.mxu0 0
    %2060 = vmatpush2.bf16.msra.mxu0 0
    %2061 = vmatprep.subr.bf16.mxu0 0
    %2062 = vmatpush2.bf16.msra.mxu0 0
    %2063 = vmatprep.subr.bf16.mxu0 0
    %2064 = vmatpush2.bf16.msra.mxu0 0
    %2065 = vmatprep.subr.bf16.mxu0 0
    %2066 = vmatpush2.bf16.msra.mxu0 0
    %2067 = vmatprep.subr.bf16.mxu0 0
    %2068 = vmatpush2.bf16.msra.mxu0 0
    %2069 = vmatprep.subr.bf16.mxu0 0
    %2070 = vmatpush2.bf16.msra.mxu0 0
    %2071 = vmatprep.mubr.bf16.mxu0 0
    %2072 = vmatmul.mubr.bf16.gmra.mxu0 %v433
    %v2073 = vpop.f32.mrf.mxu0
    %v2074 = vadd.f32 %v2033, %v2073
    %v2075 = vpop.f32.mrf.mxu0
    %v2076 = vadd.f32 %v2035, %v2075
    %v2077 = vpop.f32.mrf.mxu0
    %v2078 = vpop.f32.mrf.mxu0
    %2079 = vdwg.mxu0
    %2080 = vmatprep.subr.bf16.mxu0 %v1394
    %2081 = vmatpush1.bf16.msra.mxu0 %v1393
    %2082 = vmatprep.subr.bf16.mxu0 %v1389
    %2083 = vmatpush1.bf16.msra.mxu0 %v1388
    %2084 = vmatprep.subr.bf16.mxu0 %v1384
    %2085 = vmatpush1.bf16.msra.mxu0 %v1383
    %2086 = vmatprep.subr.bf16.mxu0 %v1379
    %2087 = vmatpush1.bf16.msra.mxu0 %v1378
    %2088 = vmatprep.subr.bf16.mxu0 %v1374
    %2089 = vmatpush1.bf16.msra.mxu0 %v1373
    %2090 = vmatprep.subr.bf16.mxu0 %v1369
    %2091 = vmatpush1.bf16.msra.mxu0 %v1368
    %2092 = vmatprep.subr.bf16.mxu0 %v1364
    %2093 = vmatpush1.bf16.msra.mxu0 %v1363
    %2094 = vmatprep.subr.bf16.mxu0 %v1359
    %2095 = vmatpush1.bf16.msra.mxu0 %v1358
    %2096 = vmatprep.subr.bf16.mxu0 %v1434
    %2097 = vmatpush2.bf16.msra.mxu0 %v1433
    %2098 = vmatprep.subr.bf16.mxu0 %v1429
    %2099 = vmatpush2.bf16.msra.mxu0 %v1428
    %2100 = vmatprep.subr.bf16.mxu0 %v1424
    %2101 = vmatpush2.bf16.msra.mxu0 %v1423
    %2102 = vmatprep.subr.bf16.mxu0 %v1419
    %2103 = vmatpush2.bf16.msra.mxu0 %v1418
    %2104 = vmatprep.subr.bf16.mxu0 %v1414
    %2105 = vmatpush2.bf16.msra.mxu0 %v1413
    %2106 = vmatprep.subr.bf16.mxu0 %v1409
    %2107 = vmatpush2.bf16.msra.mxu0 %v1408
    %2108 = vmatprep.subr.bf16.mxu0 %v1404
    %2109 = vmatpush2.bf16.msra.mxu0 %v1403
    %2110 = vmatprep.subr.bf16.mxu0 %v1399
    %2111 = vmatpush2.bf16.msra.mxu0 %v1398
    %2112 = vmatprep.mubr.bf16.mxu0 %v428
    %2113 = vmatmul.mubr.bf16.gmra.mxu0 %v427
    %v2114 = vpop.f32.mrf.mxu0
    %v2115 = vadd.f32 %v446, %v2114
    %v2116 = vpop.f32.mrf.mxu0
    %v2117 = vadd.f32 %v450, %v2116
    %v2118 = vpop.f32.mrf.mxu0
    %v2119 = vpop.f32.mrf.mxu0
    %2120 = vdwg.mxu0
    %2121 = vmatprep.subr.bf16.mxu0 %v1474
    %2122 = vmatpush1.bf16.msra.mxu0 %v1473
    %2123 = vmatprep.subr.bf16.mxu0 %v1469
    %2124 = vmatpush1.bf16.msra.mxu0 %v1468
    %2125 = vmatprep.subr.bf16.mxu0 %v1464
    %2126 = vmatpush1.bf16.msra.mxu0 %v1463
    %2127 = vmatprep.subr.bf16.mxu0 %v1459
    %2128 = vmatpush1.bf16.msra.mxu0 %v1458
    %2129 = vmatprep.subr.bf16.mxu0 %v1454
    %2130 = vmatpush1.bf16.msra.mxu0 %v1453
    %2131 = vmatprep.subr.bf16.mxu0 %v1449
    %2132 = vmatpush1.bf16.msra.mxu0 %v1448
    %2133 = vmatprep.subr.bf16.mxu0 %v1444
    %2134 = vmatpush1.bf16.msra.mxu0 %v1443
    %2135 = vmatprep.subr.bf16.mxu0 %v1439
    %2136 = vmatpush1.bf16.msra.mxu0 %v1438
    %2137 = vmatprep.subr.bf16.mxu0 %v1514
    %2138 = vmatpush2.bf16.msra.mxu0 %v1513
    %2139 = vmatprep.subr.bf16.mxu0 %v1509
    %2140 = vmatpush2.bf16.msra.mxu0 %v1508
    %2141 = vmatprep.subr.bf16.mxu0 %v1504
    %2142 = vmatpush2.bf16.msra.mxu0 %v1503
    %2143 = vmatprep.subr.bf16.mxu0 %v1499
    %2144 = vmatpush2.bf16.msra.mxu0 %v1498
    %2145 = vmatprep.subr.bf16.mxu0 %v1494
    %2146 = vmatpush2.bf16.msra.mxu0 %v1493
    %2147 = vmatprep.subr.bf16.mxu0 %v1489
    %2148 = vmatpush2.bf16.msra.mxu0 %v1488
    %2149 = vmatprep.subr.bf16.mxu0 %v1484
    %2150 = vmatpush2.bf16.msra.mxu0 %v1483
    %2151 = vmatprep.subr.bf16.mxu0 %v1479
    %2152 = vmatpush2.bf16.msra.mxu0 %v1478
    %2153 = vmatprep.mubr.bf16.mxu0 %v430
    %2154 = vmatmul.mubr.bf16.gmra.mxu0 %v429
    %v2155 = vpop.f32.mrf.mxu0
    %v2156 = vadd.f32 %v2115, %v2155
    %v2157 = vpop.f32.mrf.mxu0
    %v2158 = vadd.f32 %v2117, %v2157
    %v2159 = vpop.f32.mrf.mxu0
    %v2160 = vpop.f32.mrf.mxu0
    %2161 = vdwg.mxu0
    %2162 = vmatprep.subr.bf16.mxu0 %v1554
    %2163 = vmatpush1.bf16.msra.mxu0 %v1553
    %2164 = vmatprep.subr.bf16.mxu0 %v1549
    %2165 = vmatpush1.bf16.msra.mxu0 %v1548
    %2166 = vmatprep.subr.bf16.mxu0 %v1544
    %2167 = vmatpush1.bf16.msra.mxu0 %v1543
    %2168 = vmatprep.subr.bf16.mxu0 %v1539
    %2169 = vmatpush1.bf16.msra.mxu0 %v1538
    %2170 = vmatprep.subr.bf16.mxu0 %v1534
    %2171 = vmatpush1.bf16.msra.mxu0 %v1533
    %2172 = vmatprep.subr.bf16.mxu0 %v1529
    %2173 = vmatpush1.bf16.msra.mxu0 %v1528
    %2174 = vmatprep.subr.bf16.mxu0 %v1524
    %2175 = vmatpush1.bf16.msra.mxu0 %v1523
    %2176 = vmatprep.subr.bf16.mxu0 %v1519
    %2177 = vmatpush1.bf16.msra.mxu0 %v1518
    %2178 = vmatprep.subr.bf16.mxu0 %v1594
    %2179 = vmatpush2.bf16.msra.mxu0 %v1593
    %2180 = vmatprep.subr.bf16.mxu0 %v1589
    %2181 = vmatpush2.bf16.msra.mxu0 %v1588
    %2182 = vmatprep.subr.bf16.mxu0 %v1584
    %2183 = vmatpush2.bf16.msra.mxu0 %v1583
    %2184 = vmatprep.subr.bf16.mxu0 %v1579
    %2185 = vmatpush2.bf16.msra.mxu0 %v1578
    %2186 = vmatprep.subr.bf16.mxu0 %v1574
    %2187 = vmatpush2.bf16.msra.mxu0 %v1573
    %2188 = vmatprep.subr.bf16.mxu0 %v1569
    %2189 = vmatpush2.bf16.msra.mxu0 %v1568
    %2190 = vmatprep.subr.bf16.mxu0 %v1564
    %2191 = vmatpush2.bf16.msra.mxu0 %v1563
    %2192 = vmatprep.subr.bf16.mxu0 %v1559
    %2193 = vmatpush2.bf16.msra.mxu0 %v1558
    %2194 = vmatprep.mubr.bf16.mxu0 %v432
    %2195 = vmatmul.mubr.bf16.gmra.mxu0 %v431
    %v2196 = vpop.f32.mrf.mxu0
    %v2197 = vadd.f32 %v2156, %v2196
    %v2198 = vpop.f32.mrf.mxu0
    %v2199 = vadd.f32 %v2158, %v2198
    %v2200 = vpop.f32.mrf.mxu0
    %v2201 = vpop.f32.mrf.mxu0
    %2202 = vdwg.mxu0
    %2203 = vmatprep.subr.bf16.mxu0 %v1634
    %2204 = vmatpush1.bf16.msra.mxu0 %v1633
    %2205 = vmatprep.subr.bf16.mxu0 %v1629
    %2206 = vmatpush1.bf16.msra.mxu0 %v1628
    %2207 = vmatprep.subr.bf16.mxu0 %v1624
    %2208 = vmatpush1.bf16.msra.mxu0 %v1623
    %2209 = vmatprep.subr.bf16.mxu0 %v1619
    %2210 = vmatpush1.bf16.msra.mxu0 %v1618
    %2211 = vmatprep.subr.bf16.mxu0 %v1614
    %2212 = vmatpush1.bf16.msra.mxu0 %v1613
    %2213 = vmatprep.subr.bf16.mxu0 %v1609
    %2214 = vmatpush1.bf16.msra.mxu0 %v1608
    %2215 = vmatprep.subr.bf16.mxu0 %v1604
    %2216 = vmatpush1.bf16.msra.mxu0 %v1603
    %2217 = vmatprep.subr.bf16.mxu0 %v1599
    %2218 = vmatpush1.bf16.msra.mxu0 %v1598
    %2219 = vmatprep.subr.bf16.mxu0 0
    %2220 = vmatpush2.bf16.msra.mxu0 0
    %2221 = vmatprep.subr.bf16.mxu0 0
    %2222 = vmatpush2.bf16.msra.mxu0 0
    %2223 = vmatprep.subr.bf16.mxu0 0
    %2224 = vmatpush2.bf16.msra.mxu0 0
    %2225 = vmatprep.subr.bf16.mxu0 0
    %2226 = vmatpush2.bf16.msra.mxu0 0
    %2227 = vmatprep.subr.bf16.mxu0 0
    %2228 = vmatpush2.bf16.msra.mxu0 0
    %2229 = vmatprep.subr.bf16.mxu0 0
    %2230 = vmatpush2.bf16.msra.mxu0 0
    %2231 = vmatprep.subr.bf16.mxu0 0
    %2232 = vmatpush2.bf16.msra.mxu0 0
    %2233 = vmatprep.subr.bf16.mxu0 0
    %2234 = vmatpush2.bf16.msra.mxu0 0
    %2235 = vmatprep.mubr.bf16.mxu0 0
    %2236 = vmatmul.mubr.bf16.gmra.mxu0 %v433
    %v2237 = vpop.f32.mrf.mxu0
    %v2238 = vadd.f32 %v2197, %v2237
    %v2239 = vpop.f32.mrf.mxu0
    %v2240 = vadd.f32 %v2199, %v2239
    %v2241 = vpop.f32.mrf.mxu0
    %v2242 = vpop.f32.mrf.mxu0
    %2243 = vdwg.mxu0
    %2244 = vmatprep.subr.bf16.mxu0 0
    %2245 = vmatpush1.bf16.msra.mxu0 %v1395
    %2246 = vmatprep.subr.bf16.mxu0 0
    %2247 = vmatpush1.bf16.msra.mxu0 %v1390
    %2248 = vmatprep.subr.bf16.mxu0 0
    %2249 = vmatpush1.bf16.msra.mxu0 %v1385
    %2250 = vmatprep.subr.bf16.mxu0 0
    %2251 = vmatpush1.bf16.msra.mxu0 %v1380
    %2252 = vmatprep.subr.bf16.mxu0 0
    %2253 = vmatpush1.bf16.msra.mxu0 %v1375
    %2254 = vmatprep.subr.bf16.mxu0 0
    %2255 = vmatpush1.bf16.msra.mxu0 %v1370
    %2256 = vmatprep.subr.bf16.mxu0 0
    %2257 = vmatpush1.bf16.msra.mxu0 %v1365
    %2258 = vmatprep.subr.bf16.mxu0 0
    %2259 = vmatpush1.bf16.msra.mxu0 %v1360
    %2260 = vmatprep.subr.bf16.mxu0 0
    %2261 = vmatpush2.bf16.msra.mxu0 %v1435
    %2262 = vmatprep.subr.bf16.mxu0 0
    %2263 = vmatpush2.bf16.msra.mxu0 %v1430
    %2264 = vmatprep.subr.bf16.mxu0 0
    %2265 = vmatpush2.bf16.msra.mxu0 %v1425
    %2266 = vmatprep.subr.bf16.mxu0 0
    %2267 = vmatpush2.bf16.msra.mxu0 %v1420
    %2268 = vmatprep.subr.bf16.mxu0 0
    %2269 = vmatpush2.bf16.msra.mxu0 %v1415
    %2270 = vmatprep.subr.bf16.mxu0 0
    %2271 = vmatpush2.bf16.msra.mxu0 %v1410
    %2272 = vmatprep.subr.bf16.mxu0 0
    %2273 = vmatpush2.bf16.msra.mxu0 %v1405
    %2274 = vmatprep.subr.bf16.mxu0 0
    %2275 = vmatpush2.bf16.msra.mxu0 %v1400
    %2276 = vmatprep.mubr.bf16.mxu0 %v428
    %2277 = vmatmul.mubr.bf16.gmra.mxu0 %v427
    %v2278 = vpop.f32.mrf.mxu0
    %v2279 = vadd.f32 %v454, %v2278
    %v2280 = vpop.f32.mrf.mxu0
    %v2281 = vpop.f32.mrf.mxu0
    %v2282 = vpop.f32.mrf.mxu0
    %2283 = vdwg.mxu0
    %2284 = vmatprep.subr.bf16.mxu0 0
    %2285 = vmatpush1.bf16.msra.mxu0 %v1475
    %2286 = vmatprep.subr.bf16.mxu0 0
    %2287 = vmatpush1.bf16.msra.mxu0 %v1470
    %2288 = vmatprep.subr.bf16.mxu0 0
    %2289 = vmatpush1.bf16.msra.mxu0 %v1465
    %2290 = vmatprep.subr.bf16.mxu0 0
    %2291 = vmatpush1.bf16.msra.mxu0 %v1460
    %2292 = vmatprep.subr.bf16.mxu0 0
    %2293 = vmatpush1.bf16.msra.mxu0 %v1455
    %2294 = vmatprep.subr.bf16.mxu0 0
    %2295 = vmatpush1.bf16.msra.mxu0 %v1450
    %2296 = vmatprep.subr.bf16.mxu0 0
    %2297 = vmatpush1.bf16.msra.mxu0 %v1445
    %2298 = vmatprep.subr.bf16.mxu0 0
    %2299 = vmatpush1.bf16.msra.mxu0 %v1440
    %2300 = vmatprep.subr.bf16.mxu0 0
    %2301 = vmatpush2.bf16.msra.mxu0 %v1515
    %2302 = vmatprep.subr.bf16.mxu0 0
    %2303 = vmatpush2.bf16.msra.mxu0 %v1510
    %2304 = vmatprep.subr.bf16.mxu0 0
    %2305 = vmatpush2.bf16.msra.mxu0 %v1505
    %2306 = vmatprep.subr.bf16.mxu0 0
    %2307 = vmatpush2.bf16.msra.mxu0 %v1500
    %2308 = vmatprep.subr.bf16.mxu0 0
    %2309 = vmatpush2.bf16.msra.mxu0 %v1495
    %2310 = vmatprep.subr.bf16.mxu0 0
    %2311 = vmatpush2.bf16.msra.mxu0 %v1490
    %2312 = vmatprep.subr.bf16.mxu0 0
    %2313 = vmatpush2.bf16.msra.mxu0 %v1485
    %2314 = vmatprep.subr.bf16.mxu0 0
    %2315 = vmatpush2.bf16.msra.mxu0 %v1480
    %2316 = vmatprep.mubr.bf16.mxu0 %v430
    %2317 = vmatmul.mubr.bf16.gmra.mxu0 %v429
    %v2318 = vpop.f32.mrf.mxu0
    %v2319 = vadd.f32 %v2279, %v2318
    %v2320 = vpop.f32.mrf.mxu0
    %v2321 = vpop.f32.mrf.mxu0
    %v2322 = vpop.f32.mrf.mxu0
    %2323 = vdwg.mxu0
    %2324 = vmatprep.subr.bf16.mxu0 0
    %2325 = vmatpush1.bf16.msra.mxu0 %v1555
    %2326 = vmatprep.subr.bf16.mxu0 0
    %2327 = vmatpush1.bf16.msra.mxu0 %v1550
    %2328 = vmatprep.subr.bf16.mxu0 0
    %2329 = vmatpush1.bf16.msra.mxu0 %v1545
    %2330 = vmatprep.subr.bf16.mxu0 0
    %2331 = vmatpush1.bf16.msra.mxu0 %v1540
    %2332 = vmatprep.subr.bf16.mxu0 0
    %2333 = vmatpush1.bf16.msra.mxu0 %v1535
    %2334 = vmatprep.subr.bf16.mxu0 0
    %2335 = vmatpush1.bf16.msra.mxu0 %v1530
    %2336 = vmatprep.subr.bf16.mxu0 0
    %2337 = vmatpush1.bf16.msra.mxu0 %v1525
    %2338 = vmatprep.subr.bf16.mxu0 0
    %2339 = vmatpush1.bf16.msra.mxu0 %v1520
    %2340 = vmatprep.subr.bf16.mxu0 0
    %2341 = vmatpush2.bf16.msra.mxu0 %v1595
    %2342 = vmatprep.subr.bf16.mxu0 0
    %2343 = vmatpush2.bf16.msra.mxu0 %v1590
    %2344 = vmatprep.subr.bf16.mxu0 0
    %2345 = vmatpush2.bf16.msra.mxu0 %v1585
    %2346 = vmatprep.subr.bf16.mxu0 0
    %2347 = vmatpush2.bf16.msra.mxu0 %v1580
    %2348 = vmatprep.subr.bf16.mxu0 0
    %2349 = vmatpush2.bf16.msra.mxu0 %v1575
    %2350 = vmatprep.subr.bf16.mxu0 0
    %2351 = vmatpush2.bf16.msra.mxu0 %v1570
    %2352 = vmatprep.subr.bf16.mxu0 0
    %2353 = vmatpush2.bf16.msra.mxu0 %v1565
    %2354 = vmatprep.subr.bf16.mxu0 0
    %2355 = vmatpush2.bf16.msra.mxu0 %v1560
    %2356 = vmatprep.mubr.bf16.mxu0 %v432
    %2357 = vmatmul.mubr.bf16.gmra.mxu0 %v431
    %v2358 = vpop.f32.mrf.mxu0
    %v2359 = vadd.f32 %v2319, %v2358
    %v2360 = vpop.f32.mrf.mxu0
    %v2361 = vpop.f32.mrf.mxu0
    %v2362 = vpop.f32.mrf.mxu0
    %2363 = vdwg.mxu0
    %2364 = vmatprep.subr.bf16.mxu0 0
    %2365 = vmatpush1.bf16.msra.mxu0 %v1635
    %2366 = vmatprep.subr.bf16.mxu0 0
    %2367 = vmatpush1.bf16.msra.mxu0 %v1630
    %2368 = vmatprep.subr.bf16.mxu0 0
    %2369 = vmatpush1.bf16.msra.mxu0 %v1625
    %2370 = vmatprep.subr.bf16.mxu0 0
    %2371 = vmatpush1.bf16.msra.mxu0 %v1620
    %2372 = vmatprep.subr.bf16.mxu0 0
    %2373 = vmatpush1.bf16.msra.mxu0 %v1615
    %2374 = vmatprep.subr.bf16.mxu0 0
    %2375 = vmatpush1.bf16.msra.mxu0 %v1610
    %2376 = vmatprep.subr.bf16.mxu0 0
    %2377 = vmatpush1.bf16.msra.mxu0 %v1605
    %2378 = vmatprep.subr.bf16.mxu0 0
    %2379 = vmatpush1.bf16.msra.mxu0 %v1600
    %2380 = vmatprep.subr.bf16.mxu0 0
    %2381 = vmatpush2.bf16.msra.mxu0 0
    %2382 = vmatprep.subr.bf16.mxu0 0
    %2383 = vmatpush2.bf16.msra.mxu0 0
    %2384 = vmatprep.subr.bf16.mxu0 0
    %2385 = vmatpush2.bf16.msra.mxu0 0
    %2386 = vmatprep.subr.bf16.mxu0 0
    %2387 = vmatpush2.bf16.msra.mxu0 0
    %2388 = vmatprep.subr.bf16.mxu0 0
    %2389 = vmatpush2.bf16.msra.mxu0 0
    %2390 = vmatprep.subr.bf16.mxu0 0
    %2391 = vmatpush2.bf16.msra.mxu0 0
    %2392 = vmatprep.subr.bf16.mxu0 0
    %2393 = vmatpush2.bf16.msra.mxu0 0
    %2394 = vmatprep.subr.bf16.mxu0 0
    %2395 = vmatpush2.bf16.msra.mxu0 0
    %2396 = vmatprep.mubr.bf16.mxu0 0
    %2397 = vmatmul.mubr.bf16.gmra.mxu0 %v433
    %v2398 = vpop.f32.mrf.mxu0
    %v2399 = vadd.f32 %v2359, %v2398
    %v2400 = vpop.f32.mrf.mxu0
    %v2401 = vpop.f32.mrf.mxu0
    %v2402 = vpop.f32.mrf.mxu0
    %2403 = vdwg.mxu0
    %v2404 = vmax.f32 %v2074, 0.0
    %v2405 = vmax.f32 %v2076, 0.0
    %v2406 = vmax.f32 %v2238, 0.0
    %v2407 = vmax.f32 %v2240, 0.0
    %v2408 = vmax.f32 %v2399, 0.0
    %v2409 = vld [vmem:[%s3] sm:$0xff]
    %v2410 = vld [vmem:[%s3 + $0x8] sm:$0xf]
    %v2411 = vld [vmem:[%s3 + $0xc] sm:$0xff]
    %v2412 = vld [vmem:[%s3 + $0x14] sm:$0xf]
    %v2413 = vld [vmem:[%s3 + $0x18] sm:$0xff]
    %v2414 = vld [vmem:[%s3 + $0x20] sm:$0xf]
    %v2415 = vld [vmem:[%s3 + $0x24] sm:$0xff]
    %v2416 = vld [vmem:[%s3 + $0x2c] sm:$0xf]
    %v2417 = vld [vmem:[%s3 + $0x30] sm:$0xff]
    %v2418 = vld [vmem:[%s3 + $0x38] sm:$0xf]
    %v2419 = vld [vmem:[%s3 + $0x3c] sm:$0xff]
    %v2420 = vld [vmem:[%s3 + $0x44] sm:$0xf]
    %v2421 = vld [vmem:[%s3 + $0x48] sm:$0xff]
    %v2422 = vld [vmem:[%s3 + $0x50] sm:$0xf]
    %v2423 = vld [vmem:[%s3 + $0x54] sm:$0xff]
    %v2424 = vld [vmem:[%s3 + $0x5c] sm:$0xf]
    %v2425 = vld [vmem:[%s3 + $0x60] sm:$0xff]
    %v2426 = vld [vmem:[%s3 + $0x68] sm:$0xf]
    %v2427 = vld [vmem:[%s3 + $0x6c] sm:$0xff]
    %v2428 = vld [vmem:[%s3 + $0x74] sm:$0xf]
    %v2429 = vld [vmem:[%s3 + $0x78] sm:$0xff]
    %v2430 = vld [vmem:[%s3 + $0x80] sm:$0xf]
    %v2431 = vld [vmem:[%s3 + $0x84] sm:$0xff]
    %v2432 = vld [vmem:[%s3 + $0x8c] sm:$0xf]
    %v2433 = vld [vmem:[%s3 + $0x90] sm:$0xff]
    %v2434 = vld [vmem:[%s3 + $0x98] sm:$0xf]
    %v2435 = vld [vmem:[%s3 + $0x9c] sm:$0xff]
    %v2436 = vld [vmem:[%s3 + $0xa4] sm:$0xf]
    %v2437 = vld [vmem:[%s3 + $0xa8] sm:$0xff]
    %v2438 = vld [vmem:[%s3 + $0xb0] sm:$0xf]
    %v2439 = vld [vmem:[%s3 + $0xb4] sm:$0xff]
    %v2440 = vld [vmem:[%s3 + $0xbc] sm:$0xf]
    %v2441 = vld [vmem:[%s3 + $0xc0] sm:$0xff]
    %v2442 = vld [vmem:[%s3 + $0xc8] sm:$0xf]
    %v2443 = vld [vmem:[%s3 + $0xcc] sm:$0xff]
    %v2444 = vld [vmem:[%s3 + $0xd4] sm:$0xf]
    %v2445 = vld [vmem:[%s3 + $0xd8] sm:$0xff]
    %v2446 = vld [vmem:[%s3 + $0xe0] sm:$0xf]
    %v2447 = vld [vmem:[%s3 + $0xe4] sm:$0xff]
    %v2448 = vld [vmem:[%s3 + $0xec] sm:$0xf]
    %v2449 = vld [vmem:[%s3 + $0xf0] sm:$0xff]
    %v2450 = vld [vmem:[%s3 + $0xf8] sm:$0xf]
    %v2451 = vld [vmem:[%s3 + $0xfc] sm:$0xff]
    %v2452 = vld [vmem:[%s3 + $0x104] sm:$0xf]
    %v2453 = vld [vmem:[%s3 + $0x108] sm:$0xff]
    %v2454 = vld [vmem:[%s3 + $0x110] sm:$0xf]
    %v2455 = vld [vmem:[%s3 + $0x114] sm:$0xff]
    %v2456 = vld [vmem:[%s3 + $0x11c] sm:$0xf]
    %v2457 = vld [vmem:[%s3 + $0x120] sm:$0xff]
    %v2458 = vld [vmem:[%s3 + $0x128] sm:$0xf]
    %v2459 = vld [vmem:[%s3 + $0x12c] sm:$0xff]
    %v2460 = vld [vmem:[%s3 + $0x134] sm:$0xf]
    %v2461 = vld [vmem:[%s3 + $0x138] sm:$0xff]
    %v2462 = vld [vmem:[%s3 + $0x140] sm:$0xf]
    %v2463 = vld [vmem:[%s3 + $0x144] sm:$0xff]
    %v2464 = vld [vmem:[%s3 + $0x14c] sm:$0xf]
    %v2465 = vld [vmem:[%s3 + $0x150] sm:$0xff]
    %v2466 = vld [vmem:[%s3 + $0x158] sm:$0xf]
    %v2467 = vld [vmem:[%s3 + $0x15c] sm:$0xff]
    %v2468 = vld [vmem:[%s3 + $0x164] sm:$0xf]
    %v2469 = vld [vmem:[%s3 + $0x168] sm:$0xff]
    %v2470 = vld [vmem:[%s3 + $0x170] sm:$0xf]
    %v2471 = vld [vmem:[%s3 + $0x174] sm:$0xff]
    %v2472 = vld [vmem:[%s3 + $0x17c] sm:$0xf]
    %v2473 = vld [vmem:[%s3 + $0x180] sm:$0xff]
    %v2474 = vld [vmem:[%s3 + $0x188] sm:$0xf]
    %v2475 = vld [vmem:[%s3 + $0x18c] sm:$0xff]
    %v2476 = vld [vmem:[%s3 + $0x194] sm:$0xf]
    %v2477 = vld [vmem:[%s3 + $0x198] sm:$0xff]
    %v2478 = vld [vmem:[%s3 + $0x1a0] sm:$0xf]
    %v2479 = vld [vmem:[%s3 + $0x1a4] sm:$0xff]
    %v2480 = vld [vmem:[%s3 + $0x1ac] sm:$0xf]
    %v2481 = vld [vmem:[%s3 + $0x1b0] sm:$0xff]
    %v2482 = vld [vmem:[%s3 + $0x1b8] sm:$0xf]
    %v2483 = vld [vmem:[%s3 + $0x1bc] sm:$0xff]
    %v2484 = vld [vmem:[%s3 + $0x1c4] sm:$0xf]
    %v2485 = vld [vmem:[%s3 + $0x1c8] sm:$0xff]
    %v2486 = vld [vmem:[%s3 + $0x1d0] sm:$0xf]
    %v2487 = vld [vmem:[%s3 + $0x1d4] sm:$0xff]
    %v2488 = vld [vmem:[%s3 + $0x1dc] sm:$0xf]
    %v2489 = vld [vmem:[%s3 + $0x1e0] sm:$0xff]
    %v2490 = vld [vmem:[%s3 + $0x1e8] sm:$0xf]
    %v2491 = vld [vmem:[%s3 + $0x1ec] sm:$0xff]
    %v2492 = vld [vmem:[%s3 + $0x1f4] sm:$0xf]
    %v2493 = vld [vmem:[%s3 + $0x1f8] sm:$0xff]
    %v2494 = vld [vmem:[%s3 + $0x200] sm:$0xf]
    %v2495 = vld [vmem:[%s3 + $0x204] sm:$0xff]
    %v2496 = vld [vmem:[%s3 + $0x20c] sm:$0xf]
    %v2497 = vld [vmem:[%s3 + $0x210] sm:$0xff]
    %v2498 = vld [vmem:[%s3 + $0x218] sm:$0xf]
    %v2499 = vld [vmem:[%s3 + $0x21c] sm:$0xff]
    %v2500 = vld [vmem:[%s3 + $0x224] sm:$0xf]
    %v2501 = vld [vmem:[%s3 + $0x228] sm:$0xff]
    %v2502 = vld [vmem:[%s3 + $0x230] sm:$0xf]
    %v2503 = vld [vmem:[%s3 + $0x234] sm:$0xff]
    %v2504 = vld [vmem:[%s3 + $0x23c] sm:$0xf]
    %v2505 = vld [vmem:[%s3 + $0x240] sm:$0xff]
    %v2506 = vld [vmem:[%s3 + $0x248] sm:$0xf]
    %v2507 = vld [vmem:[%s3 + $0x24c] sm:$0xff]
    %v2508 = vld [vmem:[%s3 + $0x254] sm:$0xf]
    %v2509 = vld [vmem:[%s3 + $0x258] sm:$0xff]
    %v2510 = vld [vmem:[%s3 + $0x260] sm:$0xf]
    %v2511 = vld [vmem:[%s3 + $0x264] sm:$0xff]
    %v2512 = vld [vmem:[%s3 + $0x26c] sm:$0xf]
    %v2513 = vld [vmem:[%s3 + $0x270] sm:$0xff]
    %v2514 = vld [vmem:[%s3 + $0x278] sm:$0xf]
    %v2515 = vld [vmem:[%s3 + $0x27c] sm:$0xff]
    %v2516 = vld [vmem:[%s3 + $0x284] sm:$0xf]
    %v2517 = vld [vmem:[%s3 + $0x288] sm:$0xff]
    %v2518 = vld [vmem:[%s3 + $0x290] sm:$0xf]
    %v2519 = vld [vmem:[%s3 + $0x294] sm:$0xff]
    %v2520 = vld [vmem:[%s3 + $0x29c] sm:$0xf]
    %v2521 = vld [vmem:[%s3 + $0x2a0] sm:$0xff]
    %v2522 = vld [vmem:[%s3 + $0x2a8] sm:$0xf]
    %v2523 = vld [vmem:[%s3 + $0x2ac] sm:$0xff]
    %v2524 = vld [vmem:[%s3 + $0x2b4] sm:$0xf]
    %v2525 = vld [vmem:[%s3 + $0x2b8] sm:$0xff]
    %v2526 = vld [vmem:[%s3 + $0x2c0] sm:$0xf]
    %v2527 = vld [vmem:[%s3 + $0x2c4] sm:$0xff]
    %v2528 = vld [vmem:[%s3 + $0x2cc] sm:$0xf]
    %v2529 = vld [vmem:[%s3 + $0x2d0] sm:$0xff]
    %v2530 = vld [vmem:[%s3 + $0x2d8] sm:$0xf]
    %v2531 = vld [vmem:[%s3 + $0x2dc] sm:$0xff]
    %v2532 = vld [vmem:[%s3 + $0x2e4] sm:$0xf]
    %v2533 = vld [vmem:[%s3 + $0x2e8] sm:$0xff]
    %v2534 = vld [vmem:[%s3 + $0x2f0] sm:$0xf]
    %v2535 = vld [vmem:[%s3 + $0x2f4] sm:$0xff]
    %v2536 = vld [vmem:[%s3 + $0x2fc] sm:$0xf]
    %v2537 = vld [vmem:[%s3 + $0x300] sm:$0xff]
    %v2538 = vld [vmem:[%s3 + $0x308] sm:$0xf]
    %v2539 = vld [vmem:[%s3 + $0x30c] sm:$0xff]
    %v2540 = vld [vmem:[%s3 + $0x314] sm:$0xf]
    %v2541 = vld [vmem:[%s3 + $0x318] sm:$0xff]
    %v2542 = vld [vmem:[%s3 + $0x320] sm:$0xf]
    %v2543 = vld [vmem:[%s3 + $0x324] sm:$0xff]
    %v2544 = vld [vmem:[%s3 + $0x32c] sm:$0xf]
    %v2545 = vld [vmem:[%s3 + $0x330] sm:$0xff]
    %v2546 = vld [vmem:[%s3 + $0x338] sm:$0xf]
    %v2547 = vld [vmem:[%s3 + $0x33c] sm:$0xff]
    %v2548 = vld [vmem:[%s3 + $0x344] sm:$0xf]
    %v2549 = vld [vmem:[%s3 + $0x348] sm:$0xff]
    %v2550 = vld [vmem:[%s3 + $0x350] sm:$0xf]
    %v2551 = vld [vmem:[%s3 + $0x354] sm:$0xff]
    %v2552 = vld [vmem:[%s3 + $0x35c] sm:$0xf]
    %v2553 = vld [vmem:[%s3 + $0x360] sm:$0xff]
    %v2554 = vld [vmem:[%s3 + $0x368] sm:$0xf]
    %v2555 = vld [vmem:[%s3 + $0x36c] sm:$0xff]
    %v2556 = vld [vmem:[%s3 + $0x374] sm:$0xf]
    %v2557 = vld [vmem:[%s3 + $0x378] sm:$0xff]
    %v2558 = vld [vmem:[%s3 + $0x380] sm:$0xf]
    %v2559 = vld [vmem:[%s3 + $0x384] sm:$0xff]
    %v2560 = vld [vmem:[%s3 + $0x38c] sm:$0xf]
    %v2561 = vld [vmem:[%s3 + $0x390] sm:$0xff]
    %v2562 = vld [vmem:[%s3 + $0x398] sm:$0xf]
    %v2563 = vld [vmem:[%s3 + $0x39c] sm:$0xff]
    %v2564 = vld [vmem:[%s3 + $0x3a4] sm:$0xf]
    %v2565 = vld [vmem:[%s3 + $0x3a8] sm:$0xff]
    %v2566 = vld [vmem:[%s3 + $0x3b0] sm:$0xf]
    %v2567 = vld [vmem:[%s3 + $0x3b4] sm:$0xff]
    %v2568 = vld [vmem:[%s3 + $0x3bc] sm:$0xf]
    %v2569 = vld [vmem:[%s4] sm:$0x7]
    %v2570 = vpack.c.bf16 %v2404, %v2404
    %v2571 = vpack.c.bf16 %v2405, %v2405
    %v2572 = vpack.c.bf16 %v2406, %v2406
    %v2573 = vpack.c.bf16 %v2407, %v2407
    %v2574 = vpack.c.bf16 %v2408, %v2408
    %v2576 = vlaneseq
    %v2577 = vshrl.u32 %v2576, 7
    %v2578 = vsub.s32 0, %v2577
    %v2579 = vrot.slane %v2569, %v2578
    %v2580 = vlaneseq
    %v2581 = vshrl.u32 %v2580, 7
    %v2582 = vsub.s32 1, %v2581
    %v2583 = vrot.slane %v2569, %v2582
    %v2584 = vlaneseq
    %v2585 = vshrl.u32 %v2584, 7
    %v2586 = vsub.s32 2, %v2585
    %v2587 = vrot.slane %v2569, %v2586
    %v2751 = vunpack.c.l.b16 %v2409
    %v2752 = vunpack.c.h.b16 %v2409
    %v2753 = vunpack.c.l.b16 %v2410
    %v2754 = vunpack.c.l.b16 %v2411
    %v2755 = vunpack.c.h.b16 %v2411
    %v2756 = vunpack.c.l.b16 %v2412
    %v2757 = vunpack.c.l.b16 %v2413
    %v2758 = vunpack.c.h.b16 %v2413
    %v2759 = vunpack.c.l.b16 %v2414
    %v2760 = vunpack.c.l.b16 %v2415
    %v2761 = vunpack.c.h.b16 %v2415
    %v2762 = vunpack.c.l.b16 %v2416
    %v2763 = vunpack.c.l.b16 %v2417
    %v2764 = vunpack.c.h.b16 %v2417
    %v2765 = vunpack.c.l.b16 %v2418
    %v2766 = vunpack.c.l.b16 %v2419
    %v2767 = vunpack.c.h.b16 %v2419
    %v2768 = vunpack.c.l.b16 %v2420
    %v2769 = vunpack.c.l.b16 %v2421
    %v2770 = vunpack.c.h.b16 %v2421
    %v2771 = vunpack.c.l.b16 %v2422
    %v2772 = vunpack.c.l.b16 %v2423
    %v2773 = vunpack.c.h.b16 %v2423
    %v2774 = vunpack.c.l.b16 %v2424
    %v2775 = vunpack.c.l.b16 %v2425
    %v2776 = vunpack.c.h.b16 %v2425
    %v2777 = vunpack.c.l.b16 %v2426
    %v2778 = vunpack.c.l.b16 %v2427
    %v2779 = vunpack.c.h.b16 %v2427
    %v2780 = vunpack.c.l.b16 %v2428
    %v2781 = vunpack.c.l.b16 %v2429
    %v2782 = vunpack.c.h.b16 %v2429
    %v2783 = vunpack.c.l.b16 %v2430
    %v2784 = vunpack.c.l.b16 %v2431
    %v2785 = vunpack.c.h.b16 %v2431
    %v2786 = vunpack.c.l.b16 %v2432
    %v2787 = vunpack.c.l.b16 %v2433
    %v2788 = vunpack.c.h.b16 %v2433
    %v2789 = vunpack.c.l.b16 %v2434
    %v2790 = vunpack.c.l.b16 %v2435
    %v2791 = vunpack.c.h.b16 %v2435
    %v2792 = vunpack.c.l.b16 %v2436
    %v2793 = vunpack.c.l.b16 %v2437
    %v2794 = vunpack.c.h.b16 %v2437
    %v2795 = vunpack.c.l.b16 %v2438
    %v2796 = vunpack.c.l.b16 %v2439
    %v2797 = vunpack.c.h.b16 %v2439
    %v2798 = vunpack.c.l.b16 %v2440
    %v2799 = vunpack.c.l.b16 %v2441
    %v2800 = vunpack.c.h.b16 %v2441
    %v2801 = vunpack.c.l.b16 %v2442
    %v2802 = vunpack.c.l.b16 %v2443
    %v2803 = vunpack.c.h.b16 %v2443
    %v2804 = vunpack.c.l.b16 %v2444
    %v2805 = vunpack.c.l.b16 %v2445
    %v2806 = vunpack.c.h.b16 %v2445
    %v2807 = vunpack.c.l.b16 %v2446
    %v2808 = vunpack.c.l.b16 %v2447
    %v2809 = vunpack.c.h.b16 %v2447
    %v2810 = vunpack.c.l.b16 %v2448
    %v2811 = vunpack.c.l.b16 %v2449
    %v2812 = vunpack.c.h.b16 %v2449
    %v2813 = vunpack.c.l.b16 %v2450
    %v2814 = vunpack.c.l.b16 %v2451
    %v2815 = vunpack.c.h.b16 %v2451
    %v2816 = vunpack.c.l.b16 %v2452
    %v2817 = vunpack.c.l.b16 %v2453
    %v2818 = vunpack.c.h.b16 %v2453
    %v2819 = vunpack.c.l.b16 %v2454
    %v2820 = vunpack.c.l.b16 %v2455
    %v2821 = vunpack.c.h.b16 %v2455
    %v2822 = vunpack.c.l.b16 %v2456
    %v2823 = vunpack.c.l.b16 %v2457
    %v2824 = vunpack.c.h.b16 %v2457
    %v2825 = vunpack.c.l.b16 %v2458
    %v2826 = vunpack.c.l.b16 %v2459
    %v2827 = vunpack.c.h.b16 %v2459
    %v2828 = vunpack.c.l.b16 %v2460
    %v2829 = vunpack.c.l.b16 %v2461
    %v2830 = vunpack.c.h.b16 %v2461
    %v2831 = vunpack.c.l.b16 %v2462
    %v2832 = vunpack.c.l.b16 %v2463
    %v2833 = vunpack.c.h.b16 %v2463
    %v2834 = vunpack.c.l.b16 %v2464
    %v2835 = vunpack.c.l.b16 %v2465
    %v2836 = vunpack.c.h.b16 %v2465
    %v2837 = vunpack.c.l.b16 %v2466
    %v2838 = vunpack.c.l.b16 %v2467
    %v2839 = vunpack.c.h.b16 %v2467
    %v2840 = vunpack.c.l.b16 %v2468
    %v2841 = vunpack.c.l.b16 %v2469
    %v2842 = vunpack.c.h.b16 %v2469
    %v2843 = vunpack.c.l.b16 %v2470
    %v2844 = vunpack.c.l.b16 %v2471
    %v2845 = vunpack.c.h.b16 %v2471
    %v2846 = vunpack.c.l.b16 %v2472
    %v2847 = vunpack.c.l.b16 %v2473
    %v2848 = vunpack.c.h.b16 %v2473
    %v2849 = vunpack.c.l.b16 %v2474
    %v2850 = vunpack.c.l.b16 %v2475
    %v2851 = vunpack.c.h.b16 %v2475
    %v2852 = vunpack.c.l.b16 %v2476
    %v2853 = vunpack.c.l.b16 %v2477
    %v2854 = vunpack.c.h.b16 %v2477
    %v2855 = vunpack.c.l.b16 %v2478
    %v2856 = vunpack.c.l.b16 %v2479
    %v2857 = vunpack.c.h.b16 %v2479
    %v2858 = vunpack.c.l.b16 %v2480
    %v2859 = vunpack.c.l.b16 %v2481
    %v2860 = vunpack.c.h.b16 %v2481
    %v2861 = vunpack.c.l.b16 %v2482
    %v2862 = vunpack.c.l.b16 %v2483
    %v2863 = vunpack.c.h.b16 %v2483
    %v2864 = vunpack.c.l.b16 %v2484
    %v2865 = vunpack.c.l.b16 %v2485
    %v2866 = vunpack.c.h.b16 %v2485
    %v2867 = vunpack.c.l.b16 %v2486
    %v2868 = vunpack.c.l.b16 %v2487
    %v2869 = vunpack.c.h.b16 %v2487
    %v2870 = vunpack.c.l.b16 %v2488
    %v2871 = vunpack.c.l.b16 %v2489
    %v2872 = vunpack.c.h.b16 %v2489
    %v2873 = vunpack.c.l.b16 %v2490
    %v2874 = vunpack.c.l.b16 %v2491
    %v2875 = vunpack.c.h.b16 %v2491
    %v2876 = vunpack.c.l.b16 %v2492
    %v2877 = vunpack.c.l.b16 %v2493
    %v2878 = vunpack.c.h.b16 %v2493
    %v2879 = vunpack.c.l.b16 %v2494
    %v2880 = vunpack.c.l.b16 %v2495
    %v2881 = vunpack.c.h.b16 %v2495
    %v2882 = vunpack.c.l.b16 %v2496
    %v2883 = vunpack.c.l.b16 %v2497
    %v2884 = vunpack.c.h.b16 %v2497
    %v2885 = vunpack.c.l.b16 %v2498
    %v2886 = vunpack.c.l.b16 %v2499
    %v2887 = vunpack.c.h.b16 %v2499
    %v2888 = vunpack.c.l.b16 %v2500
    %v2889 = vunpack.c.l.b16 %v2501
    %v2890 = vunpack.c.h.b16 %v2501
    %v2891 = vunpack.c.l.b16 %v2502
    %v2892 = vunpack.c.l.b16 %v2503
    %v2893 = vunpack.c.h.b16 %v2503
    %v2894 = vunpack.c.l.b16 %v2504
    %v2895 = vunpack.c.l.b16 %v2505
    %v2896 = vunpack.c.h.b16 %v2505
    %v2897 = vunpack.c.l.b16 %v2506
    %v2898 = vunpack.c.l.b16 %v2507
    %v2899 = vunpack.c.h.b16 %v2507
    %v2900 = vunpack.c.l.b16 %v2508
    %v2901 = vunpack.c.l.b16 %v2509
    %v2902 = vunpack.c.h.b16 %v2509
    %v2903 = vunpack.c.l.b16 %v2510
    %v2904 = vunpack.c.l.b16 %v2511
    %v2905 = vunpack.c.h.b16 %v2511
    %v2906 = vunpack.c.l.b16 %v2512
    %v2907 = vunpack.c.l.b16 %v2513
    %v2908 = vunpack.c.h.b16 %v2513
    %v2909 = vunpack.c.l.b16 %v2514
    %v2910 = vunpack.c.l.b16 %v2515
    %v2911 = vunpack.c.h.b16 %v2515
    %v2912 = vunpack.c.l.b16 %v2516
    %v2913 = vunpack.c.l.b16 %v2517
    %v2914 = vunpack.c.h.b16 %v2517
    %v2915 = vunpack.c.l.b16 %v2518
    %v2916 = vunpack.c.l.b16 %v2519
    %v2917 = vunpack.c.h.b16 %v2519
    %v2918 = vunpack.c.l.b16 %v2520
    %v2919 = vunpack.c.l.b16 %v2521
    %v2920 = vunpack.c.h.b16 %v2521
    %v2921 = vunpack.c.l.b16 %v2522
    %v2922 = vunpack.c.l.b16 %v2523
    %v2923 = vunpack.c.h.b16 %v2523
    %v2924 = vunpack.c.l.b16 %v2524
    %v2925 = vunpack.c.l.b16 %v2525
    %v2926 = vunpack.c.h.b16 %v2525
    %v2927 = vunpack.c.l.b16 %v2526
    %v2928 = vunpack.c.l.b16 %v2527
    %v2929 = vunpack.c.h.b16 %v2527
    %v2930 = vunpack.c.l.b16 %v2528
    %v2931 = vunpack.c.l.b16 %v2529
    %v2932 = vunpack.c.h.b16 %v2529
    %v2933 = vunpack.c.l.b16 %v2530
    %v2934 = vunpack.c.l.b16 %v2531
    %v2935 = vunpack.c.h.b16 %v2531
    %v2936 = vunpack.c.l.b16 %v2532
    %v2937 = vunpack.c.l.b16 %v2533
    %v2938 = vunpack.c.h.b16 %v2533
    %v2939 = vunpack.c.l.b16 %v2534
    %v2940 = vunpack.c.l.b16 %v2535
    %v2941 = vunpack.c.h.b16 %v2535
    %v2942 = vunpack.c.l.b16 %v2536
    %v2943 = vunpack.c.l.b16 %v2537
    %v2944 = vunpack.c.h.b16 %v2537
    %v2945 = vunpack.c.l.b16 %v2538
    %v2946 = vunpack.c.l.b16 %v2539
    %v2947 = vunpack.c.h.b16 %v2539
    %v2948 = vunpack.c.l.b16 %v2540
    %v2949 = vunpack.c.l.b16 %v2541
    %v2950 = vunpack.c.h.b16 %v2541
    %v2951 = vunpack.c.l.b16 %v2542
    %v2952 = vunpack.c.l.b16 %v2543
    %v2953 = vunpack.c.h.b16 %v2543
    %v2954 = vunpack.c.l.b16 %v2544
    %v2955 = vunpack.c.l.b16 %v2545
    %v2956 = vunpack.c.h.b16 %v2545
    %v2957 = vunpack.c.l.b16 %v2546
    %v2958 = vunpack.c.l.b16 %v2547
    %v2959 = vunpack.c.h.b16 %v2547
    %v2960 = vunpack.c.l.b16 %v2548
    %v2961 = vunpack.c.l.b16 %v2549
    %v2962 = vunpack.c.h.b16 %v2549
    %v2963 = vunpack.c.l.b16 %v2550
    %v2964 = vunpack.c.l.b16 %v2551
    %v2965 = vunpack.c.h.b16 %v2551
    %v2966 = vunpack.c.l.b16 %v2552
    %v2967 = vunpack.c.l.b16 %v2553
    %v2968 = vunpack.c.h.b16 %v2553
    %v2969 = vunpack.c.l.b16 %v2554
    %v2970 = vunpack.c.l.b16 %v2555
    %v2971 = vunpack.c.h.b16 %v2555
    %v2972 = vunpack.c.l.b16 %v2556
    %v2973 = vunpack.c.l.b16 %v2557
    %v2974 = vunpack.c.h.b16 %v2557
    %v2975 = vunpack.c.l.b16 %v2558
    %v2976 = vunpack.c.l.b16 %v2559
    %v2977 = vunpack.c.h.b16 %v2559
    %v2978 = vunpack.c.l.b16 %v2560
    %v2979 = vunpack.c.l.b16 %v2561
    %v2980 = vunpack.c.h.b16 %v2561
    %v2981 = vunpack.c.l.b16 %v2562
    %v2982 = vunpack.c.l.b16 %v2563
    %v2983 = vunpack.c.h.b16 %v2563
    %v2984 = vunpack.c.l.b16 %v2564
    %v2985 = vunpack.c.l.b16 %v2565
    %v2986 = vunpack.c.h.b16 %v2565
    %v2987 = vunpack.c.l.b16 %v2566
    %v2988 = vunpack.c.l.b16 %v2567
    %v2989 = vunpack.c.h.b16 %v2567
    %v2990 = vunpack.c.l.b16 %v2568
    %v2991 = vpack.c.b16 %v2754, %v2751
    %v2992 = vpack.c.b16 %v2755, %v2752
    %v2993 = vpack.c.b16 %v2756, %v2753
    %v2994 = vpack.c.b16 %v2760, %v2757
    %v2995 = vpack.c.b16 %v2761, %v2758
    %v2996 = vpack.c.b16 %v2762, %v2759
    %v2997 = vpack.c.b16 %v2766, %v2763
    %v2998 = vpack.c.b16 %v2767, %v2764
    %v2999 = vpack.c.b16 %v2768, %v2765
    %v3000 = vpack.c.b16 %v2772, %v2769
    %v3001 = vpack.c.b16 %v2773, %v2770
    %v3002 = vpack.c.b16 %v2774, %v2771
    %v3003 = vpack.c.b16 %v2778, %v2775
    %v3004 = vpack.c.b16 %v2779, %v2776
    %v3005 = vpack.c.b16 %v2780, %v2777
    %v3006 = vpack.c.b16 %v2784, %v2781
    %v3007 = vpack.c.b16 %v2785, %v2782
    %v3008 = vpack.c.b16 %v2786, %v2783
    %v3009 = vpack.c.b16 %v2790, %v2787
    %v3010 = vpack.c.b16 %v2791, %v2788
    %v3011 = vpack.c.b16 %v2792, %v2789
    %v3012 = vpack.c.b16 %v2796, %v2793
    %v3013 = vpack.c.b16 %v2797, %v2794
    %v3014 = vpack.c.b16 %v2798, %v2795
    %v3015 = vpack.c.b16 %v2802, %v2799
    %v3016 = vpack.c.b16 %v2803, %v2800
    %v3017 = vpack.c.b16 %v2804, %v2801
    %v3018 = vpack.c.b16 %v2808, %v2805
    %v3019 = vpack.c.b16 %v2809, %v2806
    %v3020 = vpack.c.b16 %v2810, %v2807
    %v3021 = vpack.c.b16 %v2814, %v2811
    %v3022 = vpack.c.b16 %v2815, %v2812
    %v3023 = vpack.c.b16 %v2816, %v2813
    %v3024 = vpack.c.b16 %v2820, %v2817
    %v3025 = vpack.c.b16 %v2821, %v2818
    %v3026 = vpack.c.b16 %v2822, %v2819
    %v3027 = vpack.c.b16 %v2826, %v2823
    %v3028 = vpack.c.b16 %v2827, %v2824
    %v3029 = vpack.c.b16 %v2828, %v2825
    %v3030 = vpack.c.b16 %v2832, %v2829
    %v3031 = vpack.c.b16 %v2833, %v2830
    %v3032 = vpack.c.b16 %v2834, %v2831
    %v3033 = vpack.c.b16 %v2838, %v2835
    %v3034 = vpack.c.b16 %v2839, %v2836
    %v3035 = vpack.c.b16 %v2840, %v2837
    %v3036 = vpack.c.b16 %v2844, %v2841
    %v3037 = vpack.c.b16 %v2845, %v2842
    %v3038 = vpack.c.b16 %v2846, %v2843
    %v3039 = vpack.c.b16 %v2850, %v2847
    %v3040 = vpack.c.b16 %v2851, %v2848
    %v3041 = vpack.c.b16 %v2852, %v2849
    %v3042 = vpack.c.b16 %v2856, %v2853
    %v3043 = vpack.c.b16 %v2857, %v2854
    %v3044 = vpack.c.b16 %v2858, %v2855
    %v3045 = vpack.c.b16 %v2862, %v2859
    %v3046 = vpack.c.b16 %v2863, %v2860
    %v3047 = vpack.c.b16 %v2864, %v2861
    %v3048 = vpack.c.b16 %v2868, %v2865
    %v3049 = vpack.c.b16 %v2869, %v2866
    %v3050 = vpack.c.b16 %v2870, %v2867
    %v3051 = vpack.c.b16 %v2874, %v2871
    %v3052 = vpack.c.b16 %v2875, %v2872
    %v3053 = vpack.c.b16 %v2876, %v2873
    %v3054 = vpack.c.b16 %v2880, %v2877
    %v3055 = vpack.c.b16 %v2881, %v2878
    %v3056 = vpack.c.b16 %v2882, %v2879
    %v3057 = vpack.c.b16 %v2886, %v2883
    %v3058 = vpack.c.b16 %v2887, %v2884
    %v3059 = vpack.c.b16 %v2888, %v2885
    %v3060 = vpack.c.b16 %v2892, %v2889
    %v3061 = vpack.c.b16 %v2893, %v2890
    %v3062 = vpack.c.b16 %v2894, %v2891
    %v3063 = vpack.c.b16 %v2898, %v2895
    %v3064 = vpack.c.b16 %v2899, %v2896
    %v3065 = vpack.c.b16 %v2900, %v2897
    %v3066 = vpack.c.b16 %v2904, %v2901
    %v3067 = vpack.c.b16 %v2905, %v2902
    %v3068 = vpack.c.b16 %v2906, %v2903
    %v3069 = vpack.c.b16 %v2910, %v2907
    %v3070 = vpack.c.b16 %v2911, %v2908
    %v3071 = vpack.c.b16 %v2912, %v2909
    %v3072 = vpack.c.b16 %v2916, %v2913
    %v3073 = vpack.c.b16 %v2917, %v2914
    %v3074 = vpack.c.b16 %v2918, %v2915
    %v3075 = vpack.c.b16 %v2922, %v2919
    %v3076 = vpack.c.b16 %v2923, %v2920
    %v3077 = vpack.c.b16 %v2924, %v2921
    %v3078 = vpack.c.b16 %v2928, %v2925
    %v3079 = vpack.c.b16 %v2929, %v2926
    %v3080 = vpack.c.b16 %v2930, %v2927
    %v3081 = vpack.c.b16 %v2934, %v2931
    %v3082 = vpack.c.b16 %v2935, %v2932
    %v3083 = vpack.c.b16 %v2936, %v2933
    %v3084 = vpack.c.b16 %v2940, %v2937
    %v3085 = vpack.c.b16 %v2941, %v2938
    %v3086 = vpack.c.b16 %v2942, %v2939
    %v3087 = vpack.c.b16 %v2946, %v2943
    %v3088 = vpack.c.b16 %v2947, %v2944
    %v3089 = vpack.c.b16 %v2948, %v2945
    %v3090 = vpack.c.b16 %v2952, %v2949
    %v3091 = vpack.c.b16 %v2953, %v2950
    %v3092 = vpack.c.b16 %v2954, %v2951
    %v3093 = vpack.c.b16 %v2958, %v2955
    %v3094 = vpack.c.b16 %v2959, %v2956
    %v3095 = vpack.c.b16 %v2960, %v2957
    %v3096 = vpack.c.b16 %v2964, %v2961
    %v3097 = vpack.c.b16 %v2965, %v2962
    %v3098 = vpack.c.b16 %v2966, %v2963
    %v3099 = vpack.c.b16 %v2970, %v2967
    %v3100 = vpack.c.b16 %v2971, %v2968
    %v3101 = vpack.c.b16 %v2972, %v2969
    %v3102 = vpack.c.b16 %v2976, %v2973
    %v3103 = vpack.c.b16 %v2977, %v2974
    %v3104 = vpack.c.b16 %v2978, %v2975
    %v3105 = vpack.c.b16 %v2982, %v2979
    %v3106 = vpack.c.b16 %v2983, %v2980
    %v3107 = vpack.c.b16 %v2984, %v2981
    %v3108 = vpack.c.b16 %v2988, %v2985
    %v3109 = vpack.c.b16 %v2989, %v2986
    %v3110 = vpack.c.b16 %v2990, %v2987
    %3231 = vmatprep.subr.bf16.mxu0 %v3013
    %3232 = vmatpush1.bf16.msra.mxu0 %v3012
    %3233 = vmatprep.subr.bf16.mxu0 %v3010
    %3234 = vmatpush1.bf16.msra.mxu0 %v3009
    %3235 = vmatprep.subr.bf16.mxu0 %v3007
    %3236 = vmatpush1.bf16.msra.mxu0 %v3006
    %3237 = vmatprep.subr.bf16.mxu0 %v3004
    %3238 = vmatpush1.bf16.msra.mxu0 %v3003
    %3239 = vmatprep.subr.bf16.mxu0 %v3001
    %3240 = vmatpush1.bf16.msra.mxu0 %v3000
    %3241 = vmatprep.subr.bf16.mxu0 %v2998
    %3242 = vmatpush1.bf16.msra.mxu0 %v2997
    %3243 = vmatprep.subr.bf16.mxu0 %v2995
    %3244 = vmatpush1.bf16.msra.mxu0 %v2994
    %3245 = vmatprep.subr.bf16.mxu0 %v2992
    %3246 = vmatpush1.bf16.msra.mxu0 %v2991
    %3247 = vmatprep.subr.bf16.mxu0 %v3037
    %3248 = vmatpush2.bf16.msra.mxu0 %v3036
    %3249 = vmatprep.subr.bf16.mxu0 %v3034
    %3250 = vmatpush2.bf16.msra.mxu0 %v3033
    %3251 = vmatprep.subr.bf16.mxu0 %v3031
    %3252 = vmatpush2.bf16.msra.mxu0 %v3030
    %3253 = vmatprep.subr.bf16.mxu0 %v3028
    %3254 = vmatpush2.bf16.msra.mxu0 %v3027
    %3255 = vmatprep.subr.bf16.mxu0 %v3025
    %3256 = vmatpush2.bf16.msra.mxu0 %v3024
    %3257 = vmatprep.subr.bf16.mxu0 %v3022
    %3258 = vmatpush2.bf16.msra.mxu0 %v3021
    %3259 = vmatprep.subr.bf16.mxu0 %v3019
    %3260 = vmatpush2.bf16.msra.mxu0 %v3018
    %3261 = vmatprep.subr.bf16.mxu0 %v3016
    %3262 = vmatpush2.bf16.msra.mxu0 %v3015
    %3263 = vmatprep.mubr.bf16.mxu0 %v2571
    %3264 = vmatmul.mubr.bf16.gmra.mxu0 %v2570
    %v3265 = vpop.f32.mrf.mxu0
    %v3266 = vadd.f32 %v2579, %v3265
    %v3267 = vpop.f32.mrf.mxu0
    %v3268 = vadd.f32 %v2583, %v3267
    %v3269 = vpop.f32.mrf.mxu0
    %v3270 = vpop.f32.mrf.mxu0
    %3271 = vdwg.mxu0
    %3272 = vmatprep.subr.bf16.mxu0 %v3061
    %3273 = vmatpush1.bf16.msra.mxu0 %v3060
    %3274 = vmatprep.subr.bf16.mxu0 %v3058
    %3275 = vmatpush1.bf16.msra.mxu0 %v3057
    %3276 = vmatprep.subr.bf16.mxu0 %v3055
    %3277 = vmatpush1.bf16.msra.mxu0 %v3054
    %3278 = vmatprep.subr.bf16.mxu0 %v3052
    %3279 = vmatpush1.bf16.msra.mxu0 %v3051
    %3280 = vmatprep.subr.bf16.mxu0 %v3049
    %3281 = vmatpush1.bf16.msra.mxu0 %v3048
    %3282 = vmatprep.subr.bf16.mxu0 %v3046
    %3283 = vmatpush1.bf16.msra.mxu0 %v3045
    %3284 = vmatprep.subr.bf16.mxu0 %v3043
    %3285 = vmatpush1.bf16.msra.mxu0 %v3042
    %3286 = vmatprep.subr.bf16.mxu0 %v3040
    %3287 = vmatpush1.bf16.msra.mxu0 %v3039
    %3288 = vmatprep.subr.bf16.mxu0 %v3085
    %3289 = vmatpush2.bf16.msra.mxu0 %v3084
    %3290 = vmatprep.subr.bf16.mxu0 %v3082
    %3291 = vmatpush2.bf16.msra.mxu0 %v3081
    %3292 = vmatprep.subr.bf16.mxu0 %v3079
    %3293 = vmatpush2.bf16.msra.mxu0 %v3078
    %3294 = vmatprep.subr.bf16.mxu0 %v3076
    %3295 = vmatpush2.bf16.msra.mxu0 %v3075
    %3296 = vmatprep.subr.bf16.mxu0 %v3073
    %3297 = vmatpush2.bf16.msra.mxu0 %v3072
    %3298 = vmatprep.subr.bf16.mxu0 %v3070
    %3299 = vmatpush2.bf16.msra.mxu0 %v3069
    %3300 = vmatprep.subr.bf16.mxu0 %v3067
    %3301 = vmatpush2.bf16.msra.mxu0 %v3066
    %3302 = vmatprep.subr.bf16.mxu0 %v3064
    %3303 = vmatpush2.bf16.msra.mxu0 %v3063
    %3304 = vmatprep.mubr.bf16.mxu0 %v2573
    %3305 = vmatmul.mubr.bf16.gmra.mxu0 %v2572
    %v3306 = vpop.f32.mrf.mxu0
    %v3307 = vadd.f32 %v3266, %v3306
    %v3308 = vpop.f32.mrf.mxu0
    %v3309 = vadd.f32 %v3268, %v3308
    %v3310 = vpop.f32.mrf.mxu0
    %v3311 = vpop.f32.mrf.mxu0
    %3312 = vdwg.mxu0
    %3313 = vmatprep.subr.bf16.mxu0 %v3109
    %3314 = vmatpush1.bf16.msra.mxu0 %v3108
    %3315 = vmatprep.subr.bf16.mxu0 %v3106
    %3316 = vmatpush1.bf16.msra.mxu0 %v3105
    %3317 = vmatprep.subr.bf16.mxu0 %v3103
    %3318 = vmatpush1.bf16.msra.mxu0 %v3102
    %3319 = vmatprep.subr.bf16.mxu0 %v3100
    %3320 = vmatpush1.bf16.msra.mxu0 %v3099
    %3321 = vmatprep.subr.bf16.mxu0 %v3097
    %3322 = vmatpush1.bf16.msra.mxu0 %v3096
    %3323 = vmatprep.subr.bf16.mxu0 %v3094
    %3324 = vmatpush1.bf16.msra.mxu0 %v3093
    %3325 = vmatprep.subr.bf16.mxu0 %v3091
    %3326 = vmatpush1.bf16.msra.mxu0 %v3090
    %3327 = vmatprep.subr.bf16.mxu0 %v3088
    %3328 = vmatpush1.bf16.msra.mxu0 %v3087
    %3329 = vmatprep.subr.bf16.mxu0 0
    %3330 = vmatpush2.bf16.msra.mxu0 0
    %3331 = vmatprep.subr.bf16.mxu0 0
    %3332 = vmatpush2.bf16.msra.mxu0 0
    %3333 = vmatprep.subr.bf16.mxu0 0
    %3334 = vmatpush2.bf16.msra.mxu0 0
    %3335 = vmatprep.subr.bf16.mxu0 0
    %3336 = vmatpush2.bf16.msra.mxu0 0
    %3337 = vmatprep.subr.bf16.mxu0 0
    %3338 = vmatpush2.bf16.msra.mxu0 0
    %3339 = vmatprep.subr.bf16.mxu0 0
    %3340 = vmatpush2.bf16.msra.mxu0 0
    %3341 = vmatprep.subr.bf16.mxu0 0
    %3342 = vmatpush2.bf16.msra.mxu0 0
    %3343 = vmatprep.subr.bf16.mxu0 0
    %3344 = vmatpush2.bf16.msra.mxu0 0
    %3345 = vmatprep.mubr.bf16.mxu0 0
    %3346 = vmatmul.mubr.bf16.gmra.mxu0 %v2574
    %v3347 = vpop.f32.mrf.mxu0
    %v3348 = vadd.f32 %v3307, %v3347
    %v3349 = vpop.f32.mrf.mxu0
    %v3350 = vadd.f32 %v3309, %v3349
    %v3351 = vpop.f32.mrf.mxu0
    %v3352 = vpop.f32.mrf.mxu0
    %3353 = vdwg.mxu0
    %3354 = vmatprep.subr.bf16.mxu0 0
    %3355 = vmatpush1.bf16.msra.mxu0 %v3014
    %3356 = vmatprep.subr.bf16.mxu0 0
    %3357 = vmatpush1.bf16.msra.mxu0 %v3011
    %3358 = vmatprep.subr.bf16.mxu0 0
    %3359 = vmatpush1.bf16.msra.mxu0 %v3008
    %3360 = vmatprep.subr.bf16.mxu0 0
    %3361 = vmatpush1.bf16.msra.mxu0 %v3005
    %3362 = vmatprep.subr.bf16.mxu0 0
    %3363 = vmatpush1.bf16.msra.mxu0 %v3002
    %3364 = vmatprep.subr.bf16.mxu0 0
    %3365 = vmatpush1.bf16.msra.mxu0 %v2999
    %3366 = vmatprep.subr.bf16.mxu0 0
    %3367 = vmatpush1.bf16.msra.mxu0 %v2996
    %3368 = vmatprep.subr.bf16.mxu0 0
    %3369 = vmatpush1.bf16.msra.mxu0 %v2993
    %3370 = vmatprep.subr.bf16.mxu0 0
    %3371 = vmatpush2.bf16.msra.mxu0 %v3038
    %3372 = vmatprep.subr.bf16.mxu0 0
    %3373 = vmatpush2.bf16.msra.mxu0 %v3035
    %3374 = vmatprep.subr.bf16.mxu0 0
    %3375 = vmatpush2.bf16.msra.mxu0 %v3032
    %3376 = vmatprep.subr.bf16.mxu0 0
    %3377 = vmatpush2.bf16.msra.mxu0 %v3029
    %3378 = vmatprep.subr.bf16.mxu0 0
    %3379 = vmatpush2.bf16.msra.mxu0 %v3026
    %3380 = vmatprep.subr.bf16.mxu0 0
    %3381 = vmatpush2.bf16.msra.mxu0 %v3023
    %3382 = vmatprep.subr.bf16.mxu0 0
    %3383 = vmatpush2.bf16.msra.mxu0 %v3020
    %3384 = vmatprep.subr.bf16.mxu0 0
    %3385 = vmatpush2.bf16.msra.mxu0 %v3017
    %3386 = vmatprep.mubr.bf16.mxu0 %v2571
    %3387 = vmatmul.mubr.bf16.gmra.mxu0 %v2570
    %v3388 = vpop.f32.mrf.mxu0
    %v3389 = vadd.f32 %v2587, %v3388
    %v3390 = vpop.f32.mrf.mxu0
    %v3391 = vpop.f32.mrf.mxu0
    %v3392 = vpop.f32.mrf.mxu0
    %3393 = vdwg.mxu0
    %3394 = vmatprep.subr.bf16.mxu0 0
    %3395 = vmatpush1.bf16.msra.mxu0 %v3062
    %3396 = vmatprep.subr.bf16.mxu0 0
    %3397 = vmatpush1.bf16.msra.mxu0 %v3059
    %3398 = vmatprep.subr.bf16.mxu0 0
    %3399 = vmatpush1.bf16.msra.mxu0 %v3056
    %3400 = vmatprep.subr.bf16.mxu0 0
    %3401 = vmatpush1.bf16.msra.mxu0 %v3053
    %3402 = vmatprep.subr.bf16.mxu0 0
    %3403 = vmatpush1.bf16.msra.mxu0 %v3050
    %3404 = vmatprep.subr.bf16.mxu0 0
    %3405 = vmatpush1.bf16.msra.mxu0 %v3047
    %3406 = vmatprep.subr.bf16.mxu0 0
    %3407 = vmatpush1.bf16.msra.mxu0 %v3044
    %3408 = vmatprep.subr.bf16.mxu0 0
    %3409 = vmatpush1.bf16.msra.mxu0 %v3041
    %3410 = vmatprep.subr.bf16.mxu0 0
    %3411 = vmatpush2.bf16.msra.mxu0 %v3086
    %3412 = vmatprep.subr.bf16.mxu0 0
    %3413 = vmatpush2.bf16.msra.mxu0 %v3083
    %3414 = vmatprep.subr.bf16.mxu0 0
    %3415 = vmatpush2.bf16.msra.mxu0 %v3080
    %3416 = vmatprep.subr.bf16.mxu0 0
    %3417 = vmatpush2.bf16.msra.mxu0 %v3077
    %3418 = vmatprep.subr.bf16.mxu0 0
    %3419 = vmatpush2.bf16.msra.mxu0 %v3074
    %3420 = vmatprep.subr.bf16.mxu0 0
    %3421 = vmatpush2.bf16.msra.mxu0 %v3071
    %3422 = vmatprep.subr.bf16.mxu0 0
    %3423 = vmatpush2.bf16.msra.mxu0 %v3068
    %3424 = vmatprep.subr.bf16.mxu0 0
    %3425 = vmatpush2.bf16.msra.mxu0 %v3065
    %3426 = vmatprep.mubr.bf16.mxu0 %v2573
    %3427 = vmatmul.mubr.bf16.gmra.mxu0 %v2572
    %v3428 = vpop.f32.mrf.mxu0
    %v3429 = vadd.f32 %v3389, %v3428
    %v3430 = vpop.f32.mrf.mxu0
    %v3431 = vpop.f32.mrf.mxu0
    %v3432 = vpop.f32.mrf.mxu0
    %3433 = vdwg.mxu0
    %3434 = vmatprep.subr.bf16.mxu0 0
    %3435 = vmatpush1.bf16.msra.mxu0 %v3110
    %3436 = vmatprep.subr.bf16.mxu0 0
    %3437 = vmatpush1.bf16.msra.mxu0 %v3107
    %3438 = vmatprep.subr.bf16.mxu0 0
    %3439 = vmatpush1.bf16.msra.mxu0 %v3104
    %3440 = vmatprep.subr.bf16.mxu0 0
    %3441 = vmatpush1.bf16.msra.mxu0 %v3101
    %3442 = vmatprep.subr.bf16.mxu0 0
    %3443 = vmatpush1.bf16.msra.mxu0 %v3098
    %3444 = vmatprep.subr.bf16.mxu0 0
    %3445 = vmatpush1.bf16.msra.mxu0 %v3095
    %3446 = vmatprep.subr.bf16.mxu0 0
    %3447 = vmatpush1.bf16.msra.mxu0 %v3092
    %3448 = vmatprep.subr.bf16.mxu0 0
    %3449 = vmatpush1.bf16.msra.mxu0 %v3089
    %3450 = vmatprep.subr.bf16.mxu0 0
    %3451 = vmatpush2.bf16.msra.mxu0 0
    %3452 = vmatprep.subr.bf16.mxu0 0
    %3453 = vmatpush2.bf16.msra.mxu0 0
    %3454 = vmatprep.subr.bf16.mxu0 0
    %3455 = vmatpush2.bf16.msra.mxu0 0
    %3456 = vmatprep.subr.bf16.mxu0 0
    %3457 = vmatpush2.bf16.msra.mxu0 0
    %3458 = vmatprep.subr.bf16.mxu0 0
    %3459 = vmatpush2.bf16.msra.mxu0 0
    %3460 = vmatprep.subr.bf16.mxu0 0
    %3461 = vmatpush2.bf16.msra.mxu0 0
    %3462 = vmatprep.subr.bf16.mxu0 0
    %3463 = vmatpush2.bf16.msra.mxu0 0
    %3464 = vmatprep.subr.bf16.mxu0 0
    %3465 = vmatpush2.bf16.msra.mxu0 0
    %3466 = vmatprep.mubr.bf16.mxu0 0
    %3467 = vmatmul.mubr.bf16.gmra.mxu0 %v2574
    %v3468 = vpop.f32.mrf.mxu0
    %v3469 = vadd.f32 %v3429, %v3468
    %v3470 = vpop.f32.mrf.mxu0
    %v3471 = vpop.f32.mrf.mxu0
    %v3472 = vpop.f32.mrf.mxu0
    %3473 = vdwg.mxu0
    %v3474 = vmax.f32 %v3348, 0.0
    %v3475 = vmax.f32 %v3350, 0.0
    %v3476 = vmax.f32 %v3469, 0.0
    %v3477 = vld [vmem:[%s5] sm:$0xf]
    %v3478 = vld [vmem:[%s5 + $0x4] sm:$0xf]
    %v3479 = vld [vmem:[%s5 + $0x8] sm:$0xf]
    %v3480 = vld [vmem:[%s5 + $0xc] sm:$0xf]
    %v3481 = vld [vmem:[%s5 + $0x10] sm:$0xf]
    %v3482 = vld [vmem:[%s5 + $0x14] sm:$0xf]
    %v3483 = vld [vmem:[%s5 + $0x18] sm:$0xf]
    %v3484 = vld [vmem:[%s5 + $0x1c] sm:$0xf]
    %v3485 = vld [vmem:[%s5 + $0x20] sm:$0xf]
    %v3486 = vld [vmem:[%s5 + $0x24] sm:$0xf]
    %v3487 = vld [vmem:[%s5 + $0x28] sm:$0xf]
    %v3488 = vld [vmem:[%s5 + $0x2c] sm:$0xf]
    %v3489 = vld [vmem:[%s5 + $0x30] sm:$0xf]
    %v3490 = vld [vmem:[%s5 + $0x34] sm:$0xf]
    %v3491 = vld [vmem:[%s5 + $0x38] sm:$0xf]
    %v3492 = vld [vmem:[%s5 + $0x3c] sm:$0xf]
    %v3493 = vld [vmem:[%s5 + $0x40] sm:$0xf]
    %v3494 = vld [vmem:[%s5 + $0x44] sm:$0xf]
    %v3495 = vld [vmem:[%s5 + $0x48] sm:$0xf]
    %v3496 = vld [vmem:[%s5 + $0x4c] sm:$0xf]
    %v3497 = vld [vmem:[%s5 + $0x50] sm:$0xf]
    %v3498 = vld [vmem:[%s5 + $0x54] sm:$0xf]
    %v3499 = vld [vmem:[%s5 + $0x58] sm:$0xf]
    %v3500 = vld [vmem:[%s5 + $0x5c] sm:$0xf]
    %v3501 = vld [vmem:[%s5 + $0x60] sm:$0xf]
    %v3502 = vld [vmem:[%s5 + $0x64] sm:$0xf]
    %v3503 = vld [vmem:[%s5 + $0x68] sm:$0xf]
    %v3504 = vld [vmem:[%s5 + $0x6c] sm:$0xf]
    %v3505 = vld [vmem:[%s5 + $0x70] sm:$0xf]
    %v3506 = vld [vmem:[%s5 + $0x74] sm:$0xf]
    %v3507 = vld [vmem:[%s5 + $0x78] sm:$0xf]
    %v3508 = vld [vmem:[%s5 + $0x7c] sm:$0xf]
    %v3509 = vld [vmem:[%s5 + $0x80] sm:$0xf]
    %v3510 = vld [vmem:[%s5 + $0x84] sm:$0xf]
    %v3511 = vld [vmem:[%s5 + $0x88] sm:$0xf]
    %v3512 = vld [vmem:[%s5 + $0x8c] sm:$0xf]
    %v3513 = vld [vmem:[%s5 + $0x90] sm:$0xf]
    %v3514 = vld [vmem:[%s5 + $0x94] sm:$0xf]
    %v3515 = vld [vmem:[%s5 + $0x98] sm:$0xf]
    %v3516 = vld [vmem:[%s5 + $0x9c] sm:$0xf]
    %v3517 = vld [vmem:[%s5 + $0xa0] sm:$0xf]
    %v3518 = vld [vmem:[%s5 + $0xa4] sm:$0xf]
    %v3519 = vld [vmem:[%s5 + $0xa8] sm:$0xf]
    %v3520 = vld [vmem:[%s5 + $0xac] sm:$0xf]
    %v3521 = vld [vmem:[%s5 + $0xb0] sm:$0xf]
    %v3522 = vld [vmem:[%s5 + $0xb4] sm:$0xf]
    %v3523 = vld [vmem:[%s5 + $0xb8] sm:$0xf]
    %v3524 = vld [vmem:[%s5 + $0xbc] sm:$0xf]
    %v3525 = vld [vmem:[%s6] sm:$0x1]
    %v3526 = vpack.c.bf16 %v3474, %v3474
    %v3527 = vpack.c.bf16 %v3475, %v3475
    %v3528 = vpack.c.bf16 %v3476, %v3476
    %v3530 = vlaneseq
    %v3531 = vshrl.u32 %v3530, 7
    %v3532 = vsub.s32 0, %v3531
    %v3533 = vrot.slane %v3525, %v3532
    %v3583 = vunpack.c.l.b16 %v3477
    %v3584 = vunpack.c.l.b16 %v3478
    %v3585 = vunpack.c.l.b16 %v3479
    %v3586 = vunpack.c.l.b16 %v3480
    %v3587 = vunpack.c.l.b16 %v3481
    %v3588 = vunpack.c.l.b16 %v3482
    %v3589 = vunpack.c.l.b16 %v3483
    %v3590 = vunpack.c.l.b16 %v3484
    %v3591 = vunpack.c.l.b16 %v3485
    %v3592 = vunpack.c.l.b16 %v3486
    %v3593 = vunpack.c.l.b16 %v3487
    %v3594 = vunpack.c.l.b16 %v3488
    %v3595 = vunpack.c.l.b16 %v3489
    %v3596 = vunpack.c.l.b16 %v3490
    %v3597 = vunpack.c.l.b16 %v3491
    %v3598 = vunpack.c.l.b16 %v3492
    %v3599 = vunpack.c.l.b16 %v3493
    %v3600 = vunpack.c.l.b16 %v3494
    %v3601 = vunpack.c.l.b16 %v3495
    %v3602 = vunpack.c.l.b16 %v3496
    %v3603 = vunpack.c.l.b16 %v3497
    %v3604 = vunpack.c.l.b16 %v3498
    %v3605 = vunpack.c.l.b16 %v3499
    %v3606 = vunpack.c.l.b16 %v3500
    %v3607 = vunpack.c.l.b16 %v3501
    %v3608 = vunpack.c.l.b16 %v3502
    %v3609 = vunpack.c.l.b16 %v3503
    %v3610 = vunpack.c.l.b16 %v3504
    %v3611 = vunpack.c.l.b16 %v3505
    %v3612 = vunpack.c.l.b16 %v3506
    %v3613 = vunpack.c.l.b16 %v3507
    %v3614 = vunpack.c.l.b16 %v3508
    %v3615 = vunpack.c.l.b16 %v3509
    %v3616 = vunpack.c.l.b16 %v3510
    %v3617 = vunpack.c.l.b16 %v3511
    %v3618 = vunpack.c.l.b16 %v3512
    %v3619 = vunpack.c.l.b16 %v3513
    %v3620 = vunpack.c.l.b16 %v3514
    %v3621 = vunpack.c.l.b16 %v3515
    %v3622 = vunpack.c.l.b16 %v3516
    %v3623 = vunpack.c.l.b16 %v3517
    %v3624 = vunpack.c.l.b16 %v3518
    %v3625 = vunpack.c.l.b16 %v3519
    %v3626 = vunpack.c.l.b16 %v3520
    %v3627 = vunpack.c.l.b16 %v3521
    %v3628 = vunpack.c.l.b16 %v3522
    %v3629 = vunpack.c.l.b16 %v3523
    %v3630 = vunpack.c.l.b16 %v3524
    %v3631 = vpack.c.b16 %v3584, %v3583
    %v3632 = vpack.c.b16 %v3586, %v3585
    %v3633 = vpack.c.b16 %v3588, %v3587
    %v3634 = vpack.c.b16 %v3590, %v3589
    %v3635 = vpack.c.b16 %v3592, %v3591
    %v3636 = vpack.c.b16 %v3594, %v3593
    %v3637 = vpack.c.b16 %v3596, %v3595
    %v3638 = vpack.c.b16 %v3598, %v3597
    %v3639 = vpack.c.b16 %v3600, %v3599
    %v3640 = vpack.c.b16 %v3602, %v3601
    %v3641 = vpack.c.b16 %v3604, %v3603
    %v3642 = vpack.c.b16 %v3606, %v3605
    %v3643 = vpack.c.b16 %v3608, %v3607
    %v3644 = vpack.c.b16 %v3610, %v3609
    %v3645 = vpack.c.b16 %v3612, %v3611
    %v3646 = vpack.c.b16 %v3614, %v3613
    %v3647 = vpack.c.b16 %v3616, %v3615
    %v3648 = vpack.c.b16 %v3618, %v3617
    %v3649 = vpack.c.b16 %v3620, %v3619
    %v3650 = vpack.c.b16 %v3622, %v3621
    %v3651 = vpack.c.b16 %v3624, %v3623
    %v3652 = vpack.c.b16 %v3626, %v3625
    %v3653 = vpack.c.b16 %v3628, %v3627
    %v3654 = vpack.c.b16 %v3630, %v3629
    %3679 = vmatprep.subr.bf16.mxu0 0
    %3680 = vmatpush1.bf16.msra.mxu0 %v3638
    %3681 = vmatprep.subr.bf16.mxu0 0
    %3682 = vmatpush1.bf16.msra.mxu0 %v3637
    %3683 = vmatprep.subr.bf16.mxu0 0
    %3684 = vmatpush1.bf16.msra.mxu0 %v3636
    %3685 = vmatprep.subr.bf16.mxu0 0
    %3686 = vmatpush1.bf16.msra.mxu0 %v3635
    %3687 = vmatprep.subr.bf16.mxu0 0
    %3688 = vmatpush1.bf16.msra.mxu0 %v3634
    %3689 = vmatprep.subr.bf16.mxu0 0
    %3690 = vmatpush1.bf16.msra.mxu0 %v3633
    %3691 = vmatprep.subr.bf16.mxu0 0
    %3692 = vmatpush1.bf16.msra.mxu0 %v3632
    %3693 = vmatprep.subr.bf16.mxu0 0
    %3694 = vmatpush1.bf16.msra.mxu0 %v3631
    %3695 = vmatprep.subr.bf16.mxu0 0
    %3696 = vmatpush2.bf16.msra.mxu0 %v3646
    %3697 = vmatprep.subr.bf16.mxu0 0
    %3698 = vmatpush2.bf16.msra.mxu0 %v3645
    %3699 = vmatprep.subr.bf16.mxu0 0
    %3700 = vmatpush2.bf16.msra.mxu0 %v3644
    %3701 = vmatprep.subr.bf16.mxu0 0
    %3702 = vmatpush2.bf16.msra.mxu0 %v3643
    %3703 = vmatprep.subr.bf16.mxu0 0
    %3704 = vmatpush2.bf16.msra.mxu0 %v3642
    %3705 = vmatprep.subr.bf16.mxu0 0
    %3706 = vmatpush2.bf16.msra.mxu0 %v3641
    %3707 = vmatprep.subr.bf16.mxu0 0
    %3708 = vmatpush2.bf16.msra.mxu0 %v3640
    %3709 = vmatprep.subr.bf16.mxu0 0
    %3710 = vmatpush2.bf16.msra.mxu0 %v3639
    %3711 = vmatprep.mubr.bf16.mxu0 %v3527
    %3712 = vmatmul.mubr.bf16.gmra.mxu0 %v3526
    %v3713 = vpop.f32.mrf.mxu0
    %v3714 = vadd.f32 %v3533, %v3713
    %v3715 = vpop.f32.mrf.mxu0
    %v3716 = vpop.f32.mrf.mxu0
    %v3717 = vpop.f32.mrf.mxu0
    %3718 = vdwg.mxu0
    %3719 = vmatprep.subr.bf16.mxu0 0
    %3720 = vmatpush1.bf16.msra.mxu0 %v3654
    %3721 = vmatprep.subr.bf16.mxu0 0
    %3722 = vmatpush1.bf16.msra.mxu0 %v3653
    %3723 = vmatprep.subr.bf16.mxu0 0
    %3724 = vmatpush1.bf16.msra.mxu0 %v3652
    %3725 = vmatprep.subr.bf16.mxu0 0
    %3726 = vmatpush1.bf16.msra.mxu0 %v3651
    %3727 = vmatprep.subr.bf16.mxu0 0
    %3728 = vmatpush1.bf16.msra.mxu0 %v3650
    %3729 = vmatprep.subr.bf16.mxu0 0
    %3730 = vmatpush1.bf16.msra.mxu0 %v3649
    %3731 = vmatprep.subr.bf16.mxu0 0
    %3732 = vmatpush1.bf16.msra.mxu0 %v3648
    %3733 = vmatprep.subr.bf16.mxu0 0
    %3734 = vmatpush1.bf16.msra.mxu0 %v3647
    %3735 = vmatprep.subr.bf16.mxu0 0
    %3736 = vmatpush2.bf16.msra.mxu0 0
    %3737 = vmatprep.subr.bf16.mxu0 0
    %3738 = vmatpush2.bf16.msra.mxu0 0
    %3739 = vmatprep.subr.bf16.mxu0 0
    %3740 = vmatpush2.bf16.msra.mxu0 0
    %3741 = vmatprep.subr.bf16.mxu0 0
    %3742 = vmatpush2.bf16.msra.mxu0 0
    %3743 = vmatprep.subr.bf16.mxu0 0
    %3744 = vmatpush2.bf16.msra.mxu0 0
    %3745 = vmatprep.subr.bf16.mxu0 0
    %3746 = vmatpush2.bf16.msra.mxu0 0
    %3747 = vmatprep.subr.bf16.mxu0 0
    %3748 = vmatpush2.bf16.msra.mxu0 0
    %3749 = vmatprep.subr.bf16.mxu0 0
    %3750 = vmatpush2.bf16.msra.mxu0 0
    %3751 = vmatprep.mubr.bf16.mxu0 0
    %3752 = vmatmul.mubr.bf16.gmra.mxu0 %v3528
    %v3753 = vpop.f32.mrf.mxu0
    %v3754 = vadd.f32 %v3714, %v3753
    %v3755 = vpop.f32.mrf.mxu0
    %v3756 = vpop.f32.mrf.mxu0
    %v3757 = vpop.f32.mrf.mxu0
    %3758 = vdwg.mxu0
    %v3759 = vmax.f32 %v3754, 0.0
    %v3760 = vld [vmem:[%s7] sm:$0xf]
    %v3761 = vld [vmem:[%s7 + $0x4] sm:$0xf]
    %v3762 = vld [vmem:[%s7 + $0x8] sm:$0xf]
    %v3763 = vld [vmem:[%s7 + $0xc] sm:$0xf]
    %v3764 = vld [vmem:[%s7 + $0x10] sm:$0xf]
    %v3765 = vld [vmem:[%s7 + $0x14] sm:$0xf]
    %v3766 = vld [vmem:[%s7 + $0x18] sm:$0xf]
    %v3767 = vld [vmem:[%s7 + $0x1c] sm:$0xf]
    %v3768 = vld [vmem:[%s7 + $0x20] sm:$0xf]
    %v3769 = vld [vmem:[%s7 + $0x24] sm:$0xf]
    %v3770 = vld [vmem:[%s7 + $0x28] sm:$0xf]
    %v3771 = vld [vmem:[%s7 + $0x2c] sm:$0xf]
    %v3772 = vld [vmem:[%s7 + $0x30] sm:$0xf]
    %v3773 = vld [vmem:[%s7 + $0x34] sm:$0xf]
    %v3774 = vld [vmem:[%s7 + $0x38] sm:$0xf]
    %v3775 = vld [vmem:[%s8] sm:$0x1]
    %v3776 = vpack.c.bf16 %v3759, %v3759
    %v3778 = vlaneseq
    %v3779 = vshrl.u32 %v3778, 7
    %v3780 = vsub.s32 0, %v3779
    %v3781 = vrot.slane %v3775, %v3780
    %v3798 = vunpack.c.l.b16 %v3760
    %v3799 = vunpack.c.l.b16 %v3761
    %v3800 = vunpack.c.l.b16 %v3762
    %v3801 = vunpack.c.l.b16 %v3763
    %v3802 = vunpack.c.l.b16 %v3764
    %v3803 = vunpack.c.l.b16 %v3765
    %v3804 = vunpack.c.l.b16 %v3766
    %v3805 = vunpack.c.l.b16 %v3767
    %v3806 = vunpack.c.l.b16 %v3768
    %v3807 = vunpack.c.l.b16 %v3769
    %v3808 = vunpack.c.l.b16 %v3770
    %v3809 = vunpack.c.l.b16 %v3771
    %v3810 = vunpack.c.l.b16 %v3772
    %v3811 = vunpack.c.l.b16 %v3773
    %v3812 = vunpack.c.l.b16 %v3774
    %v3813 = vpack.c.b16 %v3799, %v3798
    %v3814 = vpack.c.b16 %v3801, %v3800
    %v3815 = vpack.c.b16 %v3803, %v3802
    %v3816 = vpack.c.b16 %v3805, %v3804
    %v3817 = vpack.c.b16 %v3807, %v3806
    %v3818 = vpack.c.b16 %v3809, %v3808
    %v3819 = vpack.c.b16 %v3811, %v3810
    %v3820 = vpack.c.b16 %v3812, %v3812
    %vm3828 = vcmask 982016
    %v3830 = vsel %vm3828, %v3776, 0
    %vm3832 = vcmask 1043456
    %v3834 = vsel %vm3832, %v3820, 0
    %3836 = vmatprep.subr.bf16.mxu0 0
    %3837 = vmatpush1.bf16.msra.mxu0 %v3834
    %3838 = vmatprep.subr.bf16.mxu0 0
    %3839 = vmatpush1.bf16.msra.mxu0 %v3819
    %3840 = vmatprep.subr.bf16.mxu0 0
    %3841 = vmatpush1.bf16.msra.mxu0 %v3818
    %3842 = vmatprep.subr.bf16.mxu0 0
    %3843 = vmatpush1.bf16.msra.mxu0 %v3817
    %3844 = vmatprep.subr.bf16.mxu0 0
    %3845 = vmatpush1.bf16.msra.mxu0 %v3816
    %3846 = vmatprep.subr.bf16.mxu0 0
    %3847 = vmatpush1.bf16.msra.mxu0 %v3815
    %3848 = vmatprep.subr.bf16.mxu0 0
    %3849 = vmatpush1.bf16.msra.mxu0 %v3814
    %3850 = vmatprep.subr.bf16.mxu0 0
    %3851 = vmatpush1.bf16.msra.mxu0 %v3813
    %3852 = vmatprep.subr.bf16.mxu0 0
    %3853 = vmatpush2.bf16.msra.mxu0 0
    %3854 = vmatprep.subr.bf16.mxu0 0
    %3855 = vmatpush2.bf16.msra.mxu0 0
    %3856 = vmatprep.subr.bf16.mxu0 0
    %3857 = vmatpush2.bf16.msra.mxu0 0
    %3858 = vmatprep.subr.bf16.mxu0 0
    %3859 = vmatpush2.bf16.msra.mxu0 0
    %3860 = vmatprep.subr.bf16.mxu0 0
    %3861 = vmatpush2.bf16.msra.mxu0 0
    %3862 = vmatprep.subr.bf16.mxu0 0
    %3863 = vmatpush2.bf16.msra.mxu0 0
    %3864 = vmatprep.subr.bf16.mxu0 0
    %3865 = vmatpush2.bf16.msra.mxu0 0
    %3866 = vmatprep.subr.bf16.mxu0 0
    %3867 = vmatpush2.bf16.msra.mxu0 0
    %3868 = vmatprep.mubr.bf16.mxu0 0
    %3869 = vmatmul.mubr.bf16.gmra.mxu0 %v3830
    %v3870 = vpop.f32.mrf.mxu0
    %v3871 = vadd.f32 %v3781, %v3870
    %v3872 = vpop.f32.mrf.mxu0
    %v3873 = vpop.f32.mrf.mxu0
    %v3874 = vpop.f32.mrf.mxu0
    %3875 = vdwg.mxu0
    %v3876 = vmax.f32 %v3871, 0.0
    %v3877 = vld [vmem:[%s9] sm:$0xf]
    %v3878 = vld [vmem:[%s9 + $0x4] sm:$0xf]
    %v3879 = vld [vmem:[%s9 + $0x8] sm:$0xf]
    %v3880 = vld [vmem:[%s9 + $0xc] sm:$0xf]
    %v3881 = vld [vmem:[%s9 + $0x10] sm:$0xf]
    %v3882 = vld [vmem:[%s9 + $0x14] sm:$0xf]
    %v3883 = vld [vmem:[%s9 + $0x18] sm:$0x1]
    %v3884 = vld [vmem:[%s10] sm:$0x1]
    %v3885 = vpack.c.bf16 %v3876, %v3876
    %v3887 = vlaneseq
    %v3888 = vshrl.u32 %v3887, 7
    %v3889 = vsub.s32 0, %v3888
    %v3890 = vrot.slane %v3884, %v3889
    %v3899 = vunpack.c.l.b16 %v3877
    %v3900 = vunpack.c.l.b16 %v3878
    %v3901 = vunpack.c.l.b16 %v3879
    %v3902 = vunpack.c.l.b16 %v3880
    %v3903 = vunpack.c.l.b16 %v3881
    %v3904 = vunpack.c.l.b16 %v3882
    %v3905 = vunpack.c.l.b16 %v3883
    %v3906 = vpack.c.b16 %v3900, %v3899
    %v3907 = vpack.c.b16 %v3902, %v3901
    %v3908 = vpack.c.b16 %v3904, %v3903
    %v3909 = vpack.c.b16 %v3905, %v3905
    %vm3913 = vcmask 408576
    %v3915 = vsel %vm3913, %v3885, 0
    %vm3917 = vcmask 1040384
    %v3919 = vsel %vm3917, %v3909, 0
    %3921 = vmatprep.subr.bf16.mxu0 0
    %3922 = vmatpush1.bf16.msra.mxu0 0
    %3923 = vmatprep.subr.bf16.mxu0 0
    %3924 = vmatpush1.bf16.msra.mxu0 0
    %3925 = vmatprep.subr.bf16.mxu0 0
    %3926 = vmatpush1.bf16.msra.mxu0 0
    %3927 = vmatprep.subr.bf16.mxu0 0
    %3928 = vmatpush1.bf16.msra.mxu0 0
    %3929 = vmatprep.subr.bf16.mxu0 0
    %3930 = vmatpush1.bf16.msra.mxu0 %v3919
    %3931 = vmatprep.subr.bf16.mxu0 0
    %3932 = vmatpush1.bf16.msra.mxu0 %v3908
    %3933 = vmatprep.subr.bf16.mxu0 0
    %3934 = vmatpush1.bf16.msra.mxu0 %v3907
    %3935 = vmatprep.subr.bf16.mxu0 0
    %3936 = vmatpush1.bf16.msra.mxu0 %v3906
    %3937 = vmatprep.subr.bf16.mxu0 0
    %3938 = vmatpush2.bf16.msra.mxu0 0
    %3939 = vmatprep.subr.bf16.mxu0 0
    %3940 = vmatpush2.bf16.msra.mxu0 0
    %3941 = vmatprep.subr.bf16.mxu0 0
    %3942 = vmatpush2.bf16.msra.mxu0 0
    %3943 = vmatprep.subr.bf16.mxu0 0
    %3944 = vmatpush2.bf16.msra.mxu0 0
    %3945 = vmatprep.subr.bf16.mxu0 0
    %3946 = vmatpush2.bf16.msra.mxu0 0
    %3947 = vmatprep.subr.bf16.mxu0 0
    %3948 = vmatpush2.bf16.msra.mxu0 0
    %3949 = vmatprep.subr.bf16.mxu0 0
    %3950 = vmatpush2.bf16.msra.mxu0 0
    %3951 = vmatprep.subr.bf16.mxu0 0
    %3952 = vmatpush2.bf16.msra.mxu0 0
    %3953 = vmatprep.mubr.bf16.mxu0 0
    %3954 = vmatmul.mubr.bf16.gmra.mxu0 %v3915
    %v3955 = vpop.f32.mrf.mxu0
    %v3956 = vadd.f32 %v3890, %v3955
    %v3957 = vpop.f32.mrf.mxu0
    %v3958 = vpop.f32.mrf.mxu0
    %v3959 = vpop.f32.mrf.mxu0
    %3960 = vdwg.mxu0
    %v3961 = vmax.f32 %v3956, 0.0
    %v3962 = vld [vmem:[%s11] sm:$0xf]
    %v3963 = vld [vmem:[%s11 + $0x4] sm:$0xf]
    %v3964 = vld [vmem:[%s11 + $0x8] sm:$0x3]
    %v3965 = vld [vmem:[%s12] sm:$0x1]
    %v3966 = vpack.c.bf16 %v3961, %v3961
    %v3968 = vlaneseq
    %v3969 = vshrl.u32 %v3968, 7
    %v3970 = vsub.s32 0, %v3969
    %v3971 = vrot.slane %v3965, %v3970
    %v3976 = vunpack.c.l.b16 %v3962
    %v3977 = vunpack.c.l.b16 %v3963
    %v3978 = vunpack.c.l.b16 %v3964
    %v3979 = vpack.c.b16 %v3977, %v3976
    %v3980 = vpack.c.b16 %v3978, %v3978
    %vm3982 = vcmask 162816
    %v3984 = vsel %vm3982, %v3966, 0
    %vm3986 = vcmask 1041408
    %v3988 = vsel %vm3986, %v3980, 0
    %3990 = vmatprep.subr.bf16.mxu0 0
    %3991 = vmatpush1.bf16.msra.mxu0 0
    %3992 = vmatprep.subr.bf16.mxu0 0
    %3993 = vmatpush1.bf16.msra.mxu0 0
    %3994 = vmatprep.subr.bf16.mxu0 0
    %3995 = vmatpush1.bf16.msra.mxu0 0
    %3996 = vmatprep.subr.bf16.mxu0 0
    %3997 = vmatpush1.bf16.msra.mxu0 0
    %3998 = vmatprep.subr.bf16.mxu0 0
    %3999 = vmatpush1.bf16.msra.mxu0 0
    %4000 = vmatprep.subr.bf16.mxu0 0
    %4001 = vmatpush1.bf16.msra.mxu0 0
    %4002 = vmatprep.subr.bf16.mxu0 0
    %4003 = vmatpush1.bf16.msra.mxu0 %v3988
    %4004 = vmatprep.subr.bf16.mxu0 0
    %4005 = vmatpush1.bf16.msra.mxu0 %v3979
    %4006 = vmatprep.subr.bf16.mxu0 0
    %4007 = vmatpush2.bf16.msra.mxu0 0
    %4008 = vmatprep.subr.bf16.mxu0 0
    %4009 = vmatpush2.bf16.msra.mxu0 0
    %4010 = vmatprep.subr.bf16.mxu0 0
    %4011 = vmatpush2.bf16.msra.mxu0 0
    %4012 = vmatprep.subr.bf16.mxu0 0
    %4013 = vmatpush2.bf16.msra.mxu0 0
    %4014 = vmatprep.subr.bf16.mxu0 0
    %4015 = vmatpush2.bf16.msra.mxu0 0
    %4016 = vmatprep.subr.bf16.mxu0 0
    %4017 = vmatpush2.bf16.msra.mxu0 0
    %4018 = vmatprep.subr.bf16.mxu0 0
    %4019 = vmatpush2.bf16.msra.mxu0 0
    %4020 = vmatprep.subr.bf16.mxu0 0
    %4021 = vmatpush2.bf16.msra.mxu0 0
    %4022 = vmatprep.mubr.bf16.mxu0 0
    %4023 = vmatmul.mubr.bf16.gmra.mxu0 %v3984
    %v4024 = vpop.f32.mrf.mxu0
    %v4025 = vadd.f32 %v3971, %v4024
    %v4026 = vpop.f32.mrf.mxu0
    %v4027 = vpop.f32.mrf.mxu0
    %v4028 = vpop.f32.mrf.mxu0
    %4029 = vdwg.mxu0
    %vm4030 = vcmask 9216
    %v4031 = vsel %vm4030, %v4025, -inf
    %4032 = vmax.xlane.f32.xlu0 %v4031
    %v4033 = vpop.xlane.xlu0 %4032
    %v4034 = vsub.f32 %v4025, %v4033
    %v4035 = vmul.f32 %v4034, 1.442695
    %v4036 = vpow.pop %v4035
    %v4037 = vsel %vm4030, %v4036, 0.0
    %4038 = vadd.xlane.f32.xlu0 %v4037
    %v4039 = vpop.xlane.xlu0 %4038
    %v4040 = vrcp.pop %v4039
    %v4041 = vmul.f32 %v4036, %v4040
    %4042 = vst.msk [vmem:[#allocation2] sm:$0x3] %vm4030, %v4041
    // Predicated region
    $region54: #{rerank_forward.11} parent=1 // pred_check
      _
    $region55: #{rerank_forward.11} parent=1 // pred_check_branch
      %4044 = sbr.rel (0) target = $region57
    $region56: #{rerank_forward.11} parent=1 // pred_region
      %s4046 = ssub.s32 32, 32
      %4047 = vsyncadd [#allocation3], %s4046
      %s4049 = sshll.u32 [#allocation2], 4
      %s4050 = int_to_ptr.vmem [resolvable:$true] %s4049
      %4052 = dma.vmem_to_hbm [thread:$0]  %s4050, 32, %s13, [#allocation3]
    $region57: #{rerank_forward.11} parent=1 // pred_fallthru
      _
    // Predicated region
    $region58: #{rerank_forward.11} parent=1 // pred_check
      _
    $region59: #{rerank_forward.11} parent=1 // pred_check_branch
      %4054 = sbr.rel (0) target = $region61
    $region60: #{rerank_forward.11} parent=1 // pred_region
      %4055 = dma.done [#allocation3], 32
    $region61: #{rerank_forward.11} parent=1 // pred_fallthru
      _
    %4056 = vsyncpa [#allocation3], 1

</llo_original>
